<compile_context>
chip_gen: v7x
topology: tpu7x:2x2x1
jax: 0.10.0
libtpu: 0.0.40
codegen_flags: <defaults>
</compile_context>

<pallas_src>
import functools

import jax
import jax.numpy as jnp
from jax.experimental import pallas as pl
from jax.experimental.pallas import tpu as pltpu

F32 = jnp.float32
BF16 = jnp.bfloat16
LN_EPS = 1e-5
# Explicit scoped-VMEM budget; safe on v5e/v6e (128 MiB physical) and v7x (64 MiB physical).
VMEM_LIMIT = 48 * 1024 * 1024


def _cparams():
    return pltpu.CompilerParams(dimension_semantics=("parallel",),
                                vmem_limit_bytes=VMEM_LIMIT)


# ----------------------------------------------------------------------------- in-kernel helpers

def _ln(x, g, b):
    """LayerNorm over the last dim (eps = 1e-5, like nn.LayerNorm)."""
    mu = jnp.mean(x, axis=-1, keepdims=True)
    var = jnp.mean((x - mu) ** 2, axis=-1, keepdims=True)
    return (x - mu) * jax.lax.rsqrt(var + LN_EPS) * g + b


def _gelu(x):
    # TODO(synk): PyTorch nn.GELU default is the exact erf form; tanh approximation used here.
    return jax.nn.gelu(x, approximate=True)


def _mm(a_f32, w_bf16):
    """bf16 MXU inputs, f32 accumulation."""
    return jnp.dot(a_f32.astype(BF16), w_bf16, preferred_element_type=F32)


# ----------------------------------------------------------------------------- kernels
# All kernels operate on one full sequence per grid step: block = (seq, feature).

def _encoder_embed_kernel(xp_ref, g1, b1, w_ref, b_ref, g2, b2, pos_ref, o_ref):
    """Patch embedding: LN(patch_dim) -> Linear -> LN(width) -> + pos (pos block == tile)."""
    h = _ln(xp_ref[...], g1[...], b1[...])
    h = _mm(h, w_ref[...]) + b_ref[...]
    h = _ln(h, g2[...], b2[...])
    o_ref[...] = (h + pos_ref[...]).astype(o_ref.dtype)


def _block_kernel(x_ref, ln1_g, ln1_b, wq_ref, wk_ref, wv_ref, bq_ref, bk_ref, bv_ref,
                  wo_ref, bo_ref, ln2_g, ln2_b, w1_ref, b1_ref, w2_ref, b2_ref, o_ref,
                  *, heads, dim_head):
    """Fused transformer block on one (seq, width) tile: x += Attn(LN(x)); x += MLP(LN(x)).

    Q/K/V and the out-projection are single lane-dense matmuls over all heads (weights
    packed (W, H*Dh) / (H*Dh, W)); only the Dh-deep score/context matmuls run per head.
    TODO(synk): at realistic head counts (12+) switch the static head loop to a batched
    einsum / fori_loop(unroll=True) to bound vreg live ranges.
    """
    x = x_ref[...].astype(F32)                              # (N, W) f32 residual stream
    scale = dim_head ** -0.5

    # ---- attention ----
    h16 = _ln(x, ln1_g[...], ln1_b[...]).astype(BF16)
    q = jnp.dot(h16, wq_ref[...], preferred_element_type=F32) + bq_ref[...]   # (N, H*Dh)
    k = jnp.dot(h16, wk_ref[...], preferred_element_type=F32) + bk_ref[...]
    v = jnp.dot(h16, wv_ref[...], preferred_element_type=F32) + bv_ref[...]
    ctx = []
    for hd in range(heads):                                 # static unroll (tiny at toy scale)
        sl = slice(hd * dim_head, (hd + 1) * dim_head)
        qh = q[:, sl].astype(BF16)
        kh = k[:, sl].astype(BF16)
        vh = v[:, sl].astype(BF16)
        s = jnp.einsum("qd,kd->qk", qh, kh, preferred_element_type=F32) * scale
        s = s - jnp.max(s, axis=-1, keepdims=True)          # softmax stays f32
        p = jnp.exp(s)
        p = p * pl.reciprocal(jnp.sum(p, axis=-1, keepdims=True), approx=True)
        ctx.append(jnp.dot(p.astype(BF16), vh, preferred_element_type=F32))
    ctx16 = jnp.concatenate(ctx, axis=1).astype(BF16)       # (N, H*Dh) lane-dense
    x = x + jnp.dot(ctx16, wo_ref[...], preferred_element_type=F32) + bo_ref[...]

    # ---- MLP ----
    h2 = _ln(x, ln2_g[...], ln2_b[...])
    m = _gelu(_mm(h2, w1_ref[...]) + b1_ref[...])
    m = _mm(m, w2_ref[...]) + b2_ref[...]
    o_ref[...] = (x + m).astype(o_ref.dtype)


def _encode_vq_kernel(h_ref, ng, nb, pw_ref, pb_ref, emb_hi_ref, emb_lo_ref, emb_t_ref,
                      e2_ref, q_ref, idx_ref, sse_ref):
    """Encoder head (LN + projection to latent) fused with vector quantization."""
    h = _ln(h_ref[...].astype(F32), ng[...], nb[...])
    z = _mm(h, pw_ref[...]) + pb_ref[...]                    # (N, D) f32 latents
    num_e = e2_ref.shape[-1]

    z2 = jnp.sum(z * z, axis=1, keepdims=True)               # (N, 1)
    cross = jnp.dot(z.astype(BF16), emb_t_ref[...], preferred_element_type=F32)  # (N, E)
    d = z2 + e2_ref[...] - 2.0 * cross                       # (N, E) squared distances

    ids = jax.lax.broadcasted_iota(jnp.int32, d.shape, 1)
    dmin = jnp.min(d, axis=1, keepdims=True)
    idx = jnp.min(jnp.where(d <= dmin, ids, num_e), axis=1, keepdims=True)   # first argmin
    idx = jnp.minimum(idx, num_e - 1)                        # guard sentinel (NaN/inf rows)
    onehot = (ids == idx).astype(BF16)                       # 0/1 exactly representable in bf16
    # bf16-hi/lo split of the codebook: two bf16 MXU passes reproduce the f32 rows ~exactly,
    # avoiding a multi-pass f32xf32 MXU matmul.
    quant = (jnp.dot(onehot, emb_hi_ref[...], preferred_element_type=F32)
             + jnp.dot(onehot, emb_lo_ref[...], preferred_element_type=F32))

    q_ref[...] = quant
    idx_ref[...] = idx
    diff = quant - z
    sse_ref[0] = jnp.sum(diff * diff, keepdims=True)         # per-batch partial SSE


def _decoder_embed_kernel(z_ref, w_ref, b_ref, pos_ref, o_ref):
    """Decoder projection (latent -> width) + positional embedding (pos block == tile)."""
    h = _mm(z_ref[...], w_ref[...]) + b_ref[...]
    o_ref[...] = (h + pos_ref[...]).astype(o_ref.dtype)


def _decoder_head_kernel(h_ref, ng, nb, w_ref, b_ref, xp_ref, o_ref, sse_ref):
    """Decoder head (LN + output linear) fused with the reconstruction SSE."""
    h = _ln(h_ref[...].astype(F32), ng[...], nb[...])
    r = _mm(h, w_ref[...]) + b_ref[...]                      # (N, patch_dim)
    o_ref[...] = r
    d = r - xp_ref[...]                                      # SSE is permutation-invariant
    sse_ref[0] = jnp.sum(d * d, keepdims=True)


# ----------------------------------------------------------------------------- wrappers

def transformer_block(x2d, p, *, batch, seq, heads, dim_head, width, mlp_dim):
    m = batch * seq
    hd = heads * dim_head

    def wspec(shape):
        return pl.BlockSpec(shape, lambda i: (0,) * len(shape))

    flops = int(2 * m * width * 3 * hd            # QKV
                + 4 * batch * heads * seq * seq * dim_head   # scores + context
                + 2 * m * hd * width              # out-projection
                + 4 * m * width * mlp_dim)        # MLP
    trans = int(batch * heads * seq * seq + m * mlp_dim)
    wbytes = 2 * (3 * width * hd + hd * width + 2 * width * mlp_dim)
    bytes_accessed = int(2 * (m * width * 2) + wbytes)

    return pl.pallas_call(
        functools.partial(_block_kernel, heads=heads, dim_head=dim_head),
        grid=(batch,),
        in_specs=[
            pl.BlockSpec((seq, width), lambda i: (i, 0)),
            wspec((1, width)), wspec((1, width)),
            wspec((width, hd)), wspec((width, hd)), wspec((width, hd)),
            wspec((1, hd)), wspec((1, hd)), wspec((1, hd)),
            wspec((hd, width)), wspec((1, width)),
            wspec((1, width)), wspec((1, width)),
            wspec((width, mlp_dim)), wspec((1, mlp_dim)),
            wspec((mlp_dim, width)), wspec((1, width)),
        ],
        out_specs=pl.BlockSpec((seq, width), lambda i: (i, 0)),
        out_shape=jax.ShapeDtypeStruct((m, width), BF16),
        input_output_aliases={0: 0},              # residual stream reuses its HBM buffer
        cost_estimate=pl.CostEstimate(flops=flops, transcendentals=trans,
                                      bytes_accessed=bytes_accessed),
        compiler_params=_cparams(),
    )(x2d, p["ln1_g"], p["ln1_b"], p["wq"], p["wk"], p["wv"], p["bq"], p["bk"], p["bv"],
      p["w_o"], p["b_o"], p["ln2_g"], p["ln2_b"], p["w1"], p["b1"], p["w2"], p["b2"])


def vqvae_forward(params, x, cfg):
    b, c, t = x.shape
    ps = cfg["patch_size"]
    n = t // ps
    m = b * n
    patch_dim = ps * c
    ew, dw, ld = cfg["encoder_width"], cfg["decoder_width"], cfg["latent_dim"]
    num_e = cfg["num_embeddings"]

    # Rearrange 'b c (n p) -> b n (p c)' (once, host XLA).
    xp = x.reshape(b, c, n, ps).transpose(0, 2, 3, 1).reshape(m, patch_dim)

    # -------- encoder embed --------
    enc = params["encoder"]
    h = pl.pallas_call(
        _encoder_embed_kernel,
        grid=(b,),
        in_specs=[
            pl.BlockSpec((n, patch_dim), lambda i: (i, 0)),
            pl.BlockSpec((1, patch_dim), lambda i: (0, 0)),
            pl.BlockSpec((1, patch_dim), lambda i: (0, 0)),
            pl.BlockSpec((patch_dim, ew), lambda i: (0, 0)),
            pl.BlockSpec((1, ew), lambda i: (0, 0)),
            pl.BlockSpec((1, ew), lambda i: (0, 0)),
            pl.BlockSpec((1, ew), lambda i: (0, 0)),
            pl.BlockSpec((n, ew), lambda i: (0, 0)),
        ],
        out_specs=pl.BlockSpec((n, ew), lambda i: (i, 0)),
        out_shape=jax.ShapeDtypeStruct((m, ew), BF16),
        compiler_params=_cparams(),
    )(xp, enc["pe_ln1_g"], enc["pe_ln1_b"], enc["pe_w"], enc["pe_b"],
      enc["pe_ln2_g"], enc["pe_ln2_b"], enc["pos"])

    for blk in enc["blocks"]:
        h = transformer_block(h, blk, batch=b, seq=n, heads=cfg["num_heads"],
                              dim_head=cfg["dim_head"], width=ew,
                              mlp_dim=ew * cfg["mlp_ratio"])

    # -------- encoder head + vector quantization (fused) --------
    quant, indices, vq_sse = pl.pallas_call(
        _encode_vq_kernel,
        grid=(b,),
        in_specs=[
            pl.BlockSpec((n, ew), lambda i: (i, 0)),
            pl.BlockSpec((1, ew), lambda i: (0, 0)),
            pl.BlockSpec((1, ew), lambda i: (0, 0)),
            pl.BlockSpec((ew, ld), lambda i: (0, 0)),
            pl.BlockSpec((1, ld), lambda i: (0, 0)),
            pl.BlockSpec((num_e, ld), lambda i: (0, 0)),
            pl.BlockSpec((num_e, ld), lambda i: (0, 0)),
            pl.BlockSpec((ld, num_e), lambda i: (0, 0)),
            pl.BlockSpec((1, num_e), lambda i: (0, 0)),
        ],
        out_specs=(
            pl.BlockSpec((n, ld), lambda i: (i, 0)),
            pl.BlockSpec((n, 1), lambda i: (i, 0)),
            pl.BlockSpec((1, 1, 1), lambda i: (i, 0, 0)),
        ),
        out_shape=(
            jax.ShapeDtypeStruct((m, ld), F32),
            jax.ShapeDtypeStruct((m, 1), jnp.int32),
            jax.ShapeDtypeStruct((b, 1, 1), F32),
        ),
        compiler_params=_cparams(),
    )(h, enc["norm_g"], enc["norm_b"], enc["proj_w"], enc["proj_b"],
      params["vq_emb_hi"], params["vq_emb_lo"], params["vq_embeddings_t"],
      params["vq_emb_sq"])

    mse = jnp.sum(vq_sse) / (m * ld)
    # q_latent_loss + commitment_cost * e_latent_loss — identical forward values.
    vq_loss = (1.0 + cfg["commitment_cost"]) * mse
    # Straight-through estimator forward value == quant.
    # TODO(synk): training-mode EMA codebook updates are not reproduced (forward-only).

    # -------- decoder --------
    dec = params["decoder"]
    hd_act = pl.pallas_call(
        _decoder_embed_kernel,
        grid=(b,),
        in_specs=[
            pl.BlockSpec((n, ld), lambda i: (i, 0)),
            pl.BlockSpec((ld, dw), lambda i: (0, 0)),
            pl.BlockSpec((1, dw), lambda i: (0, 0)),
            pl.BlockSpec((n, dw), lambda i: (0, 0)),
        ],
        out_specs=pl.BlockSpec((n, dw), lambda i: (i, 0)),
        out_shape=jax.ShapeDtypeStruct((m, dw), BF16),
        compiler_params=_cparams(),
    )(quant, dec["proj_w"], dec["proj_b"], dec["pos"])

    for blk in dec["blocks"]:
        hd_act = transformer_block(hd_act, blk, batch=b, seq=n,
                                   heads=cfg["num_heads"] // 2, dim_head=cfg["dim_head"],
                                   width=dw, mlp_dim=dw * cfg["mlp_ratio"])

    recon_p, recon_sse = pl.pallas_call(
        _decoder_head_kernel,
        grid=(b,),
        in_specs=[
            pl.BlockSpec((n, dw), lambda i: (i, 0)),
            pl.BlockSpec((1, dw), lambda i: (0, 0)),
            pl.BlockSpec((1, dw), lambda i: (0, 0)),
            pl.BlockSpec((dw, patch_dim), lambda i: (0, 0)),
            pl.BlockSpec((1, patch_dim), lambda i: (0, 0)),
            pl.BlockSpec((n, patch_dim), lambda i: (i, 0)),
        ],
        out_specs=(
            pl.BlockSpec((n, patch_dim), lambda i: (i, 0)),
            pl.BlockSpec((1, 1, 1), lambda i: (i, 0, 0)),
        ),
        out_shape=(
            jax.ShapeDtypeStruct((m, patch_dim), F32),
            jax.ShapeDtypeStruct((b, 1, 1), F32),
        ),
        compiler_params=_cparams(),
    )(hd_act, dec["norm_g"], dec["norm_b"], dec["out_w"], dec["out_b"], xp)

    # Rearrange 'b n (p c) -> b c (n p)' (once, host XLA).
    x_recon = recon_p.reshape(b, n, ps, c).transpose(0, 3, 1, 2).reshape(b, c, n * ps)
    recon_loss = jnp.sum(recon_sse) / x.size
    loss = recon_loss + vq_loss
    return x_recon, loss, vq_loss, indices


# ----------------------------------------------------------------------------- params

class _Rng:
    def __init__(self, key):
        self._key = key
        self._i = 0

    def next(self):
        self._i += 1
        return jax.random.fold_in(self._key, self._i)


def _init_block(rng, width, mlp_dim, heads, dim_head):
    s = 0.02
    hd = heads * dim_head

    def wbf16(shape):
        return (s * jax.random.normal(rng.next(), shape, F32)).astype(BF16)

    return dict(
        ln1_g=jnp.ones((1, width), F32), ln1_b=jnp.zeros((1, width), F32),
        # lane-dense packed per-head-major weights: (W, H*Dh) and (H*Dh, W)
        wq=wbf16((width, hd)), wk=wbf16((width, hd)), wv=wbf16((width, hd)),
        bq=jnp.zeros((1, hd), F32), bk=jnp.zeros((1, hd), F32), bv=jnp.zeros((1, hd), F32),
        w_o=wbf16((hd, width)), b_o=jnp.zeros((1, width), F32),
        ln2_g=jnp.ones((1, width), F32), ln2_b=jnp.zeros((1, width), F32),
        w1=wbf16((width, mlp_dim)), b1=jnp.zeros((1, mlp_dim), F32),
        w2=wbf16((mlp_dim, width)), b2=jnp.zeros((1, width), F32),
    )


def init_params(key, cfg):
    rng = _Rng(key)
    ps, c = cfg["patch_size"], cfg["num_leads"]
    n = cfg["seq_len"] // ps
    patch_dim = ps * c
    ew, dw, ld = cfg["encoder_width"], cfg["decoder_width"], cfg["latent_dim"]
    s = 0.02

    def wbf16(shape):
        return (s * jax.random.normal(rng.next(), shape, F32)).astype(BF16)

    encoder = dict(
        pe_ln1_g=jnp.ones((1, patch_dim), F32), pe_ln1_b=jnp.zeros((1, patch_dim), F32),
        pe_w=wbf16((patch_dim, ew)), pe_b=jnp.zeros((1, ew), F32),
        pe_ln2_g=jnp.ones((1, ew), F32), pe_ln2_b=jnp.zeros((1, ew), F32),
        pos=s * jax.random.normal(rng.next(), (n, ew), F32),
        blocks=[_init_block(rng, ew, ew * cfg["mlp_ratio"], cfg["num_heads"], cfg["dim_head"])
                for _ in range(cfg["encoder_depth"])],
        norm_g=jnp.ones((1, ew), F32), norm_b=jnp.zeros((1, ew), F32),
        proj_w=wbf16((ew, ld)), proj_b=jnp.zeros((1, ld), F32),
    )
    decoder = dict(
        proj_w=wbf16((ld, dw)), proj_b=jnp.zeros((1, dw), F32),
        pos=s * jax.random.normal(rng.next(), (n, dw), F32),
        blocks=[_init_block(rng, dw, dw * cfg["mlp_ratio"], cfg["num_heads"] // 2, cfg["dim_head"])
                for _ in range(cfg["decoder_depth"])],
        norm_g=jnp.ones((1, dw), F32), norm_b=jnp.zeros((1, dw), F32),
        out_w=wbf16((dw, patch_dim)), out_b=jnp.zeros((1, patch_dim), F32),
    )
    emb = 0.1 * jax.random.normal(rng.next(), (cfg["num_embeddings"], ld), F32)
    emb_hi = emb.astype(BF16)
    emb_lo = (emb - emb_hi.astype(F32)).astype(BF16)
    return dict(
        encoder=encoder, decoder=decoder,
        vq_emb_hi=emb_hi,                                     # (E, D) bf16 high part
        vq_emb_lo=emb_lo,                                     # (E, D) bf16 low (residual) part
        vq_embeddings_t=emb.T.astype(BF16),                   # (D, E) bf16 for the distance matmul
        vq_emb_sq=jnp.sum(emb * emb, axis=1)[None, :],        # (1, E) f32 codebook norms
    )


# ----------------------------------------------------------------------------- main

if __name__ == "__main__":
    cfg = dict(
        seq_len=64, patch_size=8, num_leads=4,
        encoder_width=32, encoder_depth=2,
        decoder_width=32, decoder_depth=2,
        mlp_ratio=2, num_heads=4, dim_head=8,
        latent_dim=16, num_embeddings=32, commitment_cost=0.25,
    )
    key = jax.random.PRNGKey(0)
    params = init_params(key, cfg)
    x = jax.random.normal(jax.random.fold_in(key, 9999),
                          (2, cfg["num_leads"], cfg["seq_len"]), jnp.float32)

    fwd = jax.jit(functools.partial(vqvae_forward, cfg=cfg))
    x_recon, loss, vq_loss, indices = fwd(params, x)
    jax.block_until_ready((x_recon, loss, vq_loss, indices))

    assert x_recon.shape == x.shape
    assert indices.shape == (2 * (cfg["seq_len"] // cfg["patch_size"]), 1)
    assert bool(jnp.isfinite(loss)) and bool(jnp.isfinite(vq_loss))
    print("KERNEL_OK")
</pallas_src>

<mosaic_0001>
module attributes {stable_mosaic.version = 11 : i64} {
  func.func @_decoder_embed_kernel(%arg0: i32, %arg1: memref<8x16xf32, #tpu.memory_space<vmem>>, %arg2: memref<16x32xbf16, #tpu.memory_space<vmem>>, %arg3: memref<1x32xf32, #tpu.memory_space<vmem>>, %arg4: memref<8x32xf32, #tpu.memory_space<vmem>>, %arg5: memref<8x32xbf16, #tpu.memory_space<vmem>>) attributes {dimension_semantics = [#tpu.dimension_semantics<parallel>], iteration_bounds = array<i64: 2>, scalar_prefetch = 0 : i64, scratch_operands = 0 : i64, tpu.core_type = #tpu.core_type<tc>, window_params = [{transform_indices = @transform_0, window_bounds = array<i64: 8, 16>}, {pipeline_mode = #tpu.pipeline_mode<synchronous>, transform_indices = @transform_1, window_bounds = array<i64: 16, 32>}, {pipeline_mode = #tpu.pipeline_mode<synchronous>, transform_indices = @transform_2, window_bounds = array<i64: 1, 32>}, {pipeline_mode = #tpu.pipeline_mode<synchronous>, transform_indices = @transform_3, window_bounds = array<i64: 8, 32>}, {transform_indices = @transform_4, window_bounds = array<i64: 8, 32>}]} {
    %c0 = arith.constant 0 : index
    %c0_0 = arith.constant 0 : index
    %0 = vector.load %arg1[%c0, %c0_0] : memref<8x16xf32, #tpu.memory_space<vmem>>, vector<8x16xf32>
    %c0_1 = arith.constant 0 : index
    %c0_2 = arith.constant 0 : index
    %1 = vector.load %arg2[%c0_1, %c0_2] : memref<16x32xbf16, #tpu.memory_space<vmem>>, vector<16x32xbf16>
    %2 = arith.truncf %0 : vector<8x16xf32> to vector<8x16xbf16>
    %cst = arith.constant dense<0.000000e+00> : vector<8x32xf32>
    %3 = tpu.matmul %2, %1, %cst {dimension_numbers = #tpu.dot_dimension_numbers<[1], [0], [0], [1], [0, 0, 1, 1], [], []>} : vector<8x16xbf16>, vector<16x32xbf16>, vector<8x32xf32> -> vector<8x32xf32>
    %c0_3 = arith.constant 0 : index
    %c0_4 = arith.constant 0 : index
    %4 = vector.load %arg3[%c0_3, %c0_4] : memref<1x32xf32, #tpu.memory_space<vmem>>, vector<1x32xf32>
    %5 = vector.broadcast %4 : vector<1x32xf32> to vector<8x32xf32>
    %6 = arith.addf %3, %5 : vector<8x32xf32>
    %c0_5 = arith.constant 0 : index
    %c0_6 = arith.constant 0 : index
    %7 = vector.load %arg4[%c0_5, %c0_6] : memref<8x32xf32, #tpu.memory_space<vmem>>, vector<8x32xf32>
    %8 = arith.addf %6, %7 : vector<8x32xf32>
    %9 = arith.truncf %8 : vector<8x32xf32> to vector<8x32xbf16>
    %c0_7 = arith.constant 0 : index
    %c0_8 = arith.constant 0 : index
    %10 = vector.load %arg5[%c0_7, %c0_8] : memref<8x32xbf16, #tpu.memory_space<vmem>>, vector<8x32xbf16>
    tpu.vector_store %arg5[%c0_7, %c0_8], %9 {strides = array<i32>} : memref<8x32xbf16, #tpu.memory_space<vmem>>, vector<8x32xbf16>,
    return
  }
  func.func @transform_0(%arg0: i32) -> (i32, i32) {
    %c0_i32 = arith.constant 0 : i32
    %c0_i32_0 = arith.constant 0 : i32
    return %arg0, %c0_i32 : i32, i32
  }
  func.func @transform_1(%arg0: i32) -> (i32, i32) {
    %c0_i32 = arith.constant 0 : i32
    %c0_i32_0 = arith.constant 0 : i32
    %c0_i32_1 = arith.constant 0 : i32
    return %c0_i32, %c0_i32_0 : i32, i32
  }
  func.func @transform_2(%arg0: i32) -> (i32, i32) {
    %c0_i32 = arith.constant 0 : i32
    %c0_i32_0 = arith.constant 0 : i32
    %c0_i32_1 = arith.constant 0 : i32
    return %c0_i32, %c0_i32_0 : i32, i32
  }
  func.func @transform_3(%arg0: i32) -> (i32, i32) {
    %c0_i32 = arith.constant 0 : i32
    %c0_i32_0 = arith.constant 0 : i32
    %c0_i32_1 = arith.constant 0 : i32
    return %c0_i32, %c0_i32_0 : i32, i32
  }
  func.func @transform_4(%arg0: i32) -> (i32, i32) {
    %c0_i32 = arith.constant 0 : i32
    %c0_i32_0 = arith.constant 0 : i32
    return %arg0, %c0_i32 : i32, i32
  }
}

module attributes {stable_mosaic.version = 11 : i64} {
  func.func @_encoder_embed_kernel(%arg0: i32, %arg1: memref<8x32xf32, #tpu.memory_space<vmem>>, %arg2: memref<1x32xf32, #tpu.memory_space<vmem>>, %arg3: memref<1x32xf32, #tpu.memory_space<vmem>>, %arg4: memref<32x32xbf16, #tpu.memory_space<vmem>>, %arg5: memref<1x32xf32, #tpu.memory_space<vmem>>, %arg6: memref<1x32xf32, #tpu.memory_space<vmem>>, %arg7: memref<1x32xf32, #tpu.memory_space<vmem>>, %arg8: memref<8x32xf32, #tpu.memory_space<vmem>>, %arg9: memref<8x32xbf16, #tpu.memory_space<vmem>>) attributes {dimension_semantics = [#tpu.dimension_semantics<parallel>], iteration_bounds = array<i64: 2>, scalar_prefetch = 0 : i64, scratch_operands = 0 : i64, tpu.core_type = #tpu.core_type<tc>, window_params = [{transform_indices = @transform_0, window_bounds = array<i64: 8, 32>}, {pipeline_mode = #tpu.pipeline_mode<synchronous>, transform_indices = @transform_1, window_bounds = array<i64: 1, 32>}, {pipeline_mode = #tpu.pipeline_mode<synchronous>, transform_indices = @transform_2, window_bounds = array<i64: 1, 32>}, {pipeline_mode = #tpu.pipeline_mode<synchronous>, transform_indices = @transform_3, window_bounds = array<i64: 32, 32>}, {pipeline_mode = #tpu.pipeline_mode<synchronous>, transform_indices = @transform_4, window_bounds = array<i64: 1, 32>}, {pipeline_mode = #tpu.pipeline_mode<synchronous>, transform_indices = @transform_5, window_bounds = array<i64: 1, 32>}, {pipeline_mode = #tpu.pipeline_mode<synchronous>, transform_indices = @transform_6, window_bounds = array<i64: 1, 32>}, {pipeline_mode = #tpu.pipeline_mode<synchronous>, transform_indices = @transform_7, window_bounds = array<i64: 8, 32>}, {transform_indices = @transform_8, window_bounds = array<i64: 8, 32>}]} {
    %c0 = arith.constant 0 : index
    %c0_0 = arith.constant 0 : index
    %0 = vector.load %arg1[%c0, %c0_0] : memref<8x32xf32, #tpu.memory_space<vmem>>, vector<8x32xf32>
    %c0_1 = arith.constant 0 : index
    %c0_2 = arith.constant 0 : index
    %1 = vector.load %arg2[%c0_1, %c0_2] : memref<1x32xf32, #tpu.memory_space<vmem>>, vector<1x32xf32>
    %c0_3 = arith.constant 0 : index
    %c0_4 = arith.constant 0 : index
    %2 = vector.load %arg3[%c0_3, %c0_4] : memref<1x32xf32, #tpu.memory_space<vmem>>, vector<1x32xf32>
    %cst = arith.constant dense<0.000000e+00> : vector<8xf32>
    %3 = vector.multi_reduction <add>, %0, %cst [1] : vector<8x32xf32> to vector<8xf32>
    %4 = vector.shape_cast %3 : vector<8xf32> to vector<8x1xf32>
    %cst_5 = arith.constant 3.200000e+01 : f32
    %5 = vector.broadcast %cst_5 : f32 to vector<8x1xf32>
    %6 = arith.divf %4, %5 : vector<8x1xf32>
    %7 = vector.broadcast %6 : vector<8x1xf32> to vector<8x32xf32>
    %8 = arith.subf %0, %7 : vector<8x32xf32>
    %9 = arith.mulf %8, %8 : vector<8x32xf32>
    %cst_6 = arith.constant dense<0.000000e+00> : vector<8xf32>
    %10 = vector.multi_reduction <add>, %9, %cst_6 [1] : vector<8x32xf32> to vector<8xf32>
    %11 = vector.shape_cast %10 : vector<8xf32> to vector<8x1xf32>
    %cst_7 = arith.constant 3.200000e+01 : f32
    %12 = vector.broadcast %cst_7 : f32 to vector<8x1xf32>
    %13 = arith.divf %11, %12 : vector<8x1xf32>
    %14 = vector.broadcast %6 : vector<8x1xf32> to vector<8x32xf32>
    %15 = arith.subf %0, %14 : vector<8x32xf32>
    %cst_8 = arith.constant 9.99999974E-6 : f32
    %16 = vector.broadcast %cst_8 : f32 to vector<8x1xf32>
    %17 = arith.addf %13, %16 : vector<8x1xf32>
    %18 = math.rsqrt %17 : vector<8x1xf32>
    %19 = vector.broadcast %18 : vector<8x1xf32> to vector<8x32xf32>
    %20 = arith.mulf %15, %19 : vector<8x32xf32>
    %21 = vector.broadcast %1 : vector<1x32xf32> to vector<8x32xf32>
    %22 = arith.mulf %20, %21 : vector<8x32xf32>
    %23 = vector.broadcast %2 : vector<1x32xf32> to vector<8x32xf32>
    %24 = arith.addf %22, %23 : vector<8x32xf32>
    %c0_9 = arith.constant 0 : index
    %c0_10 = arith.constant 0 : index
    %25 = vector.load %arg4[%c0_9, %c0_10] : memref<32x32xbf16, #tpu.memory_space<vmem>>, vector<32x32xbf16>
    %26 = arith.truncf %24 : vector<8x32xf32> to vector<8x32xbf16>
    %cst_11 = arith.constant dense<0.000000e+00> : vector<8x32xf32>
    %27 = tpu.matmul %26, %25, %cst_11 {dimension_numbers = #tpu.dot_dimension_numbers<[1], [0], [0], [1], [0, 0, 1, 1], [], []>} : vector<8x32xbf16>, vector<32x32xbf16>, vector<8x32xf32> -> vector<8x32xf32>
    %c0_12 = arith.constant 0 : index
    %c0_13 = arith.constant 0 : index
    %28 = vector.load %arg5[%c0_12, %c0_13] : memref<1x32xf32, #tpu.memory_space<vmem>>, vector<1x32xf32>
    %29 = vector.broadcast %28 : vector<1x32xf32> to vector<8x32xf32>
    %30 = arith.addf %27, %29 : vector<8x32xf32>
    %c0_14 = arith.constant 0 : index
    %c0_15 = arith.constant 0 : index
    %31 = vector.load %arg6[%c0_14, %c0_15] : memref<1x32xf32, #tpu.memory_space<vmem>>, vector<1x32xf32>
    %c0_16 = arith.constant 0 : index
    %c0_17 = arith.constant 0 : index
    %32 = vector.load %arg7[%c0_16, %c0_17] : memref<1x32xf32, #tpu.memory_space<vmem>>, vector<1x32xf32>
    %cst_18 = arith.constant dense<0.000000e+00> : vector<8xf32>
    %33 = vector.multi_reduction <add>, %30, %cst_18 [1] : vector<8x32xf32> to vector<8xf32>
    %34 = vector.shape_cast %33 : vector<8xf32> to vector<8x1xf32>
    %cst_19 = arith.constant 3.200000e+01 : f32
    %35 = vector.broadcast %cst_19 : f32 to vector<8x1xf32>
    %36 = arith.divf %34, %35 : vector<8x1xf32>
    %37 = vector.broadcast %36 : vector<8x1xf32> to vector<8x32xf32>
    %38 = arith.subf %30, %37 : vector<8x32xf32>
    %39 = arith.mulf %38, %38 : vector<8x32xf32>
    %cst_20 = arith.constant dense<0.000000e+00> : vector<8xf32>
    %40 = vector.multi_reduction <add>, %39, %cst_20 [1] : vector<8x32xf32> to vector<8xf32>
    %41 = vector.shape_cast %40 : vector<8xf32> to vector<8x1xf32>
    %cst_21 = arith.constant 3.200000e+01 : f32
    %42 = vector.broadcast %cst_21 : f32 to vector<8x1xf32>
    %43 = arith.divf %41, %42 : vector<8x1xf32>
    %44 = vector.broadcast %36 : vector<8x1xf32> to vector<8x32xf32>
    %45 = arith.subf %30, %44 : vector<8x32xf32>
    %cst_22 = arith.constant 9.99999974E-6 : f32
    %46 = vector.broadcast %cst_22 : f32 to vector<8x1xf32>
    %47 = arith.addf %43, %46 : vector<8x1xf32>
    %48 = math.rsqrt %47 : vector<8x1xf32>
    %49 = vector.broadcast %48 : vector<8x1xf32> to vector<8x32xf32>
    %50 = arith.mulf %45, %49 : vector<8x32xf32>
    %51 = vector.broadcast %31 : vector<1x32xf32> to vector<8x32xf32>
    %52 = arith.mulf %50, %51 : vector<8x32xf32>
    %53 = vector.broadcast %32 : vector<1x32xf32> to vector<8x32xf32>
    %54 = arith.addf %52, %53 : vector<8x32xf32>
    %c0_23 = arith.constant 0 : index
    %c0_24 = arith.constant 0 : index
    %55 = vector.load %arg8[%c0_23, %c0_24] : memref<8x32xf32, #tpu.memory_space<vmem>>, vector<8x32xf32>
    %56 = arith.addf %54, %55 : vector<8x32xf32>
    %57 = arith.truncf %56 : vector<8x32xf32> to vector<8x32xbf16>
    %c0_25 = arith.constant 0 : index
    %c0_26 = arith.constant 0 : index
    %58 = vector.load %arg9[%c0_25, %c0_26] : memref<8x32xbf16, #tpu.memory_space<vmem>>, vector<8x32xbf16>
    tpu.vector_store %arg9[%c0_25, %c0_26], %57 {strides = array<i32>} : memref<8x32xbf16, #tpu.memory_space<vmem>>, vector<8x32xbf16>,
    return
  }
  func.func @transform_0(%arg0: i32) -> (i32, i32) {
    %c0_i32 = arith.constant 0 : i32
    %c0_i32_0 = arith.constant 0 : i32
    return %arg0, %c0_i32 : i32, i32
  }
  func.func @transform_1(%arg0: i32) -> (i32, i32) {
    %c0_i32 = arith.constant 0 : i32
    %c0_i32_0 = arith.constant 0 : i32
    %c0_i32_1 = arith.constant 0 : i32
    return %c0_i32, %c0_i32_0 : i32, i32
  }
  func.func @transform_2(%arg0: i32) -> (i32, i32) {
    %c0_i32 = arith.constant 0 : i32
    %c0_i32_0 = arith.constant 0 : i32
    %c0_i32_1 = arith.constant 0 : i32
    return %c0_i32, %c0_i32_0 : i32, i32
  }
  func.func @transform_3(%arg0: i32) -> (i32, i32) {
    %c0_i32 = arith.constant 0 : i32
    %c0_i32_0 = arith.constant 0 : i32
    %c0_i32_1 = arith.constant 0 : i32
    return %c0_i32, %c0_i32_0 : i32, i32
  }
  func.func @transform_4(%arg0: i32) -> (i32, i32) {
    %c0_i32 = arith.constant 0 : i32
    %c0_i32_0 = arith.constant 0 : i32
    %c0_i32_1 = arith.constant 0 : i32
    return %c0_i32, %c0_i32_0 : i32, i32
  }
  func.func @transform_5(%arg0: i32) -> (i32, i32) {
    %c0_i32 = arith.constant 0 : i32
    %c0_i32_0 = arith.constant 0 : i32
    %c0_i32_1 = arith.constant 0 : i32
    return %c0_i32, %c0_i32_0 : i32, i32
  }
  func.func @transform_6(%arg0: i32) -> (i32, i32) {
    %c0_i32 = arith.constant 0 : i32
    %c0_i32_0 = arith.constant 0 : i32
    %c0_i32_1 = arith.constant 0 : i32
    return %c0_i32, %c0_i32_0 : i32, i32
  }
  func.func @transform_7(%arg0: i32) -> (i32, i32) {
    %c0_i32 = arith.constant 0 : i32
    %c0_i32_0 = arith.constant 0 : i32
    %c0_i32_1 = arith.constant 0 : i32
    return %c0_i32, %c0_i32_0 : i32, i32
  }
  func.func @transform_8(%arg0: i32) -> (i32, i32) {
    %c0_i32 = arith.constant 0 : i32
    %c0_i32_0 = arith.constant 0 : i32
    return %arg0, %c0_i32 : i32, i32
  }
}

module attributes {stable_mosaic.version = 11 : i64} {
  func.func @_encode_vq_kernel(%arg0: i32, %arg1: memref<8x32xbf16, #tpu.memory_space<vmem>>, %arg2: memref<1x32xf32, #tpu.memory_space<vmem>>, %arg3: memref<1x32xf32, #tpu.memory_space<vmem>>, %arg4: memref<32x16xbf16, #tpu.memory_space<vmem>>, %arg5: memref<1x16xf32, #tpu.memory_space<vmem>>, %arg6: memref<32x16xbf16, #tpu.memory_space<vmem>>, %arg7: memref<32x16xbf16, #tpu.memory_space<vmem>>, %arg8: memref<16x32xbf16, #tpu.memory_space<vmem>>, %arg9: memref<1x32xf32, #tpu.memory_space<vmem>>, %arg10: memref<8x16xf32, #tpu.memory_space<vmem>>, %arg11: memref<8x1xi32, #tpu.memory_space<vmem>>, %arg12: memref<1x1x1xf32, #tpu.memory_space<vmem>>) attributes {dimension_semantics = [#tpu.dimension_semantics<parallel>], iteration_bounds = array<i64: 2>, scalar_prefetch = 0 : i64, scratch_operands = 0 : i64, tpu.core_type = #tpu.core_type<tc>, window_params = [{transform_indices = @transform_0, window_bounds = array<i64: 8, 32>}, {pipeline_mode = #tpu.pipeline_mode<synchronous>, transform_indices = @transform_1, window_bounds = array<i64: 1, 32>}, {pipeline_mode = #tpu.pipeline_mode<synchronous>, transform_indices = @transform_2, window_bounds = array<i64: 1, 32>}, {pipeline_mode = #tpu.pipeline_mode<synchronous>, transform_indices = @transform_3, window_bounds = array<i64: 32, 16>}, {pipeline_mode = #tpu.pipeline_mode<synchronous>, transform_indices = @transform_4, window_bounds = array<i64: 1, 16>}, {pipeline_mode = #tpu.pipeline_mode<synchronous>, transform_indices = @transform_5, window_bounds = array<i64: 32, 16>}, {pipeline_mode = #tpu.pipeline_mode<synchronous>, transform_indices = @transform_6, window_bounds = array<i64: 32, 16>}, {pipeline_mode = #tpu.pipeline_mode<synchronous>, transform_indices = @transform_7, window_bounds = array<i64: 16, 32>}, {pipeline_mode = #tpu.pipeline_mode<synchronous>, transform_indices = @transform_8, window_bounds = array<i64: 1, 32>}, {transform_indices = @transform_9, window_bounds = array<i64: 8, 16>}, {transform_indices = @transform_10, window_bounds = array<i64: 8, 1>}, {transform_indices = @transform_11, window_bounds = array<i64: 1, 1, 1>}]} {
    %c0 = arith.constant 0 : index
    %c0_0 = arith.constant 0 : index
    %0 = vector.load %arg1[%c0, %c0_0] : memref<8x32xbf16, #tpu.memory_space<vmem>>, vector<8x32xbf16>
    %1 = arith.extf %0 : vector<8x32xbf16> to vector<8x32xf32>
    %c0_1 = arith.constant 0 : index
    %c0_2 = arith.constant 0 : index
    %2 = vector.load %arg2[%c0_1, %c0_2] : memref<1x32xf32, #tpu.memory_space<vmem>>, vector<1x32xf32>
    %c0_3 = arith.constant 0 : index
    %c0_4 = arith.constant 0 : index
    %3 = vector.load %arg3[%c0_3, %c0_4] : memref<1x32xf32, #tpu.memory_space<vmem>>, vector<1x32xf32>
    %cst = arith.constant dense<0.000000e+00> : vector<8xf32>
    %4 = vector.multi_reduction <add>, %1, %cst [1] : vector<8x32xf32> to vector<8xf32>
    %5 = vector.shape_cast %4 : vector<8xf32> to vector<8x1xf32>
    %cst_5 = arith.constant 3.200000e+01 : f32
    %6 = vector.broadcast %cst_5 : f32 to vector<8x1xf32>
    %7 = arith.divf %5, %6 : vector<8x1xf32>
    %8 = vector.broadcast %7 : vector<8x1xf32> to vector<8x32xf32>
    %9 = arith.subf %1, %8 : vector<8x32xf32>
    %10 = arith.mulf %9, %9 : vector<8x32xf32>
    %cst_6 = arith.constant dense<0.000000e+00> : vector<8xf32>
    %11 = vector.multi_reduction <add>, %10, %cst_6 [1] : vector<8x32xf32> to vector<8xf32>
    %12 = vector.shape_cast %11 : vector<8xf32> to vector<8x1xf32>
    %cst_7 = arith.constant 3.200000e+01 : f32
    %13 = vector.broadcast %cst_7 : f32 to vector<8x1xf32>
    %14 = arith.divf %12, %13 : vector<8x1xf32>
    %15 = vector.broadcast %7 : vector<8x1xf32> to vector<8x32xf32>
    %16 = arith.subf %1, %15 : vector<8x32xf32>
    %cst_8 = arith.constant 9.99999974E-6 : f32
    %17 = vector.broadcast %cst_8 : f32 to vector<8x1xf32>
    %18 = arith.addf %14, %17 : vector<8x1xf32>
    %19 = math.rsqrt %18 : vector<8x1xf32>
    %20 = vector.broadcast %19 : vector<8x1xf32> to vector<8x32xf32>
    %21 = arith.mulf %16, %20 : vector<8x32xf32>
    %22 = vector.broadcast %2 : vector<1x32xf32> to vector<8x32xf32>
    %23 = arith.mulf %21, %22 : vector<8x32xf32>
    %24 = vector.broadcast %3 : vector<1x32xf32> to vector<8x32xf32>
    %25 = arith.addf %23, %24 : vector<8x32xf32>
    %c0_9 = arith.constant 0 : index
    %c0_10 = arith.constant 0 : index
    %26 = vector.load %arg4[%c0_9, %c0_10] : memref<32x16xbf16, #tpu.memory_space<vmem>>, vector<32x16xbf16>
    %27 = arith.truncf %25 : vector<8x32xf32> to vector<8x32xbf16>
    %cst_11 = arith.constant dense<0.000000e+00> : vector<8x16xf32>
    %28 = tpu.matmul %27, %26, %cst_11 {dimension_numbers = #tpu.dot_dimension_numbers<[1], [0], [0], [1], [0, 0, 1, 1], [], []>} : vector<8x32xbf16>, vector<32x16xbf16>, vector<8x16xf32> -> vector<8x16xf32>
    %c0_12 = arith.constant 0 : index
    %c0_13 = arith.constant 0 : index
    %29 = vector.load %arg5[%c0_12, %c0_13] : memref<1x16xf32, #tpu.memory_space<vmem>>, vector<1x16xf32>
    %30 = vector.broadcast %29 : vector<1x16xf32> to vector<8x16xf32>
    %31 = arith.addf %28, %30 : vector<8x16xf32>
    %32 = arith.mulf %31, %31 : vector<8x16xf32>
    %cst_14 = arith.constant dense<0.000000e+00> : vector<8xf32>
    %33 = vector.multi_reduction <add>, %32, %cst_14 [1] : vector<8x16xf32> to vector<8xf32>
    %34 = vector.shape_cast %33 : vector<8xf32> to vector<8x1xf32>
    %35 = arith.truncf %31 : vector<8x16xf32> to vector<8x16xbf16>
    %c0_15 = arith.constant 0 : index
    %c0_16 = arith.constant 0 : index
    %36 = vector.load %arg8[%c0_15, %c0_16] : memref<16x32xbf16, #tpu.memory_space<vmem>>, vector<16x32xbf16>
    %cst_17 = arith.constant dense<0.000000e+00> : vector<8x32xf32>
    %37 = tpu.matmul %35, %36, %cst_17 {dimension_numbers = #tpu.dot_dimension_numbers<[1], [0], [0], [1], [0, 0, 1, 1], [], []>} : vector<8x16xbf16>, vector<16x32xbf16>, vector<8x32xf32> -> vector<8x32xf32>
    %c0_18 = arith.constant 0 : index
    %c0_19 = arith.constant 0 : index
    %38 = vector.load %arg9[%c0_18, %c0_19] : memref<1x32xf32, #tpu.memory_space<vmem>>, vector<1x32xf32>
    %39 = vector.broadcast %34 : vector<8x1xf32> to vector<8x32xf32>
    %40 = vector.broadcast %38 : vector<1x32xf32> to vector<8x32xf32>
    %41 = arith.addf %39, %40 : vector<8x32xf32>
    %cst_20 = arith.constant 2.000000e+00 : f32
    %42 = vector.broadcast %cst_20 : f32 to vector<8x32xf32>
    %43 = arith.mulf %42, %37 : vector<8x32xf32>
    %44 = arith.subf %41, %43 : vector<8x32xf32>
    %45 = tpu.iota {dimensions = array<i32: 1>} : vector<8x32xi32>
    %cst_21 = arith.constant dense<0x7F800000> : vector<8xf32>
    %46 = vector.multi_reduction <minimumf>, %44, %cst_21 [1] : vector<8x32xf32> to vector<8xf32>
    %47 = vector.shape_cast %46 : vector<8xf32> to vector<8x1xf32>
    %48 = vector.broadcast %47 : vector<8x1xf32> to vector<8x32xf32>
    %49 = arith.cmpf ole, %44, %48 : vector<8x32xf32>
    %c32_i32 = arith.constant 32 : i32
    %50 = vector.broadcast %c32_i32 : i32 to vector<8x32xi32>
    %51 = arith.select %49, %45, %50 : vector<8x32xi1>, vector<8x32xi32>
    %cst_22 = arith.constant dense<2147483647> : vector<8xi32>
    %52 = vector.multi_reduction <minsi>, %51, %cst_22 [1] : vector<8x32xi32> to vector<8xi32>
    %53 = vector.shape_cast %52 : vector<8xi32> to vector<8x1xi32>
    %c31_i32 = arith.constant 31 : i32
    %54 = vector.broadcast %c31_i32 : i32 to vector<8x1xi32>
    %55 = arith.minsi %53, %54 : vector<8x1xi32>
    %56 = vector.broadcast %55 : vector<8x1xi32> to vector<8x32xi32>
    %57 = arith.cmpi eq, %45, %56 : vector<8x32xi32>
    %58 = arith.extui %57 : vector<8x32xi1> to vector<8x32xi32>
    %59 = arith.sitofp %58 : vector<8x32xi32> to vector<8x32xf32>
    %60 = arith.truncf %59 : vector<8x32xf32> to vector<8x32xbf16>
    %c0_23 = arith.constant 0 : index
    %c0_24 = arith.constant 0 : index
    %61 = vector.load %arg6[%c0_23, %c0_24] : memref<32x16xbf16, #tpu.memory_space<vmem>>, vector<32x16xbf16>
    %cst_25 = arith.constant dense<0.000000e+00> : vector<8x16xf32>
    %62 = tpu.matmul %60, %61, %cst_25 {dimension_numbers = #tpu.dot_dimension_numbers<[1], [0], [0], [1], [0, 0, 1, 1], [], []>} : vector<8x32xbf16>, vector<32x16xbf16>, vector<8x16xf32> -> vector<8x16xf32>
    %c0_26 = arith.constant 0 : index
    %c0_27 = arith.constant 0 : index
    %63 = vector.load %arg7[%c0_26, %c0_27] : memref<32x16xbf16, #tpu.memory_space<vmem>>, vector<32x16xbf16>
    %cst_28 = arith.constant dense<0.000000e+00> : vector<8x16xf32>
    %64 = tpu.matmul %60, %63, %cst_28 {dimension_numbers = #tpu.dot_dimension_numbers<[1], [0], [0], [1], [0, 0, 1, 1], [], []>} : vector<8x32xbf16>, vector<32x16xbf16>, vector<8x16xf32> -> vector<8x16xf32>
    %65 = arith.addf %62, %64 : vector<8x16xf32>
    %c0_29 = arith.constant 0 : index
    %c0_30 = arith.constant 0 : index
    %66 = vector.load %arg10[%c0_29, %c0_30] : memref<8x16xf32, #tpu.memory_space<vmem>>, vector<8x16xf32>
    tpu.vector_store %arg10[%c0_29, %c0_30], %65 {strides = array<i32>} : memref<8x16xf32, #tpu.memory_space<vmem>>, vector<8x16xf32>,
    %c0_31 = arith.constant 0 : index
    %c0_32 = arith.constant 0 : index
    %67 = vector.load %arg11[%c0_31, %c0_32] : memref<8x1xi32, #tpu.memory_space<vmem>>, vector<8x1xi32>
    tpu.vector_store %arg11[%c0_31, %c0_32], %55 {strides = array<i32>} : memref<8x1xi32, #tpu.memory_space<vmem>>, vector<8x1xi32>,
    %68 = arith.subf %65, %31 : vector<8x16xf32>
    %69 = arith.mulf %68, %68 : vector<8x16xf32>
    %70 = vector.shape_cast %69 : vector<8x16xf32> to vector<1x8x16xf32>
    %cst_33 = arith.constant dense<0.000000e+00> : vector<1xf32>
    %71 = vector.multi_reduction <add>, %70, %cst_33 [1, 2] : vector<1x8x16xf32> to vector<1xf32>
    %72 = vector.shape_cast %71 : vector<1xf32> to vector<1x1x1xf32>
    %73 = vector.extract %72[0, 0, 0] : f32 from vector<1x1x1xf32>
    %74 = vector.broadcast %73 : f32 to vector<1x1xf32>
    %c0_34 = arith.constant 0 : index
    %c0_35 = arith.constant 0 : index
    %c0_36 = arith.constant 0 : index
    %75 = vector.load %arg12[%c0_34, %c0_35, %c0_36] : memref<1x1x1xf32, #tpu.memory_space<vmem>>, vector<1x1x1xf32>
    %76 = vector.shape_cast %75 : vector<1x1x1xf32> to vector<1x1xf32>
    %77 = vector.shape_cast %74 : vector<1x1xf32> to vector<1x1x1xf32>
    tpu.vector_store %arg12[%c0_34, %c0_35, %c0_36], %77 {strides = array<i32>} : memref<1x1x1xf32, #tpu.memory_space<vmem>>, vector<1x1x1xf32>,
    return
  }
  func.func @transform_0(%arg0: i32) -> (i32, i32) {
    %c0_i32 = arith.constant 0 : i32
    %c0_i32_0 = arith.constant 0 : i32
    return %arg0, %c0_i32 : i32, i32
  }
  func.func @transform_1(%arg0: i32) -> (i32, i32) {
    %c0_i32 = arith.constant 0 : i32
    %c0_i32_0 = arith.constant 0 : i32
    %c0_i32_1 = arith.constant 0 : i32
    return %c0_i32, %c0_i32_0 : i32, i32
  }
  func.func @transform_2(%arg0: i32) -> (i32, i32) {
    %c0_i32 = arith.constant 0 : i32
    %c0_i32_0 = arith.constant 0 : i32
    %c0_i32_1 = arith.constant 0 : i32
    return %c0_i32, %c0_i32_0 : i32, i32
  }
  func.func @transform_3(%arg0: i32) -> (i32, i32) {
    %c0_i32 = arith.constant 0 : i32
    %c0_i32_0 = arith.constant 0 : i32
    %c0_i32_1 = arith.constant 0 : i32
    return %c0_i32, %c0_i32_0 : i32, i32
  }
  func.func @transform_4(%arg0: i32) -> (i32, i32) {
    %c0_i32 = arith.constant 0 : i32
    %c0_i32_0 = arith.constant 0 : i32
    %c0_i32_1 = arith.constant 0 : i32
    return %c0_i32, %c0_i32_0 : i32, i32
  }
  func.func @transform_5(%arg0: i32) -> (i32, i32) {
    %c0_i32 = arith.constant 0 : i32
    %c0_i32_0 = arith.constant 0 : i32
    %c0_i32_1 = arith.constant 0 : i32
    return %c0_i32, %c0_i32_0 : i32, i32
  }
  func.func @transform_6(%arg0: i32) -> (i32, i32) {
    %c0_i32 = arith.constant 0 : i32
    %c0_i32_0 = arith.constant 0 : i32
    %c0_i32_1 = arith.constant 0 : i32
    return %c0_i32, %c0_i32_0 : i32, i32
  }
  func.func @transform_7(%arg0: i32) -> (i32, i32) {
    %c0_i32 = arith.constant 0 : i32
    %c0_i32_0 = arith.constant 0 : i32
    %c0_i32_1 = arith.constant 0 : i32
    return %c0_i32, %c0_i32_0 : i32, i32
  }
  func.func @transform_8(%arg0: i32) -> (i32, i32) {
    %c0_i32 = arith.constant 0 : i32
    %c0_i32_0 = arith.constant 0 : i32
    %c0_i32_1 = arith.constant 0 : i32
    return %c0_i32, %c0_i32_0 : i32, i32
  }
  func.func @transform_9(%arg0: i32) -> (i32, i32) {
    %c0_i32 = arith.constant 0 : i32
    %c0_i32_0 = arith.constant 0 : i32
    return %arg0, %c0_i32 : i32, i32
  }
  func.func @transform_10(%arg0: i32) -> (i32, i32) {
    %c0_i32 = arith.constant 0 : i32
    %c0_i32_0 = arith.constant 0 : i32
    return %arg0, %c0_i32 : i32, i32
  }
  func.func @transform_11(%arg0: i32) -> (i32, i32, i32) {
    %c0_i32 = arith.constant 0 : i32
    %c0_i32_0 = arith.constant 0 : i32
    %c0_i32_1 = arith.constant 0 : i32
    return %arg0, %c0_i32, %c0_i32_0 : i32, i32, i32
  }
}

module attributes {stable_mosaic.version = 11 : i64} {
  func.func @_block_kernel(%arg0: i32, %arg1: memref<8x32xbf16, #tpu.memory_space<vmem>>, %arg2: memref<1x32xf32, #tpu.memory_space<vmem>>, %arg3: memref<1x32xf32, #tpu.memory_space<vmem>>, %arg4: memref<32x32xbf16, #tpu.memory_space<vmem>>, %arg5: memref<32x32xbf16, #tpu.memory_space<vmem>>, %arg6: memref<32x32xbf16, #tpu.memory_space<vmem>>, %arg7: memref<1x32xf32, #tpu.memory_space<vmem>>, %arg8: memref<1x32xf32, #tpu.memory_space<vmem>>, %arg9: memref<1x32xf32, #tpu.memory_space<vmem>>, %arg10: memref<32x32xbf16, #tpu.memory_space<vmem>>, %arg11: memref<1x32xf32, #tpu.memory_space<vmem>>, %arg12: memref<1x32xf32, #tpu.memory_space<vmem>>, %arg13: memref<1x32xf32, #tpu.memory_space<vmem>>, %arg14: memref<32x64xbf16, #tpu.memory_space<vmem>>, %arg15: memref<1x64xf32, #tpu.memory_space<vmem>>, %arg16: memref<64x32xbf16, #tpu.memory_space<vmem>>, %arg17: memref<1x32xf32, #tpu.memory_space<vmem>>, %arg18: memref<8x32xbf16, #tpu.memory_space<vmem>>) attributes {dimension_semantics = [#tpu.dimension_semantics<parallel>], iteration_bounds = array<i64: 2>, scalar_prefetch = 0 : i64, scratch_operands = 0 : i64, tpu.core_type = #tpu.core_type<tc>, window_params = [{transform_indices = @transform_0, window_bounds = array<i64: 8, 32>}, {pipeline_mode = #tpu.pipeline_mode<synchronous>, transform_indices = @transform_1, window_bounds = array<i64: 1, 32>}, {pipeline_mode = #tpu.pipeline_mode<synchronous>, transform_indices = @transform_2, window_bounds = array<i64: 1, 32>}, {pipeline_mode = #tpu.pipeline_mode<synchronous>, transform_indices = @transform_3, window_bounds = array<i64: 32, 32>}, {pipeline_mode = #tpu.pipeline_mode<synchronous>, transform_indices = @transform_4, window_bounds = array<i64: 32, 32>}, {pipeline_mode = #tpu.pipeline_mode<synchronous>, transform_indices = @transform_5, window_bounds = array<i64: 32, 32>}, {pipeline_mode = #tpu.pipeline_mode<synchronous>, transform_indices = @transform_6, window_bounds = array<i64: 1, 32>}, {pipeline_mode = #tpu.pipeline_mode<synchronous>, transform_indices = @transform_7, window_bounds = array<i64: 1, 32>}, {pipeline_mode = #tpu.pipeline_mode<synchronous>, transform_indices = @transform_8, window_bounds = array<i64: 1, 32>}, {pipeline_mode = #tpu.pipeline_mode<synchronous>, transform_indices = @transform_9, window_bounds = array<i64: 32, 32>}, {pipeline_mode = #tpu.pipeline_mode<synchronous>, transform_indices = @transform_10, window_bounds = array<i64: 1, 32>}, {pipeline_mode = #tpu.pipeline_mode<synchronous>, transform_indices = @transform_11, window_bounds = array<i64: 1, 32>}, {pipeline_mode = #tpu.pipeline_mode<synchronous>, transform_indices = @transform_12, window_bounds = array<i64: 1, 32>}, {pipeline_mode = #tpu.pipeline_mode<synchronous>, transform_indices = @transform_13, window_bounds = array<i64: 32, 64>}, {pipeline_mode = #tpu.pipeline_mode<synchronous>, transform_indices = @transform_14, window_bounds = array<i64: 1, 64>}, {pipeline_mode = #tpu.pipeline_mode<synchronous>, transform_indices = @transform_15, window_bounds = array<i64: 64, 32>}, {pipeline_mode = #tpu.pipeline_mode<synchronous>, transform_indices = @transform_16, window_bounds = array<i64: 1, 32>}, {transform_indices = @transform_17, window_bounds = array<i64: 8, 32>}]} {
    %c0 = arith.constant 0 : index
    %c0_0 = arith.constant 0 : index
    %0 = vector.load %arg1[%c0, %c0_0] : memref<8x32xbf16, #tpu.memory_space<vmem>>, vector<8x32xbf16>
    %1 = arith.extf %0 : vector<8x32xbf16> to vector<8x32xf32>
    %c0_1 = arith.constant 0 : index
    %c0_2 = arith.constant 0 : index
    %2 = vector.load %arg2[%c0_1, %c0_2] : memref<1x32xf32, #tpu.memory_space<vmem>>, vector<1x32xf32>
    %c0_3 = arith.constant 0 : index
    %c0_4 = arith.constant 0 : index
    %3 = vector.load %arg3[%c0_3, %c0_4] : memref<1x32xf32, #tpu.memory_space<vmem>>, vector<1x32xf32>
    %cst = arith.constant dense<0.000000e+00> : vector<8xf32>
    %4 = vector.multi_reduction <add>, %1, %cst [1] : vector<8x32xf32> to vector<8xf32>
    %5 = vector.shape_cast %4 : vector<8xf32> to vector<8x1xf32>
    %cst_5 = arith.constant 3.200000e+01 : f32
    %6 = vector.broadcast %cst_5 : f32 to vector<8x1xf32>
    %7 = arith.divf %5, %6 : vector<8x1xf32>
    %8 = vector.broadcast %7 : vector<8x1xf32> to vector<8x32xf32>
    %9 = arith.subf %1, %8 : vector<8x32xf32>
    %10 = arith.mulf %9, %9 : vector<8x32xf32>
    %cst_6 = arith.constant dense<0.000000e+00> : vector<8xf32>
    %11 = vector.multi_reduction <add>, %10, %cst_6 [1] : vector<8x32xf32> to vector<8xf32>
    %12 = vector.shape_cast %11 : vector<8xf32> to vector<8x1xf32>
    %cst_7 = arith.constant 3.200000e+01 : f32
    %13 = vector.broadcast %cst_7 : f32 to vector<8x1xf32>
    %14 = arith.divf %12, %13 : vector<8x1xf32>
    %15 = vector.broadcast %7 : vector<8x1xf32> to vector<8x32xf32>
    %16 = arith.subf %1, %15 : vector<8x32xf32>
    %cst_8 = arith.constant 9.99999974E-6 : f32
    %17 = vector.broadcast %cst_8 : f32 to vector<8x1xf32>
    %18 = arith.addf %14, %17 : vector<8x1xf32>
    %19 = math.rsqrt %18 : vector<8x1xf32>
    %20 = vector.broadcast %19 : vector<8x1xf32> to vector<8x32xf32>
    %21 = arith.mulf %16, %20 : vector<8x32xf32>
    %22 = vector.broadcast %2 : vector<1x32xf32> to vector<8x32xf32>
    %23 = arith.mulf %21, %22 : vector<8x32xf32>
    %24 = vector.broadcast %3 : vector<1x32xf32> to vector<8x32xf32>
    %25 = arith.addf %23, %24 : vector<8x32xf32>
    %26 = arith.truncf %25 : vector<8x32xf32> to vector<8x32xbf16>
    %c0_9 = arith.constant 0 : index
    %c0_10 = arith.constant 0 : index
    %27 = vector.load %arg4[%c0_9, %c0_10] : memref<32x32xbf16, #tpu.memory_space<vmem>>, vector<32x32xbf16>
    %cst_11 = arith.constant dense<0.000000e+00> : vector<8x32xf32>
    %28 = tpu.matmul %26, %27, %cst_11 {dimension_numbers = #tpu.dot_dimension_numbers<[1], [0], [0], [1], [0, 0, 1, 1], [], []>} : vector<8x32xbf16>, vector<32x32xbf16>, vector<8x32xf32> -> vector<8x32xf32>
    %c0_12 = arith.constant 0 : index
    %c0_13 = arith.constant 0 : index
    %29 = vector.load %arg7[%c0_12, %c0_13] : memref<1x32xf32, #tpu.memory_space<vmem>>, vector<1x32xf32>
    %30 = vector.broadcast %29 : vector<1x32xf32> to vector<8x32xf32>
    %31 = arith.addf %28, %30 : vector<8x32xf32>
    %c0_14 = arith.constant 0 : index
    %c0_15 = arith.constant 0 : index
    %32 = vector.load %arg5[%c0_14, %c0_15] : memref<32x32xbf16, #tpu.memory_space<vmem>>, vector<32x32xbf16>
    %cst_16 = arith.constant dense<0.000000e+00> : vector<8x32xf32>
    %33 = tpu.matmul %26, %32, %cst_16 {dimension_numbers = #tpu.dot_dimension_numbers<[1], [0], [0], [1], [0, 0, 1, 1], [], []>} : vector<8x32xbf16>, vector<32x32xbf16>, vector<8x32xf32> -> vector<8x32xf32>
    %c0_17 = arith.constant 0 : index
    %c0_18 = arith.constant 0 : index
    %34 = vector.load %arg8[%c0_17, %c0_18] : memref<1x32xf32, #tpu.memory_space<vmem>>, vector<1x32xf32>
    %35 = vector.broadcast %34 : vector<1x32xf32> to vector<8x32xf32>
    %36 = arith.addf %33, %35 : vector<8x32xf32>
    %c0_19 = arith.constant 0 : index
    %c0_20 = arith.constant 0 : index
    %37 = vector.load %arg6[%c0_19, %c0_20] : memref<32x32xbf16, #tpu.memory_space<vmem>>, vector<32x32xbf16>
    %cst_21 = arith.constant dense<0.000000e+00> : vector<8x32xf32>
    %38 = tpu.matmul %26, %37, %cst_21 {dimension_numbers = #tpu.dot_dimension_numbers<[1], [0], [0], [1], [0, 0, 1, 1], [], []>} : vector<8x32xbf16>, vector<32x32xbf16>, vector<8x32xf32> -> vector<8x32xf32>
    %c0_22 = arith.constant 0 : index
    %c0_23 = arith.constant 0 : index
    %39 = vector.load %arg9[%c0_22, %c0_23] : memref<1x32xf32, #tpu.memory_space<vmem>>, vector<1x32xf32>
    %40 = vector.broadcast %39 : vector<1x32xf32> to vector<8x32xf32>
    %41 = arith.addf %38, %40 : vector<8x32xf32>
    %42 = vector.extract_strided_slice %31 {offsets = [0, 0], sizes = [8, 8], strides = [1, 1]} : vector<8x32xf32> to vector<8x8xf32>
    %43 = arith.truncf %42 : vector<8x8xf32> to vector<8x8xbf16>
    %44 = vector.extract_strided_slice %36 {offsets = [0, 0], sizes = [8, 8], strides = [1, 1]} : vector<8x32xf32> to vector<8x8xf32>
    %45 = arith.truncf %44 : vector<8x8xf32> to vector<8x8xbf16>
    %46 = vector.extract_strided_slice %41 {offsets = [0, 0], sizes = [8, 8], strides = [1, 1]} : vector<8x32xf32> to vector<8x8xf32>
    %47 = arith.truncf %46 : vector<8x8xf32> to vector<8x8xbf16>
    "tpu.trace_start"() <{level = 10 : i32, message = "qd,kd->qk"}> : () -> ()
    %cst_24 = arith.constant dense<0.000000e+00> : vector<8x8xf32>
    %48 = tpu.matmul %43, %45, %cst_24 {dimension_numbers = #tpu.dot_dimension_numbers<[1], [1], [0], [0], [0, 0, 1, 0], [], []>} : vector<8x8xbf16>, vector<8x8xbf16>, vector<8x8xf32> -> vector<8x8xf32>
    "tpu.trace_stop"() : () -> ()
    %cst_25 = arith.constant 0.353553385 : f32
    %49 = vector.broadcast %cst_25 : f32 to vector<8x8xf32>
    %50 = arith.mulf %48, %49 : vector<8x8xf32>
    %cst_26 = arith.constant dense<0xFF800000> : vector<8xf32>
    %51 = vector.multi_reduction <maximumf>, %50, %cst_26 [1] : vector<8x8xf32> to vector<8xf32>
    %52 = vector.shape_cast %51 : vector<8xf32> to vector<8x1xf32>
    %53 = vector.broadcast %52 : vector<8x1xf32> to vector<8x8xf32>
    %54 = arith.subf %50, %53 : vector<8x8xf32>
    %55 = math.exp %54 : vector<8x8xf32>
    %cst_27 = arith.constant dense<0.000000e+00> : vector<8xf32>
    %56 = vector.multi_reduction <add>, %55, %cst_27 [1] : vector<8x8xf32> to vector<8xf32>
    %57 = vector.shape_cast %56 : vector<8xf32> to vector<8x1xf32>
    %58 = tpu.reciprocal %57 {approx = true} : vector<8x1xf32> -> vector<8x1xf32>
    %59 = vector.broadcast %58 : vector<8x1xf32> to vector<8x8xf32>
    %60 = arith.mulf %55, %59 : vector<8x8xf32>
    %61 = arith.truncf %60 : vector<8x8xf32> to vector<8x8xbf16>
    %cst_28 = arith.constant dense<0.000000e+00> : vector<8x8xf32>
    %62 = tpu.matmul %61, %47, %cst_28 {dimension_numbers = #tpu.dot_dimension_numbers<[1], [0], [0], [1], [0, 0, 1, 1], [], []>} : vector<8x8xbf16>, vector<8x8xbf16>, vector<8x8xf32> -> vector<8x8xf32>
    %63 = vector.extract_strided_slice %31 {offsets = [0, 8], sizes = [8, 8], strides = [1, 1]} : vector<8x32xf32> to vector<8x8xf32>
    %64 = arith.truncf %63 : vector<8x8xf32> to vector<8x8xbf16>
    %65 = vector.extract_strided_slice %36 {offsets = [0, 8], sizes = [8, 8], strides = [1, 1]} : vector<8x32xf32> to vector<8x8xf32>
    %66 = arith.truncf %65 : vector<8x8xf32> to vector<8x8xbf16>
    %67 = vector.extract_strided_slice %41 {offsets = [0, 8], sizes = [8, 8], strides = [1, 1]} : vector<8x32xf32> to vector<8x8xf32>
    %68 = arith.truncf %67 : vector<8x8xf32> to vector<8x8xbf16>
    "tpu.trace_start"() <{level = 10 : i32, message = "qd,kd->qk"}> : () -> ()
    %cst_29 = arith.constant dense<0.000000e+00> : vector<8x8xf32>
    %69 = tpu.matmul %64, %66, %cst_29 {dimension_numbers = #tpu.dot_dimension_numbers<[1], [1], [0], [0], [0, 0, 1, 0], [], []>} : vector<8x8xbf16>, vector<8x8xbf16>, vector<8x8xf32> -> vector<8x8xf32>
    "tpu.trace_stop"() : () -> ()
    %cst_30 = arith.constant 0.353553385 : f32
    %70 = vector.broadcast %cst_30 : f32 to vector<8x8xf32>
    %71 = arith.mulf %69, %70 : vector<8x8xf32>
    %cst_31 = arith.constant dense<0xFF800000> : vector<8xf32>
    %72 = vector.multi_reduction <maximumf>, %71, %cst_31 [1] : vector<8x8xf32> to vector<8xf32>
    %73 = vector.shape_cast %72 : vector<8xf32> to vector<8x1xf32>
    %74 = vector.broadcast %73 : vector<8x1xf32> to vector<8x8xf32>
    %75 = arith.subf %71, %74 : vector<8x8xf32>
    %76 = math.exp %75 : vector<8x8xf32>
    %cst_32 = arith.constant dense<0.000000e+00> : vector<8xf32>
    %77 = vector.multi_reduction <add>, %76, %cst_32 [1] : vector<8x8xf32> to vector<8xf32>
    %78 = vector.shape_cast %77 : vector<8xf32> to vector<8x1xf32>
    %79 = tpu.reciprocal %78 {approx = true} : vector<8x1xf32> -> vector<8x1xf32>
    %80 = vector.broadcast %79 : vector<8x1xf32> to vector<8x8xf32>
    %81 = arith.mulf %76, %80 : vector<8x8xf32>
    %82 = arith.truncf %81 : vector<8x8xf32> to vector<8x8xbf16>
    %cst_33 = arith.constant dense<0.000000e+00> : vector<8x8xf32>
    %83 = tpu.matmul %82, %68, %cst_33 {dimension_numbers = #tpu.dot_dimension_numbers<[1], [0], [0], [1], [0, 0, 1, 1], [], []>} : vector<8x8xbf16>, vector<8x8xbf16>, vector<8x8xf32> -> vector<8x8xf32>
    %84 = vector.extract_strided_slice %31 {offsets = [0, 16], sizes = [8, 8], strides = [1, 1]} : vector<8x32xf32> to vector<8x8xf32>
    %85 = arith.truncf %84 : vector<8x8xf32> to vector<8x8xbf16>
    %86 = vector.extract_strided_slice %36 {offsets = [0, 16], sizes = [8, 8], strides = [1, 1]} : vector<8x32xf32> to vector<8x8xf32>
    %87 = arith.truncf %86 : vector<8x8xf32> to vector<8x8xbf16>
    %88 = vector.extract_strided_slice %41 {offsets = [0, 16], sizes = [8, 8], strides = [1, 1]} : vector<8x32xf32> to vector<8x8xf32>
    %89 = arith.truncf %88 : vector<8x8xf32> to vector<8x8xbf16>
    "tpu.trace_start"() <{level = 10 : i32, message = "qd,kd->qk"}> : () -> ()
    %cst_34 = arith.constant dense<0.000000e+00> : vector<8x8xf32>
    %90 = tpu.matmul %85, %87, %cst_34 {dimension_numbers = #tpu.dot_dimension_numbers<[1], [1], [0], [0], [0, 0, 1, 0], [], []>} : vector<8x8xbf16>, vector<8x8xbf16>, vector<8x8xf32> -> vector<8x8xf32>
    "tpu.trace_stop"() : () -> ()
    %cst_35 = arith.constant 0.353553385 : f32
    %91 = vector.broadcast %cst_35 : f32 to vector<8x8xf32>
    %92 = arith.mulf %90, %91 : vector<8x8xf32>
    %cst_36 = arith.constant dense<0xFF800000> : vector<8xf32>
    %93 = vector.multi_reduction <maximumf>, %92, %cst_36 [1] : vector<8x8xf32> to vector<8xf32>
    %94 = vector.shape_cast %93 : vector<8xf32> to vector<8x1xf32>
    %95 = vector.broadcast %94 : vector<8x1xf32> to vector<8x8xf32>
    %96 = arith.subf %92, %95 : vector<8x8xf32>
    %97 = math.exp %96 : vector<8x8xf32>
    %cst_37 = arith.constant dense<0.000000e+00> : vector<8xf32>
    %98 = vector.multi_reduction <add>, %97, %cst_37 [1] : vector<8x8xf32> to vector<8xf32>
    %99 = vector.shape_cast %98 : vector<8xf32> to vector<8x1xf32>
    %100 = tpu.reciprocal %99 {approx = true} : vector<8x1xf32> -> vector<8x1xf32>
    %101 = vector.broadcast %100 : vector<8x1xf32> to vector<8x8xf32>
    %102 = arith.mulf %97, %101 : vector<8x8xf32>
    %103 = arith.truncf %102 : vector<8x8xf32> to vector<8x8xbf16>
    %cst_38 = arith.constant dense<0.000000e+00> : vector<8x8xf32>
    %104 = tpu.matmul %103, %89, %cst_38 {dimension_numbers = #tpu.dot_dimension_numbers<[1], [0], [0], [1], [0, 0, 1, 1], [], []>} : vector<8x8xbf16>, vector<8x8xbf16>, vector<8x8xf32> -> vector<8x8xf32>
    %105 = vector.extract_strided_slice %31 {offsets = [0, 24], sizes = [8, 8], strides = [1, 1]} : vector<8x32xf32> to vector<8x8xf32>
    %106 = arith.truncf %105 : vector<8x8xf32> to vector<8x8xbf16>
    %107 = vector.extract_strided_slice %36 {offsets = [0, 24], sizes = [8, 8], strides = [1, 1]} : vector<8x32xf32> to vector<8x8xf32>
    %108 = arith.truncf %107 : vector<8x8xf32> to vector<8x8xbf16>
    %109 = vector.extract_strided_slice %41 {offsets = [0, 24], sizes = [8, 8], strides = [1, 1]} : vector<8x32xf32> to vector<8x8xf32>
    %110 = arith.truncf %109 : vector<8x8xf32> to vector<8x8xbf16>
    "tpu.trace_start"() <{level = 10 : i32, message = "qd,kd->qk"}> : () -> ()
    %cst_39 = arith.constant dense<0.000000e+00> : vector<8x8xf32>
    %111 = tpu.matmul %106, %108, %cst_39 {dimension_numbers = #tpu.dot_dimension_numbers<[1], [1], [0], [0], [0, 0, 1, 0], [], []>} : vector<8x8xbf16>, vector<8x8xbf16>, vector<8x8xf32> -> vector<8x8xf32>
    "tpu.trace_stop"() : () -> ()
    %cst_40 = arith.constant 0.353553385 : f32
    %112 = vector.broadcast %cst_40 : f32 to vector<8x8xf32>
    %113 = arith.mulf %111, %112 : vector<8x8xf32>
    %cst_41 = arith.constant dense<0xFF800000> : vector<8xf32>
    %114 = vector.multi_reduction <maximumf>, %113, %cst_41 [1] : vector<8x8xf32> to vector<8xf32>
    %115 = vector.shape_cast %114 : vector<8xf32> to vector<8x1xf32>
    %116 = vector.broadcast %115 : vector<8x1xf32> to vector<8x8xf32>
    %117 = arith.subf %113, %116 : vector<8x8xf32>
    %118 = math.exp %117 : vector<8x8xf32>
    %cst_42 = arith.constant dense<0.000000e+00> : vector<8xf32>
    %119 = vector.multi_reduction <add>, %118, %cst_42 [1] : vector<8x8xf32> to vector<8xf32>
    %120 = vector.shape_cast %119 : vector<8xf32> to vector<8x1xf32>
    %121 = tpu.reciprocal %120 {approx = true} : vector<8x1xf32> -> vector<8x1xf32>
    %122 = vector.broadcast %121 : vector<8x1xf32> to vector<8x8xf32>
    %123 = arith.mulf %118, %122 : vector<8x8xf32>
    %124 = arith.truncf %123 : vector<8x8xf32> to vector<8x8xbf16>
    %cst_43 = arith.constant dense<0.000000e+00> : vector<8x8xf32>
    %125 = tpu.matmul %124, %110, %cst_43 {dimension_numbers = #tpu.dot_dimension_numbers<[1], [0], [0], [1], [0, 0, 1, 1], [], []>} : vector<8x8xbf16>, vector<8x8xbf16>, vector<8x8xf32> -> vector<8x8xf32>
    %126 = tpu.concatenate %62, %83, %104, %125 in 1 : vector<8x8xf32>, vector<8x8xf32>, vector<8x8xf32>, vector<8x8xf32> -> vector<8x32xf32>
    %127 = arith.truncf %126 : vector<8x32xf32> to vector<8x32xbf16>
    %c0_44 = arith.constant 0 : index
    %c0_45 = arith.constant 0 : index
    %128 = vector.load %arg10[%c0_44, %c0_45] : memref<32x32xbf16, #tpu.memory_space<vmem>>, vector<32x32xbf16>
    %cst_46 = arith.constant dense<0.000000e+00> : vector<8x32xf32>
    %129 = tpu.matmul %127, %128, %cst_46 {dimension_numbers = #tpu.dot_dimension_numbers<[1], [0], [0], [1], [0, 0, 1, 1], [], []>} : vector<8x32xbf16>, vector<32x32xbf16>, vector<8x32xf32> -> vector<8x32xf32>
    %130 = arith.addf %1, %129 : vector<8x32xf32>
    %c0_47 = arith.constant 0 : index
    %c0_48 = arith.constant 0 : index
    %131 = vector.load %arg11[%c0_47, %c0_48] : memref<1x32xf32, #tpu.memory_space<vmem>>, vector<1x32xf32>
    %132 = vector.broadcast %131 : vector<1x32xf32> to vector<8x32xf32>
    %133 = arith.addf %130, %132 : vector<8x32xf32>
    %c0_49 = arith.constant 0 : index
    %c0_50 = arith.constant 0 : index
    %134 = vector.load %arg12[%c0_49, %c0_50] : memref<1x32xf32, #tpu.memory_space<vmem>>, vector<1x32xf32>
    %c0_51 = arith.constant 0 : index
    %c0_52 = arith.constant 0 : index
    %135 = vector.load %arg13[%c0_51, %c0_52] : memref<1x32xf32, #tpu.memory_space<vmem>>, vector<1x32xf32>
    %cst_53 = arith.constant dense<0.000000e+00> : vector<8xf32>
    %136 = vector.multi_reduction <add>, %133, %cst_53 [1] : vector<8x32xf32> to vector<8xf32>
    %137 = vector.shape_cast %136 : vector<8xf32> to vector<8x1xf32>
    %cst_54 = arith.constant 3.200000e+01 : f32
    %138 = vector.broadcast %cst_54 : f32 to vector<8x1xf32>
    %139 = arith.divf %137, %138 : vector<8x1xf32>
    %140 = vector.broadcast %139 : vector<8x1xf32> to vector<8x32xf32>
    %141 = arith.subf %133, %140 : vector<8x32xf32>
    %142 = arith.mulf %141, %141 : vector<8x32xf32>
    %cst_55 = arith.constant dense<0.000000e+00> : vector<8xf32>
    %143 = vector.multi_reduction <add>, %142, %cst_55 [1] : vector<8x32xf32> to vector<8xf32>
    %144 = vector.shape_cast %143 : vector<8xf32> to vector<8x1xf32>
    %cst_56 = arith.constant 3.200000e+01 : f32
    %145 = vector.broadcast %cst_56 : f32 to vector<8x1xf32>
    %146 = arith.divf %144, %145 : vector<8x1xf32>
    %147 = vector.broadcast %139 : vector<8x1xf32> to vector<8x32xf32>
    %148 = arith.subf %133, %147 : vector<8x32xf32>
    %cst_57 = arith.constant 9.99999974E-6 : f32
    %149 = vector.broadcast %cst_57 : f32 to vector<8x1xf32>
    %150 = arith.addf %146, %149 : vector<8x1xf32>
    %151 = math.rsqrt %150 : vector<8x1xf32>
    %152 = vector.broadcast %151 : vector<8x1xf32> to vector<8x32xf32>
    %153 = arith.mulf %148, %152 : vector<8x32xf32>
    %154 = vector.broadcast %134 : vector<1x32xf32> to vector<8x32xf32>
    %155 = arith.mulf %153, %154 : vector<8x32xf32>
    %156 = vector.broadcast %135 : vector<1x32xf32> to vector<8x32xf32>
    %157 = arith.addf %155, %156 : vector<8x32xf32>
    %c0_58 = arith.constant 0 : index
    %c0_59 = arith.constant 0 : index
    %158 = vector.load %arg14[%c0_58, %c0_59] : memref<32x64xbf16, #tpu.memory_space<vmem>>, vector<32x64xbf16>
    %159 = arith.truncf %157 : vector<8x32xf32> to vector<8x32xbf16>
    %cst_60 = arith.constant dense<0.000000e+00> : vector<8x64xf32>
    %160 = tpu.matmul %159, %158, %cst_60 {dimension_numbers = #tpu.dot_dimension_numbers<[1], [0], [0], [1], [0, 0, 1, 1], [], []>} : vector<8x32xbf16>, vector<32x64xbf16>, vector<8x64xf32> -> vector<8x64xf32>
    %c0_61 = arith.constant 0 : index
    %c0_62 = arith.constant 0 : index
    %161 = vector.load %arg15[%c0_61, %c0_62] : memref<1x64xf32, #tpu.memory_space<vmem>>, vector<1x64xf32>
    %162 = vector.broadcast %161 : vector<1x64xf32> to vector<8x64xf32>
    %163 = arith.addf %160, %162 : vector<8x64xf32>
    %164 = arith.mulf %163, %163 : vector<8x64xf32>
    %165 = arith.mulf %163, %164 : vector<8x64xf32>
    %cst_63 = arith.constant 4.471500e-02 : f32
    %166 = vector.broadcast %cst_63 : f32 to vector<8x64xf32>
    %167 = arith.mulf %166, %165 : vector<8x64xf32>
    %168 = arith.addf %163, %167 : vector<8x64xf32>
    %cst_64 = arith.constant 0.797884583 : f32
    %169 = vector.broadcast %cst_64 : f32 to vector<8x64xf32>
    %170 = arith.mulf %169, %168 : vector<8x64xf32>
    %171 = math.tanh %170 : vector<8x64xf32>
    %cst_65 = arith.constant 1.000000e+00 : f32
    %172 = vector.broadcast %cst_65 : f32 to vector<8x64xf32>
    %173 = arith.addf %172, %171 : vector<8x64xf32>
    %cst_66 = arith.constant 5.000000e-01 : f32
    %174 = vector.broadcast %cst_66 : f32 to vector<8x64xf32>
    %175 = arith.mulf %174, %173 : vector<8x64xf32>
    %176 = arith.mulf %163, %175 : vector<8x64xf32>
    %c0_67 = arith.constant 0 : index
    %c0_68 = arith.constant 0 : index
    %177 = vector.load %arg16[%c0_67, %c0_68] : memref<64x32xbf16, #tpu.memory_space<vmem>>, vector<64x32xbf16>
    %178 = arith.truncf %176 : vector<8x64xf32> to vector<8x64xbf16>
    %cst_69 = arith.constant dense<0.000000e+00> : vector<8x32xf32>
    %179 = tpu.matmul %178, %177, %cst_69 {dimension_numbers = #tpu.dot_dimension_numbers<[1], [0], [0], [1], [0, 0, 1, 1], [], []>} : vector<8x64xbf16>, vector<64x32xbf16>, vector<8x32xf32> -> vector<8x32xf32>
    %c0_70 = arith.constant 0 : index
    %c0_71 = arith.constant 0 : index
    %180 = vector.load %arg17[%c0_70, %c0_71] : memref<1x32xf32, #tpu.memory_space<vmem>>, vector<1x32xf32>
    %181 = vector.broadcast %180 : vector<1x32xf32> to vector<8x32xf32>
    %182 = arith.addf %179, %181 : vector<8x32xf32>
    %183 = arith.addf %133, %182 : vector<8x32xf32>
    %184 = arith.truncf %183 : vector<8x32xf32> to vector<8x32xbf16>
    %c0_72 = arith.constant 0 : index
    %c0_73 = arith.constant 0 : index
    %185 = vector.load %arg18[%c0_72, %c0_73] : memref<8x32xbf16, #tpu.memory_space<vmem>>, vector<8x32xbf16>
    tpu.vector_store %arg18[%c0_72, %c0_73], %184 {strides = array<i32>} : memref<8x32xbf16, #tpu.memory_space<vmem>>, vector<8x32xbf16>,
    return
  }
  func.func @transform_0(%arg0: i32) -> (i32, i32) {
    %c0_i32 = arith.constant 0 : i32
    %c0_i32_0 = arith.constant 0 : i32
    return %arg0, %c0_i32 : i32, i32
  }
  func.func @transform_1(%arg0: i32) -> (i32, i32) {
    %c0_i32 = arith.constant 0 : i32
    %c0_i32_0 = arith.constant 0 : i32
    %c0_i32_1 = arith.constant 0 : i32
    return %c0_i32, %c0_i32_0 : i32, i32
  }
  func.func @transform_2(%arg0: i32) -> (i32, i32) {
    %c0_i32 = arith.constant 0 : i32
    %c0_i32_0 = arith.constant 0 : i32
    %c0_i32_1 = arith.constant 0 : i32
    return %c0_i32, %c0_i32_0 : i32, i32
  }
  func.func @transform_3(%arg0: i32) -> (i32, i32) {
    %c0_i32 = arith.constant 0 : i32
    %c0_i32_0 = arith.constant 0 : i32
    %c0_i32_1 = arith.constant 0 : i32
    return %c0_i32, %c0_i32_0 : i32, i32
  }
  func.func @transform_4(%arg0: i32) -> (i32, i32) {
    %c0_i32 = arith.constant 0 : i32
    %c0_i32_0 = arith.constant 0 : i32
    %c0_i32_1 = arith.constant 0 : i32
    return %c0_i32, %c0_i32_0 : i32, i32
  }
  func.func @transform_5(%arg0: i32) -> (i32, i32) {
    %c0_i32 = arith.constant 0 : i32
    %c0_i32_0 = arith.constant 0 : i32
    %c0_i32_1 = arith.constant 0 : i32
    return %c0_i32, %c0_i32_0 : i32, i32
  }
  func.func @transform_6(%arg0: i32) -> (i32, i32) {
    %c0_i32 = arith.constant 0 : i32
    %c0_i32_0 = arith.constant 0 : i32
    %c0_i32_1 = arith.constant 0 : i32
    return %c0_i32, %c0_i32_0 : i32, i32
  }
  func.func @transform_7(%arg0: i32) -> (i32, i32) {
    %c0_i32 = arith.constant 0 : i32
    %c0_i32_0 = arith.constant 0 : i32
    %c0_i32_1 = arith.constant 0 : i32
    return %c0_i32, %c0_i32_0 : i32, i32
  }
  func.func @transform_8(%arg0: i32) -> (i32, i32) {
    %c0_i32 = arith.constant 0 : i32
    %c0_i32_0 = arith.constant 0 : i32
    %c0_i32_1 = arith.constant 0 : i32
    return %c0_i32, %c0_i32_0 : i32, i32
  }
  func.func @transform_9(%arg0: i32) -> (i32, i32) {
    %c0_i32 = arith.constant 0 : i32
    %c0_i32_0 = arith.constant 0 : i32
    %c0_i32_1 = arith.constant 0 : i32
    return %c0_i32, %c0_i32_0 : i32, i32
  }
  func.func @transform_10(%arg0: i32) -> (i32, i32) {
    %c0_i32 = arith.constant 0 : i32
    %c0_i32_0 = arith.constant 0 : i32
    %c0_i32_1 = arith.constant 0 : i32
    return %c0_i32, %c0_i32_0 : i32, i32
  }
  func.func @transform_11(%arg0: i32) -> (i32, i32) {
    %c0_i32 = arith.constant 0 : i32
    %c0_i32_0 = arith.constant 0 : i32
    %c0_i32_1 = arith.constant 0 : i32
    return %c0_i32, %c0_i32_0 : i32, i32
  }
  func.func @transform_12(%arg0: i32) -> (i32, i32) {
    %c0_i32 = arith.constant 0 : i32
    %c0_i32_0 = arith.constant 0 : i32
    %c0_i32_1 = arith.constant 0 : i32
    return %c0_i32, %c0_i32_0 : i32, i32
  }
  func.func @transform_13(%arg0: i32) -> (i32, i32) {
    %c0_i32 = arith.constant 0 : i32
    %c0_i32_0 = arith.constant 0 : i32
    %c0_i32_1 = arith.constant 0 : i32
    return %c0_i32, %c0_i32_0 : i32, i32
  }
  func.func @transform_14(%arg0: i32) -> (i32, i32) {
    %c0_i32 = arith.constant 0 : i32
    %c0_i32_0 = arith.constant 0 : i32
    %c0_i32_1 = arith.constant 0 : i32
    return %c0_i32, %c0_i32_0 : i32, i32
  }
  func.func @transform_15(%arg0: i32) -> (i32, i32) {
    %c0_i32 = arith.constant 0 : i32
    %c0_i32_0 = arith.constant 0 : i32
    %c0_i32_1 = arith.constant 0 : i32
    return %c0_i32, %c0_i32_0 : i32, i32
  }
  func.func @transform_16(%arg0: i32) -> (i32, i32) {
    %c0_i32 = arith.constant 0 : i32
    %c0_i32_0 = arith.constant 0 : i32
    %c0_i32_1 = arith.constant 0 : i32
    return %c0_i32, %c0_i32_0 : i32, i32
  }
  func.func @transform_17(%arg0: i32) -> (i32, i32) {
    %c0_i32 = arith.constant 0 : i32
    %c0_i32_0 = arith.constant 0 : i32
    return %arg0, %c0_i32 : i32, i32
  }
}

module attributes {stable_mosaic.version = 11 : i64} {
  func.func @_decoder_head_kernel(%arg0: i32, %arg1: memref<8x32xbf16, #tpu.memory_space<vmem>>, %arg2: memref<1x32xf32, #tpu.memory_space<vmem>>, %arg3: memref<1x32xf32, #tpu.memory_space<vmem>>, %arg4: memref<32x32xbf16, #tpu.memory_space<vmem>>, %arg5: memref<1x32xf32, #tpu.memory_space<vmem>>, %arg6: memref<8x32xf32, #tpu.memory_space<vmem>>, %arg7: memref<8x32xf32, #tpu.memory_space<vmem>>, %arg8: memref<1x1x1xf32, #tpu.memory_space<vmem>>) attributes {dimension_semantics = [#tpu.dimension_semantics<parallel>], iteration_bounds = array<i64: 2>, scalar_prefetch = 0 : i64, scratch_operands = 0 : i64, tpu.core_type = #tpu.core_type<tc>, window_params = [{transform_indices = @transform_0, window_bounds = array<i64: 8, 32>}, {pipeline_mode = #tpu.pipeline_mode<synchronous>, transform_indices = @transform_1, window_bounds = array<i64: 1, 32>}, {pipeline_mode = #tpu.pipeline_mode<synchronous>, transform_indices = @transform_2, window_bounds = array<i64: 1, 32>}, {pipeline_mode = #tpu.pipeline_mode<synchronous>, transform_indices = @transform_3, window_bounds = array<i64: 32, 32>}, {pipeline_mode = #tpu.pipeline_mode<synchronous>, transform_indices = @transform_4, window_bounds = array<i64: 1, 32>}, {transform_indices = @transform_5, window_bounds = array<i64: 8, 32>}, {transform_indices = @transform_6, window_bounds = array<i64: 8, 32>}, {transform_indices = @transform_7, window_bounds = array<i64: 1, 1, 1>}]} {
    %c0 = arith.constant 0 : index
    %c0_0 = arith.constant 0 : index
    %0 = vector.load %arg1[%c0, %c0_0] : memref<8x32xbf16, #tpu.memory_space<vmem>>, vector<8x32xbf16>
    %1 = arith.extf %0 : vector<8x32xbf16> to vector<8x32xf32>
    %c0_1 = arith.constant 0 : index
    %c0_2 = arith.constant 0 : index
    %2 = vector.load %arg2[%c0_1, %c0_2] : memref<1x32xf32, #tpu.memory_space<vmem>>, vector<1x32xf32>
    %c0_3 = arith.constant 0 : index
    %c0_4 = arith.constant 0 : index
    %3 = vector.load %arg3[%c0_3, %c0_4] : memref<1x32xf32, #tpu.memory_space<vmem>>, vector<1x32xf32>
    %cst = arith.constant dense<0.000000e+00> : vector<8xf32>
    %4 = vector.multi_reduction <add>, %1, %cst [1] : vector<8x32xf32> to vector<8xf32>
    %5 = vector.shape_cast %4 : vector<8xf32> to vector<8x1xf32>
    %cst_5 = arith.constant 3.200000e+01 : f32
    %6 = vector.broadcast %cst_5 : f32 to vector<8x1xf32>
    %7 = arith.divf %5, %6 : vector<8x1xf32>
    %8 = vector.broadcast %7 : vector<8x1xf32> to vector<8x32xf32>
    %9 = arith.subf %1, %8 : vector<8x32xf32>
    %10 = arith.mulf %9, %9 : vector<8x32xf32>
    %cst_6 = arith.constant dense<0.000000e+00> : vector<8xf32>
    %11 = vector.multi_reduction <add>, %10, %cst_6 [1] : vector<8x32xf32> to vector<8xf32>
    %12 = vector.shape_cast %11 : vector<8xf32> to vector<8x1xf32>
    %cst_7 = arith.constant 3.200000e+01 : f32
    %13 = vector.broadcast %cst_7 : f32 to vector<8x1xf32>
    %14 = arith.divf %12, %13 : vector<8x1xf32>
    %15 = vector.broadcast %7 : vector<8x1xf32> to vector<8x32xf32>
    %16 = arith.subf %1, %15 : vector<8x32xf32>
    %cst_8 = arith.constant 9.99999974E-6 : f32
    %17 = vector.broadcast %cst_8 : f32 to vector<8x1xf32>
    %18 = arith.addf %14, %17 : vector<8x1xf32>
    %19 = math.rsqrt %18 : vector<8x1xf32>
    %20 = vector.broadcast %19 : vector<8x1xf32> to vector<8x32xf32>
    %21 = arith.mulf %16, %20 : vector<8x32xf32>
    %22 = vector.broadcast %2 : vector<1x32xf32> to vector<8x32xf32>
    %23 = arith.mulf %21, %22 : vector<8x32xf32>
    %24 = vector.broadcast %3 : vector<1x32xf32> to vector<8x32xf32>
    %25 = arith.addf %23, %24 : vector<8x32xf32>
    %c0_9 = arith.constant 0 : index
    %c0_10 = arith.constant 0 : index
    %26 = vector.load %arg4[%c0_9, %c0_10] : memref<32x32xbf16, #tpu.memory_space<vmem>>, vector<32x32xbf16>
    %27 = arith.truncf %25 : vector<8x32xf32> to vector<8x32xbf16>
    %cst_11 = arith.constant dense<0.000000e+00> : vector<8x32xf32>
    %28 = tpu.matmul %27, %26, %cst_11 {dimension_numbers = #tpu.dot_dimension_numbers<[1], [0], [0], [1], [0, 0, 1, 1], [], []>} : vector<8x32xbf16>, vector<32x32xbf16>, vector<8x32xf32> -> vector<8x32xf32>
    %c0_12 = arith.constant 0 : index
    %c0_13 = arith.constant 0 : index
    %29 = vector.load %arg5[%c0_12, %c0_13] : memref<1x32xf32, #tpu.memory_space<vmem>>, vector<1x32xf32>
    %30 = vector.broadcast %29 : vector<1x32xf32> to vector<8x32xf32>
    %31 = arith.addf %28, %30 : vector<8x32xf32>
    %c0_14 = arith.constant 0 : index
    %c0_15 = arith.constant 0 : index
    %32 = vector.load %arg7[%c0_14, %c0_15] : memref<8x32xf32, #tpu.memory_space<vmem>>, vector<8x32xf32>
    tpu.vector_store %arg7[%c0_14, %c0_15], %31 {strides = array<i32>} : memref<8x32xf32, #tpu.memory_space<vmem>>, vector<8x32xf32>,
    %c0_16 = arith.constant 0 : index
    %c0_17 = arith.constant 0 : index
    %33 = vector.load %arg6[%c0_16, %c0_17] : memref<8x32xf32, #tpu.memory_space<vmem>>, vector<8x32xf32>
    %34 = arith.subf %31, %33 : vector<8x32xf32>
    %35 = arith.mulf %34, %34 : vector<8x32xf32>
    %36 = vector.shape_cast %35 : vector<8x32xf32> to vector<1x8x32xf32>
    %cst_18 = arith.constant dense<0.000000e+00> : vector<1xf32>
    %37 = vector.multi_reduction <add>, %36, %cst_18 [1, 2] : vector<1x8x32xf32> to vector<1xf32>
    %38 = vector.shape_cast %37 : vector<1xf32> to vector<1x1x1xf32>
    %39 = vector.extract %38[0, 0, 0] : f32 from vector<1x1x1xf32>
    %40 = vector.broadcast %39 : f32 to vector<1x1xf32>
    %c0_19 = arith.constant 0 : index
    %c0_20 = arith.constant 0 : index
    %c0_21 = arith.constant 0 : index
    %41 = vector.load %arg8[%c0_19, %c0_20, %c0_21] : memref<1x1x1xf32, #tpu.memory_space<vmem>>, vector<1x1x1xf32>
    %42 = vector.shape_cast %41 : vector<1x1x1xf32> to vector<1x1xf32>
    %43 = vector.shape_cast %40 : vector<1x1xf32> to vector<1x1x1xf32>
    tpu.vector_store %arg8[%c0_19, %c0_20, %c0_21], %43 {strides = array<i32>} : memref<1x1x1xf32, #tpu.memory_space<vmem>>, vector<1x1x1xf32>,
    return
  }
  func.func @transform_0(%arg0: i32) -> (i32, i32) {
    %c0_i32 = arith.constant 0 : i32
    %c0_i32_0 = arith.constant 0 : i32
    return %arg0, %c0_i32 : i32, i32
  }
  func.func @transform_1(%arg0: i32) -> (i32, i32) {
    %c0_i32 = arith.constant 0 : i32
    %c0_i32_0 = arith.constant 0 : i32
    %c0_i32_1 = arith.constant 0 : i32
    return %c0_i32, %c0_i32_0 : i32, i32
  }
  func.func @transform_2(%arg0: i32) -> (i32, i32) {
    %c0_i32 = arith.constant 0 : i32
    %c0_i32_0 = arith.constant 0 : i32
    %c0_i32_1 = arith.constant 0 : i32
    return %c0_i32, %c0_i32_0 : i32, i32
  }
  func.func @transform_3(%arg0: i32) -> (i32, i32) {
    %c0_i32 = arith.constant 0 : i32
    %c0_i32_0 = arith.constant 0 : i32
    %c0_i32_1 = arith.constant 0 : i32
    return %c0_i32, %c0_i32_0 : i32, i32
  }
  func.func @transform_4(%arg0: i32) -> (i32, i32) {
    %c0_i32 = arith.constant 0 : i32
    %c0_i32_0 = arith.constant 0 : i32
    %c0_i32_1 = arith.constant 0 : i32
    return %c0_i32, %c0_i32_0 : i32, i32
  }
  func.func @transform_5(%arg0: i32) -> (i32, i32) {
    %c0_i32 = arith.constant 0 : i32
    %c0_i32_0 = arith.constant 0 : i32
    return %arg0, %c0_i32 : i32, i32
  }
  func.func @transform_6(%arg0: i32) -> (i32, i32) {
    %c0_i32 = arith.constant 0 : i32
    %c0_i32_0 = arith.constant 0 : i32
    return %arg0, %c0_i32 : i32, i32
  }
  func.func @transform_7(%arg0: i32) -> (i32, i32, i32) {
    %c0_i32 = arith.constant 0 : i32
    %c0_i32_0 = arith.constant 0 : i32
    %c0_i32_1 = arith.constant 0 : i32
    return %arg0, %c0_i32, %c0_i32_0 : i32, i32, i32
  }
}

module attributes {stable_mosaic.version = 11 : i64} {
  func.func @_block_kernel(%arg0: i32, %arg1: memref<8x32xbf16, #tpu.memory_space<vmem>>, %arg2: memref<1x32xf32, #tpu.memory_space<vmem>>, %arg3: memref<1x32xf32, #tpu.memory_space<vmem>>, %arg4: memref<32x16xbf16, #tpu.memory_space<vmem>>, %arg5: memref<32x16xbf16, #tpu.memory_space<vmem>>, %arg6: memref<32x16xbf16, #tpu.memory_space<vmem>>, %arg7: memref<1x16xf32, #tpu.memory_space<vmem>>, %arg8: memref<1x16xf32, #tpu.memory_space<vmem>>, %arg9: memref<1x16xf32, #tpu.memory_space<vmem>>, %arg10: memref<16x32xbf16, #tpu.memory_space<vmem>>, %arg11: memref<1x32xf32, #tpu.memory_space<vmem>>, %arg12: memref<1x32xf32, #tpu.memory_space<vmem>>, %arg13: memref<1x32xf32, #tpu.memory_space<vmem>>, %arg14: memref<32x64xbf16, #tpu.memory_space<vmem>>, %arg15: memref<1x64xf32, #tpu.memory_space<vmem>>, %arg16: memref<64x32xbf16, #tpu.memory_space<vmem>>, %arg17: memref<1x32xf32, #tpu.memory_space<vmem>>, %arg18: memref<8x32xbf16, #tpu.memory_space<vmem>>) attributes {dimension_semantics = [#tpu.dimension_semantics<parallel>], iteration_bounds = array<i64: 2>, scalar_prefetch = 0 : i64, scratch_operands = 0 : i64, tpu.core_type = #tpu.core_type<tc>, window_params = [{transform_indices = @transform_0, window_bounds = array<i64: 8, 32>}, {pipeline_mode = #tpu.pipeline_mode<synchronous>, transform_indices = @transform_1, window_bounds = array<i64: 1, 32>}, {pipeline_mode = #tpu.pipeline_mode<synchronous>, transform_indices = @transform_2, window_bounds = array<i64: 1, 32>}, {pipeline_mode = #tpu.pipeline_mode<synchronous>, transform_indices = @transform_3, window_bounds = array<i64: 32, 16>}, {pipeline_mode = #tpu.pipeline_mode<synchronous>, transform_indices = @transform_4, window_bounds = array<i64: 32, 16>}, {pipeline_mode = #tpu.pipeline_mode<synchronous>, transform_indices = @transform_5, window_bounds = array<i64: 32, 16>}, {pipeline_mode = #tpu.pipeline_mode<synchronous>, transform_indices = @transform_6, window_bounds = array<i64: 1, 16>}, {pipeline_mode = #tpu.pipeline_mode<synchronous>, transform_indices = @transform_7, window_bounds = array<i64: 1, 16>}, {pipeline_mode = #tpu.pipeline_mode<synchronous>, transform_indices = @transform_8, window_bounds = array<i64: 1, 16>}, {pipeline_mode = #tpu.pipeline_mode<synchronous>, transform_indices = @transform_9, window_bounds = array<i64: 16, 32>}, {pipeline_mode = #tpu.pipeline_mode<synchronous>, transform_indices = @transform_10, window_bounds = array<i64: 1, 32>}, {pipeline_mode = #tpu.pipeline_mode<synchronous>, transform_indices = @transform_11, window_bounds = array<i64: 1, 32>}, {pipeline_mode = #tpu.pipeline_mode<synchronous>, transform_indices = @transform_12, window_bounds = array<i64: 1, 32>}, {pipeline_mode = #tpu.pipeline_mode<synchronous>, transform_indices = @transform_13, window_bounds = array<i64: 32, 64>}, {pipeline_mode = #tpu.pipeline_mode<synchronous>, transform_indices = @transform_14, window_bounds = array<i64: 1, 64>}, {pipeline_mode = #tpu.pipeline_mode<synchronous>, transform_indices = @transform_15, window_bounds = array<i64: 64, 32>}, {pipeline_mode = #tpu.pipeline_mode<synchronous>, transform_indices = @transform_16, window_bounds = array<i64: 1, 32>}, {transform_indices = @transform_17, window_bounds = array<i64: 8, 32>}]} {
    %c0 = arith.constant 0 : index
    %c0_0 = arith.constant 0 : index
    %0 = vector.load %arg1[%c0, %c0_0] : memref<8x32xbf16, #tpu.memory_space<vmem>>, vector<8x32xbf16>
    %1 = arith.extf %0 : vector<8x32xbf16> to vector<8x32xf32>
    %c0_1 = arith.constant 0 : index
    %c0_2 = arith.constant 0 : index
    %2 = vector.load %arg2[%c0_1, %c0_2] : memref<1x32xf32, #tpu.memory_space<vmem>>, vector<1x32xf32>
    %c0_3 = arith.constant 0 : index
    %c0_4 = arith.constant 0 : index
    %3 = vector.load %arg3[%c0_3, %c0_4] : memref<1x32xf32, #tpu.memory_space<vmem>>, vector<1x32xf32>
    %cst = arith.constant dense<0.000000e+00> : vector<8xf32>
    %4 = vector.multi_reduction <add>, %1, %cst [1] : vector<8x32xf32> to vector<8xf32>
    %5 = vector.shape_cast %4 : vector<8xf32> to vector<8x1xf32>
    %cst_5 = arith.constant 3.200000e+01 : f32
    %6 = vector.broadcast %cst_5 : f32 to vector<8x1xf32>
    %7 = arith.divf %5, %6 : vector<8x1xf32>
    %8 = vector.broadcast %7 : vector<8x1xf32> to vector<8x32xf32>
    %9 = arith.subf %1, %8 : vector<8x32xf32>
    %10 = arith.mulf %9, %9 : vector<8x32xf32>
    %cst_6 = arith.constant dense<0.000000e+00> : vector<8xf32>
    %11 = vector.multi_reduction <add>, %10, %cst_6 [1] : vector<8x32xf32> to vector<8xf32>
    %12 = vector.shape_cast %11 : vector<8xf32> to vector<8x1xf32>
    %cst_7 = arith.constant 3.200000e+01 : f32
    %13 = vector.broadcast %cst_7 : f32 to vector<8x1xf32>
    %14 = arith.divf %12, %13 : vector<8x1xf32>
    %15 = vector.broadcast %7 : vector<8x1xf32> to vector<8x32xf32>
    %16 = arith.subf %1, %15 : vector<8x32xf32>
    %cst_8 = arith.constant 9.99999974E-6 : f32
    %17 = vector.broadcast %cst_8 : f32 to vector<8x1xf32>
    %18 = arith.addf %14, %17 : vector<8x1xf32>
    %19 = math.rsqrt %18 : vector<8x1xf32>
    %20 = vector.broadcast %19 : vector<8x1xf32> to vector<8x32xf32>
    %21 = arith.mulf %16, %20 : vector<8x32xf32>
    %22 = vector.broadcast %2 : vector<1x32xf32> to vector<8x32xf32>
    %23 = arith.mulf %21, %22 : vector<8x32xf32>
    %24 = vector.broadcast %3 : vector<1x32xf32> to vector<8x32xf32>
    %25 = arith.addf %23, %24 : vector<8x32xf32>
    %26 = arith.truncf %25 : vector<8x32xf32> to vector<8x32xbf16>
    %c0_9 = arith.constant 0 : index
    %c0_10 = arith.constant 0 : index
    %27 = vector.load %arg4[%c0_9, %c0_10] : memref<32x16xbf16, #tpu.memory_space<vmem>>, vector<32x16xbf16>
    %cst_11 = arith.constant dense<0.000000e+00> : vector<8x16xf32>
    %28 = tpu.matmul %26, %27, %cst_11 {dimension_numbers = #tpu.dot_dimension_numbers<[1], [0], [0], [1], [0, 0, 1, 1], [], []>} : vector<8x32xbf16>, vector<32x16xbf16>, vector<8x16xf32> -> vector<8x16xf32>
    %c0_12 = arith.constant 0 : index
    %c0_13 = arith.constant 0 : index
    %29 = vector.load %arg7[%c0_12, %c0_13] : memref<1x16xf32, #tpu.memory_space<vmem>>, vector<1x16xf32>
    %30 = vector.broadcast %29 : vector<1x16xf32> to vector<8x16xf32>
    %31 = arith.addf %28, %30 : vector<8x16xf32>
    %c0_14 = arith.constant 0 : index
    %c0_15 = arith.constant 0 : index
    %32 = vector.load %arg5[%c0_14, %c0_15] : memref<32x16xbf16, #tpu.memory_space<vmem>>, vector<32x16xbf16>
    %cst_16 = arith.constant dense<0.000000e+00> : vector<8x16xf32>
    %33 = tpu.matmul %26, %32, %cst_16 {dimension_numbers = #tpu.dot_dimension_numbers<[1], [0], [0], [1], [0, 0, 1, 1], [], []>} : vector<8x32xbf16>, vector<32x16xbf16>, vector<8x16xf32> -> vector<8x16xf32>
    %c0_17 = arith.constant 0 : index
    %c0_18 = arith.constant 0 : index
    %34 = vector.load %arg8[%c0_17, %c0_18] : memref<1x16xf32, #tpu.memory_space<vmem>>, vector<1x16xf32>
    %35 = vector.broadcast %34 : vector<1x16xf32> to vector<8x16xf32>
    %36 = arith.addf %33, %35 : vector<8x16xf32>
    %c0_19 = arith.constant 0 : index
    %c0_20 = arith.constant 0 : index
    %37 = vector.load %arg6[%c0_19, %c0_20] : memref<32x16xbf16, #tpu.memory_space<vmem>>, vector<32x16xbf16>
    %cst_21 = arith.constant dense<0.000000e+00> : vector<8x16xf32>
    %38 = tpu.matmul %26, %37, %cst_21 {dimension_numbers = #tpu.dot_dimension_numbers<[1], [0], [0], [1], [0, 0, 1, 1], [], []>} : vector<8x32xbf16>, vector<32x16xbf16>, vector<8x16xf32> -> vector<8x16xf32>
    %c0_22 = arith.constant 0 : index
    %c0_23 = arith.constant 0 : index
    %39 = vector.load %arg9[%c0_22, %c0_23] : memref<1x16xf32, #tpu.memory_space<vmem>>, vector<1x16xf32>
    %40 = vector.broadcast %39 : vector<1x16xf32> to vector<8x16xf32>
    %41 = arith.addf %38, %40 : vector<8x16xf32>
    %42 = vector.extract_strided_slice %31 {offsets = [0, 0], sizes = [8, 8], strides = [1, 1]} : vector<8x16xf32> to vector<8x8xf32>
    %43 = arith.truncf %42 : vector<8x8xf32> to vector<8x8xbf16>
    %44 = vector.extract_strided_slice %36 {offsets = [0, 0], sizes = [8, 8], strides = [1, 1]} : vector<8x16xf32> to vector<8x8xf32>
    %45 = arith.truncf %44 : vector<8x8xf32> to vector<8x8xbf16>
    %46 = vector.extract_strided_slice %41 {offsets = [0, 0], sizes = [8, 8], strides = [1, 1]} : vector<8x16xf32> to vector<8x8xf32>
    %47 = arith.truncf %46 : vector<8x8xf32> to vector<8x8xbf16>
    "tpu.trace_start"() <{level = 10 : i32, message = "qd,kd->qk"}> : () -> ()
    %cst_24 = arith.constant dense<0.000000e+00> : vector<8x8xf32>
    %48 = tpu.matmul %43, %45, %cst_24 {dimension_numbers = #tpu.dot_dimension_numbers<[1], [1], [0], [0], [0, 0, 1, 0], [], []>} : vector<8x8xbf16>, vector<8x8xbf16>, vector<8x8xf32> -> vector<8x8xf32>
    "tpu.trace_stop"() : () -> ()
    %cst_25 = arith.constant 0.353553385 : f32
    %49 = vector.broadcast %cst_25 : f32 to vector<8x8xf32>
    %50 = arith.mulf %48, %49 : vector<8x8xf32>
    %cst_26 = arith.constant dense<0xFF800000> : vector<8xf32>
    %51 = vector.multi_reduction <maximumf>, %50, %cst_26 [1] : vector<8x8xf32> to vector<8xf32>
    %52 = vector.shape_cast %51 : vector<8xf32> to vector<8x1xf32>
    %53 = vector.broadcast %52 : vector<8x1xf32> to vector<8x8xf32>
    %54 = arith.subf %50, %53 : vector<8x8xf32>
    %55 = math.exp %54 : vector<8x8xf32>
    %cst_27 = arith.constant dense<0.000000e+00> : vector<8xf32>
    %56 = vector.multi_reduction <add>, %55, %cst_27 [1] : vector<8x8xf32> to vector<8xf32>
    %57 = vector.shape_cast %56 : vector<8xf32> to vector<8x1xf32>
    %58 = tpu.reciprocal %57 {approx = true} : vector<8x1xf32> -> vector<8x1xf32>
    %59 = vector.broadcast %58 : vector<8x1xf32> to vector<8x8xf32>
    %60 = arith.mulf %55, %59 : vector<8x8xf32>
    %61 = arith.truncf %60 : vector<8x8xf32> to vector<8x8xbf16>
    %cst_28 = arith.constant dense<0.000000e+00> : vector<8x8xf32>
    %62 = tpu.matmul %61, %47, %cst_28 {dimension_numbers = #tpu.dot_dimension_numbers<[1], [0], [0], [1], [0, 0, 1, 1], [], []>} : vector<8x8xbf16>, vector<8x8xbf16>, vector<8x8xf32> -> vector<8x8xf32>
    %63 = vector.extract_strided_slice %31 {offsets = [0, 8], sizes = [8, 8], strides = [1, 1]} : vector<8x16xf32> to vector<8x8xf32>
    %64 = arith.truncf %63 : vector<8x8xf32> to vector<8x8xbf16>
    %65 = vector.extract_strided_slice %36 {offsets = [0, 8], sizes = [8, 8], strides = [1, 1]} : vector<8x16xf32> to vector<8x8xf32>
    %66 = arith.truncf %65 : vector<8x8xf32> to vector<8x8xbf16>
    %67 = vector.extract_strided_slice %41 {offsets = [0, 8], sizes = [8, 8], strides = [1, 1]} : vector<8x16xf32> to vector<8x8xf32>
    %68 = arith.truncf %67 : vector<8x8xf32> to vector<8x8xbf16>
    "tpu.trace_start"() <{level = 10 : i32, message = "qd,kd->qk"}> : () -> ()
    %cst_29 = arith.constant dense<0.000000e+00> : vector<8x8xf32>
    %69 = tpu.matmul %64, %66, %cst_29 {dimension_numbers = #tpu.dot_dimension_numbers<[1], [1], [0], [0], [0, 0, 1, 0], [], []>} : vector<8x8xbf16>, vector<8x8xbf16>, vector<8x8xf32> -> vector<8x8xf32>
    "tpu.trace_stop"() : () -> ()
    %cst_30 = arith.constant 0.353553385 : f32
    %70 = vector.broadcast %cst_30 : f32 to vector<8x8xf32>
    %71 = arith.mulf %69, %70 : vector<8x8xf32>
    %cst_31 = arith.constant dense<0xFF800000> : vector<8xf32>
    %72 = vector.multi_reduction <maximumf>, %71, %cst_31 [1] : vector<8x8xf32> to vector<8xf32>
    %73 = vector.shape_cast %72 : vector<8xf32> to vector<8x1xf32>
    %74 = vector.broadcast %73 : vector<8x1xf32> to vector<8x8xf32>
    %75 = arith.subf %71, %74 : vector<8x8xf32>
    %76 = math.exp %75 : vector<8x8xf32>
    %cst_32 = arith.constant dense<0.000000e+00> : vector<8xf32>
    %77 = vector.multi_reduction <add>, %76, %cst_32 [1] : vector<8x8xf32> to vector<8xf32>
    %78 = vector.shape_cast %77 : vector<8xf32> to vector<8x1xf32>
    %79 = tpu.reciprocal %78 {approx = true} : vector<8x1xf32> -> vector<8x1xf32>
    %80 = vector.broadcast %79 : vector<8x1xf32> to vector<8x8xf32>
    %81 = arith.mulf %76, %80 : vector<8x8xf32>
    %82 = arith.truncf %81 : vector<8x8xf32> to vector<8x8xbf16>
    %cst_33 = arith.constant dense<0.000000e+00> : vector<8x8xf32>
    %83 = tpu.matmul %82, %68, %cst_33 {dimension_numbers = #tpu.dot_dimension_numbers<[1], [0], [0], [1], [0, 0, 1, 1], [], []>} : vector<8x8xbf16>, vector<8x8xbf16>, vector<8x8xf32> -> vector<8x8xf32>
    %84 = tpu.concatenate %62, %83 in 1 : vector<8x8xf32>, vector<8x8xf32> -> vector<8x16xf32>
    %85 = arith.truncf %84 : vector<8x16xf32> to vector<8x16xbf16>
    %c0_34 = arith.constant 0 : index
    %c0_35 = arith.constant 0 : index
    %86 = vector.load %arg10[%c0_34, %c0_35] : memref<16x32xbf16, #tpu.memory_space<vmem>>, vector<16x32xbf16>
    %cst_36 = arith.constant dense<0.000000e+00> : vector<8x32xf32>
    %87 = tpu.matmul %85, %86, %cst_36 {dimension_numbers = #tpu.dot_dimension_numbers<[1], [0], [0], [1], [0, 0, 1, 1], [], []>} : vector<8x16xbf16>, vector<16x32xbf16>, vector<8x32xf32> -> vector<8x32xf32>
    %88 = arith.addf %1, %87 : vector<8x32xf32>
    %c0_37 = arith.constant 0 : index
    %c0_38 = arith.constant 0 : index
    %89 = vector.load %arg11[%c0_37, %c0_38] : memref<1x32xf32, #tpu.memory_space<vmem>>, vector<1x32xf32>
    %90 = vector.broadcast %89 : vector<1x32xf32> to vector<8x32xf32>
    %91 = arith.addf %88, %90 : vector<8x32xf32>
    %c0_39 = arith.constant 0 : index
    %c0_40 = arith.constant 0 : index
    %92 = vector.load %arg12[%c0_39, %c0_40] : memref<1x32xf32, #tpu.memory_space<vmem>>, vector<1x32xf32>
    %c0_41 = arith.constant 0 : index
    %c0_42 = arith.constant 0 : index
    %93 = vector.load %arg13[%c0_41, %c0_42] : memref<1x32xf32, #tpu.memory_space<vmem>>, vector<1x32xf32>
    %cst_43 = arith.constant dense<0.000000e+00> : vector<8xf32>
    %94 = vector.multi_reduction <add>, %91, %cst_43 [1] : vector<8x32xf32> to vector<8xf32>
    %95 = vector.shape_cast %94 : vector<8xf32> to vector<8x1xf32>
    %cst_44 = arith.constant 3.200000e+01 : f32
    %96 = vector.broadcast %cst_44 : f32 to vector<8x1xf32>
    %97 = arith.divf %95, %96 : vector<8x1xf32>
    %98 = vector.broadcast %97 : vector<8x1xf32> to vector<8x32xf32>
    %99 = arith.subf %91, %98 : vector<8x32xf32>
    %100 = arith.mulf %99, %99 : vector<8x32xf32>
    %cst_45 = arith.constant dense<0.000000e+00> : vector<8xf32>
    %101 = vector.multi_reduction <add>, %100, %cst_45 [1] : vector<8x32xf32> to vector<8xf32>
    %102 = vector.shape_cast %101 : vector<8xf32> to vector<8x1xf32>
    %cst_46 = arith.constant 3.200000e+01 : f32
    %103 = vector.broadcast %cst_46 : f32 to vector<8x1xf32>
    %104 = arith.divf %102, %103 : vector<8x1xf32>
    %105 = vector.broadcast %97 : vector<8x1xf32> to vector<8x32xf32>
    %106 = arith.subf %91, %105 : vector<8x32xf32>
    %cst_47 = arith.constant 9.99999974E-6 : f32
    %107 = vector.broadcast %cst_47 : f32 to vector<8x1xf32>
    %108 = arith.addf %104, %107 : vector<8x1xf32>
    %109 = math.rsqrt %108 : vector<8x1xf32>
    %110 = vector.broadcast %109 : vector<8x1xf32> to vector<8x32xf32>
    %111 = arith.mulf %106, %110 : vector<8x32xf32>
    %112 = vector.broadcast %92 : vector<1x32xf32> to vector<8x32xf32>
    %113 = arith.mulf %111, %112 : vector<8x32xf32>
    %114 = vector.broadcast %93 : vector<1x32xf32> to vector<8x32xf32>
    %115 = arith.addf %113, %114 : vector<8x32xf32>
    %c0_48 = arith.constant 0 : index
    %c0_49 = arith.constant 0 : index
    %116 = vector.load %arg14[%c0_48, %c0_49] : memref<32x64xbf16, #tpu.memory_space<vmem>>, vector<32x64xbf16>
    %117 = arith.truncf %115 : vector<8x32xf32> to vector<8x32xbf16>
    %cst_50 = arith.constant dense<0.000000e+00> : vector<8x64xf32>
    %118 = tpu.matmul %117, %116, %cst_50 {dimension_numbers = #tpu.dot_dimension_numbers<[1], [0], [0], [1], [0, 0, 1, 1], [], []>} : vector<8x32xbf16>, vector<32x64xbf16>, vector<8x64xf32> -> vector<8x64xf32>
    %c0_51 = arith.constant 0 : index
    %c0_52 = arith.constant 0 : index
    %119 = vector.load %arg15[%c0_51, %c0_52] : memref<1x64xf32, #tpu.memory_space<vmem>>, vector<1x64xf32>
    %120 = vector.broadcast %119 : vector<1x64xf32> to vector<8x64xf32>
    %121 = arith.addf %118, %120 : vector<8x64xf32>
    %122 = arith.mulf %121, %121 : vector<8x64xf32>
    %123 = arith.mulf %121, %122 : vector<8x64xf32>
    %cst_53 = arith.constant 4.471500e-02 : f32
    %124 = vector.broadcast %cst_53 : f32 to vector<8x64xf32>
    %125 = arith.mulf %124, %123 : vector<8x64xf32>
    %126 = arith.addf %121, %125 : vector<8x64xf32>
    %cst_54 = arith.constant 0.797884583 : f32
    %127 = vector.broadcast %cst_54 : f32 to vector<8x64xf32>
    %128 = arith.mulf %127, %126 : vector<8x64xf32>
    %129 = math.tanh %128 : vector<8x64xf32>
    %cst_55 = arith.constant 1.000000e+00 : f32
    %130 = vector.broadcast %cst_55 : f32 to vector<8x64xf32>
    %131 = arith.addf %130, %129 : vector<8x64xf32>
    %cst_56 = arith.constant 5.000000e-01 : f32
    %132 = vector.broadcast %cst_56 : f32 to vector<8x64xf32>
    %133 = arith.mulf %132, %131 : vector<8x64xf32>
    %134 = arith.mulf %121, %133 : vector<8x64xf32>
    %c0_57 = arith.constant 0 : index
    %c0_58 = arith.constant 0 : index
    %135 = vector.load %arg16[%c0_57, %c0_58] : memref<64x32xbf16, #tpu.memory_space<vmem>>, vector<64x32xbf16>
    %136 = arith.truncf %134 : vector<8x64xf32> to vector<8x64xbf16>
    %cst_59 = arith.constant dense<0.000000e+00> : vector<8x32xf32>
    %137 = tpu.matmul %136, %135, %cst_59 {dimension_numbers = #tpu.dot_dimension_numbers<[1], [0], [0], [1], [0, 0, 1, 1], [], []>} : vector<8x64xbf16>, vector<64x32xbf16>, vector<8x32xf32> -> vector<8x32xf32>
    %c0_60 = arith.constant 0 : index
    %c0_61 = arith.constant 0 : index
    %138 = vector.load %arg17[%c0_60, %c0_61] : memref<1x32xf32, #tpu.memory_space<vmem>>, vector<1x32xf32>
    %139 = vector.broadcast %138 : vector<1x32xf32> to vector<8x32xf32>
    %140 = arith.addf %137, %139 : vector<8x32xf32>
    %141 = arith.addf %91, %140 : vector<8x32xf32>
    %142 = arith.truncf %141 : vector<8x32xf32> to vector<8x32xbf16>
    %c0_62 = arith.constant 0 : index
    %c0_63 = arith.constant 0 : index
    %143 = vector.load %arg18[%c0_62, %c0_63] : memref<8x32xbf16, #tpu.memory_space<vmem>>, vector<8x32xbf16>
    tpu.vector_store %arg18[%c0_62, %c0_63], %142 {strides = array<i32>} : memref<8x32xbf16, #tpu.memory_space<vmem>>, vector<8x32xbf16>,
    return
  }
  func.func @transform_0(%arg0: i32) -> (i32, i32) {
    %c0_i32 = arith.constant 0 : i32
    %c0_i32_0 = arith.constant 0 : i32
    return %arg0, %c0_i32 : i32, i32
  }
  func.func @transform_1(%arg0: i32) -> (i32, i32) {
    %c0_i32 = arith.constant 0 : i32
    %c0_i32_0 = arith.constant 0 : i32
    %c0_i32_1 = arith.constant 0 : i32
    return %c0_i32, %c0_i32_0 : i32, i32
  }
  func.func @transform_2(%arg0: i32) -> (i32, i32) {
    %c0_i32 = arith.constant 0 : i32
    %c0_i32_0 = arith.constant 0 : i32
    %c0_i32_1 = arith.constant 0 : i32
    return %c0_i32, %c0_i32_0 : i32, i32
  }
  func.func @transform_3(%arg0: i32) -> (i32, i32) {
    %c0_i32 = arith.constant 0 : i32
    %c0_i32_0 = arith.constant 0 : i32
    %c0_i32_1 = arith.constant 0 : i32
    return %c0_i32, %c0_i32_0 : i32, i32
  }
  func.func @transform_4(%arg0: i32) -> (i32, i32) {
    %c0_i32 = arith.constant 0 : i32
    %c0_i32_0 = arith.constant 0 : i32
    %c0_i32_1 = arith.constant 0 : i32
    return %c0_i32, %c0_i32_0 : i32, i32
  }
  func.func @transform_5(%arg0: i32) -> (i32, i32) {
    %c0_i32 = arith.constant 0 : i32
    %c0_i32_0 = arith.constant 0 : i32
    %c0_i32_1 = arith.constant 0 : i32
    return %c0_i32, %c0_i32_0 : i32, i32
  }
  func.func @transform_6(%arg0: i32) -> (i32, i32) {
    %c0_i32 = arith.constant 0 : i32
    %c0_i32_0 = arith.constant 0 : i32
    %c0_i32_1 = arith.constant 0 : i32
    return %c0_i32, %c0_i32_0 : i32, i32
  }
  func.func @transform_7(%arg0: i32) -> (i32, i32) {
    %c0_i32 = arith.constant 0 : i32
    %c0_i32_0 = arith.constant 0 : i32
    %c0_i32_1 = arith.constant 0 : i32
    return %c0_i32, %c0_i32_0 : i32, i32
  }
  func.func @transform_8(%arg0: i32) -> (i32, i32) {
    %c0_i32 = arith.constant 0 : i32
    %c0_i32_0 = arith.constant 0 : i32
    %c0_i32_1 = arith.constant 0 : i32
    return %c0_i32, %c0_i32_0 : i32, i32
  }
  func.func @transform_9(%arg0: i32) -> (i32, i32) {
    %c0_i32 = arith.constant 0 : i32
    %c0_i32_0 = arith.constant 0 : i32
    %c0_i32_1 = arith.constant 0 : i32
    return %c0_i32, %c0_i32_0 : i32, i32
  }
  func.func @transform_10(%arg0: i32) -> (i32, i32) {
    %c0_i32 = arith.constant 0 : i32
    %c0_i32_0 = arith.constant 0 : i32
    %c0_i32_1 = arith.constant 0 : i32
    return %c0_i32, %c0_i32_0 : i32, i32
  }
  func.func @transform_11(%arg0: i32) -> (i32, i32) {
    %c0_i32 = arith.constant 0 : i32
    %c0_i32_0 = arith.constant 0 : i32
    %c0_i32_1 = arith.constant 0 : i32
    return %c0_i32, %c0_i32_0 : i32, i32
  }
  func.func @transform_12(%arg0: i32) -> (i32, i32) {
    %c0_i32 = arith.constant 0 : i32
    %c0_i32_0 = arith.constant 0 : i32
    %c0_i32_1 = arith.constant 0 : i32
    return %c0_i32, %c0_i32_0 : i32, i32
  }
  func.func @transform_13(%arg0: i32) -> (i32, i32) {
    %c0_i32 = arith.constant 0 : i32
    %c0_i32_0 = arith.constant 0 : i32
    %c0_i32_1 = arith.constant 0 : i32
    return %c0_i32, %c0_i32_0 : i32, i32
  }
  func.func @transform_14(%arg0: i32) -> (i32, i32) {
    %c0_i32 = arith.constant 0 : i32
    %c0_i32_0 = arith.constant 0 : i32
    %c0_i32_1 = arith.constant 0 : i32
    return %c0_i32, %c0_i32_0 : i32, i32
  }
  func.func @transform_15(%arg0: i32) -> (i32, i32) {
    %c0_i32 = arith.constant 0 : i32
    %c0_i32_0 = arith.constant 0 : i32
    %c0_i32_1 = arith.constant 0 : i32
    return %c0_i32, %c0_i32_0 : i32, i32
  }
  func.func @transform_16(%arg0: i32) -> (i32, i32) {
    %c0_i32 = arith.constant 0 : i32
    %c0_i32_0 = arith.constant 0 : i32
    %c0_i32_1 = arith.constant 0 : i32
    return %c0_i32, %c0_i32_0 : i32, i32
  }
  func.func @transform_17(%arg0: i32) -> (i32, i32) {
    %c0_i32 = arith.constant 0 : i32
    %c0_i32_0 = arith.constant 0 : i32
    return %arg0, %c0_i32 : i32, i32
  }
}

</mosaic_0001>

<llo_original>
// kernel: vqvae_forward.8
$region0: #{vqvae_forward.8}
  #allocation0 [shape = 'u32[]', space=smem, size = 0x4, offset = 0x4, fixed_abs, tag = 'smem constant byte address 0x4 - core index']
  #allocation1 [shape = 'u32[144,128]{1,0:T(1,128)}', space=vmem, size = 0x12000, scoped, tag = 'internal scratch']
  %s0 = inlined_call_operand.vmem [shape: f32[16,32], index: 0, kind: input, shape index: {}]
  %s1 = inlined_call_operand.vmem [shape: f32[1,32], index: 1, kind: input, shape index: {}]
  %s2 = inlined_call_operand.vmem [shape: f32[1,32], index: 2, kind: input, shape index: {}]
  %s3 = inlined_call_operand.vmem [shape: bf16[32,32], index: 3, kind: input, shape index: {}]
  %s4 = inlined_call_operand.vmem [shape: f32[1,32], index: 4, kind: input, shape index: {}]
  %s5 = inlined_call_operand.vmem [shape: f32[1,32], index: 5, kind: input, shape index: {}]
  %s6 = inlined_call_operand.vmem [shape: f32[1,32], index: 6, kind: input, shape index: {}]
  %s7 = inlined_call_operand.vmem [shape: f32[8,32], index: 7, kind: input, shape index: {}]
  %s8 = inlined_call_operand.vmem [shape: bf16[16,32], index: 8, kind: output, shape index: {}]
  %s9 = sld [smem:[#allocation0]]
  $region65: #{vqvae_forward.8} parent=0
    _
  %s11 = ssub.s32 1, %s9
  %s12 = scalar_select 0, %s11, %s9
  loop: start=0, step=1, limit=4
  $region2: #{vqvae_forward.8} parent=0 // loop_pre_header
    _
  $region3: #{vqvae_forward.8} parent=0 // loop_header
    %s14 = sphi 0, %s18
    %p15 = scmp.ge.s32.totalorder %s14, 4
    %s24 = sphi 0, %s26
    %s27 = sphi 0, %s24
    %s28 = sphi 0, %s27
    %s44 = sphi 0, %s28
    %s48 = sphi 0, %s48
    %s50 = sphi 0, %s48
    %s51 = sphi 0, %s50
    %s65 = sphi 0, %s51
    %s69 = sphi 0, %s69
    %s71 = sphi 0, %s69
    %s72 = sphi 0, %s71
    %s86 = sphi 0, %s72
    %s90 = sphi 0, %s90
    %s92 = sphi 0, %s90
    %s93 = sphi 0, %s92
    %s107 = sphi 0, %s93
    %s111 = sphi 0, %s111
    %s113 = sphi 0, %s111
    %s114 = sphi 0, %s113
    %s128 = sphi 0, %s114
    %s132 = sphi 0, %s132
    %s134 = sphi 0, %s132
    %s135 = sphi 0, %s134
    %s149 = sphi 0, %s135
    %s153 = sphi 0, %s153
    %s155 = sphi 0, %s153
    %s156 = sphi 0, %s155
    %s170 = sphi 0, %s156
    %s174 = sphi 0, %s174
    %s176 = sphi 0, %s174
    %s177 = sphi 0, %s176
    %s191 = sphi 0, %s177
    %s197 = sphi 0, %s199
    %s200 = sphi 0, %s197
    %s201 = sphi 0, %s200
    %s217 = sphi 0, %s201
  $region4: #{vqvae_forward.8} parent=0 // loop_header_branch
    %17 = sbr.rel (%p15) target = $region8
  $region5: #{vqvae_forward.8} parent=0 // loop_body
    %s19 = ssub.s32 %s14, 1
    %s20 = ssub.s32 %s14, 2
    %s21 = sadd.s32 %s14, 1
    %s22 = ssub.s32 %s14, %s21
    %p23 = scmp.eq.s32.totalorder %s22, 0
    %s25 = sadd.s32 %s24, 1
    %s26 = scalar_select %p23, %s24, %s25
    %p29 = pneg %p23
    %p30 = scmp.eq.s32.totalorder %s14, 1
    %p31 = por %p29, %p30
    %p32 = scmp.ne.s32.totalorder %s24, %s27
    %p33 = scmp.eq.s32.totalorder %s14, 0
    %p34 = por %p32, %p33
    %p35 = scmp.ne.s32.totalorder %s24, %s27
    %p36 = scmp.eq.s32.totalorder %s19, 1
    %p37 = por %p35, %p36
    %p38 = scmp.ne.s32.totalorder %s27, %s28
    %p39 = scmp.eq.s32.totalorder %s19, 0
    %p40 = por %p38, %p39
    %p41 = scmp.ne.s32.totalorder %s27, %s28
    %p42 = scmp.eq.s32.totalorder %s20, 1
    %p43 = por %p41, %p42
    %p45 = scmp.ne.s32.totalorder %s28, %s44
    %p46 = scmp.eq.s32.totalorder %s20, 0
    %p47 = por %p45, %p46
    %s49 = sadd.s32 %s48, 1
    %p52 = scmp.eq.s32.totalorder %s14, 1
    %p53 = scmp.ne.s32.totalorder %s48, %s50
    %p54 = scmp.eq.s32.totalorder %s14, 0
    %p55 = por %p53, %p54
    %p56 = scmp.ne.s32.totalorder %s48, %s50
    %p57 = scmp.eq.s32.totalorder %s19, 1
    %p58 = por %p56, %p57
    %p59 = scmp.ne.s32.totalorder %s50, %s51
    %p60 = scmp.eq.s32.totalorder %s19, 0
    %p61 = por %p59, %p60
    %p62 = scmp.ne.s32.totalorder %s50, %s51
    %p63 = scmp.eq.s32.totalorder %s20, 1
    %p64 = por %p62, %p63
    %p66 = scmp.ne.s32.totalorder %s51, %s65
    %p67 = scmp.eq.s32.totalorder %s20, 0
    %p68 = por %p66, %p67
    %s70 = sadd.s32 %s69, 1
    %p73 = scmp.eq.s32.totalorder %s14, 1
    %p74 = scmp.ne.s32.totalorder %s69, %s71
    %p75 = scmp.eq.s32.totalorder %s14, 0
    %p76 = por %p74, %p75
    %p77 = scmp.ne.s32.totalorder %s69, %s71
    %p78 = scmp.eq.s32.totalorder %s19, 1
    %p79 = por %p77, %p78
    %p80 = scmp.ne.s32.totalorder %s71, %s72
    %p81 = scmp.eq.s32.totalorder %s19, 0
    %p82 = por %p80, %p81
    %p83 = scmp.ne.s32.totalorder %s71, %s72
    %p84 = scmp.eq.s32.totalorder %s20, 1
    %p85 = por %p83, %p84
    %p87 = scmp.ne.s32.totalorder %s72, %s86
    %p88 = scmp.eq.s32.totalorder %s20, 0
    %p89 = por %p87, %p88
    %s91 = sadd.s32 %s90, 1
    %p94 = scmp.eq.s32.totalorder %s14, 1
    %p95 = scmp.ne.s32.totalorder %s90, %s92
    %p96 = scmp.eq.s32.totalorder %s14, 0
    %p97 = por %p95, %p96
    %p98 = scmp.ne.s32.totalorder %s90, %s92
    %p99 = scmp.eq.s32.totalorder %s19, 1
    %p100 = por %p98, %p99
    %p101 = scmp.ne.s32.totalorder %s92, %s93
    %p102 = scmp.eq.s32.totalorder %s19, 0
    %p103 = por %p101, %p102
    %p104 = scmp.ne.s32.totalorder %s92, %s93
    %p105 = scmp.eq.s32.totalorder %s20, 1
    %p106 = por %p104, %p105
    %p108 = scmp.ne.s32.totalorder %s93, %s107
    %p109 = scmp.eq.s32.totalorder %s20, 0
    %p110 = por %p108, %p109
    %s112 = sadd.s32 %s111, 1
    %p115 = scmp.eq.s32.totalorder %s14, 1
    %p116 = scmp.ne.s32.totalorder %s111, %s113
    %p117 = scmp.eq.s32.totalorder %s14, 0
    %p118 = por %p116, %p117
    %p119 = scmp.ne.s32.totalorder %s111, %s113
    %p120 = scmp.eq.s32.totalorder %s19, 1
    %p121 = por %p119, %p120
    %p122 = scmp.ne.s32.totalorder %s113, %s114
    %p123 = scmp.eq.s32.totalorder %s19, 0
    %p124 = por %p122, %p123
    %p125 = scmp.ne.s32.totalorder %s113, %s114
    %p126 = scmp.eq.s32.totalorder %s20, 1
    %p127 = por %p125, %p126
    %p129 = scmp.ne.s32.totalorder %s114, %s128
    %p130 = scmp.eq.s32.totalorder %s20, 0
    %p131 = por %p129, %p130
    %s133 = sadd.s32 %s132, 1
    %p136 = scmp.eq.s32.totalorder %s14, 1
    %p137 = scmp.ne.s32.totalorder %s132, %s134
    %p138 = scmp.eq.s32.totalorder %s14, 0
    %p139 = por %p137, %p138
    %p140 = scmp.ne.s32.totalorder %s132, %s134
    %p141 = scmp.eq.s32.totalorder %s19, 1
    %p142 = por %p140, %p141
    %p143 = scmp.ne.s32.totalorder %s134, %s135
    %p144 = scmp.eq.s32.totalorder %s19, 0
    %p145 = por %p143, %p144
    %p146 = scmp.ne.s32.totalorder %s134, %s135
    %p147 = scmp.eq.s32.totalorder %s20, 1
    %p148 = por %p146, %p147
    %p150 = scmp.ne.s32.totalorder %s135, %s149
    %p151 = scmp.eq.s32.totalorder %s20, 0
    %p152 = por %p150, %p151
    %s154 = sadd.s32 %s153, 1
    %p157 = scmp.eq.s32.totalorder %s14, 1
    %p158 = scmp.ne.s32.totalorder %s153, %s155
    %p159 = scmp.eq.s32.totalorder %s14, 0
    %p160 = por %p158, %p159
    %p161 = scmp.ne.s32.totalorder %s153, %s155
    %p162 = scmp.eq.s32.totalorder %s19, 1
    %p163 = por %p161, %p162
    %p164 = scmp.ne.s32.totalorder %s155, %s156
    %p165 = scmp.eq.s32.totalorder %s19, 0
    %p166 = por %p164, %p165
    %p167 = scmp.ne.s32.totalorder %s155, %s156
    %p168 = scmp.eq.s32.totalorder %s20, 1
    %p169 = por %p167, %p168
    %p171 = scmp.ne.s32.totalorder %s156, %s170
    %p172 = scmp.eq.s32.totalorder %s20, 0
    %p173 = por %p171, %p172
    %s175 = sadd.s32 %s174, 1
    %p178 = scmp.eq.s32.totalorder %s14, 1
    %p179 = scmp.ne.s32.totalorder %s174, %s176
    %p180 = scmp.eq.s32.totalorder %s14, 0
    %p181 = por %p179, %p180
    %p182 = scmp.ne.s32.totalorder %s174, %s176
    %p183 = scmp.eq.s32.totalorder %s19, 1
    %p184 = por %p182, %p183
    %p185 = scmp.ne.s32.totalorder %s176, %s177
    %p186 = scmp.eq.s32.totalorder %s19, 0
    %p187 = por %p185, %p186
    %p188 = scmp.ne.s32.totalorder %s176, %s177
    %p189 = scmp.eq.s32.totalorder %s20, 1
    %p190 = por %p188, %p189
    %p192 = scmp.ne.s32.totalorder %s177, %s191
    %p193 = scmp.eq.s32.totalorder %s20, 0
    %p194 = por %p192, %p193
    %s195 = ssub.s32 %s14, %s21
    %p196 = scmp.eq.s32.totalorder %s195, 0
    %s198 = sadd.s32 %s197, 1
    %s199 = scalar_select %p196, %s197, %s198
    %p202 = pneg %p196
    %p203 = scmp.eq.s32.totalorder %s14, 1
    %p204 = por %p202, %p203
    %p205 = scmp.ne.s32.totalorder %s197, %s200
    %p206 = scmp.eq.s32.totalorder %s14, 0
    %p207 = por %p205, %p206
    %p208 = scmp.ne.s32.totalorder %s197, %s200
    %p209 = scmp.eq.s32.totalorder %s19, 1
    %p210 = por %p208, %p209
    %p211 = scmp.ne.s32.totalorder %s200, %s201
    %p212 = scmp.eq.s32.totalorder %s19, 0
    %p213 = por %p211, %p212
    %p214 = scmp.ne.s32.totalorder %s200, %s201
    %p215 = scmp.eq.s32.totalorder %s20, 1
    %p216 = por %p214, %p215
    %p218 = scmp.ne.s32.totalorder %s201, %s217
    %p219 = scmp.eq.s32.totalorder %s20, 0
    %p220 = por %p218, %p219
    %p221 = scmp.le.s32.totalorder 1, %s14
    %p222 = scmp.lt.s32.totalorder %s14, 3
    %p223 = pnand %p221, %p222
    %p224 = pneg %p223
    // Predicated region
    $region9: #{vqvae_forward.8} parent=5 // pred_check
      _
    $region10: #{vqvae_forward.8} parent=5 // pred_check_branch
      %226 = sbr.rel (%p223) target = $region12
    $region11: #{vqvae_forward.8} parent=5 // pred_region
      %s227 = ssub.s32 %s14, 1
      // Predicated region
      $region13: #{vqvae_forward.8} parent=11 // pred_check
        %p228 = pneg %p61
      $region14: #{vqvae_forward.8} parent=11 // pred_check_branch
        %230 = sbr.rel (%p228) target = $region16
      $region15: #{vqvae_forward.8} parent=11 // pred_region
        _
      $region16: #{vqvae_forward.8} parent=11 // pred_fallthru
        _
      // Predicated region
      $region17: #{vqvae_forward.8} parent=11 // pred_check
        %p231 = pneg %p82
      $region18: #{vqvae_forward.8} parent=11 // pred_check_branch
        %233 = sbr.rel (%p231) target = $region20
      $region19: #{vqvae_forward.8} parent=11 // pred_region
        _
      $region20: #{vqvae_forward.8} parent=11 // pred_fallthru
        _
      // Predicated region
      $region21: #{vqvae_forward.8} parent=11 // pred_check
        %p234 = pneg %p103
      $region22: #{vqvae_forward.8} parent=11 // pred_check_branch
        %236 = sbr.rel (%p234) target = $region24
      $region23: #{vqvae_forward.8} parent=11 // pred_region
        _
      $region24: #{vqvae_forward.8} parent=11 // pred_fallthru
        _
      // Predicated region
      $region25: #{vqvae_forward.8} parent=11 // pred_check
        %p237 = pneg %p124
      $region26: #{vqvae_forward.8} parent=11 // pred_check_branch
        %239 = sbr.rel (%p237) target = $region28
      $region27: #{vqvae_forward.8} parent=11 // pred_region
        _
      $region28: #{vqvae_forward.8} parent=11 // pred_fallthru
        _
      // Predicated region
      $region29: #{vqvae_forward.8} parent=11 // pred_check
        %p240 = pneg %p145
      $region30: #{vqvae_forward.8} parent=11 // pred_check_branch
        %242 = sbr.rel (%p240) target = $region32
      $region31: #{vqvae_forward.8} parent=11 // pred_region
        _
      $region32: #{vqvae_forward.8} parent=11 // pred_fallthru
        _
      // Predicated region
      $region33: #{vqvae_forward.8} parent=11 // pred_check
        %p243 = pneg %p166
      $region34: #{vqvae_forward.8} parent=11 // pred_check_branch
        %245 = sbr.rel (%p243) target = $region36
      $region35: #{vqvae_forward.8} parent=11 // pred_region
        _
      $region36: #{vqvae_forward.8} parent=11 // pred_fallthru
        _
      // Predicated region
      $region37: #{vqvae_forward.8} parent=11 // pred_check
        %p246 = pneg %p187
      $region38: #{vqvae_forward.8} parent=11 // pred_check_branch
        %248 = sbr.rel (%p246) target = $region40
      $region39: #{vqvae_forward.8} parent=11 // pred_region
        _
      $region40: #{vqvae_forward.8} parent=11 // pred_fallthru
        _
    $region12: #{vqvae_forward.8} parent=5 // pred_fallthru
      _
    %p249 = scmp.lt.s32.totalorder %s14, 2
    // Predicated region
    $region41: #{vqvae_forward.8} parent=5 // pred_check
      %p250 = pneg %p249
    $region42: #{vqvae_forward.8} parent=5 // pred_check_branch
      %252 = sbr.rel (%p250) target = $region44
    $region43: #{vqvae_forward.8} parent=5 // pred_region
      // Predicated region
      $region45: #{vqvae_forward.8} parent=43 // pred_check
        %p253 = pneg %p34
      $region46: #{vqvae_forward.8} parent=43 // pred_check_branch
        %255 = sbr.rel (%p253) target = $region48
      $region47: #{vqvae_forward.8} parent=43 // pred_region
        %p256 = scmp.lt.s32.totalorder %s14, 1
        %s257 = scalar_select %p256, %s14, 1
        %s258 = smul.addr %s257, 8
        %s259 = scalar_lea.vmem %s0, %s258
      $region48: #{vqvae_forward.8} parent=43 // pred_fallthru
        _
    $region44: #{vqvae_forward.8} parent=5 // pred_fallthru
      _
    %p260 = scmp.le.s32.totalorder 1, %s14
    %p261 = scmp.lt.s32.totalorder %s14, 3
    %p262 = pnand %p260, %p261
    %p263 = pneg %p262
    // Predicated region
    $region49: #{vqvae_forward.8} parent=5 // pred_check
      _
    $region50: #{vqvae_forward.8} parent=5 // pred_check_branch
      %265 = sbr.rel (%p262) target = $region52
    $region51: #{vqvae_forward.8} parent=5 // pred_region
      %s266 = ssub.s32 %s14, 1
      %p267 = scmp.lt.s32.totalorder %s19, 1
      %s268 = scalar_select %p267, %s19, 1
      %s269 = smul.addr %s268, 8
      %s270 = scalar_lea.vmem %s0, %s269
      %p271 = pneg %p40
      %p272 = pneg %p37
      %p273 = pneg %p61
      %p274 = pneg %p58
      %p275 = pneg %p82
      %p276 = pneg %p79
      %p277 = pneg %p103
      %p278 = pneg %p100
      %p279 = pneg %p124
      %p280 = pneg %p121
      %p281 = pneg %p145
      %p282 = pneg %p142
      %p283 = pneg %p166
      %p284 = pneg %p163
      %p285 = pneg %p187
      %p286 = pneg %p184
      %p287 = pneg %p213
      %p288 = pneg %p210
      %p289 = scmp.lt.s32.totalorder %s19, 1
      %s290 = scalar_select %p289, %s19, 1
      %s291 = smul.addr %s290, 4
      %s292 = scalar_lea.vmem %s8, %s291
      %p293 = scmp.lt.s32.totalorder %s19, 1
      %s294 = scalar_select %p293, %s19, 1
      %s295 = smul.addr %s294, 8
      %s296 = scalar_lea.vmem %s0, %s295
      %p297 = scmp.lt.s32.totalorder %s19, 1
      %s298 = scalar_select %p297, %s19, 1
      %s299 = smul.addr %s298, 4
      %s300 = scalar_lea.vmem %s8, %s299
      %v302 = vld [vmem:[%s296] sm:$0xff]
      %v303 = vld [vmem:[%s1] sm:$0x1]
      %v304 = vld [vmem:[%s2] sm:$0x1]
      %vm305 = vcmask 261120
      %v306 = vsel %vm305, %v302, 0.0
      %307 = vadd.xlane.f32.xlu0 %v306
      %v308 = vpop.xlane.xlu0 %307
      %v309 = vrcp.pop 32.0
      %v310 = vmul.f32 %v308, %v309
      %v311 = vsub.f32 %v302, %v310
      %v312 = vmul.f32 %v311, %v311
      %v313 = vsel %vm305, %v312, 0.0
      %314 = vadd.xlane.f32.xlu0 %v313
      %v315 = vpop.xlane.xlu0 %314
      %v316 = vmul.f32 %v315, %v309
      %v317 = vadd.f32 %v316, 1e-05
      %v318 = vrsqrt.pop %v317
      %v319 = vmul.f32 %v311, %v318
      %v321 = vlaneseq
      %v322 = vshrl.u32 %v321, 7
      %v323 = vsub.s32 0, %v322
      %v324 = vrot.slane %v303, %v323
      %v326 = vmul.f32 %v319, %v324
      %v328 = vlaneseq
      %v329 = vshrl.u32 %v328, 7
      %v330 = vsub.s32 0, %v329
      %v331 = vrot.slane %v304, %v330
      %v333 = vadd.f32 %v326, %v331
      %v334 = vld [vmem:[%s3] sm:$0xf]
      %v335 = vld [vmem:[%s3 + $0x4] sm:$0xf]
      %v336 = vld [vmem:[%s3 + $0x8] sm:$0xf]
      %v337 = vld [vmem:[%s3 + $0xc] sm:$0xf]
      %v338 = vpack.c.bf16 %v333, %v333
      %v339 = vld [vmem:[%s4] sm:$0x1]
      %v341 = vlaneseq
      %v342 = vshrl.u32 %v341, 7
      %v343 = vsub.s32 0, %v342
      %v344 = vrot.slane %v339, %v343
      %v350 = vunpack.c.l.b16 %v334
      %v351 = vunpack.c.l.b16 %v335
      %v352 = vunpack.c.l.b16 %v336
      %v353 = vunpack.c.l.b16 %v337
      %v354 = vpack.c.b16 %v351, %v350
      %v355 = vpack.c.b16 %v353, %v352
      %v359 = vsel %vm305, %v338, 0
      %361 = vmatprep.subr.bf16.mxu0 0
      %362 = vmatpush1.bf16.msra.mxu0 %v354
      %363 = vmatprep.subr.bf16.mxu0 0
      %364 = vmatpush1.bf16.msra.mxu0 %v355
      %365 = vmatprep.subr.bf16.mxu0 0
      %366 = vmatpush1.bf16.msra.mxu0 0
      %367 = vmatprep.subr.bf16.mxu0 0
      %368 = vmatpush1.bf16.msra.mxu0 0
      %369 = vmatprep.subr.bf16.mxu0 0
      %370 = vmatpush1.bf16.msra.mxu0 0
      %371 = vmatprep.subr.bf16.mxu0 0
      %372 = vmatpush1.bf16.msra.mxu0 0
      %373 = vmatprep.subr.bf16.mxu0 0
      %374 = vmatpush1.bf16.msra.mxu0 0
      %375 = vmatprep.subr.bf16.mxu0 0
      %376 = vmatpush1.bf16.msra.mxu0 0
      %377 = vmatprep.subr.bf16.mxu0 0
      %378 = vmatpush1.bf16.msra.mxu0 0
      %379 = vmatprep.subr.bf16.mxu0 0
      %380 = vmatpush1.bf16.msra.mxu0 0
      %381 = vmatprep.subr.bf16.mxu0 0
      %382 = vmatpush1.bf16.msra.mxu0 0
      %383 = vmatprep.subr.bf16.mxu0 0
      %384 = vmatpush1.bf16.msra.mxu0 0
      %385 = vmatprep.subr.bf16.mxu0 0
      %386 = vmatpush1.bf16.msra.mxu0 0
      %387 = vmatprep.subr.bf16.mxu0 0
      %388 = vmatpush1.bf16.msra.mxu0 0
      %389 = vmatprep.subr.bf16.mxu0 0
      %390 = vmatpush1.bf16.msra.mxu0 0
      %391 = vmatprep.subr.bf16.mxu0 0
      %392 = vmatpush1.bf16.msra.mxu0 0
      %393 = vmatprep.mubr.bf16.mxu0 0
      %394 = vmatmul.mubr.bf16.gmra.mrb[0].mxu0 %v359
      %v395 = vpop.f32.mrb[0].mxu0
      %v396 = vadd.f32 %v344, %v395
      %v397 = vpop.f32.mrb[0].mxu0
      %v398 = vpop.f32.mrb[0].mxu0
      %v399 = vpop.f32.mrb[0].mxu0
      %400 = vdwg.mxu0
      %v401 = vld [vmem:[%s5] sm:$0x1]
      %v402 = vld [vmem:[%s6] sm:$0x1]
      %v403 = vsel %vm305, %v396, 0.0
      %404 = vadd.xlane.f32.xlu0 %v403
      %v405 = vpop.xlane.xlu0 %404
      %v406 = vmul.f32 %v405, %v309
      %v407 = vsub.f32 %v396, %v406
      %v408 = vmul.f32 %v407, %v407
      %v409 = vsel %vm305, %v408, 0.0
      %410 = vadd.xlane.f32.xlu0 %v409
      %v411 = vpop.xlane.xlu0 %410
      %v412 = vmul.f32 %v411, %v309
      %v413 = vadd.f32 %v412, 1e-05
      %v414 = vrsqrt.pop %v413
      %v415 = vmul.f32 %v407, %v414
      %v417 = vlaneseq
      %v418 = vshrl.u32 %v417, 7
      %v419 = vsub.s32 0, %v418
      %v420 = vrot.slane %v401, %v419
      %v422 = vmul.f32 %v415, %v420
      %v424 = vlaneseq
      %v425 = vshrl.u32 %v424, 7
      %v426 = vsub.s32 0, %v425
      %v427 = vrot.slane %v402, %v426
      %v429 = vadd.f32 %v422, %v427
      %v430 = vld [vmem:[%s7] sm:$0xff]
      %v431 = vadd.f32 %v429, %v430
      %v432 = vpack.c.bf16 %v431, %v431
      %vm433 = vcmask 257024
      %434 = vst.msk [vmem:[%s300] sm:$0xf] %vm433, %v432
      %p435 = scmp.lt.s32.totalorder %s19, 1
      %s436 = scalar_select %p435, %s19, 1
      %s437 = smul.addr %s436, 4
      %s438 = scalar_lea.vmem %s8, %s437
      // Predicated region
      $region53: #{vqvae_forward.8} parent=51 // pred_check
        %p439 = pneg %p210
      $region54: #{vqvae_forward.8} parent=51 // pred_check_branch
        %441 = sbr.rel (%p439) target = $region56
      $region55: #{vqvae_forward.8} parent=51 // pred_region
        _
      $region56: #{vqvae_forward.8} parent=51 // pred_fallthru
        _
    $region52: #{vqvae_forward.8} parent=5 // pred_fallthru
      _
    %p442 = scmp.le.s32.totalorder 2, %s14
    // Predicated region
    $region57: #{vqvae_forward.8} parent=5 // pred_check
      %p443 = pneg %p442
    $region58: #{vqvae_forward.8} parent=5 // pred_check_branch
      %445 = sbr.rel (%p443) target = $region60
    $region59: #{vqvae_forward.8} parent=5 // pred_region
      %s446 = ssub.s32 %s14, 2
      // Predicated region
      $region61: #{vqvae_forward.8} parent=59 // pred_check
        %p447 = pneg %p216
      $region62: #{vqvae_forward.8} parent=59 // pred_check_branch
        %449 = sbr.rel (%p447) target = $region64
      $region63: #{vqvae_forward.8} parent=59 // pred_region
        %p450 = scmp.lt.s32.totalorder %s20, 1
        %s451 = scalar_select %p450, %s20, 1
        %s452 = smul.addr %s451, 4
        %s453 = scalar_lea.vmem %s8, %s452
      $region64: #{vqvae_forward.8} parent=59 // pred_fallthru
        _
    $region60: #{vqvae_forward.8} parent=5 // pred_fallthru
      _
  $region6: #{vqvae_forward.8} parent=0 // loop_footer
    %s18 = sadd.s32 1, %s14
  $region7: #{vqvae_forward.8} parent=0 // loop_footer_branch
    %13 = sbr.rel target = $region3
  $region8: #{vqvae_forward.8} parent=0 // loop_exit
    _

// kernel: vqvae_forward.12
$region0: #{vqvae_forward.12}
  #allocation0 [shape = 'u32[]', space=smem, size = 0x4, offset = 0x4, fixed_abs, tag = 'smem constant byte address 0x4 - core index']
  #allocation1 [shape = 'u32[144,128]{1,0:T(1,128)}', space=vmem, size = 0x12000, scoped, tag = 'internal scratch']
  %s0 = inlined_call_operand.vmem [shape: f32[16,16], index: 0, kind: input, shape index: {}]
  %s1 = inlined_call_operand.vmem [shape: bf16[16,32], index: 1, kind: input, shape index: {}]
  %s2 = inlined_call_operand.vmem [shape: f32[1,32], index: 2, kind: input, shape index: {}]
  %s3 = inlined_call_operand.vmem [shape: f32[8,32], index: 3, kind: input, shape index: {}]
  %s4 = inlined_call_operand.vmem [shape: bf16[16,32], index: 4, kind: output, shape index: {}]
  %s5 = sld [smem:[#allocation0]]
  $region49: #{vqvae_forward.12} parent=0
    _
  %s7 = ssub.s32 1, %s5
  %s8 = scalar_select 0, %s7, %s5
  loop: start=0, step=1, limit=4
  $region2: #{vqvae_forward.12} parent=0 // loop_pre_header
    _
  $region3: #{vqvae_forward.12} parent=0 // loop_header
    %s10 = sphi 0, %s14
    %p11 = scmp.ge.s32.totalorder %s10, 4
    %s20 = sphi 0, %s22
    %s23 = sphi 0, %s20
    %s24 = sphi 0, %s23
    %s40 = sphi 0, %s24
    %s44 = sphi 0, %s44
    %s46 = sphi 0, %s44
    %s47 = sphi 0, %s46
    %s61 = sphi 0, %s47
    %s65 = sphi 0, %s65
    %s67 = sphi 0, %s65
    %s68 = sphi 0, %s67
    %s82 = sphi 0, %s68
    %s86 = sphi 0, %s86
    %s88 = sphi 0, %s86
    %s89 = sphi 0, %s88
    %s103 = sphi 0, %s89
    %s109 = sphi 0, %s111
    %s112 = sphi 0, %s109
    %s113 = sphi 0, %s112
    %s129 = sphi 0, %s113
  $region4: #{vqvae_forward.12} parent=0 // loop_header_branch
    %13 = sbr.rel (%p11) target = $region8
  $region5: #{vqvae_forward.12} parent=0 // loop_body
    %s15 = ssub.s32 %s10, 1
    %s16 = ssub.s32 %s10, 2
    %s17 = sadd.s32 %s10, 1
    %s18 = ssub.s32 %s10, %s17
    %p19 = scmp.eq.s32.totalorder %s18, 0
    %s21 = sadd.s32 %s20, 1
    %s22 = scalar_select %p19, %s20, %s21
    %p25 = pneg %p19
    %p26 = scmp.eq.s32.totalorder %s10, 1
    %p27 = por %p25, %p26
    %p28 = scmp.ne.s32.totalorder %s20, %s23
    %p29 = scmp.eq.s32.totalorder %s10, 0
    %p30 = por %p28, %p29
    %p31 = scmp.ne.s32.totalorder %s20, %s23
    %p32 = scmp.eq.s32.totalorder %s15, 1
    %p33 = por %p31, %p32
    %p34 = scmp.ne.s32.totalorder %s23, %s24
    %p35 = scmp.eq.s32.totalorder %s15, 0
    %p36 = por %p34, %p35
    %p37 = scmp.ne.s32.totalorder %s23, %s24
    %p38 = scmp.eq.s32.totalorder %s16, 1
    %p39 = por %p37, %p38
    %p41 = scmp.ne.s32.totalorder %s24, %s40
    %p42 = scmp.eq.s32.totalorder %s16, 0
    %p43 = por %p41, %p42
    %s45 = sadd.s32 %s44, 1
    %p48 = scmp.eq.s32.totalorder %s10, 1
    %p49 = scmp.ne.s32.totalorder %s44, %s46
    %p50 = scmp.eq.s32.totalorder %s10, 0
    %p51 = por %p49, %p50
    %p52 = scmp.ne.s32.totalorder %s44, %s46
    %p53 = scmp.eq.s32.totalorder %s15, 1
    %p54 = por %p52, %p53
    %p55 = scmp.ne.s32.totalorder %s46, %s47
    %p56 = scmp.eq.s32.totalorder %s15, 0
    %p57 = por %p55, %p56
    %p58 = scmp.ne.s32.totalorder %s46, %s47
    %p59 = scmp.eq.s32.totalorder %s16, 1
    %p60 = por %p58, %p59
    %p62 = scmp.ne.s32.totalorder %s47, %s61
    %p63 = scmp.eq.s32.totalorder %s16, 0
    %p64 = por %p62, %p63
    %s66 = sadd.s32 %s65, 1
    %p69 = scmp.eq.s32.totalorder %s10, 1
    %p70 = scmp.ne.s32.totalorder %s65, %s67
    %p71 = scmp.eq.s32.totalorder %s10, 0
    %p72 = por %p70, %p71
    %p73 = scmp.ne.s32.totalorder %s65, %s67
    %p74 = scmp.eq.s32.totalorder %s15, 1
    %p75 = por %p73, %p74
    %p76 = scmp.ne.s32.totalorder %s67, %s68
    %p77 = scmp.eq.s32.totalorder %s15, 0
    %p78 = por %p76, %p77
    %p79 = scmp.ne.s32.totalorder %s67, %s68
    %p80 = scmp.eq.s32.totalorder %s16, 1
    %p81 = por %p79, %p80
    %p83 = scmp.ne.s32.totalorder %s68, %s82
    %p84 = scmp.eq.s32.totalorder %s16, 0
    %p85 = por %p83, %p84
    %s87 = sadd.s32 %s86, 1
    %p90 = scmp.eq.s32.totalorder %s10, 1
    %p91 = scmp.ne.s32.totalorder %s86, %s88
    %p92 = scmp.eq.s32.totalorder %s10, 0
    %p93 = por %p91, %p92
    %p94 = scmp.ne.s32.totalorder %s86, %s88
    %p95 = scmp.eq.s32.totalorder %s15, 1
    %p96 = por %p94, %p95
    %p97 = scmp.ne.s32.totalorder %s88, %s89
    %p98 = scmp.eq.s32.totalorder %s15, 0
    %p99 = por %p97, %p98
    %p100 = scmp.ne.s32.totalorder %s88, %s89
    %p101 = scmp.eq.s32.totalorder %s16, 1
    %p102 = por %p100, %p101
    %p104 = scmp.ne.s32.totalorder %s89, %s103
    %p105 = scmp.eq.s32.totalorder %s16, 0
    %p106 = por %p104, %p105
    %s107 = ssub.s32 %s10, %s17
    %p108 = scmp.eq.s32.totalorder %s107, 0
    %s110 = sadd.s32 %s109, 1
    %s111 = scalar_select %p108, %s109, %s110
    %p114 = pneg %p108
    %p115 = scmp.eq.s32.totalorder %s10, 1
    %p116 = por %p114, %p115
    %p117 = scmp.ne.s32.totalorder %s109, %s112
    %p118 = scmp.eq.s32.totalorder %s10, 0
    %p119 = por %p117, %p118
    %p120 = scmp.ne.s32.totalorder %s109, %s112
    %p121 = scmp.eq.s32.totalorder %s15, 1
    %p122 = por %p120, %p121
    %p123 = scmp.ne.s32.totalorder %s112, %s113
    %p124 = scmp.eq.s32.totalorder %s15, 0
    %p125 = por %p123, %p124
    %p126 = scmp.ne.s32.totalorder %s112, %s113
    %p127 = scmp.eq.s32.totalorder %s16, 1
    %p128 = por %p126, %p127
    %p130 = scmp.ne.s32.totalorder %s113, %s129
    %p131 = scmp.eq.s32.totalorder %s16, 0
    %p132 = por %p130, %p131
    %p133 = scmp.le.s32.totalorder 1, %s10
    %p134 = scmp.lt.s32.totalorder %s10, 3
    %p135 = pnand %p133, %p134
    %p136 = pneg %p135
    // Predicated region
    $region9: #{vqvae_forward.12} parent=5 // pred_check
      _
    $region10: #{vqvae_forward.12} parent=5 // pred_check_branch
      %138 = sbr.rel (%p135) target = $region12
    $region11: #{vqvae_forward.12} parent=5 // pred_region
      %s139 = ssub.s32 %s10, 1
      // Predicated region
      $region13: #{vqvae_forward.12} parent=11 // pred_check
        %p140 = pneg %p57
      $region14: #{vqvae_forward.12} parent=11 // pred_check_branch
        %142 = sbr.rel (%p140) target = $region16
      $region15: #{vqvae_forward.12} parent=11 // pred_region
        _
      $region16: #{vqvae_forward.12} parent=11 // pred_fallthru
        _
      // Predicated region
      $region17: #{vqvae_forward.12} parent=11 // pred_check
        %p143 = pneg %p78
      $region18: #{vqvae_forward.12} parent=11 // pred_check_branch
        %145 = sbr.rel (%p143) target = $region20
      $region19: #{vqvae_forward.12} parent=11 // pred_region
        _
      $region20: #{vqvae_forward.12} parent=11 // pred_fallthru
        _
      // Predicated region
      $region21: #{vqvae_forward.12} parent=11 // pred_check
        %p146 = pneg %p99
      $region22: #{vqvae_forward.12} parent=11 // pred_check_branch
        %148 = sbr.rel (%p146) target = $region24
      $region23: #{vqvae_forward.12} parent=11 // pred_region
        _
      $region24: #{vqvae_forward.12} parent=11 // pred_fallthru
        _
    $region12: #{vqvae_forward.12} parent=5 // pred_fallthru
      _
    %p149 = scmp.lt.s32.totalorder %s10, 2
    // Predicated region
    $region25: #{vqvae_forward.12} parent=5 // pred_check
      %p150 = pneg %p149
    $region26: #{vqvae_forward.12} parent=5 // pred_check_branch
      %152 = sbr.rel (%p150) target = $region28
    $region27: #{vqvae_forward.12} parent=5 // pred_region
      // Predicated region
      $region29: #{vqvae_forward.12} parent=27 // pred_check
        %p153 = pneg %p30
      $region30: #{vqvae_forward.12} parent=27 // pred_check_branch
        %155 = sbr.rel (%p153) target = $region32
      $region31: #{vqvae_forward.12} parent=27 // pred_region
        %p156 = scmp.lt.s32.totalorder %s10, 1
        %s157 = scalar_select %p156, %s10, 1
        %s158 = smul.addr %s157, 8
        %s159 = scalar_lea.vmem %s0, %s158
      $region32: #{vqvae_forward.12} parent=27 // pred_fallthru
        _
    $region28: #{vqvae_forward.12} parent=5 // pred_fallthru
      _
    %p160 = scmp.le.s32.totalorder 1, %s10
    %p161 = scmp.lt.s32.totalorder %s10, 3
    %p162 = pnand %p160, %p161
    %p163 = pneg %p162
    // Predicated region
    $region33: #{vqvae_forward.12} parent=5 // pred_check
      _
    $region34: #{vqvae_forward.12} parent=5 // pred_check_branch
      %165 = sbr.rel (%p162) target = $region36
    $region35: #{vqvae_forward.12} parent=5 // pred_region
      %s166 = ssub.s32 %s10, 1
      %p167 = scmp.lt.s32.totalorder %s15, 1
      %s168 = scalar_select %p167, %s15, 1
      %s169 = smul.addr %s168, 8
      %s170 = scalar_lea.vmem %s0, %s169
      %p171 = pneg %p36
      %p172 = pneg %p33
      %p173 = pneg %p57
      %p174 = pneg %p54
      %p175 = pneg %p78
      %p176 = pneg %p75
      %p177 = pneg %p99
      %p178 = pneg %p96
      %p179 = pneg %p125
      %p180 = pneg %p122
      %p181 = scmp.lt.s32.totalorder %s15, 1
      %s182 = scalar_select %p181, %s15, 1
      %s183 = smul.addr %s182, 4
      %s184 = scalar_lea.vmem %s4, %s183
      %p185 = scmp.lt.s32.totalorder %s15, 1
      %s186 = scalar_select %p185, %s15, 1
      %s187 = smul.addr %s186, 8
      %s188 = scalar_lea.vmem %s0, %s187
      %p189 = scmp.lt.s32.totalorder %s15, 1
      %s190 = scalar_select %p189, %s15, 1
      %s191 = smul.addr %s190, 4
      %s192 = scalar_lea.vmem %s4, %s191
      %v194 = vld [vmem:[%s188] sm:$0xff]
      %v195 = vld [vmem:[%s1] sm:$0xf]
      %v196 = vld [vmem:[%s1 + $0x4] sm:$0xf]
      %v197 = vpack.c.bf16 %v194, %v194
      %v198 = vld [vmem:[%s2] sm:$0x1]
      %v200 = vlaneseq
      %v201 = vshrl.u32 %v200, 7
      %v202 = vsub.s32 0, %v201
      %v203 = vrot.slane %v198, %v202
      %v207 = vunpack.c.l.b16 %v195
      %v208 = vunpack.c.l.b16 %v196
      %v209 = vpack.c.b16 %v208, %v207
      %vm211 = vcmask 130048
      %v213 = vsel %vm211, %v197, 0
      %215 = vmatprep.subr.bf16.mxu0 0
      %216 = vmatpush1.bf16.msra.mxu0 %v209
      %217 = vmatprep.subr.bf16.mxu0 0
      %218 = vmatpush1.bf16.msra.mxu0 0
      %219 = vmatprep.subr.bf16.mxu0 0
      %220 = vmatpush1.bf16.msra.mxu0 0
      %221 = vmatprep.subr.bf16.mxu0 0
      %222 = vmatpush1.bf16.msra.mxu0 0
      %223 = vmatprep.subr.bf16.mxu0 0
      %224 = vmatpush1.bf16.msra.mxu0 0
      %225 = vmatprep.subr.bf16.mxu0 0
      %226 = vmatpush1.bf16.msra.mxu0 0
      %227 = vmatprep.subr.bf16.mxu0 0
      %228 = vmatpush1.bf16.msra.mxu0 0
      %229 = vmatprep.subr.bf16.mxu0 0
      %230 = vmatpush1.bf16.msra.mxu0 0
      %231 = vmatprep.subr.bf16.mxu0 0
      %232 = vmatpush1.bf16.msra.mxu0 0
      %233 = vmatprep.subr.bf16.mxu0 0
      %234 = vmatpush1.bf16.msra.mxu0 0
      %235 = vmatprep.subr.bf16.mxu0 0
      %236 = vmatpush1.bf16.msra.mxu0 0
      %237 = vmatprep.subr.bf16.mxu0 0
      %238 = vmatpush1.bf16.msra.mxu0 0
      %239 = vmatprep.subr.bf16.mxu0 0
      %240 = vmatpush1.bf16.msra.mxu0 0
      %241 = vmatprep.subr.bf16.mxu0 0
      %242 = vmatpush1.bf16.msra.mxu0 0
      %243 = vmatprep.subr.bf16.mxu0 0
      %244 = vmatpush1.bf16.msra.mxu0 0
      %245 = vmatprep.subr.bf16.mxu0 0
      %246 = vmatpush1.bf16.msra.mxu0 0
      %247 = vmatprep.mubr.bf16.mxu0 0
      %248 = vmatmul.mubr.bf16.gmra.mrb[0].mxu0 %v213
      %v249 = vpop.f32.mrb[0].mxu0
      %v250 = vadd.f32 %v203, %v249
      %v251 = vpop.f32.mrb[0].mxu0
      %v252 = vpop.f32.mrb[0].mxu0
      %v253 = vpop.f32.mrb[0].mxu0
      %254 = vdwg.mxu0
      %v255 = vld [vmem:[%s3] sm:$0xff]
      %v256 = vadd.f32 %v250, %v255
      %v257 = vpack.c.bf16 %v256, %v256
      %vm258 = vcmask 257024
      %259 = vst.msk [vmem:[%s192] sm:$0xf] %vm258, %v257
      %p260 = scmp.lt.s32.totalorder %s15, 1
      %s261 = scalar_select %p260, %s15, 1
      %s262 = smul.addr %s261, 4
      %s263 = scalar_lea.vmem %s4, %s262
      // Predicated region
      $region37: #{vqvae_forward.12} parent=35 // pred_check
        %p264 = pneg %p122
      $region38: #{vqvae_forward.12} parent=35 // pred_check_branch
        %266 = sbr.rel (%p264) target = $region40
      $region39: #{vqvae_forward.12} parent=35 // pred_region
        _
      $region40: #{vqvae_forward.12} parent=35 // pred_fallthru
        _
    $region36: #{vqvae_forward.12} parent=5 // pred_fallthru
      _
    %p267 = scmp.le.s32.totalorder 2, %s10
    // Predicated region
    $region41: #{vqvae_forward.12} parent=5 // pred_check
      %p268 = pneg %p267
    $region42: #{vqvae_forward.12} parent=5 // pred_check_branch
      %270 = sbr.rel (%p268) target = $region44
    $region43: #{vqvae_forward.12} parent=5 // pred_region
      %s271 = ssub.s32 %s10, 2
      // Predicated region
      $region45: #{vqvae_forward.12} parent=43 // pred_check
        %p272 = pneg %p128
      $region46: #{vqvae_forward.12} parent=43 // pred_check_branch
        %274 = sbr.rel (%p272) target = $region48
      $region47: #{vqvae_forward.12} parent=43 // pred_region
        %p275 = scmp.lt.s32.totalorder %s16, 1
        %s276 = scalar_select %p275, %s16, 1
        %s277 = smul.addr %s276, 4
        %s278 = scalar_lea.vmem %s4, %s277
      $region48: #{vqvae_forward.12} parent=43 // pred_fallthru
        _
    $region44: #{vqvae_forward.12} parent=5 // pred_fallthru
      _
  $region6: #{vqvae_forward.12} parent=0 // loop_footer
    %s14 = sadd.s32 1, %s10
  $region7: #{vqvae_forward.12} parent=0 // loop_footer_branch
    %9 = sbr.rel target = $region3
  $region8: #{vqvae_forward.12} parent=0 // loop_exit
    _

// kernel: vqvae_forward.11
$region0: #{vqvae_forward.11}
  #allocation0 [shape = 'u32[]', space=smem, size = 0x4, offset = 0x4, fixed_abs, tag = 'smem constant byte address 0x4 - core index']
  #allocation1 [shape = 'u32[144,128]{1,0:T(1,128)}', space=vmem, size = 0x12000, scoped, tag = 'internal scratch']
  %s0 = inlined_call_operand.vmem [shape: bf16[16,32], index: 0, kind: input, shape index: {}]
  %s1 = inlined_call_operand.vmem [shape: f32[1,32], index: 1, kind: input, shape index: {}]
  %s2 = inlined_call_operand.vmem [shape: f32[1,32], index: 2, kind: input, shape index: {}]
  %s3 = inlined_call_operand.vmem [shape: bf16[32,16], index: 3, kind: input, shape index: {}]
  %s4 = inlined_call_operand.vmem [shape: f32[1,16], index: 4, kind: input, shape index: {}]
  %s5 = inlined_call_operand.vmem [shape: bf16[32,16], index: 5, kind: input, shape index: {}]
  %s6 = inlined_call_operand.vmem [shape: bf16[32,16], index: 6, kind: input, shape index: {}]
  %s7 = inlined_call_operand.vmem [shape: bf16[16,32], index: 7, kind: input, shape index: {}]
  %s8 = inlined_call_operand.vmem [shape: f32[1,32], index: 8, kind: input, shape index: {}]
  %s9 = inlined_call_operand.vmem [shape: f32[16,16], index: 9, kind: output, shape index: {0}]
  %s10 = inlined_call_operand.vmem [shape: s32[16,1], index: 10, kind: output, shape index: {1}]
  %s11 = inlined_call_operand.vmem [shape: f32[2,1,1], index: 11, kind: output, shape index: {2}]
  %12 = xla_tuple %s9, %s10, %s11
  %s13 = sld [smem:[#allocation0]]
  $region85: #{vqvae_forward.11} parent=0
    _
  %s15 = ssub.s32 1, %s13
  %s16 = scalar_select 0, %s15, %s13
  loop: start=0, step=1, limit=4
  $region2: #{vqvae_forward.11} parent=0 // loop_pre_header
    _
  $region3: #{vqvae_forward.11} parent=0 // loop_header
    %s18 = sphi 0, %s22
    %p19 = scmp.ge.s32.totalorder %s18, 4
    %s28 = sphi 0, %s30
    %s31 = sphi 0, %s28
    %s32 = sphi 0, %s31
    %s48 = sphi 0, %s32
    %s52 = sphi 0, %s52
    %s54 = sphi 0, %s52
    %s55 = sphi 0, %s54
    %s69 = sphi 0, %s55
    %s73 = sphi 0, %s73
    %s75 = sphi 0, %s73
    %s76 = sphi 0, %s75
    %s90 = sphi 0, %s76
    %s94 = sphi 0, %s94
    %s96 = sphi 0, %s94
    %s97 = sphi 0, %s96
    %s111 = sphi 0, %s97
    %s115 = sphi 0, %s115
    %s117 = sphi 0, %s115
    %s118 = sphi 0, %s117
    %s132 = sphi 0, %s118
    %s136 = sphi 0, %s136
    %s138 = sphi 0, %s136
    %s139 = sphi 0, %s138
    %s153 = sphi 0, %s139
    %s157 = sphi 0, %s157
    %s159 = sphi 0, %s157
    %s160 = sphi 0, %s159
    %s174 = sphi 0, %s160
    %s178 = sphi 0, %s178
    %s180 = sphi 0, %s178
    %s181 = sphi 0, %s180
    %s195 = sphi 0, %s181
    %s199 = sphi 0, %s199
    %s201 = sphi 0, %s199
    %s202 = sphi 0, %s201
    %s216 = sphi 0, %s202
    %s222 = sphi 0, %s224
    %s225 = sphi 0, %s222
    %s226 = sphi 0, %s225
    %s242 = sphi 0, %s226
    %s248 = sphi 0, %s250
    %s251 = sphi 0, %s248
    %s252 = sphi 0, %s251
    %s268 = sphi 0, %s252
    %s274 = sphi 0, %s276
    %s277 = sphi 0, %s274
    %s278 = sphi 0, %s277
    %s294 = sphi 0, %s278
  $region4: #{vqvae_forward.11} parent=0 // loop_header_branch
    %21 = sbr.rel (%p19) target = $region8
  $region5: #{vqvae_forward.11} parent=0 // loop_body
    %s23 = ssub.s32 %s18, 1
    %s24 = ssub.s32 %s18, 2
    %s25 = sadd.s32 %s18, 1
    %s26 = ssub.s32 %s18, %s25
    %p27 = scmp.eq.s32.totalorder %s26, 0
    %s29 = sadd.s32 %s28, 1
    %s30 = scalar_select %p27, %s28, %s29
    %p33 = pneg %p27
    %p34 = scmp.eq.s32.totalorder %s18, 1
    %p35 = por %p33, %p34
    %p36 = scmp.ne.s32.totalorder %s28, %s31
    %p37 = scmp.eq.s32.totalorder %s18, 0
    %p38 = por %p36, %p37
    %p39 = scmp.ne.s32.totalorder %s28, %s31
    %p40 = scmp.eq.s32.totalorder %s23, 1
    %p41 = por %p39, %p40
    %p42 = scmp.ne.s32.totalorder %s31, %s32
    %p43 = scmp.eq.s32.totalorder %s23, 0
    %p44 = por %p42, %p43
    %p45 = scmp.ne.s32.totalorder %s31, %s32
    %p46 = scmp.eq.s32.totalorder %s24, 1
    %p47 = por %p45, %p46
    %p49 = scmp.ne.s32.totalorder %s32, %s48
    %p50 = scmp.eq.s32.totalorder %s24, 0
    %p51 = por %p49, %p50
    %s53 = sadd.s32 %s52, 1
    %p56 = scmp.eq.s32.totalorder %s18, 1
    %p57 = scmp.ne.s32.totalorder %s52, %s54
    %p58 = scmp.eq.s32.totalorder %s18, 0
    %p59 = por %p57, %p58
    %p60 = scmp.ne.s32.totalorder %s52, %s54
    %p61 = scmp.eq.s32.totalorder %s23, 1
    %p62 = por %p60, %p61
    %p63 = scmp.ne.s32.totalorder %s54, %s55
    %p64 = scmp.eq.s32.totalorder %s23, 0
    %p65 = por %p63, %p64
    %p66 = scmp.ne.s32.totalorder %s54, %s55
    %p67 = scmp.eq.s32.totalorder %s24, 1
    %p68 = por %p66, %p67
    %p70 = scmp.ne.s32.totalorder %s55, %s69
    %p71 = scmp.eq.s32.totalorder %s24, 0
    %p72 = por %p70, %p71
    %s74 = sadd.s32 %s73, 1
    %p77 = scmp.eq.s32.totalorder %s18, 1
    %p78 = scmp.ne.s32.totalorder %s73, %s75
    %p79 = scmp.eq.s32.totalorder %s18, 0
    %p80 = por %p78, %p79
    %p81 = scmp.ne.s32.totalorder %s73, %s75
    %p82 = scmp.eq.s32.totalorder %s23, 1
    %p83 = por %p81, %p82
    %p84 = scmp.ne.s32.totalorder %s75, %s76
    %p85 = scmp.eq.s32.totalorder %s23, 0
    %p86 = por %p84, %p85
    %p87 = scmp.ne.s32.totalorder %s75, %s76
    %p88 = scmp.eq.s32.totalorder %s24, 1
    %p89 = por %p87, %p88
    %p91 = scmp.ne.s32.totalorder %s76, %s90
    %p92 = scmp.eq.s32.totalorder %s24, 0
    %p93 = por %p91, %p92
    %s95 = sadd.s32 %s94, 1
    %p98 = scmp.eq.s32.totalorder %s18, 1
    %p99 = scmp.ne.s32.totalorder %s94, %s96
    %p100 = scmp.eq.s32.totalorder %s18, 0
    %p101 = por %p99, %p100
    %p102 = scmp.ne.s32.totalorder %s94, %s96
    %p103 = scmp.eq.s32.totalorder %s23, 1
    %p104 = por %p102, %p103
    %p105 = scmp.ne.s32.totalorder %s96, %s97
    %p106 = scmp.eq.s32.totalorder %s23, 0
    %p107 = por %p105, %p106
    %p108 = scmp.ne.s32.totalorder %s96, %s97
    %p109 = scmp.eq.s32.totalorder %s24, 1
    %p110 = por %p108, %p109
    %p112 = scmp.ne.s32.totalorder %s97, %s111
    %p113 = scmp.eq.s32.totalorder %s24, 0
    %p114 = por %p112, %p113
    %s116 = sadd.s32 %s115, 1
    %p119 = scmp.eq.s32.totalorder %s18, 1
    %p120 = scmp.ne.s32.totalorder %s115, %s117
    %p121 = scmp.eq.s32.totalorder %s18, 0
    %p122 = por %p120, %p121
    %p123 = scmp.ne.s32.totalorder %s115, %s117
    %p124 = scmp.eq.s32.totalorder %s23, 1
    %p125 = por %p123, %p124
    %p126 = scmp.ne.s32.totalorder %s117, %s118
    %p127 = scmp.eq.s32.totalorder %s23, 0
    %p128 = por %p126, %p127
    %p129 = scmp.ne.s32.totalorder %s117, %s118
    %p130 = scmp.eq.s32.totalorder %s24, 1
    %p131 = por %p129, %p130
    %p133 = scmp.ne.s32.totalorder %s118, %s132
    %p134 = scmp.eq.s32.totalorder %s24, 0
    %p135 = por %p133, %p134
    %s137 = sadd.s32 %s136, 1
    %p140 = scmp.eq.s32.totalorder %s18, 1
    %p141 = scmp.ne.s32.totalorder %s136, %s138
    %p142 = scmp.eq.s32.totalorder %s18, 0
    %p143 = por %p141, %p142
    %p144 = scmp.ne.s32.totalorder %s136, %s138
    %p145 = scmp.eq.s32.totalorder %s23, 1
    %p146 = por %p144, %p145
    %p147 = scmp.ne.s32.totalorder %s138, %s139
    %p148 = scmp.eq.s32.totalorder %s23, 0
    %p149 = por %p147, %p148
    %p150 = scmp.ne.s32.totalorder %s138, %s139
    %p151 = scmp.eq.s32.totalorder %s24, 1
    %p152 = por %p150, %p151
    %p154 = scmp.ne.s32.totalorder %s139, %s153
    %p155 = scmp.eq.s32.totalorder %s24, 0
    %p156 = por %p154, %p155
    %s158 = sadd.s32 %s157, 1
    %p161 = scmp.eq.s32.totalorder %s18, 1
    %p162 = scmp.ne.s32.totalorder %s157, %s159
    %p163 = scmp.eq.s32.totalorder %s18, 0
    %p164 = por %p162, %p163
    %p165 = scmp.ne.s32.totalorder %s157, %s159
    %p166 = scmp.eq.s32.totalorder %s23, 1
    %p167 = por %p165, %p166
    %p168 = scmp.ne.s32.totalorder %s159, %s160
    %p169 = scmp.eq.s32.totalorder %s23, 0
    %p170 = por %p168, %p169
    %p171 = scmp.ne.s32.totalorder %s159, %s160
    %p172 = scmp.eq.s32.totalorder %s24, 1
    %p173 = por %p171, %p172
    %p175 = scmp.ne.s32.totalorder %s160, %s174
    %p176 = scmp.eq.s32.totalorder %s24, 0
    %p177 = por %p175, %p176
    %s179 = sadd.s32 %s178, 1
    %p182 = scmp.eq.s32.totalorder %s18, 1
    %p183 = scmp.ne.s32.totalorder %s178, %s180
    %p184 = scmp.eq.s32.totalorder %s18, 0
    %p185 = por %p183, %p184
    %p186 = scmp.ne.s32.totalorder %s178, %s180
    %p187 = scmp.eq.s32.totalorder %s23, 1
    %p188 = por %p186, %p187
    %p189 = scmp.ne.s32.totalorder %s180, %s181
    %p190 = scmp.eq.s32.totalorder %s23, 0
    %p191 = por %p189, %p190
    %p192 = scmp.ne.s32.totalorder %s180, %s181
    %p193 = scmp.eq.s32.totalorder %s24, 1
    %p194 = por %p192, %p193
    %p196 = scmp.ne.s32.totalorder %s181, %s195
    %p197 = scmp.eq.s32.totalorder %s24, 0
    %p198 = por %p196, %p197
    %s200 = sadd.s32 %s199, 1
    %p203 = scmp.eq.s32.totalorder %s18, 1
    %p204 = scmp.ne.s32.totalorder %s199, %s201
    %p205 = scmp.eq.s32.totalorder %s18, 0
    %p206 = por %p204, %p205
    %p207 = scmp.ne.s32.totalorder %s199, %s201
    %p208 = scmp.eq.s32.totalorder %s23, 1
    %p209 = por %p207, %p208
    %p210 = scmp.ne.s32.totalorder %s201, %s202
    %p211 = scmp.eq.s32.totalorder %s23, 0
    %p212 = por %p210, %p211
    %p213 = scmp.ne.s32.totalorder %s201, %s202
    %p214 = scmp.eq.s32.totalorder %s24, 1
    %p215 = por %p213, %p214
    %p217 = scmp.ne.s32.totalorder %s202, %s216
    %p218 = scmp.eq.s32.totalorder %s24, 0
    %p219 = por %p217, %p218
    %s220 = ssub.s32 %s18, %s25
    %p221 = scmp.eq.s32.totalorder %s220, 0
    %s223 = sadd.s32 %s222, 1
    %s224 = scalar_select %p221, %s222, %s223
    %p227 = pneg %p221
    %p228 = scmp.eq.s32.totalorder %s18, 1
    %p229 = por %p227, %p228
    %p230 = scmp.ne.s32.totalorder %s222, %s225
    %p231 = scmp.eq.s32.totalorder %s18, 0
    %p232 = por %p230, %p231
    %p233 = scmp.ne.s32.totalorder %s222, %s225
    %p234 = scmp.eq.s32.totalorder %s23, 1
    %p235 = por %p233, %p234
    %p236 = scmp.ne.s32.totalorder %s225, %s226
    %p237 = scmp.eq.s32.totalorder %s23, 0
    %p238 = por %p236, %p237
    %p239 = scmp.ne.s32.totalorder %s225, %s226
    %p240 = scmp.eq.s32.totalorder %s24, 1
    %p241 = por %p239, %p240
    %p243 = scmp.ne.s32.totalorder %s226, %s242
    %p244 = scmp.eq.s32.totalorder %s24, 0
    %p245 = por %p243, %p244
    %s246 = ssub.s32 %s18, %s25
    %p247 = scmp.eq.s32.totalorder %s246, 0
    %s249 = sadd.s32 %s248, 1
    %s250 = scalar_select %p247, %s248, %s249
    %p253 = pneg %p247
    %p254 = scmp.eq.s32.totalorder %s18, 1
    %p255 = por %p253, %p254
    %p256 = scmp.ne.s32.totalorder %s248, %s251
    %p257 = scmp.eq.s32.totalorder %s18, 0
    %p258 = por %p256, %p257
    %p259 = scmp.ne.s32.totalorder %s248, %s251
    %p260 = scmp.eq.s32.totalorder %s23, 1
    %p261 = por %p259, %p260
    %p262 = scmp.ne.s32.totalorder %s251, %s252
    %p263 = scmp.eq.s32.totalorder %s23, 0
    %p264 = por %p262, %p263
    %p265 = scmp.ne.s32.totalorder %s251, %s252
    %p266 = scmp.eq.s32.totalorder %s24, 1
    %p267 = por %p265, %p266
    %p269 = scmp.ne.s32.totalorder %s252, %s268
    %p270 = scmp.eq.s32.totalorder %s24, 0
    %p271 = por %p269, %p270
    %s272 = ssub.s32 %s18, %s25
    %p273 = scmp.eq.s32.totalorder %s272, 0
    %s275 = sadd.s32 %s274, 1
    %s276 = scalar_select %p273, %s274, %s275
    %p279 = pneg %p273
    %p280 = scmp.eq.s32.totalorder %s18, 1
    %p281 = por %p279, %p280
    %p282 = scmp.ne.s32.totalorder %s274, %s277
    %p283 = scmp.eq.s32.totalorder %s18, 0
    %p284 = por %p282, %p283
    %p285 = scmp.ne.s32.totalorder %s274, %s277
    %p286 = scmp.eq.s32.totalorder %s23, 1
    %p287 = por %p285, %p286
    %p288 = scmp.ne.s32.totalorder %s277, %s278
    %p289 = scmp.eq.s32.totalorder %s23, 0
    %p290 = por %p288, %p289
    %p291 = scmp.ne.s32.totalorder %s277, %s278
    %p292 = scmp.eq.s32.totalorder %s24, 1
    %p293 = por %p291, %p292
    %p295 = scmp.ne.s32.totalorder %s278, %s294
    %p296 = scmp.eq.s32.totalorder %s24, 0
    %p297 = por %p295, %p296
    %p298 = scmp.le.s32.totalorder 1, %s18
    %p299 = scmp.lt.s32.totalorder %s18, 3
    %p300 = pnand %p298, %p299
    %p301 = pneg %p300
    // Predicated region
    $region9: #{vqvae_forward.11} parent=5 // pred_check
      _
    $region10: #{vqvae_forward.11} parent=5 // pred_check_branch
      %303 = sbr.rel (%p300) target = $region12
    $region11: #{vqvae_forward.11} parent=5 // pred_region
      %s304 = ssub.s32 %s18, 1
      // Predicated region
      $region13: #{vqvae_forward.11} parent=11 // pred_check
        %p305 = pneg %p65
      $region14: #{vqvae_forward.11} parent=11 // pred_check_branch
        %307 = sbr.rel (%p305) target = $region16
      $region15: #{vqvae_forward.11} parent=11 // pred_region
        _
      $region16: #{vqvae_forward.11} parent=11 // pred_fallthru
        _
      // Predicated region
      $region17: #{vqvae_forward.11} parent=11 // pred_check
        %p308 = pneg %p86
      $region18: #{vqvae_forward.11} parent=11 // pred_check_branch
        %310 = sbr.rel (%p308) target = $region20
      $region19: #{vqvae_forward.11} parent=11 // pred_region
        _
      $region20: #{vqvae_forward.11} parent=11 // pred_fallthru
        _
      // Predicated region
      $region21: #{vqvae_forward.11} parent=11 // pred_check
        %p311 = pneg %p107
      $region22: #{vqvae_forward.11} parent=11 // pred_check_branch
        %313 = sbr.rel (%p311) target = $region24
      $region23: #{vqvae_forward.11} parent=11 // pred_region
        _
      $region24: #{vqvae_forward.11} parent=11 // pred_fallthru
        _
      // Predicated region
      $region25: #{vqvae_forward.11} parent=11 // pred_check
        %p314 = pneg %p128
      $region26: #{vqvae_forward.11} parent=11 // pred_check_branch
        %316 = sbr.rel (%p314) target = $region28
      $region27: #{vqvae_forward.11} parent=11 // pred_region
        _
      $region28: #{vqvae_forward.11} parent=11 // pred_fallthru
        _
      // Predicated region
      $region29: #{vqvae_forward.11} parent=11 // pred_check
        %p317 = pneg %p149
      $region30: #{vqvae_forward.11} parent=11 // pred_check_branch
        %319 = sbr.rel (%p317) target = $region32
      $region31: #{vqvae_forward.11} parent=11 // pred_region
        _
      $region32: #{vqvae_forward.11} parent=11 // pred_fallthru
        _
      // Predicated region
      $region33: #{vqvae_forward.11} parent=11 // pred_check
        %p320 = pneg %p170
      $region34: #{vqvae_forward.11} parent=11 // pred_check_branch
        %322 = sbr.rel (%p320) target = $region36
      $region35: #{vqvae_forward.11} parent=11 // pred_region
        _
      $region36: #{vqvae_forward.11} parent=11 // pred_fallthru
        _
      // Predicated region
      $region37: #{vqvae_forward.11} parent=11 // pred_check
        %p323 = pneg %p191
      $region38: #{vqvae_forward.11} parent=11 // pred_check_branch
        %325 = sbr.rel (%p323) target = $region40
      $region39: #{vqvae_forward.11} parent=11 // pred_region
        _
      $region40: #{vqvae_forward.11} parent=11 // pred_fallthru
        _
      // Predicated region
      $region41: #{vqvae_forward.11} parent=11 // pred_check
        %p326 = pneg %p212
      $region42: #{vqvae_forward.11} parent=11 // pred_check_branch
        %328 = sbr.rel (%p326) target = $region44
      $region43: #{vqvae_forward.11} parent=11 // pred_region
        _
      $region44: #{vqvae_forward.11} parent=11 // pred_fallthru
        _
    $region12: #{vqvae_forward.11} parent=5 // pred_fallthru
      _
    %p329 = scmp.lt.s32.totalorder %s18, 2
    // Predicated region
    $region45: #{vqvae_forward.11} parent=5 // pred_check
      %p330 = pneg %p329
    $region46: #{vqvae_forward.11} parent=5 // pred_check_branch
      %332 = sbr.rel (%p330) target = $region48
    $region47: #{vqvae_forward.11} parent=5 // pred_region
      // Predicated region
      $region49: #{vqvae_forward.11} parent=47 // pred_check
        %p333 = pneg %p38
      $region50: #{vqvae_forward.11} parent=47 // pred_check_branch
        %335 = sbr.rel (%p333) target = $region52
      $region51: #{vqvae_forward.11} parent=47 // pred_region
        %p336 = scmp.lt.s32.totalorder %s18, 1
        %s337 = scalar_select %p336, %s18, 1
        %s338 = smul.addr %s337, 4
        %s339 = scalar_lea.vmem %s0, %s338
      $region52: #{vqvae_forward.11} parent=47 // pred_fallthru
        _
    $region48: #{vqvae_forward.11} parent=5 // pred_fallthru
      _
    %p340 = scmp.le.s32.totalorder 1, %s18
    %p341 = scmp.lt.s32.totalorder %s18, 3
    %p342 = pnand %p340, %p341
    %p343 = pneg %p342
    // Predicated region
    $region53: #{vqvae_forward.11} parent=5 // pred_check
      _
    $region54: #{vqvae_forward.11} parent=5 // pred_check_branch
      %345 = sbr.rel (%p342) target = $region56
    $region55: #{vqvae_forward.11} parent=5 // pred_region
      %s346 = ssub.s32 %s18, 1
      %p347 = scmp.lt.s32.totalorder %s23, 1
      %s348 = scalar_select %p347, %s23, 1
      %s349 = smul.addr %s348, 4
      %s350 = scalar_lea.vmem %s0, %s349
      %p351 = pneg %p44
      %p352 = pneg %p41
      %p353 = pneg %p65
      %p354 = pneg %p62
      %p355 = pneg %p86
      %p356 = pneg %p83
      %p357 = pneg %p107
      %p358 = pneg %p104
      %p359 = pneg %p128
      %p360 = pneg %p125
      %p361 = pneg %p149
      %p362 = pneg %p146
      %p363 = pneg %p170
      %p364 = pneg %p167
      %p365 = pneg %p191
      %p366 = pneg %p188
      %p367 = pneg %p212
      %p368 = pneg %p209
      %p369 = pneg %p238
      %p370 = pneg %p235
      %p371 = scmp.lt.s32.totalorder %s23, 1
      %s372 = scalar_select %p371, %s23, 1
      %s373 = smul.addr %s372, 8
      %s374 = scalar_lea.vmem %s9, %s373
      %p375 = pneg %p264
      %p376 = pneg %p261
      %p377 = scmp.lt.s32.totalorder %s23, 1
      %s378 = scalar_select %p377, %s23, 1
      %s379 = smul.addr %s378, 8
      %s380 = scalar_lea.vmem %s10, %s379
      %p381 = pneg %p290
      %p382 = pneg %p287
      %p383 = scmp.lt.s32.totalorder %s23, 1
      %s384 = scalar_select %p383, %s23, 1
      %s385 = scalar_lea.vmem %s11, %s384
      %p386 = scmp.lt.s32.totalorder %s23, 1
      %s387 = scalar_select %p386, %s23, 1
      %s388 = smul.addr %s387, 4
      %s389 = scalar_lea.vmem %s0, %s388
      %p390 = scmp.lt.s32.totalorder %s23, 1
      %s391 = scalar_select %p390, %s23, 1
      %s392 = smul.addr %s391, 8
      %s393 = scalar_lea.vmem %s9, %s392
      %p394 = scmp.lt.s32.totalorder %s23, 1
      %s395 = scalar_select %p394, %s23, 1
      %s396 = smul.addr %s395, 8
      %s397 = scalar_lea.vmem %s10, %s396
      %p398 = scmp.lt.s32.totalorder %s23, 1
      %s399 = scalar_select %p398, %s23, 1
      %s400 = scalar_lea.vmem %s11, %s399
      %v402 = vld [vmem:[%s389] sm:$0xf]
      %v403 = vunpack.c.l.bf16 %v402
      %v404 = vld [vmem:[%s1] sm:$0x1]
      %v405 = vld [vmem:[%s2] sm:$0x1]
      %vm406 = vcmask 261120
      %v407 = vsel %vm406, %v403, 0.0
      %408 = vadd.xlane.f32.xlu0 %v407
      %v409 = vpop.xlane.xlu0 %408
      %v410 = vrcp.pop 32.0
      %v411 = vmul.f32 %v409, %v410
      %v412 = vsub.f32 %v403, %v411
      %v413 = vmul.f32 %v412, %v412
      %v414 = vsel %vm406, %v413, 0.0
      %415 = vadd.xlane.f32.xlu0 %v414
      %v416 = vpop.xlane.xlu0 %415
      %v417 = vmul.f32 %v416, %v410
      %v418 = vadd.f32 %v417, 1e-05
      %v419 = vrsqrt.pop %v418
      %v420 = vmul.f32 %v412, %v419
      %v422 = vlaneseq
      %v423 = vshrl.u32 %v422, 7
      %v424 = vsub.s32 0, %v423
      %v425 = vrot.slane %v404, %v424
      %v427 = vmul.f32 %v420, %v425
      %v429 = vlaneseq
      %v430 = vshrl.u32 %v429, 7
      %v431 = vsub.s32 0, %v430
      %v432 = vrot.slane %v405, %v431
      %v434 = vadd.f32 %v427, %v432
      %v435 = vld [vmem:[%s3] sm:$0xf]
      %v436 = vld [vmem:[%s3 + $0x4] sm:$0xf]
      %v437 = vld [vmem:[%s3 + $0x8] sm:$0xf]
      %v438 = vld [vmem:[%s3 + $0xc] sm:$0xf]
      %v439 = vpack.c.bf16 %v434, %v434
      %v440 = vld [vmem:[%s4] sm:$0x1]
      %v442 = vlaneseq
      %v443 = vshrl.u32 %v442, 7
      %v444 = vsub.s32 0, %v443
      %v445 = vrot.slane %v440, %v444
      %v451 = vunpack.c.l.b16 %v435
      %v452 = vunpack.c.l.b16 %v436
      %v453 = vunpack.c.l.b16 %v437
      %v454 = vunpack.c.l.b16 %v438
      %v455 = vpack.c.b16 %v452, %v451
      %v456 = vpack.c.b16 %v454, %v453
      %v460 = vsel %vm406, %v439, 0
      %462 = vmatprep.subr.bf16.mxu0 0
      %463 = vmatpush1.bf16.msra.mxu0 %v455
      %464 = vmatprep.subr.bf16.mxu0 0
      %465 = vmatpush1.bf16.msra.mxu0 %v456
      %466 = vmatprep.subr.bf16.mxu0 0
      %467 = vmatpush1.bf16.msra.mxu0 0
      %468 = vmatprep.subr.bf16.mxu0 0
      %469 = vmatpush1.bf16.msra.mxu0 0
      %470 = vmatprep.subr.bf16.mxu0 0
      %471 = vmatpush1.bf16.msra.mxu0 0
      %472 = vmatprep.subr.bf16.mxu0 0
      %473 = vmatpush1.bf16.msra.mxu0 0
      %474 = vmatprep.subr.bf16.mxu0 0
      %475 = vmatpush1.bf16.msra.mxu0 0
      %476 = vmatprep.subr.bf16.mxu0 0
      %477 = vmatpush1.bf16.msra.mxu0 0
      %478 = vmatprep.subr.bf16.mxu0 0
      %479 = vmatpush1.bf16.msra.mxu0 0
      %480 = vmatprep.subr.bf16.mxu0 0
      %481 = vmatpush1.bf16.msra.mxu0 0
      %482 = vmatprep.subr.bf16.mxu0 0
      %483 = vmatpush1.bf16.msra.mxu0 0
      %484 = vmatprep.subr.bf16.mxu0 0
      %485 = vmatpush1.bf16.msra.mxu0 0
      %486 = vmatprep.subr.bf16.mxu0 0
      %487 = vmatpush1.bf16.msra.mxu0 0
      %488 = vmatprep.subr.bf16.mxu0 0
      %489 = vmatpush1.bf16.msra.mxu0 0
      %490 = vmatprep.subr.bf16.mxu0 0
      %491 = vmatpush1.bf16.msra.mxu0 0
      %492 = vmatprep.subr.bf16.mxu0 0
      %493 = vmatpush1.bf16.msra.mxu0 0
      %494 = vmatprep.mubr.bf16.mxu0 0
      %495 = vmatmul.mubr.bf16.gmra.mrb[0].mxu0 %v460
      %v496 = vpop.f32.mrb[0].mxu0
      %v497 = vadd.f32 %v445, %v496
      %v498 = vpop.f32.mrb[0].mxu0
      %v499 = vpop.f32.mrb[0].mxu0
      %v500 = vpop.f32.mrb[0].mxu0
      %501 = vdwg.mxu0
      %v502 = vmul.f32 %v497, %v497
      %vm503 = vcmask 130048
      %v504 = vsel %vm503, %v502, 0.0
      %505 = vadd.xlane.f32.xlu0 %v504
      %v506 = vpop.xlane.xlu0 %505
      %v507 = vpack.c.bf16 %v497, %v497
      %v508 = vld [vmem:[%s7] sm:$0xf]
      %v509 = vld [vmem:[%s7 + $0x4] sm:$0xf]
      %v512 = vunpack.c.l.b16 %v508
      %v513 = vunpack.c.l.b16 %v509
      %v514 = vpack.c.b16 %v513, %v512
      %v517 = vsel %vm503, %v507, 0
      %519 = vmatprep.subr.bf16.mxu0 0
      %520 = vmatpush1.bf16.msra.mxu0 %v514
      %521 = vmatprep.subr.bf16.mxu0 0
      %522 = vmatpush1.bf16.msra.mxu0 0
      %523 = vmatprep.subr.bf16.mxu0 0
      %524 = vmatpush1.bf16.msra.mxu0 0
      %525 = vmatprep.subr.bf16.mxu0 0
      %526 = vmatpush1.bf16.msra.mxu0 0
      %527 = vmatprep.subr.bf16.mxu0 0
      %528 = vmatpush1.bf16.msra.mxu0 0
      %529 = vmatprep.subr.bf16.mxu0 0
      %530 = vmatpush1.bf16.msra.mxu0 0
      %531 = vmatprep.subr.bf16.mxu0 0
      %532 = vmatpush1.bf16.msra.mxu0 0
      %533 = vmatprep.subr.bf16.mxu0 0
      %534 = vmatpush1.bf16.msra.mxu0 0
      %535 = vmatprep.subr.bf16.mxu0 0
      %536 = vmatpush1.bf16.msra.mxu0 0
      %537 = vmatprep.subr.bf16.mxu0 0
      %538 = vmatpush1.bf16.msra.mxu0 0
      %539 = vmatprep.subr.bf16.mxu0 0
      %540 = vmatpush1.bf16.msra.mxu0 0
      %541 = vmatprep.subr.bf16.mxu0 0
      %542 = vmatpush1.bf16.msra.mxu0 0
      %543 = vmatprep.subr.bf16.mxu0 0
      %544 = vmatpush1.bf16.msra.mxu0 0
      %545 = vmatprep.subr.bf16.mxu0 0
      %546 = vmatpush1.bf16.msra.mxu0 0
      %547 = vmatprep.subr.bf16.mxu0 0
      %548 = vmatpush1.bf16.msra.mxu0 0
      %549 = vmatprep.subr.bf16.mxu0 0
      %550 = vmatpush1.bf16.msra.mxu0 0
      %551 = vmatprep.mubr.bf16.mxu0 0
      %552 = vmatmul.mubr.bf16.gmra.mrb[0].mxu0 %v517
      %v553 = vpop.f32.mrb[0].mxu0
      %v554 = vadd.f32 0.0, %v553
      %v555 = vpop.f32.mrb[0].mxu0
      %v556 = vpop.f32.mrb[0].mxu0
      %v557 = vpop.f32.mrb[0].mxu0
      %558 = vdwg.mxu0
      %v559 = vld [vmem:[%s8] sm:$0x1]
      %v561 = vlaneseq
      %v562 = vshrl.u32 %v561, 7
      %v563 = vsub.s32 0, %v562
      %v564 = vrot.slane %v559, %v563
      %v566 = vadd.f32 %v506, %v564
      %v567 = vmul.f32 %v554, 2.0
      %v568 = vsub.f32 %v566, %v567
      %v569 = vlaneseq
      %v570 = vand.u32 %v569, 127
      %v571 = vsel %vm406, %v568, inf
      %572 = vmin.xlane.f32.xlu0 %v571
      %v573 = vpop.xlane.xlu0 %572
      %vm574 = vcmp.le.f32.partialorder %v568, %v573
      %v575 = vsel %vm574, %v570, 32
      %v576 = vsel %vm406, %v575, 2147483647
      %v577 = vand.u32 %v576, 65535
      %v578 = vshra.s32 %v576, 16
      %v579 = vcvt.s32.f32 %v577
      %v580 = vcvt.s32.f32 %v578
      %581 = vmin.xlane.f32.xlu0 %v580
      %v582 = vpop.xlane.xlu0 %581
      %vm583 = vcmp.eq.f32.partialorder %v580, %v582
      %v584 = vsel %vm583, %v579, inf
      %585 = vmin.xlane.f32.xlu0 %v584
      %v586 = vpop.xlane.xlu0 %585
      %v587 = vcvt.f32.s32 %v586
      %v588 = vcvt.f32.s32 %v582
      %v589 = vshll.u32 %v588, 16
      %v590 = vadd.s32 %v589, %v587
      %vm591 = vcmp.lt.s32.totalorder %v590, 31
      %v592 = vsel %vm591, %v590, 31
      %vm593 = vcmp.eq.s32.totalorder %v570, %v592
      %v594 = vsel %vm593, 1, 0
      %v595 = vcvt.s32.f32 %v594
      %v596 = vpack.c.bf16 %v595, %v595
      %v597 = vld [vmem:[%s5] sm:$0xf]
      %v598 = vld [vmem:[%s5 + $0x4] sm:$0xf]
      %v599 = vld [vmem:[%s5 + $0x8] sm:$0xf]
      %v600 = vld [vmem:[%s5 + $0xc] sm:$0xf]
      %v601 = vld [vmem:[%s6] sm:$0xf]
      %v602 = vld [vmem:[%s6 + $0x4] sm:$0xf]
      %v603 = vld [vmem:[%s6 + $0x8] sm:$0xf]
      %v604 = vld [vmem:[%s6 + $0xc] sm:$0xf]
      %v609 = vunpack.c.l.b16 %v601
      %v610 = vunpack.c.l.b16 %v602
      %v611 = vunpack.c.l.b16 %v603
      %v612 = vunpack.c.l.b16 %v604
      %v613 = vpack.c.b16 %v610, %v609
      %v614 = vpack.c.b16 %v612, %v611
      %v618 = vsel %vm406, %v596, 0
      %620 = vmatprep.subr.bf16.mxu0 0
      %621 = vmatpush1.bf16.msra.mxu0 %v613
      %622 = vmatprep.subr.bf16.mxu0 0
      %623 = vmatpush1.bf16.msra.mxu0 %v614
      %624 = vmatprep.subr.bf16.mxu0 0
      %625 = vmatpush1.bf16.msra.mxu0 0
      %626 = vmatprep.subr.bf16.mxu0 0
      %627 = vmatpush1.bf16.msra.mxu0 0
      %628 = vmatprep.subr.bf16.mxu0 0
      %629 = vmatpush1.bf16.msra.mxu0 0
      %630 = vmatprep.subr.bf16.mxu0 0
      %631 = vmatpush1.bf16.msra.mxu0 0
      %632 = vmatprep.subr.bf16.mxu0 0
      %633 = vmatpush1.bf16.msra.mxu0 0
      %634 = vmatprep.subr.bf16.mxu0 0
      %635 = vmatpush1.bf16.msra.mxu0 0
      %636 = vmatprep.subr.bf16.mxu0 0
      %637 = vmatpush1.bf16.msra.mxu0 0
      %638 = vmatprep.subr.bf16.mxu0 0
      %639 = vmatpush1.bf16.msra.mxu0 0
      %640 = vmatprep.subr.bf16.mxu0 0
      %641 = vmatpush1.bf16.msra.mxu0 0
      %642 = vmatprep.subr.bf16.mxu0 0
      %643 = vmatpush1.bf16.msra.mxu0 0
      %644 = vmatprep.subr.bf16.mxu0 0
      %645 = vmatpush1.bf16.msra.mxu0 0
      %646 = vmatprep.subr.bf16.mxu0 0
      %647 = vmatpush1.bf16.msra.mxu0 0
      %648 = vmatprep.subr.bf16.mxu0 0
      %649 = vmatpush1.bf16.msra.mxu0 0
      %650 = vmatprep.subr.bf16.mxu0 0
      %651 = vmatpush1.bf16.msra.mxu0 0
      %652 = vmatprep.mubr.bf16.mxu0 0
      %653 = vmatmul.mubr.bf16.gmra.mrb[0].mxu0 %v618
      %v654 = vpop.f32.mrb[0].mxu0
      %v655 = vadd.f32 0.0, %v654
      %v656 = vpop.f32.mrb[0].mxu0
      %v657 = vpop.f32.mrb[0].mxu0
      %v658 = vpop.f32.mrb[0].mxu0
      %659 = vdwg.mxu0
      %v664 = vunpack.c.l.b16 %v597
      %v665 = vunpack.c.l.b16 %v598
      %v666 = vunpack.c.l.b16 %v599
      %v667 = vunpack.c.l.b16 %v600
      %v668 = vpack.c.b16 %v665, %v664
      %v669 = vpack.c.b16 %v667, %v666
      %672 = vmatprep.subr.bf16.mxu0 0
      %673 = vmatpush1.bf16.msra.mxu0 %v668
      %674 = vmatprep.subr.bf16.mxu0 0
      %675 = vmatpush1.bf16.msra.mxu0 %v669
      %676 = vmatprep.subr.bf16.mxu0 0
      %677 = vmatpush1.bf16.msra.mxu0 0
      %678 = vmatprep.subr.bf16.mxu0 0
      %679 = vmatpush1.bf16.msra.mxu0 0
      %680 = vmatprep.subr.bf16.mxu0 0
      %681 = vmatpush1.bf16.msra.mxu0 0
      %682 = vmatprep.subr.bf16.mxu0 0
      %683 = vmatpush1.bf16.msra.mxu0 0
      %684 = vmatprep.subr.bf16.mxu0 0
      %685 = vmatpush1.bf16.msra.mxu0 0
      %686 = vmatprep.subr.bf16.mxu0 0
      %687 = vmatpush1.bf16.msra.mxu0 0
      %688 = vmatprep.subr.bf16.mxu0 0
      %689 = vmatpush1.bf16.msra.mxu0 0
      %690 = vmatprep.subr.bf16.mxu0 0
      %691 = vmatpush1.bf16.msra.mxu0 0
      %692 = vmatprep.subr.bf16.mxu0 0
      %693 = vmatpush1.bf16.msra.mxu0 0
      %694 = vmatprep.subr.bf16.mxu0 0
      %695 = vmatpush1.bf16.msra.mxu0 0
      %696 = vmatprep.subr.bf16.mxu0 0
      %697 = vmatpush1.bf16.msra.mxu0 0
      %698 = vmatprep.subr.bf16.mxu0 0
      %699 = vmatpush1.bf16.msra.mxu0 0
      %700 = vmatprep.subr.bf16.mxu0 0
      %701 = vmatpush1.bf16.msra.mxu0 0
      %702 = vmatprep.subr.bf16.mxu0 0
      %703 = vmatpush1.bf16.msra.mxu0 0
      %704 = vmatprep.mubr.bf16.mxu0 0
      %705 = vmatmul.mubr.bf16.gmra.mrb[0].mxu0 %v618
      %v706 = vpop.f32.mrb[0].mxu0
      %v707 = vadd.f32 %v655, %v706
      %v708 = vpop.f32.mrb[0].mxu0
      %v709 = vpop.f32.mrb[0].mxu0
      %v710 = vpop.f32.mrb[0].mxu0
      %711 = vdwg.mxu0
      %712 = vst.msk [vmem:[%s393] sm:$0xff] %vm503, %v707
      %vm713 = vcmask 7168
      %714 = vst.msk [vmem:[%s397] sm:$0xff] %vm713, %v592
      %v715 = vsub.f32 %v707, %v497
      %v716 = vmul.f32 %v715, %v715
      %v717 = vsel %vm503, %v716, 0.0
      %718 = vadd.xlane.f32.xlu0 %v717
      %v719 = vpop.xlane.xlu0 %718
      %v720 = vrot.slane %v719, 4
      %v721 = vadd.f32 %v719, %v720
      %v722 = vrot.slane %v721, 2
      %v723 = vadd.f32 %v721, %v722
      %v724 = vrot.slane %v723, 1
      %v725 = vadd.f32 %v723, %v724
      %s726 = vtos %v725
      %v727 = vstv %s726
      %vm728 = vcmask 0
      %729 = vst.msk [vmem:[%s400] sm:$0x1] %vm728, %v727
      %p730 = scmp.lt.s32.totalorder %s23, 1
      %s731 = scalar_select %p730, %s23, 1
      %s732 = smul.addr %s731, 8
      %s733 = scalar_lea.vmem %s9, %s732
      %p734 = scmp.lt.s32.totalorder %s23, 1
      %s735 = scalar_select %p734, %s23, 1
      %s736 = smul.addr %s735, 8
      %s737 = scalar_lea.vmem %s10, %s736
      %p738 = scmp.lt.s32.totalorder %s23, 1
      %s739 = scalar_select %p738, %s23, 1
      %s740 = scalar_lea.vmem %s11, %s739
      // Predicated region
      $region57: #{vqvae_forward.11} parent=55 // pred_check
        %p741 = pneg %p235
      $region58: #{vqvae_forward.11} parent=55 // pred_check_branch
        %743 = sbr.rel (%p741) target = $region60
      $region59: #{vqvae_forward.11} parent=55 // pred_region
        _
      $region60: #{vqvae_forward.11} parent=55 // pred_fallthru
        _
      // Predicated region
      $region61: #{vqvae_forward.11} parent=55 // pred_check
        %p744 = pneg %p261
      $region62: #{vqvae_forward.11} parent=55 // pred_check_branch
        %746 = sbr.rel (%p744) target = $region64
      $region63: #{vqvae_forward.11} parent=55 // pred_region
        _
      $region64: #{vqvae_forward.11} parent=55 // pred_fallthru
        _
      // Predicated region
      $region65: #{vqvae_forward.11} parent=55 // pred_check
        %p747 = pneg %p287
      $region66: #{vqvae_forward.11} parent=55 // pred_check_branch
        %749 = sbr.rel (%p747) target = $region68
      $region67: #{vqvae_forward.11} parent=55 // pred_region
        _
      $region68: #{vqvae_forward.11} parent=55 // pred_fallthru
        _
    $region56: #{vqvae_forward.11} parent=5 // pred_fallthru
      _
    %p750 = scmp.le.s32.totalorder 2, %s18
    // Predicated region
    $region69: #{vqvae_forward.11} parent=5 // pred_check
      %p751 = pneg %p750
    $region70: #{vqvae_forward.11} parent=5 // pred_check_branch
      %753 = sbr.rel (%p751) target = $region72
    $region71: #{vqvae_forward.11} parent=5 // pred_region
      %s754 = ssub.s32 %s18, 2
      // Predicated region
      $region73: #{vqvae_forward.11} parent=71 // pred_check
        %p755 = pneg %p241
      $region74: #{vqvae_forward.11} parent=71 // pred_check_branch
        %757 = sbr.rel (%p755) target = $region76
      $region75: #{vqvae_forward.11} parent=71 // pred_region
        %p758 = scmp.lt.s32.totalorder %s24, 1
        %s759 = scalar_select %p758, %s24, 1
        %s760 = smul.addr %s759, 8
        %s761 = scalar_lea.vmem %s9, %s760
      $region76: #{vqvae_forward.11} parent=71 // pred_fallthru
        _
      // Predicated region
      $region77: #{vqvae_forward.11} parent=71 // pred_check
        %p762 = pneg %p267
      $region78: #{vqvae_forward.11} parent=71 // pred_check_branch
        %764 = sbr.rel (%p762) target = $region80
      $region79: #{vqvae_forward.11} parent=71 // pred_region
        %p765 = scmp.lt.s32.totalorder %s24, 1
        %s766 = scalar_select %p765, %s24, 1
        %s767 = smul.addr %s766, 8
        %s768 = scalar_lea.vmem %s10, %s767
      $region80: #{vqvae_forward.11} parent=71 // pred_fallthru
        _
      // Predicated region
      $region81: #{vqvae_forward.11} parent=71 // pred_check
        %p769 = pneg %p293
      $region82: #{vqvae_forward.11} parent=71 // pred_check_branch
        %771 = sbr.rel (%p769) target = $region84
      $region83: #{vqvae_forward.11} parent=71 // pred_region
        %p772 = scmp.lt.s32.totalorder %s24, 1
        %s773 = scalar_select %p772, %s24, 1
        %s774 = scalar_lea.vmem %s11, %s773
      $region84: #{vqvae_forward.11} parent=71 // pred_fallthru
        _
    $region72: #{vqvae_forward.11} parent=5 // pred_fallthru
      _
  $region6: #{vqvae_forward.11} parent=0 // loop_footer
    %s22 = sadd.s32 1, %s18
  $region7: #{vqvae_forward.11} parent=0 // loop_footer_branch
    %17 = sbr.rel target = $region3
  $region8: #{vqvae_forward.11} parent=0 // loop_exit
    _

// kernel: vqvae_forward.9
$region0: #{vqvae_forward.9}
  #allocation0 [shape = 'u32[]', space=smem, size = 0x4, offset = 0x4, fixed_abs, tag = 'smem constant byte address 0x4 - core index']
  #allocation1 [shape = 'u32[144,128]{1,0:T(1,128)}', space=vmem, size = 0x12000, scoped, tag = 'internal scratch']
  %s0 = inlined_call_operand.vmem [shape: bf16[16,32], index: 0, kind: input, shape index: {}, may-alias: {0,17}]
  %s1 = inlined_call_operand.vmem [shape: f32[1,32], index: 1, kind: input, shape index: {}]
  %s2 = inlined_call_operand.vmem [shape: f32[1,32], index: 2, kind: input, shape index: {}]
  %s3 = inlined_call_operand.vmem [shape: bf16[32,32], index: 3, kind: input, shape index: {}]
  %s4 = inlined_call_operand.vmem [shape: bf16[32,32], index: 4, kind: input, shape index: {}]
  %s5 = inlined_call_operand.vmem [shape: bf16[32,32], index: 5, kind: input, shape index: {}]
  %s6 = inlined_call_operand.vmem [shape: f32[1,32], index: 6, kind: input, shape index: {}]
  %s7 = inlined_call_operand.vmem [shape: f32[1,32], index: 7, kind: input, shape index: {}]
  %s8 = inlined_call_operand.vmem [shape: f32[1,32], index: 8, kind: input, shape index: {}]
  %s9 = inlined_call_operand.vmem [shape: bf16[32,32], index: 9, kind: input, shape index: {}]
  %s10 = inlined_call_operand.vmem [shape: f32[1,32], index: 10, kind: input, shape index: {}]
  %s11 = inlined_call_operand.vmem [shape: f32[1,32], index: 11, kind: input, shape index: {}]
  %s12 = inlined_call_operand.vmem [shape: f32[1,32], index: 12, kind: input, shape index: {}]
  %s13 = inlined_call_operand.vmem [shape: bf16[32,64], index: 13, kind: input, shape index: {}]
  %s14 = inlined_call_operand.vmem [shape: f32[1,64], index: 14, kind: input, shape index: {}]
  %s15 = inlined_call_operand.vmem [shape: bf16[64,32], index: 15, kind: input, shape index: {}]
  %s16 = inlined_call_operand.vmem [shape: f32[1,32], index: 16, kind: input, shape index: {}]
  %s17 = inlined_call_operand.vmem [shape: bf16[16,32], index: 17, kind: output, shape index: {}, may-alias: {0,17}]
  %s18 = sld [smem:[#allocation0]]
  $region101: #{vqvae_forward.9} parent=0
    _
  %s20 = ssub.s32 1, %s18
  %s21 = scalar_select 0, %s20, %s18
  loop: start=0, step=1, limit=4
  $region2: #{vqvae_forward.9} parent=0 // loop_pre_header
    _
  $region3: #{vqvae_forward.9} parent=0 // loop_header
    %s23 = sphi 0, %s27
    %p24 = scmp.ge.s32.totalorder %s23, 4
    %s33 = sphi 0, %s35
    %s36 = sphi 0, %s33
    %s37 = sphi 0, %s36
    %s53 = sphi 0, %s37
    %s57 = sphi 0, %s57
    %s59 = sphi 0, %s57
    %s60 = sphi 0, %s59
    %s74 = sphi 0, %s60
    %s78 = sphi 0, %s78
    %s80 = sphi 0, %s78
    %s81 = sphi 0, %s80
    %s95 = sphi 0, %s81
    %s99 = sphi 0, %s99
    %s101 = sphi 0, %s99
    %s102 = sphi 0, %s101
    %s116 = sphi 0, %s102
    %s120 = sphi 0, %s120
    %s122 = sphi 0, %s120
    %s123 = sphi 0, %s122
    %s137 = sphi 0, %s123
    %s141 = sphi 0, %s141
    %s143 = sphi 0, %s141
    %s144 = sphi 0, %s143
    %s158 = sphi 0, %s144
    %s162 = sphi 0, %s162
    %s164 = sphi 0, %s162
    %s165 = sphi 0, %s164
    %s179 = sphi 0, %s165
    %s183 = sphi 0, %s183
    %s185 = sphi 0, %s183
    %s186 = sphi 0, %s185
    %s200 = sphi 0, %s186
    %s204 = sphi 0, %s204
    %s206 = sphi 0, %s204
    %s207 = sphi 0, %s206
    %s221 = sphi 0, %s207
    %s225 = sphi 0, %s225
    %s227 = sphi 0, %s225
    %s228 = sphi 0, %s227
    %s242 = sphi 0, %s228
    %s246 = sphi 0, %s246
    %s248 = sphi 0, %s246
    %s249 = sphi 0, %s248
    %s263 = sphi 0, %s249
    %s267 = sphi 0, %s267
    %s269 = sphi 0, %s267
    %s270 = sphi 0, %s269
    %s284 = sphi 0, %s270
    %s288 = sphi 0, %s288
    %s290 = sphi 0, %s288
    %s291 = sphi 0, %s290
    %s305 = sphi 0, %s291
    %s309 = sphi 0, %s309
    %s311 = sphi 0, %s309
    %s312 = sphi 0, %s311
    %s326 = sphi 0, %s312
    %s330 = sphi 0, %s330
    %s332 = sphi 0, %s330
    %s333 = sphi 0, %s332
    %s347 = sphi 0, %s333
    %s351 = sphi 0, %s351
    %s353 = sphi 0, %s351
    %s354 = sphi 0, %s353
    %s368 = sphi 0, %s354
    %s372 = sphi 0, %s372
    %s374 = sphi 0, %s372
    %s375 = sphi 0, %s374
    %s389 = sphi 0, %s375
    %s395 = sphi 0, %s397
    %s398 = sphi 0, %s395
    %s399 = sphi 0, %s398
    %s415 = sphi 0, %s399
  $region4: #{vqvae_forward.9} parent=0 // loop_header_branch
    %26 = sbr.rel (%p24) target = $region8
  $region5: #{vqvae_forward.9} parent=0 // loop_body
    %s28 = ssub.s32 %s23, 1
    %s29 = ssub.s32 %s23, 2
    %s30 = sadd.s32 %s23, 1
    %s31 = ssub.s32 %s23, %s30
    %p32 = scmp.eq.s32.totalorder %s31, 0
    %s34 = sadd.s32 %s33, 1
    %s35 = scalar_select %p32, %s33, %s34
    %p38 = pneg %p32
    %p39 = scmp.eq.s32.totalorder %s23, 1
    %p40 = por %p38, %p39
    %p41 = scmp.ne.s32.totalorder %s33, %s36
    %p42 = scmp.eq.s32.totalorder %s23, 0
    %p43 = por %p41, %p42
    %p44 = scmp.ne.s32.totalorder %s33, %s36
    %p45 = scmp.eq.s32.totalorder %s28, 1
    %p46 = por %p44, %p45
    %p47 = scmp.ne.s32.totalorder %s36, %s37
    %p48 = scmp.eq.s32.totalorder %s28, 0
    %p49 = por %p47, %p48
    %p50 = scmp.ne.s32.totalorder %s36, %s37
    %p51 = scmp.eq.s32.totalorder %s29, 1
    %p52 = por %p50, %p51
    %p54 = scmp.ne.s32.totalorder %s37, %s53
    %p55 = scmp.eq.s32.totalorder %s29, 0
    %p56 = por %p54, %p55
    %s58 = sadd.s32 %s57, 1
    %p61 = scmp.eq.s32.totalorder %s23, 1
    %p62 = scmp.ne.s32.totalorder %s57, %s59
    %p63 = scmp.eq.s32.totalorder %s23, 0
    %p64 = por %p62, %p63
    %p65 = scmp.ne.s32.totalorder %s57, %s59
    %p66 = scmp.eq.s32.totalorder %s28, 1
    %p67 = por %p65, %p66
    %p68 = scmp.ne.s32.totalorder %s59, %s60
    %p69 = scmp.eq.s32.totalorder %s28, 0
    %p70 = por %p68, %p69
    %p71 = scmp.ne.s32.totalorder %s59, %s60
    %p72 = scmp.eq.s32.totalorder %s29, 1
    %p73 = por %p71, %p72
    %p75 = scmp.ne.s32.totalorder %s60, %s74
    %p76 = scmp.eq.s32.totalorder %s29, 0
    %p77 = por %p75, %p76
    %s79 = sadd.s32 %s78, 1
    %p82 = scmp.eq.s32.totalorder %s23, 1
    %p83 = scmp.ne.s32.totalorder %s78, %s80
    %p84 = scmp.eq.s32.totalorder %s23, 0
    %p85 = por %p83, %p84
    %p86 = scmp.ne.s32.totalorder %s78, %s80
    %p87 = scmp.eq.s32.totalorder %s28, 1
    %p88 = por %p86, %p87
    %p89 = scmp.ne.s32.totalorder %s80, %s81
    %p90 = scmp.eq.s32.totalorder %s28, 0
    %p91 = por %p89, %p90
    %p92 = scmp.ne.s32.totalorder %s80, %s81
    %p93 = scmp.eq.s32.totalorder %s29, 1
    %p94 = por %p92, %p93
    %p96 = scmp.ne.s32.totalorder %s81, %s95
    %p97 = scmp.eq.s32.totalorder %s29, 0
    %p98 = por %p96, %p97
    %s100 = sadd.s32 %s99, 1
    %p103 = scmp.eq.s32.totalorder %s23, 1
    %p104 = scmp.ne.s32.totalorder %s99, %s101
    %p105 = scmp.eq.s32.totalorder %s23, 0
    %p106 = por %p104, %p105
    %p107 = scmp.ne.s32.totalorder %s99, %s101
    %p108 = scmp.eq.s32.totalorder %s28, 1
    %p109 = por %p107, %p108
    %p110 = scmp.ne.s32.totalorder %s101, %s102
    %p111 = scmp.eq.s32.totalorder %s28, 0
    %p112 = por %p110, %p111
    %p113 = scmp.ne.s32.totalorder %s101, %s102
    %p114 = scmp.eq.s32.totalorder %s29, 1
    %p115 = por %p113, %p114
    %p117 = scmp.ne.s32.totalorder %s102, %s116
    %p118 = scmp.eq.s32.totalorder %s29, 0
    %p119 = por %p117, %p118
    %s121 = sadd.s32 %s120, 1
    %p124 = scmp.eq.s32.totalorder %s23, 1
    %p125 = scmp.ne.s32.totalorder %s120, %s122
    %p126 = scmp.eq.s32.totalorder %s23, 0
    %p127 = por %p125, %p126
    %p128 = scmp.ne.s32.totalorder %s120, %s122
    %p129 = scmp.eq.s32.totalorder %s28, 1
    %p130 = por %p128, %p129
    %p131 = scmp.ne.s32.totalorder %s122, %s123
    %p132 = scmp.eq.s32.totalorder %s28, 0
    %p133 = por %p131, %p132
    %p134 = scmp.ne.s32.totalorder %s122, %s123
    %p135 = scmp.eq.s32.totalorder %s29, 1
    %p136 = por %p134, %p135
    %p138 = scmp.ne.s32.totalorder %s123, %s137
    %p139 = scmp.eq.s32.totalorder %s29, 0
    %p140 = por %p138, %p139
    %s142 = sadd.s32 %s141, 1
    %p145 = scmp.eq.s32.totalorder %s23, 1
    %p146 = scmp.ne.s32.totalorder %s141, %s143
    %p147 = scmp.eq.s32.totalorder %s23, 0
    %p148 = por %p146, %p147
    %p149 = scmp.ne.s32.totalorder %s141, %s143
    %p150 = scmp.eq.s32.totalorder %s28, 1
    %p151 = por %p149, %p150
    %p152 = scmp.ne.s32.totalorder %s143, %s144
    %p153 = scmp.eq.s32.totalorder %s28, 0
    %p154 = por %p152, %p153
    %p155 = scmp.ne.s32.totalorder %s143, %s144
    %p156 = scmp.eq.s32.totalorder %s29, 1
    %p157 = por %p155, %p156
    %p159 = scmp.ne.s32.totalorder %s144, %s158
    %p160 = scmp.eq.s32.totalorder %s29, 0
    %p161 = por %p159, %p160
    %s163 = sadd.s32 %s162, 1
    %p166 = scmp.eq.s32.totalorder %s23, 1
    %p167 = scmp.ne.s32.totalorder %s162, %s164
    %p168 = scmp.eq.s32.totalorder %s23, 0
    %p169 = por %p167, %p168
    %p170 = scmp.ne.s32.totalorder %s162, %s164
    %p171 = scmp.eq.s32.totalorder %s28, 1
    %p172 = por %p170, %p171
    %p173 = scmp.ne.s32.totalorder %s164, %s165
    %p174 = scmp.eq.s32.totalorder %s28, 0
    %p175 = por %p173, %p174
    %p176 = scmp.ne.s32.totalorder %s164, %s165
    %p177 = scmp.eq.s32.totalorder %s29, 1
    %p178 = por %p176, %p177
    %p180 = scmp.ne.s32.totalorder %s165, %s179
    %p181 = scmp.eq.s32.totalorder %s29, 0
    %p182 = por %p180, %p181
    %s184 = sadd.s32 %s183, 1
    %p187 = scmp.eq.s32.totalorder %s23, 1
    %p188 = scmp.ne.s32.totalorder %s183, %s185
    %p189 = scmp.eq.s32.totalorder %s23, 0
    %p190 = por %p188, %p189
    %p191 = scmp.ne.s32.totalorder %s183, %s185
    %p192 = scmp.eq.s32.totalorder %s28, 1
    %p193 = por %p191, %p192
    %p194 = scmp.ne.s32.totalorder %s185, %s186
    %p195 = scmp.eq.s32.totalorder %s28, 0
    %p196 = por %p194, %p195
    %p197 = scmp.ne.s32.totalorder %s185, %s186
    %p198 = scmp.eq.s32.totalorder %s29, 1
    %p199 = por %p197, %p198
    %p201 = scmp.ne.s32.totalorder %s186, %s200
    %p202 = scmp.eq.s32.totalorder %s29, 0
    %p203 = por %p201, %p202
    %s205 = sadd.s32 %s204, 1
    %p208 = scmp.eq.s32.totalorder %s23, 1
    %p209 = scmp.ne.s32.totalorder %s204, %s206
    %p210 = scmp.eq.s32.totalorder %s23, 0
    %p211 = por %p209, %p210
    %p212 = scmp.ne.s32.totalorder %s204, %s206
    %p213 = scmp.eq.s32.totalorder %s28, 1
    %p214 = por %p212, %p213
    %p215 = scmp.ne.s32.totalorder %s206, %s207
    %p216 = scmp.eq.s32.totalorder %s28, 0
    %p217 = por %p215, %p216
    %p218 = scmp.ne.s32.totalorder %s206, %s207
    %p219 = scmp.eq.s32.totalorder %s29, 1
    %p220 = por %p218, %p219
    %p222 = scmp.ne.s32.totalorder %s207, %s221
    %p223 = scmp.eq.s32.totalorder %s29, 0
    %p224 = por %p222, %p223
    %s226 = sadd.s32 %s225, 1
    %p229 = scmp.eq.s32.totalorder %s23, 1
    %p230 = scmp.ne.s32.totalorder %s225, %s227
    %p231 = scmp.eq.s32.totalorder %s23, 0
    %p232 = por %p230, %p231
    %p233 = scmp.ne.s32.totalorder %s225, %s227
    %p234 = scmp.eq.s32.totalorder %s28, 1
    %p235 = por %p233, %p234
    %p236 = scmp.ne.s32.totalorder %s227, %s228
    %p237 = scmp.eq.s32.totalorder %s28, 0
    %p238 = por %p236, %p237
    %p239 = scmp.ne.s32.totalorder %s227, %s228
    %p240 = scmp.eq.s32.totalorder %s29, 1
    %p241 = por %p239, %p240
    %p243 = scmp.ne.s32.totalorder %s228, %s242
    %p244 = scmp.eq.s32.totalorder %s29, 0
    %p245 = por %p243, %p244
    %s247 = sadd.s32 %s246, 1
    %p250 = scmp.eq.s32.totalorder %s23, 1
    %p251 = scmp.ne.s32.totalorder %s246, %s248
    %p252 = scmp.eq.s32.totalorder %s23, 0
    %p253 = por %p251, %p252
    %p254 = scmp.ne.s32.totalorder %s246, %s248
    %p255 = scmp.eq.s32.totalorder %s28, 1
    %p256 = por %p254, %p255
    %p257 = scmp.ne.s32.totalorder %s248, %s249
    %p258 = scmp.eq.s32.totalorder %s28, 0
    %p259 = por %p257, %p258
    %p260 = scmp.ne.s32.totalorder %s248, %s249
    %p261 = scmp.eq.s32.totalorder %s29, 1
    %p262 = por %p260, %p261
    %p264 = scmp.ne.s32.totalorder %s249, %s263
    %p265 = scmp.eq.s32.totalorder %s29, 0
    %p266 = por %p264, %p265
    %s268 = sadd.s32 %s267, 1
    %p271 = scmp.eq.s32.totalorder %s23, 1
    %p272 = scmp.ne.s32.totalorder %s267, %s269
    %p273 = scmp.eq.s32.totalorder %s23, 0
    %p274 = por %p272, %p273
    %p275 = scmp.ne.s32.totalorder %s267, %s269
    %p276 = scmp.eq.s32.totalorder %s28, 1
    %p277 = por %p275, %p276
    %p278 = scmp.ne.s32.totalorder %s269, %s270
    %p279 = scmp.eq.s32.totalorder %s28, 0
    %p280 = por %p278, %p279
    %p281 = scmp.ne.s32.totalorder %s269, %s270
    %p282 = scmp.eq.s32.totalorder %s29, 1
    %p283 = por %p281, %p282
    %p285 = scmp.ne.s32.totalorder %s270, %s284
    %p286 = scmp.eq.s32.totalorder %s29, 0
    %p287 = por %p285, %p286
    %s289 = sadd.s32 %s288, 1
    %p292 = scmp.eq.s32.totalorder %s23, 1
    %p293 = scmp.ne.s32.totalorder %s288, %s290
    %p294 = scmp.eq.s32.totalorder %s23, 0
    %p295 = por %p293, %p294
    %p296 = scmp.ne.s32.totalorder %s288, %s290
    %p297 = scmp.eq.s32.totalorder %s28, 1
    %p298 = por %p296, %p297
    %p299 = scmp.ne.s32.totalorder %s290, %s291
    %p300 = scmp.eq.s32.totalorder %s28, 0
    %p301 = por %p299, %p300
    %p302 = scmp.ne.s32.totalorder %s290, %s291
    %p303 = scmp.eq.s32.totalorder %s29, 1
    %p304 = por %p302, %p303
    %p306 = scmp.ne.s32.totalorder %s291, %s305
    %p307 = scmp.eq.s32.totalorder %s29, 0
    %p308 = por %p306, %p307
    %s310 = sadd.s32 %s309, 1
    %p313 = scmp.eq.s32.totalorder %s23, 1
    %p314 = scmp.ne.s32.totalorder %s309, %s311
    %p315 = scmp.eq.s32.totalorder %s23, 0
    %p316 = por %p314, %p315
    %p317 = scmp.ne.s32.totalorder %s309, %s311
    %p318 = scmp.eq.s32.totalorder %s28, 1
    %p319 = por %p317, %p318
    %p320 = scmp.ne.s32.totalorder %s311, %s312
    %p321 = scmp.eq.s32.totalorder %s28, 0
    %p322 = por %p320, %p321
    %p323 = scmp.ne.s32.totalorder %s311, %s312
    %p324 = scmp.eq.s32.totalorder %s29, 1
    %p325 = por %p323, %p324
    %p327 = scmp.ne.s32.totalorder %s312, %s326
    %p328 = scmp.eq.s32.totalorder %s29, 0
    %p329 = por %p327, %p328
    %s331 = sadd.s32 %s330, 1
    %p334 = scmp.eq.s32.totalorder %s23, 1
    %p335 = scmp.ne.s32.totalorder %s330, %s332
    %p336 = scmp.eq.s32.totalorder %s23, 0
    %p337 = por %p335, %p336
    %p338 = scmp.ne.s32.totalorder %s330, %s332
    %p339 = scmp.eq.s32.totalorder %s28, 1
    %p340 = por %p338, %p339
    %p341 = scmp.ne.s32.totalorder %s332, %s333
    %p342 = scmp.eq.s32.totalorder %s28, 0
    %p343 = por %p341, %p342
    %p344 = scmp.ne.s32.totalorder %s332, %s333
    %p345 = scmp.eq.s32.totalorder %s29, 1
    %p346 = por %p344, %p345
    %p348 = scmp.ne.s32.totalorder %s333, %s347
    %p349 = scmp.eq.s32.totalorder %s29, 0
    %p350 = por %p348, %p349
    %s352 = sadd.s32 %s351, 1
    %p355 = scmp.eq.s32.totalorder %s23, 1
    %p356 = scmp.ne.s32.totalorder %s351, %s353
    %p357 = scmp.eq.s32.totalorder %s23, 0
    %p358 = por %p356, %p357
    %p359 = scmp.ne.s32.totalorder %s351, %s353
    %p360 = scmp.eq.s32.totalorder %s28, 1
    %p361 = por %p359, %p360
    %p362 = scmp.ne.s32.totalorder %s353, %s354
    %p363 = scmp.eq.s32.totalorder %s28, 0
    %p364 = por %p362, %p363
    %p365 = scmp.ne.s32.totalorder %s353, %s354
    %p366 = scmp.eq.s32.totalorder %s29, 1
    %p367 = por %p365, %p366
    %p369 = scmp.ne.s32.totalorder %s354, %s368
    %p370 = scmp.eq.s32.totalorder %s29, 0
    %p371 = por %p369, %p370
    %s373 = sadd.s32 %s372, 1
    %p376 = scmp.eq.s32.totalorder %s23, 1
    %p377 = scmp.ne.s32.totalorder %s372, %s374
    %p378 = scmp.eq.s32.totalorder %s23, 0
    %p379 = por %p377, %p378
    %p380 = scmp.ne.s32.totalorder %s372, %s374
    %p381 = scmp.eq.s32.totalorder %s28, 1
    %p382 = por %p380, %p381
    %p383 = scmp.ne.s32.totalorder %s374, %s375
    %p384 = scmp.eq.s32.totalorder %s28, 0
    %p385 = por %p383, %p384
    %p386 = scmp.ne.s32.totalorder %s374, %s375
    %p387 = scmp.eq.s32.totalorder %s29, 1
    %p388 = por %p386, %p387
    %p390 = scmp.ne.s32.totalorder %s375, %s389
    %p391 = scmp.eq.s32.totalorder %s29, 0
    %p392 = por %p390, %p391
    %s393 = ssub.s32 %s23, %s30
    %p394 = scmp.eq.s32.totalorder %s393, 0
    %s396 = sadd.s32 %s395, 1
    %s397 = scalar_select %p394, %s395, %s396
    %p400 = pneg %p394
    %p401 = scmp.eq.s32.totalorder %s23, 1
    %p402 = por %p400, %p401
    %p403 = scmp.ne.s32.totalorder %s395, %s398
    %p404 = scmp.eq.s32.totalorder %s23, 0
    %p405 = por %p403, %p404
    %p406 = scmp.ne.s32.totalorder %s395, %s398
    %p407 = scmp.eq.s32.totalorder %s28, 1
    %p408 = por %p406, %p407
    %p409 = scmp.ne.s32.totalorder %s398, %s399
    %p410 = scmp.eq.s32.totalorder %s28, 0
    %p411 = por %p409, %p410
    %p412 = scmp.ne.s32.totalorder %s398, %s399
    %p413 = scmp.eq.s32.totalorder %s29, 1
    %p414 = por %p412, %p413
    %p416 = scmp.ne.s32.totalorder %s399, %s415
    %p417 = scmp.eq.s32.totalorder %s29, 0
    %p418 = por %p416, %p417
    %p419 = scmp.le.s32.totalorder 1, %s23
    %p420 = scmp.lt.s32.totalorder %s23, 3
    %p421 = pnand %p419, %p420
    %p422 = pneg %p421
    // Predicated region
    $region9: #{vqvae_forward.9} parent=5 // pred_check
      _
    $region10: #{vqvae_forward.9} parent=5 // pred_check_branch
      %424 = sbr.rel (%p421) target = $region12
    $region11: #{vqvae_forward.9} parent=5 // pred_region
      %s425 = ssub.s32 %s23, 1
      // Predicated region
      $region13: #{vqvae_forward.9} parent=11 // pred_check
        %p426 = pneg %p70
      $region14: #{vqvae_forward.9} parent=11 // pred_check_branch
        %428 = sbr.rel (%p426) target = $region16
      $region15: #{vqvae_forward.9} parent=11 // pred_region
        _
      $region16: #{vqvae_forward.9} parent=11 // pred_fallthru
        _
      // Predicated region
      $region17: #{vqvae_forward.9} parent=11 // pred_check
        %p429 = pneg %p91
      $region18: #{vqvae_forward.9} parent=11 // pred_check_branch
        %431 = sbr.rel (%p429) target = $region20
      $region19: #{vqvae_forward.9} parent=11 // pred_region
        _
      $region20: #{vqvae_forward.9} parent=11 // pred_fallthru
        _
      // Predicated region
      $region21: #{vqvae_forward.9} parent=11 // pred_check
        %p432 = pneg %p112
      $region22: #{vqvae_forward.9} parent=11 // pred_check_branch
        %434 = sbr.rel (%p432) target = $region24
      $region23: #{vqvae_forward.9} parent=11 // pred_region
        _
      $region24: #{vqvae_forward.9} parent=11 // pred_fallthru
        _
      // Predicated region
      $region25: #{vqvae_forward.9} parent=11 // pred_check
        %p435 = pneg %p133
      $region26: #{vqvae_forward.9} parent=11 // pred_check_branch
        %437 = sbr.rel (%p435) target = $region28
      $region27: #{vqvae_forward.9} parent=11 // pred_region
        _
      $region28: #{vqvae_forward.9} parent=11 // pred_fallthru
        _
      // Predicated region
      $region29: #{vqvae_forward.9} parent=11 // pred_check
        %p438 = pneg %p154
      $region30: #{vqvae_forward.9} parent=11 // pred_check_branch
        %440 = sbr.rel (%p438) target = $region32
      $region31: #{vqvae_forward.9} parent=11 // pred_region
        _
      $region32: #{vqvae_forward.9} parent=11 // pred_fallthru
        _
      // Predicated region
      $region33: #{vqvae_forward.9} parent=11 // pred_check
        %p441 = pneg %p175
      $region34: #{vqvae_forward.9} parent=11 // pred_check_branch
        %443 = sbr.rel (%p441) target = $region36
      $region35: #{vqvae_forward.9} parent=11 // pred_region
        _
      $region36: #{vqvae_forward.9} parent=11 // pred_fallthru
        _
      // Predicated region
      $region37: #{vqvae_forward.9} parent=11 // pred_check
        %p444 = pneg %p196
      $region38: #{vqvae_forward.9} parent=11 // pred_check_branch
        %446 = sbr.rel (%p444) target = $region40
      $region39: #{vqvae_forward.9} parent=11 // pred_region
        _
      $region40: #{vqvae_forward.9} parent=11 // pred_fallthru
        _
      // Predicated region
      $region41: #{vqvae_forward.9} parent=11 // pred_check
        %p447 = pneg %p217
      $region42: #{vqvae_forward.9} parent=11 // pred_check_branch
        %449 = sbr.rel (%p447) target = $region44
      $region43: #{vqvae_forward.9} parent=11 // pred_region
        _
      $region44: #{vqvae_forward.9} parent=11 // pred_fallthru
        _
      // Predicated region
      $region45: #{vqvae_forward.9} parent=11 // pred_check
        %p450 = pneg %p238
      $region46: #{vqvae_forward.9} parent=11 // pred_check_branch
        %452 = sbr.rel (%p450) target = $region48
      $region47: #{vqvae_forward.9} parent=11 // pred_region
        _
      $region48: #{vqvae_forward.9} parent=11 // pred_fallthru
        _
      // Predicated region
      $region49: #{vqvae_forward.9} parent=11 // pred_check
        %p453 = pneg %p259
      $region50: #{vqvae_forward.9} parent=11 // pred_check_branch
        %455 = sbr.rel (%p453) target = $region52
      $region51: #{vqvae_forward.9} parent=11 // pred_region
        _
      $region52: #{vqvae_forward.9} parent=11 // pred_fallthru
        _
      // Predicated region
      $region53: #{vqvae_forward.9} parent=11 // pred_check
        %p456 = pneg %p280
      $region54: #{vqvae_forward.9} parent=11 // pred_check_branch
        %458 = sbr.rel (%p456) target = $region56
      $region55: #{vqvae_forward.9} parent=11 // pred_region
        _
      $region56: #{vqvae_forward.9} parent=11 // pred_fallthru
        _
      // Predicated region
      $region57: #{vqvae_forward.9} parent=11 // pred_check
        %p459 = pneg %p301
      $region58: #{vqvae_forward.9} parent=11 // pred_check_branch
        %461 = sbr.rel (%p459) target = $region60
      $region59: #{vqvae_forward.9} parent=11 // pred_region
        _
      $region60: #{vqvae_forward.9} parent=11 // pred_fallthru
        _
      // Predicated region
      $region61: #{vqvae_forward.9} parent=11 // pred_check
        %p462 = pneg %p322
      $region62: #{vqvae_forward.9} parent=11 // pred_check_branch
        %464 = sbr.rel (%p462) target = $region64
      $region63: #{vqvae_forward.9} parent=11 // pred_region
        _
      $region64: #{vqvae_forward.9} parent=11 // pred_fallthru
        _
      // Predicated region
      $region65: #{vqvae_forward.9} parent=11 // pred_check
        %p465 = pneg %p343
      $region66: #{vqvae_forward.9} parent=11 // pred_check_branch
        %467 = sbr.rel (%p465) target = $region68
      $region67: #{vqvae_forward.9} parent=11 // pred_region
        _
      $region68: #{vqvae_forward.9} parent=11 // pred_fallthru
        _
      // Predicated region
      $region69: #{vqvae_forward.9} parent=11 // pred_check
        %p468 = pneg %p364
      $region70: #{vqvae_forward.9} parent=11 // pred_check_branch
        %470 = sbr.rel (%p468) target = $region72
      $region71: #{vqvae_forward.9} parent=11 // pred_region
        _
      $region72: #{vqvae_forward.9} parent=11 // pred_fallthru
        _
      // Predicated region
      $region73: #{vqvae_forward.9} parent=11 // pred_check
        %p471 = pneg %p385
      $region74: #{vqvae_forward.9} parent=11 // pred_check_branch
        %473 = sbr.rel (%p471) target = $region76
      $region75: #{vqvae_forward.9} parent=11 // pred_region
        _
      $region76: #{vqvae_forward.9} parent=11 // pred_fallthru
        _
    $region12: #{vqvae_forward.9} parent=5 // pred_fallthru
      _
    %p474 = scmp.lt.s32.totalorder %s23, 2
    // Predicated region
    $region77: #{vqvae_forward.9} parent=5 // pred_check
      %p475 = pneg %p474
    $region78: #{vqvae_forward.9} parent=5 // pred_check_branch
      %477 = sbr.rel (%p475) target = $region80
    $region79: #{vqvae_forward.9} parent=5 // pred_region
      // Predicated region
      $region81: #{vqvae_forward.9} parent=79 // pred_check
        %p478 = pneg %p43
      $region82: #{vqvae_forward.9} parent=79 // pred_check_branch
        %480 = sbr.rel (%p478) target = $region84
      $region83: #{vqvae_forward.9} parent=79 // pred_region
        %p481 = scmp.lt.s32.totalorder %s23, 1
        %s482 = scalar_select %p481, %s23, 1
        %s483 = smul.addr %s482, 4
        %s484 = scalar_lea.vmem %s0, %s483
      $region84: #{vqvae_forward.9} parent=79 // pred_fallthru
        _
    $region80: #{vqvae_forward.9} parent=5 // pred_fallthru
      _
    %p485 = scmp.le.s32.totalorder 1, %s23
    %p486 = scmp.lt.s32.totalorder %s23, 3
    %p487 = pnand %p485, %p486
    %p488 = pneg %p487
    // Predicated region
    $region85: #{vqvae_forward.9} parent=5 // pred_check
      _
    $region86: #{vqvae_forward.9} parent=5 // pred_check_branch
      %490 = sbr.rel (%p487) target = $region88
    $region87: #{vqvae_forward.9} parent=5 // pred_region
      %s491 = ssub.s32 %s23, 1
      %p492 = scmp.lt.s32.totalorder %s28, 1
      %s493 = scalar_select %p492, %s28, 1
      %s494 = smul.addr %s493, 4
      %s495 = scalar_lea.vmem %s0, %s494
      %p496 = pneg %p49
      %p497 = pneg %p46
      %p498 = pneg %p70
      %p499 = pneg %p67
      %p500 = pneg %p91
      %p501 = pneg %p88
      %p502 = pneg %p112
      %p503 = pneg %p109
      %p504 = pneg %p133
      %p505 = pneg %p130
      %p506 = pneg %p154
      %p507 = pneg %p151
      %p508 = pneg %p175
      %p509 = pneg %p172
      %p510 = pneg %p196
      %p511 = pneg %p193
      %p512 = pneg %p217
      %p513 = pneg %p214
      %p514 = pneg %p238
      %p515 = pneg %p235
      %p516 = pneg %p259
      %p517 = pneg %p256
      %p518 = pneg %p280
      %p519 = pneg %p277
      %p520 = pneg %p301
      %p521 = pneg %p298
      %p522 = pneg %p322
      %p523 = pneg %p319
      %p524 = pneg %p343
      %p525 = pneg %p340
      %p526 = pneg %p364
      %p527 = pneg %p361
      %p528 = pneg %p385
      %p529 = pneg %p382
      %p530 = pneg %p411
      %p531 = pneg %p408
      %p532 = scmp.lt.s32.totalorder %s28, 1
      %s533 = scalar_select %p532, %s28, 1
      %s534 = smul.addr %s533, 4
      %s535 = scalar_lea.vmem %s17, %s534
      %p536 = scmp.lt.s32.totalorder %s28, 1
      %s537 = scalar_select %p536, %s28, 1
      %s538 = smul.addr %s537, 4
      %s539 = scalar_lea.vmem %s0, %s538
      %p540 = scmp.lt.s32.totalorder %s28, 1
      %s541 = scalar_select %p540, %s28, 1
      %s542 = smul.addr %s541, 4
      %s543 = scalar_lea.vmem %s17, %s542
      %v545 = vld [vmem:[%s539] sm:$0xf]
      %v546 = vunpack.c.l.bf16 %v545
      %v547 = vld [vmem:[%s1] sm:$0x1]
      %v548 = vld [vmem:[%s2] sm:$0x1]
      %vm549 = vcmask 261120
      %v550 = vsel %vm549, %v546, 0.0
      %551 = vadd.xlane.f32.xlu0 %v550
      %v552 = vpop.xlane.xlu0 %551
      %v553 = vrcp.pop 32.0
      %v554 = vmul.f32 %v552, %v553
      %v555 = vsub.f32 %v546, %v554
      %v556 = vmul.f32 %v555, %v555
      %v557 = vsel %vm549, %v556, 0.0
      %558 = vadd.xlane.f32.xlu0 %v557
      %v559 = vpop.xlane.xlu0 %558
      %v560 = vmul.f32 %v559, %v553
      %v561 = vadd.f32 %v560, 1e-05
      %v562 = vrsqrt.pop %v561
      %v563 = vmul.f32 %v555, %v562
      %v565 = vlaneseq
      %v566 = vshrl.u32 %v565, 7
      %v567 = vsub.s32 0, %v566
      %v568 = vrot.slane %v547, %v567
      %v570 = vmul.f32 %v563, %v568
      %v572 = vlaneseq
      %v573 = vshrl.u32 %v572, 7
      %v574 = vsub.s32 0, %v573
      %v575 = vrot.slane %v548, %v574
      %v577 = vadd.f32 %v570, %v575
      %v578 = vpack.c.bf16 %v577, %v577
      %v579 = vld [vmem:[%s3] sm:$0xf]
      %v580 = vld [vmem:[%s3 + $0x4] sm:$0xf]
      %v581 = vld [vmem:[%s3 + $0x8] sm:$0xf]
      %v582 = vld [vmem:[%s3 + $0xc] sm:$0xf]
      %v583 = vld [vmem:[%s6] sm:$0x1]
      %v585 = vlaneseq
      %v586 = vshrl.u32 %v585, 7
      %v587 = vsub.s32 0, %v586
      %v588 = vrot.slane %v583, %v587
      %v594 = vunpack.c.l.b16 %v579
      %v595 = vunpack.c.l.b16 %v580
      %v596 = vunpack.c.l.b16 %v581
      %v597 = vunpack.c.l.b16 %v582
      %v598 = vpack.c.b16 %v595, %v594
      %v599 = vpack.c.b16 %v597, %v596
      %v603 = vsel %vm549, %v578, 0
      %605 = vmatprep.subr.bf16.mxu0 0
      %606 = vmatpush1.bf16.msra.mxu0 %v598
      %607 = vmatprep.subr.bf16.mxu0 0
      %608 = vmatpush1.bf16.msra.mxu0 %v599
      %609 = vmatprep.subr.bf16.mxu0 0
      %610 = vmatpush1.bf16.msra.mxu0 0
      %611 = vmatprep.subr.bf16.mxu0 0
      %612 = vmatpush1.bf16.msra.mxu0 0
      %613 = vmatprep.subr.bf16.mxu0 0
      %614 = vmatpush1.bf16.msra.mxu0 0
      %615 = vmatprep.subr.bf16.mxu0 0
      %616 = vmatpush1.bf16.msra.mxu0 0
      %617 = vmatprep.subr.bf16.mxu0 0
      %618 = vmatpush1.bf16.msra.mxu0 0
      %619 = vmatprep.subr.bf16.mxu0 0
      %620 = vmatpush1.bf16.msra.mxu0 0
      %621 = vmatprep.subr.bf16.mxu0 0
      %622 = vmatpush1.bf16.msra.mxu0 0
      %623 = vmatprep.subr.bf16.mxu0 0
      %624 = vmatpush1.bf16.msra.mxu0 0
      %625 = vmatprep.subr.bf16.mxu0 0
      %626 = vmatpush1.bf16.msra.mxu0 0
      %627 = vmatprep.subr.bf16.mxu0 0
      %628 = vmatpush1.bf16.msra.mxu0 0
      %629 = vmatprep.subr.bf16.mxu0 0
      %630 = vmatpush1.bf16.msra.mxu0 0
      %631 = vmatprep.subr.bf16.mxu0 0
      %632 = vmatpush1.bf16.msra.mxu0 0
      %633 = vmatprep.subr.bf16.mxu0 0
      %634 = vmatpush1.bf16.msra.mxu0 0
      %635 = vmatprep.subr.bf16.mxu0 0
      %636 = vmatpush1.bf16.msra.mxu0 0
      %637 = vmatprep.mubr.bf16.mxu0 0
      %638 = vmatmul.mubr.bf16.gmra.mrb[0].mxu0 %v603
      %v639 = vpop.f32.mrb[0].mxu0
      %v640 = vadd.f32 %v588, %v639
      %v641 = vpop.f32.mrb[0].mxu0
      %v642 = vpop.f32.mrb[0].mxu0
      %v643 = vpop.f32.mrb[0].mxu0
      %644 = vdwg.mxu0
      %v645 = vld [vmem:[%s4] sm:$0xf]
      %v646 = vld [vmem:[%s4 + $0x4] sm:$0xf]
      %v647 = vld [vmem:[%s4 + $0x8] sm:$0xf]
      %v648 = vld [vmem:[%s4 + $0xc] sm:$0xf]
      %v649 = vld [vmem:[%s7] sm:$0x1]
      %v651 = vlaneseq
      %v652 = vshrl.u32 %v651, 7
      %v653 = vsub.s32 0, %v652
      %v654 = vrot.slane %v649, %v653
      %v660 = vunpack.c.l.b16 %v645
      %v661 = vunpack.c.l.b16 %v646
      %v662 = vunpack.c.l.b16 %v647
      %v663 = vunpack.c.l.b16 %v648
      %v664 = vpack.c.b16 %v661, %v660
      %v665 = vpack.c.b16 %v663, %v662
      %668 = vmatprep.subr.bf16.mxu0 0
      %669 = vmatpush1.bf16.msra.mxu0 %v664
      %670 = vmatprep.subr.bf16.mxu0 0
      %671 = vmatpush1.bf16.msra.mxu0 %v665
      %672 = vmatprep.subr.bf16.mxu0 0
      %673 = vmatpush1.bf16.msra.mxu0 0
      %674 = vmatprep.subr.bf16.mxu0 0
      %675 = vmatpush1.bf16.msra.mxu0 0
      %676 = vmatprep.subr.bf16.mxu0 0
      %677 = vmatpush1.bf16.msra.mxu0 0
      %678 = vmatprep.subr.bf16.mxu0 0
      %679 = vmatpush1.bf16.msra.mxu0 0
      %680 = vmatprep.subr.bf16.mxu0 0
      %681 = vmatpush1.bf16.msra.mxu0 0
      %682 = vmatprep.subr.bf16.mxu0 0
      %683 = vmatpush1.bf16.msra.mxu0 0
      %684 = vmatprep.subr.bf16.mxu0 0
      %685 = vmatpush1.bf16.msra.mxu0 0
      %686 = vmatprep.subr.bf16.mxu0 0
      %687 = vmatpush1.bf16.msra.mxu0 0
      %688 = vmatprep.subr.bf16.mxu0 0
      %689 = vmatpush1.bf16.msra.mxu0 0
      %690 = vmatprep.subr.bf16.mxu0 0
      %691 = vmatpush1.bf16.msra.mxu0 0
      %692 = vmatprep.subr.bf16.mxu0 0
      %693 = vmatpush1.bf16.msra.mxu0 0
      %694 = vmatprep.subr.bf16.mxu0 0
      %695 = vmatpush1.bf16.msra.mxu0 0
      %696 = vmatprep.subr.bf16.mxu0 0
      %697 = vmatpush1.bf16.msra.mxu0 0
      %698 = vmatprep.subr.bf16.mxu0 0
      %699 = vmatpush1.bf16.msra.mxu0 0
      %700 = vmatprep.mubr.bf16.mxu0 0
      %701 = vmatmul.mubr.bf16.gmra.mrb[0].mxu0 %v603
      %v702 = vpop.f32.mrb[0].mxu0
      %v703 = vadd.f32 %v654, %v702
      %v704 = vpop.f32.mrb[0].mxu0
      %v705 = vpop.f32.mrb[0].mxu0
      %v706 = vpop.f32.mrb[0].mxu0
      %707 = vdwg.mxu0
      %v708 = vld [vmem:[%s5] sm:$0xf]
      %v709 = vld [vmem:[%s5 + $0x4] sm:$0xf]
      %v710 = vld [vmem:[%s5 + $0x8] sm:$0xf]
      %v711 = vld [vmem:[%s5 + $0xc] sm:$0xf]
      %v712 = vld [vmem:[%s8] sm:$0x1]
      %v714 = vlaneseq
      %v715 = vshrl.u32 %v714, 7
      %v716 = vsub.s32 0, %v715
      %v717 = vrot.slane %v712, %v716
      %v723 = vunpack.c.l.b16 %v708
      %v724 = vunpack.c.l.b16 %v709
      %v725 = vunpack.c.l.b16 %v710
      %v726 = vunpack.c.l.b16 %v711
      %v727 = vpack.c.b16 %v724, %v723
      %v728 = vpack.c.b16 %v726, %v725
      %731 = vmatprep.subr.bf16.mxu0 0
      %732 = vmatpush1.bf16.msra.mxu0 %v727
      %733 = vmatprep.subr.bf16.mxu0 0
      %734 = vmatpush1.bf16.msra.mxu0 %v728
      %735 = vmatprep.subr.bf16.mxu0 0
      %736 = vmatpush1.bf16.msra.mxu0 0
      %737 = vmatprep.subr.bf16.mxu0 0
      %738 = vmatpush1.bf16.msra.mxu0 0
      %739 = vmatprep.subr.bf16.mxu0 0
      %740 = vmatpush1.bf16.msra.mxu0 0
      %741 = vmatprep.subr.bf16.mxu0 0
      %742 = vmatpush1.bf16.msra.mxu0 0
      %743 = vmatprep.subr.bf16.mxu0 0
      %744 = vmatpush1.bf16.msra.mxu0 0
      %745 = vmatprep.subr.bf16.mxu0 0
      %746 = vmatpush1.bf16.msra.mxu0 0
      %747 = vmatprep.subr.bf16.mxu0 0
      %748 = vmatpush1.bf16.msra.mxu0 0
      %749 = vmatprep.subr.bf16.mxu0 0
      %750 = vmatpush1.bf16.msra.mxu0 0
      %751 = vmatprep.subr.bf16.mxu0 0
      %752 = vmatpush1.bf16.msra.mxu0 0
      %753 = vmatprep.subr.bf16.mxu0 0
      %754 = vmatpush1.bf16.msra.mxu0 0
      %755 = vmatprep.subr.bf16.mxu0 0
      %756 = vmatpush1.bf16.msra.mxu0 0
      %757 = vmatprep.subr.bf16.mxu0 0
      %758 = vmatpush1.bf16.msra.mxu0 0
      %759 = vmatprep.subr.bf16.mxu0 0
      %760 = vmatpush1.bf16.msra.mxu0 0
      %761 = vmatprep.subr.bf16.mxu0 0
      %762 = vmatpush1.bf16.msra.mxu0 0
      %763 = vmatprep.mubr.bf16.mxu0 0
      %764 = vmatmul.mubr.bf16.gmra.mrb[0].mxu0 %v603
      %v765 = vpop.f32.mrb[0].mxu0
      %v766 = vadd.f32 %v717, %v765
      %v767 = vpop.f32.mrb[0].mxu0
      %v768 = vpop.f32.mrb[0].mxu0
      %v769 = vpop.f32.mrb[0].mxu0
      %770 = vdwg.mxu0
      %v771 = vpack.c.bf16 %v640, %v640
      %v772 = vpack.c.bf16 %v703, %v703
      %v773 = vpack.c.bf16 %v766, %v766
      %vm774 = vcmask 64512
      %v776 = vsel %vm774, %v771, 0
      %v779 = vsel %vm774, %v772, 0
      %781 = vmatprep.subr.bf16.mxu0 0
      %782 = vmatpush1.bf16.xpose.msra.mxu0 %v779
      %783 = vmatprep.subr.bf16.mxu0 0
      %784 = vmatpush1.bf16.xpose.msra.mxu0 0
      %785 = vmatprep.subr.bf16.mxu0 0
      %786 = vmatpush1.bf16.xpose.msra.mxu0 0
      %787 = vmatprep.subr.bf16.mxu0 0
      %788 = vmatpush1.bf16.xpose.msra.mxu0 0
      %789 = vmatprep.subr.bf16.mxu0 0
      %790 = vmatpush1.bf16.xpose.msra.mxu0 0
      %791 = vmatprep.subr.bf16.mxu0 0
      %792 = vmatpush1.bf16.xpose.msra.mxu0 0
      %793 = vmatprep.subr.bf16.mxu0 0
      %794 = vmatpush1.bf16.xpose.msra.mxu0 0
      %795 = vmatprep.subr.bf16.mxu0 0
      %796 = vmatpush1.bf16.xpose.msra.mxu0 0
      %797 = vmatprep.subr.bf16.mxu0 0
      %798 = vmatpush1.bf16.xpose.msra.mxu0 0
      %799 = vmatprep.subr.bf16.mxu0 0
      %800 = vmatpush1.bf16.xpose.msra.mxu0 0
      %801 = vmatprep.subr.bf16.mxu0 0
      %802 = vmatpush1.bf16.xpose.msra.mxu0 0
      %803 = vmatprep.subr.bf16.mxu0 0
      %804 = vmatpush1.bf16.xpose.msra.mxu0 0
      %805 = vmatprep.subr.bf16.mxu0 0
      %806 = vmatpush1.bf16.xpose.msra.mxu0 0
      %807 = vmatprep.subr.bf16.mxu0 0
      %808 = vmatpush1.bf16.xpose.msra.mxu0 0
      %809 = vmatprep.subr.bf16.mxu0 0
      %810 = vmatpush1.bf16.xpose.msra.mxu0 0
      %811 = vmatprep.subr.bf16.mxu0 0
      %812 = vmatpush1.bf16.xpose.msra.mxu0 0
      %813 = vmatprep.mubr.bf16.mxu0 0
      %814 = vmatmul.mubr.bf16.gmra.mrb[0].mxu0 %v776
      %v815 = vpop.f32.mrb[0].mxu0
      %v816 = vadd.f32 0.0, %v815
      %v817 = vpop.f32.mrb[0].mxu0
      %v818 = vpop.f32.mrb[0].mxu0
      %v819 = vpop.f32.mrb[0].mxu0
      %820 = vdwg.mxu0
      %v821 = vmul.f32 %v816, 0.35355338
      %v822 = vsel %vm774, %v821, -inf
      %823 = vmax.xlane.f32.xlu0 %v822
      %v824 = vpop.xlane.xlu0 %823
      %v825 = vsub.f32 %v821, %v824
      %v826 = vmul.f32 %v825, 1.442695
      %v827 = vpow.pop %v826
      %v828 = vsel %vm774, %v827, 0.0
      %829 = vadd.xlane.f32.xlu0 %v828
      %v830 = vpop.xlane.xlu0 %829
      %v831 = vrcp.pop %v830
      %v832 = vmul.f32 %v827, %v831
      %v833 = vpack.c.bf16 %v832, %v832
      %v835 = vsel %vm774, %v833, 0
      %vm837 = vcmask 1043456
      %v839 = vsel %vm837, %v773, 0
      %841 = vmatprep.subr.bf16.mxu0 0
      %842 = vmatpush1.bf16.msra.mxu0 %v839
      %843 = vmatprep.subr.bf16.mxu0 0
      %844 = vmatpush1.bf16.msra.mxu0 0
      %845 = vmatprep.subr.bf16.mxu0 0
      %846 = vmatpush1.bf16.msra.mxu0 0
      %847 = vmatprep.subr.bf16.mxu0 0
      %848 = vmatpush1.bf16.msra.mxu0 0
      %849 = vmatprep.subr.bf16.mxu0 0
      %850 = vmatpush1.bf16.msra.mxu0 0
      %851 = vmatprep.subr.bf16.mxu0 0
      %852 = vmatpush1.bf16.msra.mxu0 0
      %853 = vmatprep.subr.bf16.mxu0 0
      %854 = vmatpush1.bf16.msra.mxu0 0
      %855 = vmatprep.subr.bf16.mxu0 0
      %856 = vmatpush1.bf16.msra.mxu0 0
      %857 = vmatprep.subr.bf16.mxu0 0
      %858 = vmatpush1.bf16.msra.mxu0 0
      %859 = vmatprep.subr.bf16.mxu0 0
      %860 = vmatpush1.bf16.msra.mxu0 0
      %861 = vmatprep.subr.bf16.mxu0 0
      %862 = vmatpush1.bf16.msra.mxu0 0
      %863 = vmatprep.subr.bf16.mxu0 0
      %864 = vmatpush1.bf16.msra.mxu0 0
      %865 = vmatprep.subr.bf16.mxu0 0
      %866 = vmatpush1.bf16.msra.mxu0 0
      %867 = vmatprep.subr.bf16.mxu0 0
      %868 = vmatpush1.bf16.msra.mxu0 0
      %869 = vmatprep.subr.bf16.mxu0 0
      %870 = vmatpush1.bf16.msra.mxu0 0
      %871 = vmatprep.subr.bf16.mxu0 0
      %872 = vmatpush1.bf16.msra.mxu0 0
      %873 = vmatprep.mubr.bf16.mxu0 0
      %874 = vmatmul.mubr.bf16.gmra.mrb[0].mxu0 %v835
      %v875 = vpop.f32.mrb[0].mxu0
      %v876 = vadd.f32 0.0, %v875
      %v877 = vpop.f32.mrb[0].mxu0
      %v878 = vpop.f32.mrb[0].mxu0
      %v879 = vpop.f32.mrb[0].mxu0
      %880 = vdwg.mxu0
      %882 = vrot.lane.b32.xlu0 %v771, 120
      %v883 = vpop.permute.xlu0 %882
      %885 = vrot.lane.b32.xlu0 %v772, 120
      %v886 = vpop.permute.xlu0 %885
      %v888 = vsel %vm774, %v883, 0
      %v891 = vsel %vm774, %v886, 0
      %893 = vmatprep.subr.bf16.mxu0 0
      %894 = vmatpush1.bf16.xpose.msra.mxu0 %v891
      %895 = vmatprep.subr.bf16.mxu0 0
      %896 = vmatpush1.bf16.xpose.msra.mxu0 0
      %897 = vmatprep.subr.bf16.mxu0 0
      %898 = vmatpush1.bf16.xpose.msra.mxu0 0
      %899 = vmatprep.subr.bf16.mxu0 0
      %900 = vmatpush1.bf16.xpose.msra.mxu0 0
      %901 = vmatprep.subr.bf16.mxu0 0
      %902 = vmatpush1.bf16.xpose.msra.mxu0 0
      %903 = vmatprep.subr.bf16.mxu0 0
      %904 = vmatpush1.bf16.xpose.msra.mxu0 0
      %905 = vmatprep.subr.bf16.mxu0 0
      %906 = vmatpush1.bf16.xpose.msra.mxu0 0
      %907 = vmatprep.subr.bf16.mxu0 0
      %908 = vmatpush1.bf16.xpose.msra.mxu0 0
      %909 = vmatprep.subr.bf16.mxu0 0
      %910 = vmatpush1.bf16.xpose.msra.mxu0 0
      %911 = vmatprep.subr.bf16.mxu0 0
      %912 = vmatpush1.bf16.xpose.msra.mxu0 0
      %913 = vmatprep.subr.bf16.mxu0 0
      %914 = vmatpush1.bf16.xpose.msra.mxu0 0
      %915 = vmatprep.subr.bf16.mxu0 0
      %916 = vmatpush1.bf16.xpose.msra.mxu0 0
      %917 = vmatprep.subr.bf16.mxu0 0
      %918 = vmatpush1.bf16.xpose.msra.mxu0 0
      %919 = vmatprep.subr.bf16.mxu0 0
      %920 = vmatpush1.bf16.xpose.msra.mxu0 0
      %921 = vmatprep.subr.bf16.mxu0 0
      %922 = vmatpush1.bf16.xpose.msra.mxu0 0
      %923 = vmatprep.subr.bf16.mxu0 0
      %924 = vmatpush1.bf16.xpose.msra.mxu0 0
      %925 = vmatprep.mubr.bf16.mxu0 0
      %926 = vmatmul.mubr.bf16.gmra.mrb[0].mxu0 %v888
      %v927 = vpop.f32.mrb[0].mxu0
      %v928 = vadd.f32 0.0, %v927
      %v929 = vpop.f32.mrb[0].mxu0
      %v930 = vpop.f32.mrb[0].mxu0
      %v931 = vpop.f32.mrb[0].mxu0
      %932 = vdwg.mxu0
      %v933 = vmul.f32 %v928, 0.35355338
      %v934 = vsel %vm774, %v933, -inf
      %935 = vmax.xlane.f32.xlu0 %v934
      %v936 = vpop.xlane.xlu0 %935
      %v937 = vsub.f32 %v933, %v936
      %v938 = vmul.f32 %v937, 1.442695
      %v939 = vpow.pop %v938
      %v940 = vsel %vm774, %v939, 0.0
      %941 = vadd.xlane.f32.xlu0 %v940
      %v942 = vpop.xlane.xlu0 %941
      %v943 = vrcp.pop %v942
      %v944 = vmul.f32 %v939, %v943
      %v945 = vpack.c.bf16 %v944, %v944
      %947 = vrot.lane.b32.xlu0 %v773, 120
      %v948 = vpop.permute.xlu0 %947
      %v950 = vsel %vm774, %v945, 0
      %v953 = vsel %vm837, %v948, 0
      %955 = vmatprep.subr.bf16.mxu0 0
      %956 = vmatpush1.bf16.msra.mxu0 %v953
      %957 = vmatprep.subr.bf16.mxu0 0
      %958 = vmatpush1.bf16.msra.mxu0 0
      %959 = vmatprep.subr.bf16.mxu0 0
      %960 = vmatpush1.bf16.msra.mxu0 0
      %961 = vmatprep.subr.bf16.mxu0 0
      %962 = vmatpush1.bf16.msra.mxu0 0
      %963 = vmatprep.subr.bf16.mxu0 0
      %964 = vmatpush1.bf16.msra.mxu0 0
      %965 = vmatprep.subr.bf16.mxu0 0
      %966 = vmatpush1.bf16.msra.mxu0 0
      %967 = vmatprep.subr.bf16.mxu0 0
      %968 = vmatpush1.bf16.msra.mxu0 0
      %969 = vmatprep.subr.bf16.mxu0 0
      %970 = vmatpush1.bf16.msra.mxu0 0
      %971 = vmatprep.subr.bf16.mxu0 0
      %972 = vmatpush1.bf16.msra.mxu0 0
      %973 = vmatprep.subr.bf16.mxu0 0
      %974 = vmatpush1.bf16.msra.mxu0 0
      %975 = vmatprep.subr.bf16.mxu0 0
      %976 = vmatpush1.bf16.msra.mxu0 0
      %977 = vmatprep.subr.bf16.mxu0 0
      %978 = vmatpush1.bf16.msra.mxu0 0
      %979 = vmatprep.subr.bf16.mxu0 0
      %980 = vmatpush1.bf16.msra.mxu0 0
      %981 = vmatprep.subr.bf16.mxu0 0
      %982 = vmatpush1.bf16.msra.mxu0 0
      %983 = vmatprep.subr.bf16.mxu0 0
      %984 = vmatpush1.bf16.msra.mxu0 0
      %985 = vmatprep.subr.bf16.mxu0 0
      %986 = vmatpush1.bf16.msra.mxu0 0
      %987 = vmatprep.mubr.bf16.mxu0 0
      %988 = vmatmul.mubr.bf16.gmra.mrb[0].mxu0 %v950
      %v989 = vpop.f32.mrb[0].mxu0
      %v990 = vadd.f32 0.0, %v989
      %v991 = vpop.f32.mrb[0].mxu0
      %v992 = vpop.f32.mrb[0].mxu0
      %v993 = vpop.f32.mrb[0].mxu0
      %994 = vdwg.mxu0
      %995 = vrot.lane.b32.xlu0 %v771, 112
      %v996 = vpop.permute.xlu0 %995
      %997 = vrot.lane.b32.xlu0 %v772, 112
      %v998 = vpop.permute.xlu0 %997
      %v1000 = vsel %vm774, %v996, 0
      %v1003 = vsel %vm774, %v998, 0
      %1005 = vmatprep.subr.bf16.mxu0 0
      %1006 = vmatpush1.bf16.xpose.msra.mxu0 %v1003
      %1007 = vmatprep.subr.bf16.mxu0 0
      %1008 = vmatpush1.bf16.xpose.msra.mxu0 0
      %1009 = vmatprep.subr.bf16.mxu0 0
      %1010 = vmatpush1.bf16.xpose.msra.mxu0 0
      %1011 = vmatprep.subr.bf16.mxu0 0
      %1012 = vmatpush1.bf16.xpose.msra.mxu0 0
      %1013 = vmatprep.subr.bf16.mxu0 0
      %1014 = vmatpush1.bf16.xpose.msra.mxu0 0
      %1015 = vmatprep.subr.bf16.mxu0 0
      %1016 = vmatpush1.bf16.xpose.msra.mxu0 0
      %1017 = vmatprep.subr.bf16.mxu0 0
      %1018 = vmatpush1.bf16.xpose.msra.mxu0 0
      %1019 = vmatprep.subr.bf16.mxu0 0
      %1020 = vmatpush1.bf16.xpose.msra.mxu0 0
      %1021 = vmatprep.subr.bf16.mxu0 0
      %1022 = vmatpush1.bf16.xpose.msra.mxu0 0
      %1023 = vmatprep.subr.bf16.mxu0 0
      %1024 = vmatpush1.bf16.xpose.msra.mxu0 0
      %1025 = vmatprep.subr.bf16.mxu0 0
      %1026 = vmatpush1.bf16.xpose.msra.mxu0 0
      %1027 = vmatprep.subr.bf16.mxu0 0
      %1028 = vmatpush1.bf16.xpose.msra.mxu0 0
      %1029 = vmatprep.subr.bf16.mxu0 0
      %1030 = vmatpush1.bf16.xpose.msra.mxu0 0
      %1031 = vmatprep.subr.bf16.mxu0 0
      %1032 = vmatpush1.bf16.xpose.msra.mxu0 0
      %1033 = vmatprep.subr.bf16.mxu0 0
      %1034 = vmatpush1.bf16.xpose.msra.mxu0 0
      %1035 = vmatprep.subr.bf16.mxu0 0
      %1036 = vmatpush1.bf16.xpose.msra.mxu0 0
      %1037 = vmatprep.mubr.bf16.mxu0 0
      %1038 = vmatmul.mubr.bf16.gmra.mrb[0].mxu0 %v1000
      %v1039 = vpop.f32.mrb[0].mxu0
      %v1040 = vadd.f32 0.0, %v1039
      %v1041 = vpop.f32.mrb[0].mxu0
      %v1042 = vpop.f32.mrb[0].mxu0
      %v1043 = vpop.f32.mrb[0].mxu0
      %1044 = vdwg.mxu0
      %v1045 = vmul.f32 %v1040, 0.35355338
      %v1046 = vsel %vm774, %v1045, -inf
      %1047 = vmax.xlane.f32.xlu0 %v1046
      %v1048 = vpop.xlane.xlu0 %1047
      %v1049 = vsub.f32 %v1045, %v1048
      %v1050 = vmul.f32 %v1049, 1.442695
      %v1051 = vpow.pop %v1050
      %v1052 = vsel %vm774, %v1051, 0.0
      %1053 = vadd.xlane.f32.xlu0 %v1052
      %v1054 = vpop.xlane.xlu0 %1053
      %v1055 = vrcp.pop %v1054
      %v1056 = vmul.f32 %v1051, %v1055
      %v1057 = vpack.c.bf16 %v1056, %v1056
      %1058 = vrot.lane.b32.xlu0 %v773, 112
      %v1059 = vpop.permute.xlu0 %1058
      %v1061 = vsel %vm774, %v1057, 0
      %v1064 = vsel %vm837, %v1059, 0
      %1066 = vmatprep.subr.bf16.mxu0 0
      %1067 = vmatpush1.bf16.msra.mxu0 %v1064
      %1068 = vmatprep.subr.bf16.mxu0 0
      %1069 = vmatpush1.bf16.msra.mxu0 0
      %1070 = vmatprep.subr.bf16.mxu0 0
      %1071 = vmatpush1.bf16.msra.mxu0 0
      %1072 = vmatprep.subr.bf16.mxu0 0
      %1073 = vmatpush1.bf16.msra.mxu0 0
      %1074 = vmatprep.subr.bf16.mxu0 0
      %1075 = vmatpush1.bf16.msra.mxu0 0
      %1076 = vmatprep.subr.bf16.mxu0 0
      %1077 = vmatpush1.bf16.msra.mxu0 0
      %1078 = vmatprep.subr.bf16.mxu0 0
      %1079 = vmatpush1.bf16.msra.mxu0 0
      %1080 = vmatprep.subr.bf16.mxu0 0
      %1081 = vmatpush1.bf16.msra.mxu0 0
      %1082 = vmatprep.subr.bf16.mxu0 0
      %1083 = vmatpush1.bf16.msra.mxu0 0
      %1084 = vmatprep.subr.bf16.mxu0 0
      %1085 = vmatpush1.bf16.msra.mxu0 0
      %1086 = vmatprep.subr.bf16.mxu0 0
      %1087 = vmatpush1.bf16.msra.mxu0 0
      %1088 = vmatprep.subr.bf16.mxu0 0
      %1089 = vmatpush1.bf16.msra.mxu0 0
      %1090 = vmatprep.subr.bf16.mxu0 0
      %1091 = vmatpush1.bf16.msra.mxu0 0
      %1092 = vmatprep.subr.bf16.mxu0 0
      %1093 = vmatpush1.bf16.msra.mxu0 0
      %1094 = vmatprep.subr.bf16.mxu0 0
      %1095 = vmatpush1.bf16.msra.mxu0 0
      %1096 = vmatprep.subr.bf16.mxu0 0
      %1097 = vmatpush1.bf16.msra.mxu0 0
      %1098 = vmatprep.mubr.bf16.mxu0 0
      %1099 = vmatmul.mubr.bf16.gmra.mrb[0].mxu0 %v1061
      %v1100 = vpop.f32.mrb[0].mxu0
      %v1101 = vadd.f32 0.0, %v1100
      %v1102 = vpop.f32.mrb[0].mxu0
      %v1103 = vpop.f32.mrb[0].mxu0
      %v1104 = vpop.f32.mrb[0].mxu0
      %1105 = vdwg.mxu0
      %1106 = vrot.lane.b32.xlu0 %v771, 104
      %v1107 = vpop.permute.xlu0 %1106
      %1108 = vrot.lane.b32.xlu0 %v772, 104
      %v1109 = vpop.permute.xlu0 %1108
      %v1111 = vsel %vm774, %v1107, 0
      %v1114 = vsel %vm774, %v1109, 0
      %1116 = vmatprep.subr.bf16.mxu0 0
      %1117 = vmatpush1.bf16.xpose.msra.mxu0 %v1114
      %1118 = vmatprep.subr.bf16.mxu0 0
      %1119 = vmatpush1.bf16.xpose.msra.mxu0 0
      %1120 = vmatprep.subr.bf16.mxu0 0
      %1121 = vmatpush1.bf16.xpose.msra.mxu0 0
      %1122 = vmatprep.subr.bf16.mxu0 0
      %1123 = vmatpush1.bf16.xpose.msra.mxu0 0
      %1124 = vmatprep.subr.bf16.mxu0 0
      %1125 = vmatpush1.bf16.xpose.msra.mxu0 0
      %1126 = vmatprep.subr.bf16.mxu0 0
      %1127 = vmatpush1.bf16.xpose.msra.mxu0 0
      %1128 = vmatprep.subr.bf16.mxu0 0
      %1129 = vmatpush1.bf16.xpose.msra.mxu0 0
      %1130 = vmatprep.subr.bf16.mxu0 0
      %1131 = vmatpush1.bf16.xpose.msra.mxu0 0
      %1132 = vmatprep.subr.bf16.mxu0 0
      %1133 = vmatpush1.bf16.xpose.msra.mxu0 0
      %1134 = vmatprep.subr.bf16.mxu0 0
      %1135 = vmatpush1.bf16.xpose.msra.mxu0 0
      %1136 = vmatprep.subr.bf16.mxu0 0
      %1137 = vmatpush1.bf16.xpose.msra.mxu0 0
      %1138 = vmatprep.subr.bf16.mxu0 0
      %1139 = vmatpush1.bf16.xpose.msra.mxu0 0
      %1140 = vmatprep.subr.bf16.mxu0 0
      %1141 = vmatpush1.bf16.xpose.msra.mxu0 0
      %1142 = vmatprep.subr.bf16.mxu0 0
      %1143 = vmatpush1.bf16.xpose.msra.mxu0 0
      %1144 = vmatprep.subr.bf16.mxu0 0
      %1145 = vmatpush1.bf16.xpose.msra.mxu0 0
      %1146 = vmatprep.subr.bf16.mxu0 0
      %1147 = vmatpush1.bf16.xpose.msra.mxu0 0
      %1148 = vmatprep.mubr.bf16.mxu0 0
      %1149 = vmatmul.mubr.bf16.gmra.mrb[0].mxu0 %v1111
      %v1150 = vpop.f32.mrb[0].mxu0
      %v1151 = vadd.f32 0.0, %v1150
      %v1152 = vpop.f32.mrb[0].mxu0
      %v1153 = vpop.f32.mrb[0].mxu0
      %v1154 = vpop.f32.mrb[0].mxu0
      %1155 = vdwg.mxu0
      %v1156 = vmul.f32 %v1151, 0.35355338
      %v1157 = vsel %vm774, %v1156, -inf
      %1158 = vmax.xlane.f32.xlu0 %v1157
      %v1159 = vpop.xlane.xlu0 %1158
      %v1160 = vsub.f32 %v1156, %v1159
      %v1161 = vmul.f32 %v1160, 1.442695
      %v1162 = vpow.pop %v1161
      %v1163 = vsel %vm774, %v1162, 0.0
      %1164 = vadd.xlane.f32.xlu0 %v1163
      %v1165 = vpop.xlane.xlu0 %1164
      %v1166 = vrcp.pop %v1165
      %v1167 = vmul.f32 %v1162, %v1166
      %v1168 = vpack.c.bf16 %v1167, %v1167
      %1169 = vrot.lane.b32.xlu0 %v773, 104
      %v1170 = vpop.permute.xlu0 %1169
      %v1172 = vsel %vm774, %v1168, 0
      %v1175 = vsel %vm837, %v1170, 0
      %1177 = vmatprep.subr.bf16.mxu0 0
      %1178 = vmatpush1.bf16.msra.mxu0 %v1175
      %1179 = vmatprep.subr.bf16.mxu0 0
      %1180 = vmatpush1.bf16.msra.mxu0 0
      %1181 = vmatprep.subr.bf16.mxu0 0
      %1182 = vmatpush1.bf16.msra.mxu0 0
      %1183 = vmatprep.subr.bf16.mxu0 0
      %1184 = vmatpush1.bf16.msra.mxu0 0
      %1185 = vmatprep.subr.bf16.mxu0 0
      %1186 = vmatpush1.bf16.msra.mxu0 0
      %1187 = vmatprep.subr.bf16.mxu0 0
      %1188 = vmatpush1.bf16.msra.mxu0 0
      %1189 = vmatprep.subr.bf16.mxu0 0
      %1190 = vmatpush1.bf16.msra.mxu0 0
      %1191 = vmatprep.subr.bf16.mxu0 0
      %1192 = vmatpush1.bf16.msra.mxu0 0
      %1193 = vmatprep.subr.bf16.mxu0 0
      %1194 = vmatpush1.bf16.msra.mxu0 0
      %1195 = vmatprep.subr.bf16.mxu0 0
      %1196 = vmatpush1.bf16.msra.mxu0 0
      %1197 = vmatprep.subr.bf16.mxu0 0
      %1198 = vmatpush1.bf16.msra.mxu0 0
      %1199 = vmatprep.subr.bf16.mxu0 0
      %1200 = vmatpush1.bf16.msra.mxu0 0
      %1201 = vmatprep.subr.bf16.mxu0 0
      %1202 = vmatpush1.bf16.msra.mxu0 0
      %1203 = vmatprep.subr.bf16.mxu0 0
      %1204 = vmatpush1.bf16.msra.mxu0 0
      %1205 = vmatprep.subr.bf16.mxu0 0
      %1206 = vmatpush1.bf16.msra.mxu0 0
      %1207 = vmatprep.subr.bf16.mxu0 0
      %1208 = vmatpush1.bf16.msra.mxu0 0
      %1209 = vmatprep.mubr.bf16.mxu0 0
      %1210 = vmatmul.mubr.bf16.gmra.mrb[0].mxu0 %v1172
      %v1211 = vpop.f32.mrb[0].mxu0
      %v1212 = vadd.f32 0.0, %v1211
      %v1213 = vpop.f32.mrb[0].mxu0
      %v1214 = vpop.f32.mrb[0].mxu0
      %v1215 = vpop.f32.mrb[0].mxu0
      %1216 = vdwg.mxu0
      %1218 = vrot.lane.b32.xlu0 %v990, 8
      %v1219 = vpop.permute.xlu0 %1218
      %1222 = vrot.lane.b32.xlu0 %v1101, 16
      %v1223 = vpop.permute.xlu0 %1222
      %1226 = vrot.lane.b32.xlu0 %v1212, 24
      %v1227 = vpop.permute.xlu0 %1226
      %v1229 = vsel %vm774, %v876, %v1219
      %vm1230 = vcmask 130048
      %v1231 = vsel %vm1230, %v1229, %v1223
      %vm1232 = vcmask 195584
      %v1233 = vsel %vm1232, %v1231, %v1227
      %v1234 = vpack.c.bf16 %v1233, %v1233
      %v1235 = vld [vmem:[%s9] sm:$0xf]
      %v1236 = vld [vmem:[%s9 + $0x4] sm:$0xf]
      %v1237 = vld [vmem:[%s9 + $0x8] sm:$0xf]
      %v1238 = vld [vmem:[%s9 + $0xc] sm:$0xf]
      %v1243 = vunpack.c.l.b16 %v1235
      %v1244 = vunpack.c.l.b16 %v1236
      %v1245 = vunpack.c.l.b16 %v1237
      %v1246 = vunpack.c.l.b16 %v1238
      %v1247 = vpack.c.b16 %v1244, %v1243
      %v1248 = vpack.c.b16 %v1246, %v1245
      %v1252 = vsel %vm549, %v1234, 0
      %1254 = vmatprep.subr.bf16.mxu0 0
      %1255 = vmatpush1.bf16.msra.mxu0 %v1247
      %1256 = vmatprep.subr.bf16.mxu0 0
      %1257 = vmatpush1.bf16.msra.mxu0 %v1248
      %1258 = vmatprep.subr.bf16.mxu0 0
      %1259 = vmatpush1.bf16.msra.mxu0 0
      %1260 = vmatprep.subr.bf16.mxu0 0
      %1261 = vmatpush1.bf16.msra.mxu0 0
      %1262 = vmatprep.subr.bf16.mxu0 0
      %1263 = vmatpush1.bf16.msra.mxu0 0
      %1264 = vmatprep.subr.bf16.mxu0 0
      %1265 = vmatpush1.bf16.msra.mxu0 0
      %1266 = vmatprep.subr.bf16.mxu0 0
      %1267 = vmatpush1.bf16.msra.mxu0 0
      %1268 = vmatprep.subr.bf16.mxu0 0
      %1269 = vmatpush1.bf16.msra.mxu0 0
      %1270 = vmatprep.subr.bf16.mxu0 0
      %1271 = vmatpush1.bf16.msra.mxu0 0
      %1272 = vmatprep.subr.bf16.mxu0 0
      %1273 = vmatpush1.bf16.msra.mxu0 0
      %1274 = vmatprep.subr.bf16.mxu0 0
      %1275 = vmatpush1.bf16.msra.mxu0 0
      %1276 = vmatprep.subr.bf16.mxu0 0
      %1277 = vmatpush1.bf16.msra.mxu0 0
      %1278 = vmatprep.subr.bf16.mxu0 0
      %1279 = vmatpush1.bf16.msra.mxu0 0
      %1280 = vmatprep.subr.bf16.mxu0 0
      %1281 = vmatpush1.bf16.msra.mxu0 0
      %1282 = vmatprep.subr.bf16.mxu0 0
      %1283 = vmatpush1.bf16.msra.mxu0 0
      %1284 = vmatprep.subr.bf16.mxu0 0
      %1285 = vmatpush1.bf16.msra.mxu0 0
      %1286 = vmatprep.mubr.bf16.mxu0 0
      %1287 = vmatmul.mubr.bf16.gmra.mrb[0].mxu0 %v1252
      %v1288 = vpop.f32.mrb[0].mxu0
      %v1289 = vadd.f32 0.0, %v1288
      %v1290 = vpop.f32.mrb[0].mxu0
      %v1291 = vpop.f32.mrb[0].mxu0
      %v1292 = vpop.f32.mrb[0].mxu0
      %1293 = vdwg.mxu0
      %v1294 = vadd.f32 %v546, %v1289
      %v1295 = vld [vmem:[%s10] sm:$0x1]
      %v1297 = vlaneseq
      %v1298 = vshrl.u32 %v1297, 7
      %v1299 = vsub.s32 0, %v1298
      %v1300 = vrot.slane %v1295, %v1299
      %v1302 = vadd.f32 %v1294, %v1300
      %v1303 = vld [vmem:[%s11] sm:$0x1]
      %v1304 = vld [vmem:[%s12] sm:$0x1]
      %v1305 = vsel %vm549, %v1302, 0.0
      %1306 = vadd.xlane.f32.xlu0 %v1305
      %v1307 = vpop.xlane.xlu0 %1306
      %v1308 = vmul.f32 %v1307, %v553
      %v1309 = vsub.f32 %v1302, %v1308
      %v1310 = vmul.f32 %v1309, %v1309
      %v1311 = vsel %vm549, %v1310, 0.0
      %1312 = vadd.xlane.f32.xlu0 %v1311
      %v1313 = vpop.xlane.xlu0 %1312
      %v1314 = vmul.f32 %v1313, %v553
      %v1315 = vadd.f32 %v1314, 1e-05
      %v1316 = vrsqrt.pop %v1315
      %v1317 = vmul.f32 %v1309, %v1316
      %v1319 = vlaneseq
      %v1320 = vshrl.u32 %v1319, 7
      %v1321 = vsub.s32 0, %v1320
      %v1322 = vrot.slane %v1303, %v1321
      %v1324 = vmul.f32 %v1317, %v1322
      %v1326 = vlaneseq
      %v1327 = vshrl.u32 %v1326, 7
      %v1328 = vsub.s32 0, %v1327
      %v1329 = vrot.slane %v1304, %v1328
      %v1331 = vadd.f32 %v1324, %v1329
      %v1332 = vld [vmem:[%s13] sm:$0xf]
      %v1333 = vld [vmem:[%s13 + $0x4] sm:$0xf]
      %v1334 = vld [vmem:[%s13 + $0x8] sm:$0xf]
      %v1335 = vld [vmem:[%s13 + $0xc] sm:$0xf]
      %v1336 = vpack.c.bf16 %v1331, %v1331
      %v1337 = vld [vmem:[%s14] sm:$0x1]
      %v1339 = vlaneseq
      %v1340 = vshrl.u32 %v1339, 7
      %v1341 = vsub.s32 0, %v1340
      %v1342 = vrot.slane %v1337, %v1341
      %v1348 = vunpack.c.l.b16 %v1332
      %v1349 = vunpack.c.l.b16 %v1333
      %v1350 = vunpack.c.l.b16 %v1334
      %v1351 = vunpack.c.l.b16 %v1335
      %v1352 = vpack.c.b16 %v1349, %v1348
      %v1353 = vpack.c.b16 %v1351, %v1350
      %v1357 = vsel %vm549, %v1336, 0
      %1359 = vmatprep.subr.bf16.mxu0 0
      %1360 = vmatpush1.bf16.msra.mxu0 %v1352
      %1361 = vmatprep.subr.bf16.mxu0 0
      %1362 = vmatpush1.bf16.msra.mxu0 %v1353
      %1363 = vmatprep.subr.bf16.mxu0 0
      %1364 = vmatpush1.bf16.msra.mxu0 0
      %1365 = vmatprep.subr.bf16.mxu0 0
      %1366 = vmatpush1.bf16.msra.mxu0 0
      %1367 = vmatprep.subr.bf16.mxu0 0
      %1368 = vmatpush1.bf16.msra.mxu0 0
      %1369 = vmatprep.subr.bf16.mxu0 0
      %1370 = vmatpush1.bf16.msra.mxu0 0
      %1371 = vmatprep.subr.bf16.mxu0 0
      %1372 = vmatpush1.bf16.msra.mxu0 0
      %1373 = vmatprep.subr.bf16.mxu0 0
      %1374 = vmatpush1.bf16.msra.mxu0 0
      %1375 = vmatprep.subr.bf16.mxu0 0
      %1376 = vmatpush1.bf16.msra.mxu0 0
      %1377 = vmatprep.subr.bf16.mxu0 0
      %1378 = vmatpush1.bf16.msra.mxu0 0
      %1379 = vmatprep.subr.bf16.mxu0 0
      %1380 = vmatpush1.bf16.msra.mxu0 0
      %1381 = vmatprep.subr.bf16.mxu0 0
      %1382 = vmatpush1.bf16.msra.mxu0 0
      %1383 = vmatprep.subr.bf16.mxu0 0
      %1384 = vmatpush1.bf16.msra.mxu0 0
      %1385 = vmatprep.subr.bf16.mxu0 0
      %1386 = vmatpush1.bf16.msra.mxu0 0
      %1387 = vmatprep.subr.bf16.mxu0 0
      %1388 = vmatpush1.bf16.msra.mxu0 0
      %1389 = vmatprep.subr.bf16.mxu0 0
      %1390 = vmatpush1.bf16.msra.mxu0 0
      %1391 = vmatprep.mubr.bf16.mxu0 0
      %1392 = vmatmul.mubr.bf16.gmra.mrb[0].mxu0 %v1357
      %v1393 = vpop.f32.mrb[0].mxu0
      %v1394 = vadd.f32 %v1342, %v1393
      %v1395 = vpop.f32.mrb[0].mxu0
      %v1396 = vpop.f32.mrb[0].mxu0
      %v1397 = vpop.f32.mrb[0].mxu0
      %1398 = vdwg.mxu0
      %v1399 = vmul.f32 %v1394, %v1394
      %v1400 = vmul.f32 %v1394, %v1399
      %v1401 = vmul.f32 %v1400, 0.044715
      %v1402 = vadd.f32 %v1394, %v1401
      %v1403 = vmul.f32 %v1402, 0.7978846
      %v1404 = vtanh.pop %v1403
      %v1405 = vadd.f32 %v1404, 1.0
      %v1406 = vmul.f32 %v1405, 0.5
      %v1407 = vmul.f32 %v1394, %v1406
      %v1408 = vld [vmem:[%s15] sm:$0xf]
      %v1409 = vld [vmem:[%s15 + $0x4] sm:$0xf]
      %v1410 = vld [vmem:[%s15 + $0x8] sm:$0xf]
      %v1411 = vld [vmem:[%s15 + $0xc] sm:$0xf]
      %v1412 = vld [vmem:[%s15 + $0x10] sm:$0xf]
      %v1413 = vld [vmem:[%s15 + $0x14] sm:$0xf]
      %v1414 = vld [vmem:[%s15 + $0x18] sm:$0xf]
      %v1415 = vld [vmem:[%s15 + $0x1c] sm:$0xf]
      %v1416 = vpack.c.bf16 %v1407, %v1407
      %v1417 = vld [vmem:[%s16] sm:$0x1]
      %v1419 = vlaneseq
      %v1420 = vshrl.u32 %v1419, 7
      %v1421 = vsub.s32 0, %v1420
      %v1422 = vrot.slane %v1417, %v1421
      %v1432 = vunpack.c.l.b16 %v1408
      %v1433 = vunpack.c.l.b16 %v1409
      %v1434 = vunpack.c.l.b16 %v1410
      %v1435 = vunpack.c.l.b16 %v1411
      %v1436 = vunpack.c.l.b16 %v1412
      %v1437 = vunpack.c.l.b16 %v1413
      %v1438 = vunpack.c.l.b16 %v1414
      %v1439 = vunpack.c.l.b16 %v1415
      %v1440 = vpack.c.b16 %v1433, %v1432
      %v1441 = vpack.c.b16 %v1435, %v1434
      %v1442 = vpack.c.b16 %v1437, %v1436
      %v1443 = vpack.c.b16 %v1439, %v1438
      %vm1448 = vcmask 523264
      %v1450 = vsel %vm1448, %v1416, 0
      %1452 = vmatprep.subr.bf16.mxu0 0
      %1453 = vmatpush1.bf16.msra.mxu0 %v1440
      %1454 = vmatprep.subr.bf16.mxu0 0
      %1455 = vmatpush1.bf16.msra.mxu0 %v1441
      %1456 = vmatprep.subr.bf16.mxu0 0
      %1457 = vmatpush1.bf16.msra.mxu0 %v1442
      %1458 = vmatprep.subr.bf16.mxu0 0
      %1459 = vmatpush1.bf16.msra.mxu0 %v1443
      %1460 = vmatprep.subr.bf16.mxu0 0
      %1461 = vmatpush1.bf16.msra.mxu0 0
      %1462 = vmatprep.subr.bf16.mxu0 0
      %1463 = vmatpush1.bf16.msra.mxu0 0
      %1464 = vmatprep.subr.bf16.mxu0 0
      %1465 = vmatpush1.bf16.msra.mxu0 0
      %1466 = vmatprep.subr.bf16.mxu0 0
      %1467 = vmatpush1.bf16.msra.mxu0 0
      %1468 = vmatprep.subr.bf16.mxu0 0
      %1469 = vmatpush1.bf16.msra.mxu0 0
      %1470 = vmatprep.subr.bf16.mxu0 0
      %1471 = vmatpush1.bf16.msra.mxu0 0
      %1472 = vmatprep.subr.bf16.mxu0 0
      %1473 = vmatpush1.bf16.msra.mxu0 0
      %1474 = vmatprep.subr.bf16.mxu0 0
      %1475 = vmatpush1.bf16.msra.mxu0 0
      %1476 = vmatprep.subr.bf16.mxu0 0
      %1477 = vmatpush1.bf16.msra.mxu0 0
      %1478 = vmatprep.subr.bf16.mxu0 0
      %1479 = vmatpush1.bf16.msra.mxu0 0
      %1480 = vmatprep.subr.bf16.mxu0 0
      %1481 = vmatpush1.bf16.msra.mxu0 0
      %1482 = vmatprep.subr.bf16.mxu0 0
      %1483 = vmatpush1.bf16.msra.mxu0 0
      %1484 = vmatprep.mubr.bf16.mxu0 0
      %1485 = vmatmul.mubr.bf16.gmra.mrb[0].mxu0 %v1450
      %v1486 = vpop.f32.mrb[0].mxu0
      %v1487 = vadd.f32 %v1422, %v1486
      %v1488 = vpop.f32.mrb[0].mxu0
      %v1489 = vpop.f32.mrb[0].mxu0
      %v1490 = vpop.f32.mrb[0].mxu0
      %1491 = vdwg.mxu0
      %v1492 = vadd.f32 %v1302, %v1487
      %v1493 = vpack.c.bf16 %v1492, %v1492
      %vm1494 = vcmask 257024
      %1495 = vst.msk [vmem:[%s543] sm:$0xf] %vm1494, %v1493
      %p1496 = scmp.lt.s32.totalorder %s28, 1
      %s1497 = scalar_select %p1496, %s28, 1
      %s1498 = smul.addr %s1497, 4
      %s1499 = scalar_lea.vmem %s17, %s1498
      // Predicated region
      $region89: #{vqvae_forward.9} parent=87 // pred_check
        %p1500 = pneg %p408
      $region90: #{vqvae_forward.9} parent=87 // pred_check_branch
        %1502 = sbr.rel (%p1500) target = $region92
      $region91: #{vqvae_forward.9} parent=87 // pred_region
        _
      $region92: #{vqvae_forward.9} parent=87 // pred_fallthru
        _
    $region88: #{vqvae_forward.9} parent=5 // pred_fallthru
      _
    %p1503 = scmp.le.s32.totalorder 2, %s23
    // Predicated region
    $region93: #{vqvae_forward.9} parent=5 // pred_check
      %p1504 = pneg %p1503
    $region94: #{vqvae_forward.9} parent=5 // pred_check_branch
      %1506 = sbr.rel (%p1504) target = $region96
    $region95: #{vqvae_forward.9} parent=5 // pred_region
      %s1507 = ssub.s32 %s23, 2
      // Predicated region
      $region97: #{vqvae_forward.9} parent=95 // pred_check
        %p1508 = pneg %p414
      $region98: #{vqvae_forward.9} parent=95 // pred_check_branch
        %1510 = sbr.rel (%p1508) target = $region100
      $region99: #{vqvae_forward.9} parent=95 // pred_region
        %p1511 = scmp.lt.s32.totalorder %s29, 1
        %s1512 = scalar_select %p1511, %s29, 1
        %s1513 = smul.addr %s1512, 4
        %s1514 = scalar_lea.vmem %s17, %s1513
      $region100: #{vqvae_forward.9} parent=95 // pred_fallthru
        _
    $region96: #{vqvae_forward.9} parent=5 // pred_fallthru
      _
  $region6: #{vqvae_forward.9} parent=0 // loop_footer
    %s27 = sadd.s32 1, %s23
  $region7: #{vqvae_forward.9} parent=0 // loop_footer_branch
    %22 = sbr.rel target = $region3
  $region8: #{vqvae_forward.9} parent=0 // loop_exit
    _

// kernel: vqvae_forward.15
$region0: #{vqvae_forward.15}
  #allocation0 [shape = 'u32[]', space=smem, size = 0x4, offset = 0x4, fixed_abs, tag = 'smem constant byte address 0x4 - core index']
  #allocation1 [shape = 'u32[144,128]{1,0:T(1,128)}', space=vmem, size = 0x12000, scoped, tag = 'internal scratch']
  %s0 = inlined_call_operand.vmem [shape: bf16[16,32], index: 0, kind: input, shape index: {}]
  %s1 = inlined_call_operand.vmem [shape: f32[1,32], index: 1, kind: input, shape index: {}]
  %s2 = inlined_call_operand.vmem [shape: f32[1,32], index: 2, kind: input, shape index: {}]
  %s3 = inlined_call_operand.vmem [shape: bf16[32,32], index: 3, kind: input, shape index: {}]
  %s4 = inlined_call_operand.vmem [shape: f32[1,32], index: 4, kind: input, shape index: {}]
  %s5 = inlined_call_operand.vmem [shape: f32[16,32], index: 5, kind: input, shape index: {}]
  %s6 = inlined_call_operand.vmem [shape: f32[16,32], index: 6, kind: output, shape index: {0}]
  %s7 = inlined_call_operand.vmem [shape: f32[2,1,1], index: 7, kind: output, shape index: {1}]
  %8 = xla_tuple %s6, %s7
  %s9 = sld [smem:[#allocation0]]
  $region65: #{vqvae_forward.15} parent=0
    _
  %s11 = ssub.s32 1, %s9
  %s12 = scalar_select 0, %s11, %s9
  loop: start=0, step=1, limit=4
  $region2: #{vqvae_forward.15} parent=0 // loop_pre_header
    _
  $region3: #{vqvae_forward.15} parent=0 // loop_header
    %s14 = sphi 0, %s18
    %p15 = scmp.ge.s32.totalorder %s14, 4
    %s24 = sphi 0, %s26
    %s27 = sphi 0, %s24
    %s28 = sphi 0, %s27
    %s44 = sphi 0, %s28
    %s48 = sphi 0, %s48
    %s50 = sphi 0, %s48
    %s51 = sphi 0, %s50
    %s65 = sphi 0, %s51
    %s69 = sphi 0, %s69
    %s71 = sphi 0, %s69
    %s72 = sphi 0, %s71
    %s86 = sphi 0, %s72
    %s90 = sphi 0, %s90
    %s92 = sphi 0, %s90
    %s93 = sphi 0, %s92
    %s107 = sphi 0, %s93
    %s111 = sphi 0, %s111
    %s113 = sphi 0, %s111
    %s114 = sphi 0, %s113
    %s128 = sphi 0, %s114
    %s134 = sphi 0, %s136
    %s137 = sphi 0, %s134
    %s138 = sphi 0, %s137
    %s154 = sphi 0, %s138
    %s160 = sphi 0, %s162
    %s163 = sphi 0, %s160
    %s164 = sphi 0, %s163
    %s180 = sphi 0, %s164
    %s186 = sphi 0, %s188
    %s189 = sphi 0, %s186
    %s190 = sphi 0, %s189
    %s206 = sphi 0, %s190
  $region4: #{vqvae_forward.15} parent=0 // loop_header_branch
    %17 = sbr.rel (%p15) target = $region8
  $region5: #{vqvae_forward.15} parent=0 // loop_body
    %s19 = ssub.s32 %s14, 1
    %s20 = ssub.s32 %s14, 2
    %s21 = sadd.s32 %s14, 1
    %s22 = ssub.s32 %s14, %s21
    %p23 = scmp.eq.s32.totalorder %s22, 0
    %s25 = sadd.s32 %s24, 1
    %s26 = scalar_select %p23, %s24, %s25
    %p29 = pneg %p23
    %p30 = scmp.eq.s32.totalorder %s14, 1
    %p31 = por %p29, %p30
    %p32 = scmp.ne.s32.totalorder %s24, %s27
    %p33 = scmp.eq.s32.totalorder %s14, 0
    %p34 = por %p32, %p33
    %p35 = scmp.ne.s32.totalorder %s24, %s27
    %p36 = scmp.eq.s32.totalorder %s19, 1
    %p37 = por %p35, %p36
    %p38 = scmp.ne.s32.totalorder %s27, %s28
    %p39 = scmp.eq.s32.totalorder %s19, 0
    %p40 = por %p38, %p39
    %p41 = scmp.ne.s32.totalorder %s27, %s28
    %p42 = scmp.eq.s32.totalorder %s20, 1
    %p43 = por %p41, %p42
    %p45 = scmp.ne.s32.totalorder %s28, %s44
    %p46 = scmp.eq.s32.totalorder %s20, 0
    %p47 = por %p45, %p46
    %s49 = sadd.s32 %s48, 1
    %p52 = scmp.eq.s32.totalorder %s14, 1
    %p53 = scmp.ne.s32.totalorder %s48, %s50
    %p54 = scmp.eq.s32.totalorder %s14, 0
    %p55 = por %p53, %p54
    %p56 = scmp.ne.s32.totalorder %s48, %s50
    %p57 = scmp.eq.s32.totalorder %s19, 1
    %p58 = por %p56, %p57
    %p59 = scmp.ne.s32.totalorder %s50, %s51
    %p60 = scmp.eq.s32.totalorder %s19, 0
    %p61 = por %p59, %p60
    %p62 = scmp.ne.s32.totalorder %s50, %s51
    %p63 = scmp.eq.s32.totalorder %s20, 1
    %p64 = por %p62, %p63
    %p66 = scmp.ne.s32.totalorder %s51, %s65
    %p67 = scmp.eq.s32.totalorder %s20, 0
    %p68 = por %p66, %p67
    %s70 = sadd.s32 %s69, 1
    %p73 = scmp.eq.s32.totalorder %s14, 1
    %p74 = scmp.ne.s32.totalorder %s69, %s71
    %p75 = scmp.eq.s32.totalorder %s14, 0
    %p76 = por %p74, %p75
    %p77 = scmp.ne.s32.totalorder %s69, %s71
    %p78 = scmp.eq.s32.totalorder %s19, 1
    %p79 = por %p77, %p78
    %p80 = scmp.ne.s32.totalorder %s71, %s72
    %p81 = scmp.eq.s32.totalorder %s19, 0
    %p82 = por %p80, %p81
    %p83 = scmp.ne.s32.totalorder %s71, %s72
    %p84 = scmp.eq.s32.totalorder %s20, 1
    %p85 = por %p83, %p84
    %p87 = scmp.ne.s32.totalorder %s72, %s86
    %p88 = scmp.eq.s32.totalorder %s20, 0
    %p89 = por %p87, %p88
    %s91 = sadd.s32 %s90, 1
    %p94 = scmp.eq.s32.totalorder %s14, 1
    %p95 = scmp.ne.s32.totalorder %s90, %s92
    %p96 = scmp.eq.s32.totalorder %s14, 0
    %p97 = por %p95, %p96
    %p98 = scmp.ne.s32.totalorder %s90, %s92
    %p99 = scmp.eq.s32.totalorder %s19, 1
    %p100 = por %p98, %p99
    %p101 = scmp.ne.s32.totalorder %s92, %s93
    %p102 = scmp.eq.s32.totalorder %s19, 0
    %p103 = por %p101, %p102
    %p104 = scmp.ne.s32.totalorder %s92, %s93
    %p105 = scmp.eq.s32.totalorder %s20, 1
    %p106 = por %p104, %p105
    %p108 = scmp.ne.s32.totalorder %s93, %s107
    %p109 = scmp.eq.s32.totalorder %s20, 0
    %p110 = por %p108, %p109
    %s112 = sadd.s32 %s111, 1
    %p115 = scmp.eq.s32.totalorder %s14, 1
    %p116 = scmp.ne.s32.totalorder %s111, %s113
    %p117 = scmp.eq.s32.totalorder %s14, 0
    %p118 = por %p116, %p117
    %p119 = scmp.ne.s32.totalorder %s111, %s113
    %p120 = scmp.eq.s32.totalorder %s19, 1
    %p121 = por %p119, %p120
    %p122 = scmp.ne.s32.totalorder %s113, %s114
    %p123 = scmp.eq.s32.totalorder %s19, 0
    %p124 = por %p122, %p123
    %p125 = scmp.ne.s32.totalorder %s113, %s114
    %p126 = scmp.eq.s32.totalorder %s20, 1
    %p127 = por %p125, %p126
    %p129 = scmp.ne.s32.totalorder %s114, %s128
    %p130 = scmp.eq.s32.totalorder %s20, 0
    %p131 = por %p129, %p130
    %s132 = ssub.s32 %s14, %s21
    %p133 = scmp.eq.s32.totalorder %s132, 0
    %s135 = sadd.s32 %s134, 1
    %s136 = scalar_select %p133, %s134, %s135
    %p139 = pneg %p133
    %p140 = scmp.eq.s32.totalorder %s14, 1
    %p141 = por %p139, %p140
    %p142 = scmp.ne.s32.totalorder %s134, %s137
    %p143 = scmp.eq.s32.totalorder %s14, 0
    %p144 = por %p142, %p143
    %p145 = scmp.ne.s32.totalorder %s134, %s137
    %p146 = scmp.eq.s32.totalorder %s19, 1
    %p147 = por %p145, %p146
    %p148 = scmp.ne.s32.totalorder %s137, %s138
    %p149 = scmp.eq.s32.totalorder %s19, 0
    %p150 = por %p148, %p149
    %p151 = scmp.ne.s32.totalorder %s137, %s138
    %p152 = scmp.eq.s32.totalorder %s20, 1
    %p153 = por %p151, %p152
    %p155 = scmp.ne.s32.totalorder %s138, %s154
    %p156 = scmp.eq.s32.totalorder %s20, 0
    %p157 = por %p155, %p156
    %s158 = ssub.s32 %s14, %s21
    %p159 = scmp.eq.s32.totalorder %s158, 0
    %s161 = sadd.s32 %s160, 1
    %s162 = scalar_select %p159, %s160, %s161
    %p165 = pneg %p159
    %p166 = scmp.eq.s32.totalorder %s14, 1
    %p167 = por %p165, %p166
    %p168 = scmp.ne.s32.totalorder %s160, %s163
    %p169 = scmp.eq.s32.totalorder %s14, 0
    %p170 = por %p168, %p169
    %p171 = scmp.ne.s32.totalorder %s160, %s163
    %p172 = scmp.eq.s32.totalorder %s19, 1
    %p173 = por %p171, %p172
    %p174 = scmp.ne.s32.totalorder %s163, %s164
    %p175 = scmp.eq.s32.totalorder %s19, 0
    %p176 = por %p174, %p175
    %p177 = scmp.ne.s32.totalorder %s163, %s164
    %p178 = scmp.eq.s32.totalorder %s20, 1
    %p179 = por %p177, %p178
    %p181 = scmp.ne.s32.totalorder %s164, %s180
    %p182 = scmp.eq.s32.totalorder %s20, 0
    %p183 = por %p181, %p182
    %s184 = ssub.s32 %s14, %s21
    %p185 = scmp.eq.s32.totalorder %s184, 0
    %s187 = sadd.s32 %s186, 1
    %s188 = scalar_select %p185, %s186, %s187
    %p191 = pneg %p185
    %p192 = scmp.eq.s32.totalorder %s14, 1
    %p193 = por %p191, %p192
    %p194 = scmp.ne.s32.totalorder %s186, %s189
    %p195 = scmp.eq.s32.totalorder %s14, 0
    %p196 = por %p194, %p195
    %p197 = scmp.ne.s32.totalorder %s186, %s189
    %p198 = scmp.eq.s32.totalorder %s19, 1
    %p199 = por %p197, %p198
    %p200 = scmp.ne.s32.totalorder %s189, %s190
    %p201 = scmp.eq.s32.totalorder %s19, 0
    %p202 = por %p200, %p201
    %p203 = scmp.ne.s32.totalorder %s189, %s190
    %p204 = scmp.eq.s32.totalorder %s20, 1
    %p205 = por %p203, %p204
    %p207 = scmp.ne.s32.totalorder %s190, %s206
    %p208 = scmp.eq.s32.totalorder %s20, 0
    %p209 = por %p207, %p208
    %p210 = scmp.le.s32.totalorder 1, %s14
    %p211 = scmp.lt.s32.totalorder %s14, 3
    %p212 = pnand %p210, %p211
    %p213 = pneg %p212
    // Predicated region
    $region9: #{vqvae_forward.15} parent=5 // pred_check
      _
    $region10: #{vqvae_forward.15} parent=5 // pred_check_branch
      %215 = sbr.rel (%p212) target = $region12
    $region11: #{vqvae_forward.15} parent=5 // pred_region
      %s216 = ssub.s32 %s14, 1
      // Predicated region
      $region13: #{vqvae_forward.15} parent=11 // pred_check
        %p217 = pneg %p61
      $region14: #{vqvae_forward.15} parent=11 // pred_check_branch
        %219 = sbr.rel (%p217) target = $region16
      $region15: #{vqvae_forward.15} parent=11 // pred_region
        _
      $region16: #{vqvae_forward.15} parent=11 // pred_fallthru
        _
      // Predicated region
      $region17: #{vqvae_forward.15} parent=11 // pred_check
        %p220 = pneg %p82
      $region18: #{vqvae_forward.15} parent=11 // pred_check_branch
        %222 = sbr.rel (%p220) target = $region20
      $region19: #{vqvae_forward.15} parent=11 // pred_region
        _
      $region20: #{vqvae_forward.15} parent=11 // pred_fallthru
        _
      // Predicated region
      $region21: #{vqvae_forward.15} parent=11 // pred_check
        %p223 = pneg %p103
      $region22: #{vqvae_forward.15} parent=11 // pred_check_branch
        %225 = sbr.rel (%p223) target = $region24
      $region23: #{vqvae_forward.15} parent=11 // pred_region
        _
      $region24: #{vqvae_forward.15} parent=11 // pred_fallthru
        _
      // Predicated region
      $region25: #{vqvae_forward.15} parent=11 // pred_check
        %p226 = pneg %p124
      $region26: #{vqvae_forward.15} parent=11 // pred_check_branch
        %228 = sbr.rel (%p226) target = $region28
      $region27: #{vqvae_forward.15} parent=11 // pred_region
        _
      $region28: #{vqvae_forward.15} parent=11 // pred_fallthru
        _
    $region12: #{vqvae_forward.15} parent=5 // pred_fallthru
      _
    %p229 = scmp.lt.s32.totalorder %s14, 2
    // Predicated region
    $region29: #{vqvae_forward.15} parent=5 // pred_check
      %p230 = pneg %p229
    $region30: #{vqvae_forward.15} parent=5 // pred_check_branch
      %232 = sbr.rel (%p230) target = $region32
    $region31: #{vqvae_forward.15} parent=5 // pred_region
      // Predicated region
      $region33: #{vqvae_forward.15} parent=31 // pred_check
        %p233 = pneg %p34
      $region34: #{vqvae_forward.15} parent=31 // pred_check_branch
        %235 = sbr.rel (%p233) target = $region36
      $region35: #{vqvae_forward.15} parent=31 // pred_region
        %p236 = scmp.lt.s32.totalorder %s14, 1
        %s237 = scalar_select %p236, %s14, 1
        %s238 = smul.addr %s237, 4
        %s239 = scalar_lea.vmem %s0, %s238
      $region36: #{vqvae_forward.15} parent=31 // pred_fallthru
        _
      // Predicated region
      $region37: #{vqvae_forward.15} parent=31 // pred_check
        %p240 = pneg %p144
      $region38: #{vqvae_forward.15} parent=31 // pred_check_branch
        %242 = sbr.rel (%p240) target = $region40
      $region39: #{vqvae_forward.15} parent=31 // pred_region
        %p243 = scmp.lt.s32.totalorder %s14, 1
        %s244 = scalar_select %p243, %s14, 1
        %s245 = smul.addr %s244, 8
        %s246 = scalar_lea.vmem %s5, %s245
      $region40: #{vqvae_forward.15} parent=31 // pred_fallthru
        _
    $region32: #{vqvae_forward.15} parent=5 // pred_fallthru
      _
    %p247 = scmp.le.s32.totalorder 1, %s14
    %p248 = scmp.lt.s32.totalorder %s14, 3
    %p249 = pnand %p247, %p248
    %p250 = pneg %p249
    // Predicated region
    $region41: #{vqvae_forward.15} parent=5 // pred_check
      _
    $region42: #{vqvae_forward.15} parent=5 // pred_check_branch
      %252 = sbr.rel (%p249) target = $region44
    $region43: #{vqvae_forward.15} parent=5 // pred_region
      %s253 = ssub.s32 %s14, 1
      %p254 = scmp.lt.s32.totalorder %s19, 1
      %s255 = scalar_select %p254, %s19, 1
      %s256 = smul.addr %s255, 4
      %s257 = scalar_lea.vmem %s0, %s256
      %p258 = pneg %p40
      %p259 = pneg %p37
      %p260 = pneg %p61
      %p261 = pneg %p58
      %p262 = pneg %p82
      %p263 = pneg %p79
      %p264 = pneg %p103
      %p265 = pneg %p100
      %p266 = pneg %p124
      %p267 = pneg %p121
      %p268 = scmp.lt.s32.totalorder %s19, 1
      %s269 = scalar_select %p268, %s19, 1
      %s270 = smul.addr %s269, 8
      %s271 = scalar_lea.vmem %s5, %s270
      %p272 = pneg %p150
      %p273 = pneg %p147
      %p274 = pneg %p176
      %p275 = pneg %p173
      %p276 = scmp.lt.s32.totalorder %s19, 1
      %s277 = scalar_select %p276, %s19, 1
      %s278 = smul.addr %s277, 8
      %s279 = scalar_lea.vmem %s6, %s278
      %p280 = pneg %p202
      %p281 = pneg %p199
      %p282 = scmp.lt.s32.totalorder %s19, 1
      %s283 = scalar_select %p282, %s19, 1
      %s284 = scalar_lea.vmem %s7, %s283
      %p285 = scmp.lt.s32.totalorder %s19, 1
      %s286 = scalar_select %p285, %s19, 1
      %s287 = smul.addr %s286, 4
      %s288 = scalar_lea.vmem %s0, %s287
      %p289 = scmp.lt.s32.totalorder %s19, 1
      %s290 = scalar_select %p289, %s19, 1
      %s291 = smul.addr %s290, 8
      %s292 = scalar_lea.vmem %s5, %s291
      %p293 = scmp.lt.s32.totalorder %s19, 1
      %s294 = scalar_select %p293, %s19, 1
      %s295 = smul.addr %s294, 8
      %s296 = scalar_lea.vmem %s6, %s295
      %p297 = scmp.lt.s32.totalorder %s19, 1
      %s298 = scalar_select %p297, %s19, 1
      %s299 = scalar_lea.vmem %s7, %s298
      %v301 = vld [vmem:[%s288] sm:$0xf]
      %v302 = vunpack.c.l.bf16 %v301
      %v303 = vld [vmem:[%s1] sm:$0x1]
      %v304 = vld [vmem:[%s2] sm:$0x1]
      %vm305 = vcmask 261120
      %v306 = vsel %vm305, %v302, 0.0
      %307 = vadd.xlane.f32.xlu0 %v306
      %v308 = vpop.xlane.xlu0 %307
      %v309 = vrcp.pop 32.0
      %v310 = vmul.f32 %v308, %v309
      %v311 = vsub.f32 %v302, %v310
      %v312 = vmul.f32 %v311, %v311
      %v313 = vsel %vm305, %v312, 0.0
      %314 = vadd.xlane.f32.xlu0 %v313
      %v315 = vpop.xlane.xlu0 %314
      %v316 = vmul.f32 %v315, %v309
      %v317 = vadd.f32 %v316, 1e-05
      %v318 = vrsqrt.pop %v317
      %v319 = vmul.f32 %v311, %v318
      %v321 = vlaneseq
      %v322 = vshrl.u32 %v321, 7
      %v323 = vsub.s32 0, %v322
      %v324 = vrot.slane %v303, %v323
      %v326 = vmul.f32 %v319, %v324
      %v328 = vlaneseq
      %v329 = vshrl.u32 %v328, 7
      %v330 = vsub.s32 0, %v329
      %v331 = vrot.slane %v304, %v330
      %v333 = vadd.f32 %v326, %v331
      %v334 = vld [vmem:[%s3] sm:$0xf]
      %v335 = vld [vmem:[%s3 + $0x4] sm:$0xf]
      %v336 = vld [vmem:[%s3 + $0x8] sm:$0xf]
      %v337 = vld [vmem:[%s3 + $0xc] sm:$0xf]
      %v338 = vpack.c.bf16 %v333, %v333
      %v339 = vld [vmem:[%s4] sm:$0x1]
      %v341 = vlaneseq
      %v342 = vshrl.u32 %v341, 7
      %v343 = vsub.s32 0, %v342
      %v344 = vrot.slane %v339, %v343
      %v350 = vunpack.c.l.b16 %v334
      %v351 = vunpack.c.l.b16 %v335
      %v352 = vunpack.c.l.b16 %v336
      %v353 = vunpack.c.l.b16 %v337
      %v354 = vpack.c.b16 %v351, %v350
      %v355 = vpack.c.b16 %v353, %v352
      %v359 = vsel %vm305, %v338, 0
      %361 = vmatprep.subr.bf16.mxu0 0
      %362 = vmatpush1.bf16.msra.mxu0 %v354
      %363 = vmatprep.subr.bf16.mxu0 0
      %364 = vmatpush1.bf16.msra.mxu0 %v355
      %365 = vmatprep.subr.bf16.mxu0 0
      %366 = vmatpush1.bf16.msra.mxu0 0
      %367 = vmatprep.subr.bf16.mxu0 0
      %368 = vmatpush1.bf16.msra.mxu0 0
      %369 = vmatprep.subr.bf16.mxu0 0
      %370 = vmatpush1.bf16.msra.mxu0 0
      %371 = vmatprep.subr.bf16.mxu0 0
      %372 = vmatpush1.bf16.msra.mxu0 0
      %373 = vmatprep.subr.bf16.mxu0 0
      %374 = vmatpush1.bf16.msra.mxu0 0
      %375 = vmatprep.subr.bf16.mxu0 0
      %376 = vmatpush1.bf16.msra.mxu0 0
      %377 = vmatprep.subr.bf16.mxu0 0
      %378 = vmatpush1.bf16.msra.mxu0 0
      %379 = vmatprep.subr.bf16.mxu0 0
      %380 = vmatpush1.bf16.msra.mxu0 0
      %381 = vmatprep.subr.bf16.mxu0 0
      %382 = vmatpush1.bf16.msra.mxu0 0
      %383 = vmatprep.subr.bf16.mxu0 0
      %384 = vmatpush1.bf16.msra.mxu0 0
      %385 = vmatprep.subr.bf16.mxu0 0
      %386 = vmatpush1.bf16.msra.mxu0 0
      %387 = vmatprep.subr.bf16.mxu0 0
      %388 = vmatpush1.bf16.msra.mxu0 0
      %389 = vmatprep.subr.bf16.mxu0 0
      %390 = vmatpush1.bf16.msra.mxu0 0
      %391 = vmatprep.subr.bf16.mxu0 0
      %392 = vmatpush1.bf16.msra.mxu0 0
      %393 = vmatprep.mubr.bf16.mxu0 0
      %394 = vmatmul.mubr.bf16.gmra.mrb[0].mxu0 %v359
      %v395 = vpop.f32.mrb[0].mxu0
      %v396 = vadd.f32 %v344, %v395
      %v397 = vpop.f32.mrb[0].mxu0
      %v398 = vpop.f32.mrb[0].mxu0
      %v399 = vpop.f32.mrb[0].mxu0
      %400 = vdwg.mxu0
      %401 = vst.msk [vmem:[%s296] sm:$0xff] %vm305, %v396
      %v402 = vld [vmem:[%s292] sm:$0xff]
      %v403 = vsub.f32 %v396, %v402
      %v404 = vmul.f32 %v403, %v403
      %v405 = vsel %vm305, %v404, 0.0
      %406 = vadd.xlane.f32.xlu0 %v405
      %v407 = vpop.xlane.xlu0 %406
      %v408 = vrot.slane %v407, 4
      %v409 = vadd.f32 %v407, %v408
      %v410 = vrot.slane %v409, 2
      %v411 = vadd.f32 %v409, %v410
      %v412 = vrot.slane %v411, 1
      %v413 = vadd.f32 %v411, %v412
      %s414 = vtos %v413
      %v415 = vstv %s414
      %vm416 = vcmask 0
      %417 = vst.msk [vmem:[%s299] sm:$0x1] %vm416, %v415
      %p418 = scmp.lt.s32.totalorder %s19, 1
      %s419 = scalar_select %p418, %s19, 1
      %s420 = smul.addr %s419, 8
      %s421 = scalar_lea.vmem %s6, %s420
      %p422 = scmp.lt.s32.totalorder %s19, 1
      %s423 = scalar_select %p422, %s19, 1
      %s424 = scalar_lea.vmem %s7, %s423
      // Predicated region
      $region45: #{vqvae_forward.15} parent=43 // pred_check
        %p425 = pneg %p173
      $region46: #{vqvae_forward.15} parent=43 // pred_check_branch
        %427 = sbr.rel (%p425) target = $region48
      $region47: #{vqvae_forward.15} parent=43 // pred_region
        _
      $region48: #{vqvae_forward.15} parent=43 // pred_fallthru
        _
      // Predicated region
      $region49: #{vqvae_forward.15} parent=43 // pred_check
        %p428 = pneg %p199
      $region50: #{vqvae_forward.15} parent=43 // pred_check_branch
        %430 = sbr.rel (%p428) target = $region52
      $region51: #{vqvae_forward.15} parent=43 // pred_region
        _
      $region52: #{vqvae_forward.15} parent=43 // pred_fallthru
        _
    $region44: #{vqvae_forward.15} parent=5 // pred_fallthru
      _
    %p431 = scmp.le.s32.totalorder 2, %s14
    // Predicated region
    $region53: #{vqvae_forward.15} parent=5 // pred_check
      %p432 = pneg %p431
    $region54: #{vqvae_forward.15} parent=5 // pred_check_branch
      %434 = sbr.rel (%p432) target = $region56
    $region55: #{vqvae_forward.15} parent=5 // pred_region
      %s435 = ssub.s32 %s14, 2
      // Predicated region
      $region57: #{vqvae_forward.15} parent=55 // pred_check
        %p436 = pneg %p179
      $region58: #{vqvae_forward.15} parent=55 // pred_check_branch
        %438 = sbr.rel (%p436) target = $region60
      $region59: #{vqvae_forward.15} parent=55 // pred_region
        %p439 = scmp.lt.s32.totalorder %s20, 1
        %s440 = scalar_select %p439, %s20, 1
        %s441 = smul.addr %s440, 8
        %s442 = scalar_lea.vmem %s6, %s441
      $region60: #{vqvae_forward.15} parent=55 // pred_fallthru
        _
      // Predicated region
      $region61: #{vqvae_forward.15} parent=55 // pred_check
        %p443 = pneg %p205
      $region62: #{vqvae_forward.15} parent=55 // pred_check_branch
        %445 = sbr.rel (%p443) target = $region64
      $region63: #{vqvae_forward.15} parent=55 // pred_region
        %p446 = scmp.lt.s32.totalorder %s20, 1
        %s447 = scalar_select %p446, %s20, 1
        %s448 = scalar_lea.vmem %s7, %s447
      $region64: #{vqvae_forward.15} parent=55 // pred_fallthru
        _
    $region56: #{vqvae_forward.15} parent=5 // pred_fallthru
      _
  $region6: #{vqvae_forward.15} parent=0 // loop_footer
    %s18 = sadd.s32 1, %s14
  $region7: #{vqvae_forward.15} parent=0 // loop_footer_branch
    %13 = sbr.rel target = $region3
  $region8: #{vqvae_forward.15} parent=0 // loop_exit
    _

// kernel: vqvae_forward.13
$region0: #{vqvae_forward.13}
  #allocation0 [shape = 'u32[]', space=smem, size = 0x4, offset = 0x4, fixed_abs, tag = 'smem constant byte address 0x4 - core index']
  #allocation1 [shape = 'u32[144,128]{1,0:T(1,128)}', space=vmem, size = 0x12000, scoped, tag = 'internal scratch']
  %s0 = inlined_call_operand.vmem [shape: bf16[16,32], index: 0, kind: input, shape index: {}, may-alias: {0,17}]
  %s1 = inlined_call_operand.vmem [shape: f32[1,32], index: 1, kind: input, shape index: {}]
  %s2 = inlined_call_operand.vmem [shape: f32[1,32], index: 2, kind: input, shape index: {}]
  %s3 = inlined_call_operand.vmem [shape: bf16[32,16], index: 3, kind: input, shape index: {}]
  %s4 = inlined_call_operand.vmem [shape: bf16[32,16], index: 4, kind: input, shape index: {}]
  %s5 = inlined_call_operand.vmem [shape: bf16[32,16], index: 5, kind: input, shape index: {}]
  %s6 = inlined_call_operand.vmem [shape: f32[1,16], index: 6, kind: input, shape index: {}]
  %s7 = inlined_call_operand.vmem [shape: f32[1,16], index: 7, kind: input, shape index: {}]
  %s8 = inlined_call_operand.vmem [shape: f32[1,16], index: 8, kind: input, shape index: {}]
  %s9 = inlined_call_operand.vmem [shape: bf16[16,32], index: 9, kind: input, shape index: {}]
  %s10 = inlined_call_operand.vmem [shape: f32[1,32], index: 10, kind: input, shape index: {}]
  %s11 = inlined_call_operand.vmem [shape: f32[1,32], index: 11, kind: input, shape index: {}]
  %s12 = inlined_call_operand.vmem [shape: f32[1,32], index: 12, kind: input, shape index: {}]
  %s13 = inlined_call_operand.vmem [shape: bf16[32,64], index: 13, kind: input, shape index: {}]
  %s14 = inlined_call_operand.vmem [shape: f32[1,64], index: 14, kind: input, shape index: {}]
  %s15 = inlined_call_operand.vmem [shape: bf16[64,32], index: 15, kind: input, shape index: {}]
  %s16 = inlined_call_operand.vmem [shape: f32[1,32], index: 16, kind: input, shape index: {}]
  %s17 = inlined_call_operand.vmem [shape: bf16[16,32], index: 17, kind: output, shape index: {}, may-alias: {0,17}]
  %s18 = sld [smem:[#allocation0]]
  $region101: #{vqvae_forward.13} parent=0
    _
  %s20 = ssub.s32 1, %s18
  %s21 = scalar_select 0, %s20, %s18
  loop: start=0, step=1, limit=4
  $region2: #{vqvae_forward.13} parent=0 // loop_pre_header
    _
  $region3: #{vqvae_forward.13} parent=0 // loop_header
    %s23 = sphi 0, %s27
    %p24 = scmp.ge.s32.totalorder %s23, 4
    %s33 = sphi 0, %s35
    %s36 = sphi 0, %s33
    %s37 = sphi 0, %s36
    %s53 = sphi 0, %s37
    %s57 = sphi 0, %s57
    %s59 = sphi 0, %s57
    %s60 = sphi 0, %s59
    %s74 = sphi 0, %s60
    %s78 = sphi 0, %s78
    %s80 = sphi 0, %s78
    %s81 = sphi 0, %s80
    %s95 = sphi 0, %s81
    %s99 = sphi 0, %s99
    %s101 = sphi 0, %s99
    %s102 = sphi 0, %s101
    %s116 = sphi 0, %s102
    %s120 = sphi 0, %s120
    %s122 = sphi 0, %s120
    %s123 = sphi 0, %s122
    %s137 = sphi 0, %s123
    %s141 = sphi 0, %s141
    %s143 = sphi 0, %s141
    %s144 = sphi 0, %s143
    %s158 = sphi 0, %s144
    %s162 = sphi 0, %s162
    %s164 = sphi 0, %s162
    %s165 = sphi 0, %s164
    %s179 = sphi 0, %s165
    %s183 = sphi 0, %s183
    %s185 = sphi 0, %s183
    %s186 = sphi 0, %s185
    %s200 = sphi 0, %s186
    %s204 = sphi 0, %s204
    %s206 = sphi 0, %s204
    %s207 = sphi 0, %s206
    %s221 = sphi 0, %s207
    %s225 = sphi 0, %s225
    %s227 = sphi 0, %s225
    %s228 = sphi 0, %s227
    %s242 = sphi 0, %s228
    %s246 = sphi 0, %s246
    %s248 = sphi 0, %s246
    %s249 = sphi 0, %s248
    %s263 = sphi 0, %s249
    %s267 = sphi 0, %s267
    %s269 = sphi 0, %s267
    %s270 = sphi 0, %s269
    %s284 = sphi 0, %s270
    %s288 = sphi 0, %s288
    %s290 = sphi 0, %s288
    %s291 = sphi 0, %s290
    %s305 = sphi 0, %s291
    %s309 = sphi 0, %s309
    %s311 = sphi 0, %s309
    %s312 = sphi 0, %s311
    %s326 = sphi 0, %s312
    %s330 = sphi 0, %s330
    %s332 = sphi 0, %s330
    %s333 = sphi 0, %s332
    %s347 = sphi 0, %s333
    %s351 = sphi 0, %s351
    %s353 = sphi 0, %s351
    %s354 = sphi 0, %s353
    %s368 = sphi 0, %s354
    %s372 = sphi 0, %s372
    %s374 = sphi 0, %s372
    %s375 = sphi 0, %s374
    %s389 = sphi 0, %s375
    %s395 = sphi 0, %s397
    %s398 = sphi 0, %s395
    %s399 = sphi 0, %s398
    %s415 = sphi 0, %s399
  $region4: #{vqvae_forward.13} parent=0 // loop_header_branch
    %26 = sbr.rel (%p24) target = $region8
  $region5: #{vqvae_forward.13} parent=0 // loop_body
    %s28 = ssub.s32 %s23, 1
    %s29 = ssub.s32 %s23, 2
    %s30 = sadd.s32 %s23, 1
    %s31 = ssub.s32 %s23, %s30
    %p32 = scmp.eq.s32.totalorder %s31, 0
    %s34 = sadd.s32 %s33, 1
    %s35 = scalar_select %p32, %s33, %s34
    %p38 = pneg %p32
    %p39 = scmp.eq.s32.totalorder %s23, 1
    %p40 = por %p38, %p39
    %p41 = scmp.ne.s32.totalorder %s33, %s36
    %p42 = scmp.eq.s32.totalorder %s23, 0
    %p43 = por %p41, %p42
    %p44 = scmp.ne.s32.totalorder %s33, %s36
    %p45 = scmp.eq.s32.totalorder %s28, 1
    %p46 = por %p44, %p45
    %p47 = scmp.ne.s32.totalorder %s36, %s37
    %p48 = scmp.eq.s32.totalorder %s28, 0
    %p49 = por %p47, %p48
    %p50 = scmp.ne.s32.totalorder %s36, %s37
    %p51 = scmp.eq.s32.totalorder %s29, 1
    %p52 = por %p50, %p51
    %p54 = scmp.ne.s32.totalorder %s37, %s53
    %p55 = scmp.eq.s32.totalorder %s29, 0
    %p56 = por %p54, %p55
    %s58 = sadd.s32 %s57, 1
    %p61 = scmp.eq.s32.totalorder %s23, 1
    %p62 = scmp.ne.s32.totalorder %s57, %s59
    %p63 = scmp.eq.s32.totalorder %s23, 0
    %p64 = por %p62, %p63
    %p65 = scmp.ne.s32.totalorder %s57, %s59
    %p66 = scmp.eq.s32.totalorder %s28, 1
    %p67 = por %p65, %p66
    %p68 = scmp.ne.s32.totalorder %s59, %s60
    %p69 = scmp.eq.s32.totalorder %s28, 0
    %p70 = por %p68, %p69
    %p71 = scmp.ne.s32.totalorder %s59, %s60
    %p72 = scmp.eq.s32.totalorder %s29, 1
    %p73 = por %p71, %p72
    %p75 = scmp.ne.s32.totalorder %s60, %s74
    %p76 = scmp.eq.s32.totalorder %s29, 0
    %p77 = por %p75, %p76
    %s79 = sadd.s32 %s78, 1
    %p82 = scmp.eq.s32.totalorder %s23, 1
    %p83 = scmp.ne.s32.totalorder %s78, %s80
    %p84 = scmp.eq.s32.totalorder %s23, 0
    %p85 = por %p83, %p84
    %p86 = scmp.ne.s32.totalorder %s78, %s80
    %p87 = scmp.eq.s32.totalorder %s28, 1
    %p88 = por %p86, %p87
    %p89 = scmp.ne.s32.totalorder %s80, %s81
    %p90 = scmp.eq.s32.totalorder %s28, 0
    %p91 = por %p89, %p90
    %p92 = scmp.ne.s32.totalorder %s80, %s81
    %p93 = scmp.eq.s32.totalorder %s29, 1
    %p94 = por %p92, %p93
    %p96 = scmp.ne.s32.totalorder %s81, %s95
    %p97 = scmp.eq.s32.totalorder %s29, 0
    %p98 = por %p96, %p97
    %s100 = sadd.s32 %s99, 1
    %p103 = scmp.eq.s32.totalorder %s23, 1
    %p104 = scmp.ne.s32.totalorder %s99, %s101
    %p105 = scmp.eq.s32.totalorder %s23, 0
    %p106 = por %p104, %p105
    %p107 = scmp.ne.s32.totalorder %s99, %s101
    %p108 = scmp.eq.s32.totalorder %s28, 1
    %p109 = por %p107, %p108
    %p110 = scmp.ne.s32.totalorder %s101, %s102
    %p111 = scmp.eq.s32.totalorder %s28, 0
    %p112 = por %p110, %p111
    %p113 = scmp.ne.s32.totalorder %s101, %s102
    %p114 = scmp.eq.s32.totalorder %s29, 1
    %p115 = por %p113, %p114
    %p117 = scmp.ne.s32.totalorder %s102, %s116
    %p118 = scmp.eq.s32.totalorder %s29, 0
    %p119 = por %p117, %p118
    %s121 = sadd.s32 %s120, 1
    %p124 = scmp.eq.s32.totalorder %s23, 1
    %p125 = scmp.ne.s32.totalorder %s120, %s122
    %p126 = scmp.eq.s32.totalorder %s23, 0
    %p127 = por %p125, %p126
    %p128 = scmp.ne.s32.totalorder %s120, %s122
    %p129 = scmp.eq.s32.totalorder %s28, 1
    %p130 = por %p128, %p129
    %p131 = scmp.ne.s32.totalorder %s122, %s123
    %p132 = scmp.eq.s32.totalorder %s28, 0
    %p133 = por %p131, %p132
    %p134 = scmp.ne.s32.totalorder %s122, %s123
    %p135 = scmp.eq.s32.totalorder %s29, 1
    %p136 = por %p134, %p135
    %p138 = scmp.ne.s32.totalorder %s123, %s137
    %p139 = scmp.eq.s32.totalorder %s29, 0
    %p140 = por %p138, %p139
    %s142 = sadd.s32 %s141, 1
    %p145 = scmp.eq.s32.totalorder %s23, 1
    %p146 = scmp.ne.s32.totalorder %s141, %s143
    %p147 = scmp.eq.s32.totalorder %s23, 0
    %p148 = por %p146, %p147
    %p149 = scmp.ne.s32.totalorder %s141, %s143
    %p150 = scmp.eq.s32.totalorder %s28, 1
    %p151 = por %p149, %p150
    %p152 = scmp.ne.s32.totalorder %s143, %s144
    %p153 = scmp.eq.s32.totalorder %s28, 0
    %p154 = por %p152, %p153
    %p155 = scmp.ne.s32.totalorder %s143, %s144
    %p156 = scmp.eq.s32.totalorder %s29, 1
    %p157 = por %p155, %p156
    %p159 = scmp.ne.s32.totalorder %s144, %s158
    %p160 = scmp.eq.s32.totalorder %s29, 0
    %p161 = por %p159, %p160
    %s163 = sadd.s32 %s162, 1
    %p166 = scmp.eq.s32.totalorder %s23, 1
    %p167 = scmp.ne.s32.totalorder %s162, %s164
    %p168 = scmp.eq.s32.totalorder %s23, 0
    %p169 = por %p167, %p168
    %p170 = scmp.ne.s32.totalorder %s162, %s164
    %p171 = scmp.eq.s32.totalorder %s28, 1
    %p172 = por %p170, %p171
    %p173 = scmp.ne.s32.totalorder %s164, %s165
    %p174 = scmp.eq.s32.totalorder %s28, 0
    %p175 = por %p173, %p174
    %p176 = scmp.ne.s32.totalorder %s164, %s165
    %p177 = scmp.eq.s32.totalorder %s29, 1
    %p178 = por %p176, %p177
    %p180 = scmp.ne.s32.totalorder %s165, %s179
    %p181 = scmp.eq.s32.totalorder %s29, 0
    %p182 = por %p180, %p181
    %s184 = sadd.s32 %s183, 1
    %p187 = scmp.eq.s32.totalorder %s23, 1
    %p188 = scmp.ne.s32.totalorder %s183, %s185
    %p189 = scmp.eq.s32.totalorder %s23, 0
    %p190 = por %p188, %p189
    %p191 = scmp.ne.s32.totalorder %s183, %s185
    %p192 = scmp.eq.s32.totalorder %s28, 1
    %p193 = por %p191, %p192
    %p194 = scmp.ne.s32.totalorder %s185, %s186
    %p195 = scmp.eq.s32.totalorder %s28, 0
    %p196 = por %p194, %p195
    %p197 = scmp.ne.s32.totalorder %s185, %s186
    %p198 = scmp.eq.s32.totalorder %s29, 1
    %p199 = por %p197, %p198
    %p201 = scmp.ne.s32.totalorder %s186, %s200
    %p202 = scmp.eq.s32.totalorder %s29, 0
    %p203 = por %p201, %p202
    %s205 = sadd.s32 %s204, 1
    %p208 = scmp.eq.s32.totalorder %s23, 1
    %p209 = scmp.ne.s32.totalorder %s204, %s206
    %p210 = scmp.eq.s32.totalorder %s23, 0
    %p211 = por %p209, %p210
    %p212 = scmp.ne.s32.totalorder %s204, %s206
    %p213 = scmp.eq.s32.totalorder %s28, 1
    %p214 = por %p212, %p213
    %p215 = scmp.ne.s32.totalorder %s206, %s207
    %p216 = scmp.eq.s32.totalorder %s28, 0
    %p217 = por %p215, %p216
    %p218 = scmp.ne.s32.totalorder %s206, %s207
    %p219 = scmp.eq.s32.totalorder %s29, 1
    %p220 = por %p218, %p219
    %p222 = scmp.ne.s32.totalorder %s207, %s221
    %p223 = scmp.eq.s32.totalorder %s29, 0
    %p224 = por %p222, %p223
    %s226 = sadd.s32 %s225, 1
    %p229 = scmp.eq.s32.totalorder %s23, 1
    %p230 = scmp.ne.s32.totalorder %s225, %s227
    %p231 = scmp.eq.s32.totalorder %s23, 0
    %p232 = por %p230, %p231
    %p233 = scmp.ne.s32.totalorder %s225, %s227
    %p234 = scmp.eq.s32.totalorder %s28, 1
    %p235 = por %p233, %p234
    %p236 = scmp.ne.s32.totalorder %s227, %s228
    %p237 = scmp.eq.s32.totalorder %s28, 0
    %p238 = por %p236, %p237
    %p239 = scmp.ne.s32.totalorder %s227, %s228
    %p240 = scmp.eq.s32.totalorder %s29, 1
    %p241 = por %p239, %p240
    %p243 = scmp.ne.s32.totalorder %s228, %s242
    %p244 = scmp.eq.s32.totalorder %s29, 0
    %p245 = por %p243, %p244
    %s247 = sadd.s32 %s246, 1
    %p250 = scmp.eq.s32.totalorder %s23, 1
    %p251 = scmp.ne.s32.totalorder %s246, %s248
    %p252 = scmp.eq.s32.totalorder %s23, 0
    %p253 = por %p251, %p252
    %p254 = scmp.ne.s32.totalorder %s246, %s248
    %p255 = scmp.eq.s32.totalorder %s28, 1
    %p256 = por %p254, %p255
    %p257 = scmp.ne.s32.totalorder %s248, %s249
    %p258 = scmp.eq.s32.totalorder %s28, 0
    %p259 = por %p257, %p258
    %p260 = scmp.ne.s32.totalorder %s248, %s249
    %p261 = scmp.eq.s32.totalorder %s29, 1
    %p262 = por %p260, %p261
    %p264 = scmp.ne.s32.totalorder %s249, %s263
    %p265 = scmp.eq.s32.totalorder %s29, 0
    %p266 = por %p264, %p265
    %s268 = sadd.s32 %s267, 1
    %p271 = scmp.eq.s32.totalorder %s23, 1
    %p272 = scmp.ne.s32.totalorder %s267, %s269
    %p273 = scmp.eq.s32.totalorder %s23, 0
    %p274 = por %p272, %p273
    %p275 = scmp.ne.s32.totalorder %s267, %s269
    %p276 = scmp.eq.s32.totalorder %s28, 1
    %p277 = por %p275, %p276
    %p278 = scmp.ne.s32.totalorder %s269, %s270
    %p279 = scmp.eq.s32.totalorder %s28, 0
    %p280 = por %p278, %p279
    %p281 = scmp.ne.s32.totalorder %s269, %s270
    %p282 = scmp.eq.s32.totalorder %s29, 1
    %p283 = por %p281, %p282
    %p285 = scmp.ne.s32.totalorder %s270, %s284
    %p286 = scmp.eq.s32.totalorder %s29, 0
    %p287 = por %p285, %p286
    %s289 = sadd.s32 %s288, 1
    %p292 = scmp.eq.s32.totalorder %s23, 1
    %p293 = scmp.ne.s32.totalorder %s288, %s290
    %p294 = scmp.eq.s32.totalorder %s23, 0
    %p295 = por %p293, %p294
    %p296 = scmp.ne.s32.totalorder %s288, %s290
    %p297 = scmp.eq.s32.totalorder %s28, 1
    %p298 = por %p296, %p297
    %p299 = scmp.ne.s32.totalorder %s290, %s291
    %p300 = scmp.eq.s32.totalorder %s28, 0
    %p301 = por %p299, %p300
    %p302 = scmp.ne.s32.totalorder %s290, %s291
    %p303 = scmp.eq.s32.totalorder %s29, 1
    %p304 = por %p302, %p303
    %p306 = scmp.ne.s32.totalorder %s291, %s305
    %p307 = scmp.eq.s32.totalorder %s29, 0
    %p308 = por %p306, %p307
    %s310 = sadd.s32 %s309, 1
    %p313 = scmp.eq.s32.totalorder %s23, 1
    %p314 = scmp.ne.s32.totalorder %s309, %s311
    %p315 = scmp.eq.s32.totalorder %s23, 0
    %p316 = por %p314, %p315
    %p317 = scmp.ne.s32.totalorder %s309, %s311
    %p318 = scmp.eq.s32.totalorder %s28, 1
    %p319 = por %p317, %p318
    %p320 = scmp.ne.s32.totalorder %s311, %s312
    %p321 = scmp.eq.s32.totalorder %s28, 0
    %p322 = por %p320, %p321
    %p323 = scmp.ne.s32.totalorder %s311, %s312
    %p324 = scmp.eq.s32.totalorder %s29, 1
    %p325 = por %p323, %p324
    %p327 = scmp.ne.s32.totalorder %s312, %s326
    %p328 = scmp.eq.s32.totalorder %s29, 0
    %p329 = por %p327, %p328
    %s331 = sadd.s32 %s330, 1
    %p334 = scmp.eq.s32.totalorder %s23, 1
    %p335 = scmp.ne.s32.totalorder %s330, %s332
    %p336 = scmp.eq.s32.totalorder %s23, 0
    %p337 = por %p335, %p336
    %p338 = scmp.ne.s32.totalorder %s330, %s332
    %p339 = scmp.eq.s32.totalorder %s28, 1
    %p340 = por %p338, %p339
    %p341 = scmp.ne.s32.totalorder %s332, %s333
    %p342 = scmp.eq.s32.totalorder %s28, 0
    %p343 = por %p341, %p342
    %p344 = scmp.ne.s32.totalorder %s332, %s333
    %p345 = scmp.eq.s32.totalorder %s29, 1
    %p346 = por %p344, %p345
    %p348 = scmp.ne.s32.totalorder %s333, %s347
    %p349 = scmp.eq.s32.totalorder %s29, 0
    %p350 = por %p348, %p349
    %s352 = sadd.s32 %s351, 1
    %p355 = scmp.eq.s32.totalorder %s23, 1
    %p356 = scmp.ne.s32.totalorder %s351, %s353
    %p357 = scmp.eq.s32.totalorder %s23, 0
    %p358 = por %p356, %p357
    %p359 = scmp.ne.s32.totalorder %s351, %s353
    %p360 = scmp.eq.s32.totalorder %s28, 1
    %p361 = por %p359, %p360
    %p362 = scmp.ne.s32.totalorder %s353, %s354
    %p363 = scmp.eq.s32.totalorder %s28, 0
    %p364 = por %p362, %p363
    %p365 = scmp.ne.s32.totalorder %s353, %s354
    %p366 = scmp.eq.s32.totalorder %s29, 1
    %p367 = por %p365, %p366
    %p369 = scmp.ne.s32.totalorder %s354, %s368
    %p370 = scmp.eq.s32.totalorder %s29, 0
    %p371 = por %p369, %p370
    %s373 = sadd.s32 %s372, 1
    %p376 = scmp.eq.s32.totalorder %s23, 1
    %p377 = scmp.ne.s32.totalorder %s372, %s374
    %p378 = scmp.eq.s32.totalorder %s23, 0
    %p379 = por %p377, %p378
    %p380 = scmp.ne.s32.totalorder %s372, %s374
    %p381 = scmp.eq.s32.totalorder %s28, 1
    %p382 = por %p380, %p381
    %p383 = scmp.ne.s32.totalorder %s374, %s375
    %p384 = scmp.eq.s32.totalorder %s28, 0
    %p385 = por %p383, %p384
    %p386 = scmp.ne.s32.totalorder %s374, %s375
    %p387 = scmp.eq.s32.totalorder %s29, 1
    %p388 = por %p386, %p387
    %p390 = scmp.ne.s32.totalorder %s375, %s389
    %p391 = scmp.eq.s32.totalorder %s29, 0
    %p392 = por %p390, %p391
    %s393 = ssub.s32 %s23, %s30
    %p394 = scmp.eq.s32.totalorder %s393, 0
    %s396 = sadd.s32 %s395, 1
    %s397 = scalar_select %p394, %s395, %s396
    %p400 = pneg %p394
    %p401 = scmp.eq.s32.totalorder %s23, 1
    %p402 = por %p400, %p401
    %p403 = scmp.ne.s32.totalorder %s395, %s398
    %p404 = scmp.eq.s32.totalorder %s23, 0
    %p405 = por %p403, %p404
    %p406 = scmp.ne.s32.totalorder %s395, %s398
    %p407 = scmp.eq.s32.totalorder %s28, 1
    %p408 = por %p406, %p407
    %p409 = scmp.ne.s32.totalorder %s398, %s399
    %p410 = scmp.eq.s32.totalorder %s28, 0
    %p411 = por %p409, %p410
    %p412 = scmp.ne.s32.totalorder %s398, %s399
    %p413 = scmp.eq.s32.totalorder %s29, 1
    %p414 = por %p412, %p413
    %p416 = scmp.ne.s32.totalorder %s399, %s415
    %p417 = scmp.eq.s32.totalorder %s29, 0
    %p418 = por %p416, %p417
    %p419 = scmp.le.s32.totalorder 1, %s23
    %p420 = scmp.lt.s32.totalorder %s23, 3
    %p421 = pnand %p419, %p420
    %p422 = pneg %p421
    // Predicated region
    $region9: #{vqvae_forward.13} parent=5 // pred_check
      _
    $region10: #{vqvae_forward.13} parent=5 // pred_check_branch
      %424 = sbr.rel (%p421) target = $region12
    $region11: #{vqvae_forward.13} parent=5 // pred_region
      %s425 = ssub.s32 %s23, 1
      // Predicated region
      $region13: #{vqvae_forward.13} parent=11 // pred_check
        %p426 = pneg %p70
      $region14: #{vqvae_forward.13} parent=11 // pred_check_branch
        %428 = sbr.rel (%p426) target = $region16
      $region15: #{vqvae_forward.13} parent=11 // pred_region
        _
      $region16: #{vqvae_forward.13} parent=11 // pred_fallthru
        _
      // Predicated region
      $region17: #{vqvae_forward.13} parent=11 // pred_check
        %p429 = pneg %p91
      $region18: #{vqvae_forward.13} parent=11 // pred_check_branch
        %431 = sbr.rel (%p429) target = $region20
      $region19: #{vqvae_forward.13} parent=11 // pred_region
        _
      $region20: #{vqvae_forward.13} parent=11 // pred_fallthru
        _
      // Predicated region
      $region21: #{vqvae_forward.13} parent=11 // pred_check
        %p432 = pneg %p112
      $region22: #{vqvae_forward.13} parent=11 // pred_check_branch
        %434 = sbr.rel (%p432) target = $region24
      $region23: #{vqvae_forward.13} parent=11 // pred_region
        _
      $region24: #{vqvae_forward.13} parent=11 // pred_fallthru
        _
      // Predicated region
      $region25: #{vqvae_forward.13} parent=11 // pred_check
        %p435 = pneg %p133
      $region26: #{vqvae_forward.13} parent=11 // pred_check_branch
        %437 = sbr.rel (%p435) target = $region28
      $region27: #{vqvae_forward.13} parent=11 // pred_region
        _
      $region28: #{vqvae_forward.13} parent=11 // pred_fallthru
        _
      // Predicated region
      $region29: #{vqvae_forward.13} parent=11 // pred_check
        %p438 = pneg %p154
      $region30: #{vqvae_forward.13} parent=11 // pred_check_branch
        %440 = sbr.rel (%p438) target = $region32
      $region31: #{vqvae_forward.13} parent=11 // pred_region
        _
      $region32: #{vqvae_forward.13} parent=11 // pred_fallthru
        _
      // Predicated region
      $region33: #{vqvae_forward.13} parent=11 // pred_check
        %p441 = pneg %p175
      $region34: #{vqvae_forward.13} parent=11 // pred_check_branch
        %443 = sbr.rel (%p441) target = $region36
      $region35: #{vqvae_forward.13} parent=11 // pred_region
        _
      $region36: #{vqvae_forward.13} parent=11 // pred_fallthru
        _
      // Predicated region
      $region37: #{vqvae_forward.13} parent=11 // pred_check
        %p444 = pneg %p196
      $region38: #{vqvae_forward.13} parent=11 // pred_check_branch
        %446 = sbr.rel (%p444) target = $region40
      $region39: #{vqvae_forward.13} parent=11 // pred_region
        _
      $region40: #{vqvae_forward.13} parent=11 // pred_fallthru
        _
      // Predicated region
      $region41: #{vqvae_forward.13} parent=11 // pred_check
        %p447 = pneg %p217
      $region42: #{vqvae_forward.13} parent=11 // pred_check_branch
        %449 = sbr.rel (%p447) target = $region44
      $region43: #{vqvae_forward.13} parent=11 // pred_region
        _
      $region44: #{vqvae_forward.13} parent=11 // pred_fallthru
        _
      // Predicated region
      $region45: #{vqvae_forward.13} parent=11 // pred_check
        %p450 = pneg %p238
      $region46: #{vqvae_forward.13} parent=11 // pred_check_branch
        %452 = sbr.rel (%p450) target = $region48
      $region47: #{vqvae_forward.13} parent=11 // pred_region
        _
      $region48: #{vqvae_forward.13} parent=11 // pred_fallthru
        _
      // Predicated region
      $region49: #{vqvae_forward.13} parent=11 // pred_check
        %p453 = pneg %p259
      $region50: #{vqvae_forward.13} parent=11 // pred_check_branch
        %455 = sbr.rel (%p453) target = $region52
      $region51: #{vqvae_forward.13} parent=11 // pred_region
        _
      $region52: #{vqvae_forward.13} parent=11 // pred_fallthru
        _
      // Predicated region
      $region53: #{vqvae_forward.13} parent=11 // pred_check
        %p456 = pneg %p280
      $region54: #{vqvae_forward.13} parent=11 // pred_check_branch
        %458 = sbr.rel (%p456) target = $region56
      $region55: #{vqvae_forward.13} parent=11 // pred_region
        _
      $region56: #{vqvae_forward.13} parent=11 // pred_fallthru
        _
      // Predicated region
      $region57: #{vqvae_forward.13} parent=11 // pred_check
        %p459 = pneg %p301
      $region58: #{vqvae_forward.13} parent=11 // pred_check_branch
        %461 = sbr.rel (%p459) target = $region60
      $region59: #{vqvae_forward.13} parent=11 // pred_region
        _
      $region60: #{vqvae_forward.13} parent=11 // pred_fallthru
        _
      // Predicated region
      $region61: #{vqvae_forward.13} parent=11 // pred_check
        %p462 = pneg %p322
      $region62: #{vqvae_forward.13} parent=11 // pred_check_branch
        %464 = sbr.rel (%p462) target = $region64
      $region63: #{vqvae_forward.13} parent=11 // pred_region
        _
      $region64: #{vqvae_forward.13} parent=11 // pred_fallthru
        _
      // Predicated region
      $region65: #{vqvae_forward.13} parent=11 // pred_check
        %p465 = pneg %p343
      $region66: #{vqvae_forward.13} parent=11 // pred_check_branch
        %467 = sbr.rel (%p465) target = $region68
      $region67: #{vqvae_forward.13} parent=11 // pred_region
        _
      $region68: #{vqvae_forward.13} parent=11 // pred_fallthru
        _
      // Predicated region
      $region69: #{vqvae_forward.13} parent=11 // pred_check
        %p468 = pneg %p364
      $region70: #{vqvae_forward.13} parent=11 // pred_check_branch
        %470 = sbr.rel (%p468) target = $region72
      $region71: #{vqvae_forward.13} parent=11 // pred_region
        _
      $region72: #{vqvae_forward.13} parent=11 // pred_fallthru
        _
      // Predicated region
      $region73: #{vqvae_forward.13} parent=11 // pred_check
        %p471 = pneg %p385
      $region74: #{vqvae_forward.13} parent=11 // pred_check_branch
        %473 = sbr.rel (%p471) target = $region76
      $region75: #{vqvae_forward.13} parent=11 // pred_region
        _
      $region76: #{vqvae_forward.13} parent=11 // pred_fallthru
        _
    $region12: #{vqvae_forward.13} parent=5 // pred_fallthru
      _
    %p474 = scmp.lt.s32.totalorder %s23, 2
    // Predicated region
    $region77: #{vqvae_forward.13} parent=5 // pred_check
      %p475 = pneg %p474
    $region78: #{vqvae_forward.13} parent=5 // pred_check_branch
      %477 = sbr.rel (%p475) target = $region80
    $region79: #{vqvae_forward.13} parent=5 // pred_region
      // Predicated region
      $region81: #{vqvae_forward.13} parent=79 // pred_check
        %p478 = pneg %p43
      $region82: #{vqvae_forward.13} parent=79 // pred_check_branch
        %480 = sbr.rel (%p478) target = $region84
      $region83: #{vqvae_forward.13} parent=79 // pred_region
        %p481 = scmp.lt.s32.totalorder %s23, 1
        %s482 = scalar_select %p481, %s23, 1
        %s483 = smul.addr %s482, 4
        %s484 = scalar_lea.vmem %s0, %s483
      $region84: #{vqvae_forward.13} parent=79 // pred_fallthru
        _
    $region80: #{vqvae_forward.13} parent=5 // pred_fallthru
      _
    %p485 = scmp.le.s32.totalorder 1, %s23
    %p486 = scmp.lt.s32.totalorder %s23, 3
    %p487 = pnand %p485, %p486
    %p488 = pneg %p487
    // Predicated region
    $region85: #{vqvae_forward.13} parent=5 // pred_check
      _
    $region86: #{vqvae_forward.13} parent=5 // pred_check_branch
      %490 = sbr.rel (%p487) target = $region88
    $region87: #{vqvae_forward.13} parent=5 // pred_region
      %s491 = ssub.s32 %s23, 1
      %p492 = scmp.lt.s32.totalorder %s28, 1
      %s493 = scalar_select %p492, %s28, 1
      %s494 = smul.addr %s493, 4
      %s495 = scalar_lea.vmem %s0, %s494
      %p496 = pneg %p49
      %p497 = pneg %p46
      %p498 = pneg %p70
      %p499 = pneg %p67
      %p500 = pneg %p91
      %p501 = pneg %p88
      %p502 = pneg %p112
      %p503 = pneg %p109
      %p504 = pneg %p133
      %p505 = pneg %p130
      %p506 = pneg %p154
      %p507 = pneg %p151
      %p508 = pneg %p175
      %p509 = pneg %p172
      %p510 = pneg %p196
      %p511 = pneg %p193
      %p512 = pneg %p217
      %p513 = pneg %p214
      %p514 = pneg %p238
      %p515 = pneg %p235
      %p516 = pneg %p259
      %p517 = pneg %p256
      %p518 = pneg %p280
      %p519 = pneg %p277
      %p520 = pneg %p301
      %p521 = pneg %p298
      %p522 = pneg %p322
      %p523 = pneg %p319
      %p524 = pneg %p343
      %p525 = pneg %p340
      %p526 = pneg %p364
      %p527 = pneg %p361
      %p528 = pneg %p385
      %p529 = pneg %p382
      %p530 = pneg %p411
      %p531 = pneg %p408
      %p532 = scmp.lt.s32.totalorder %s28, 1
      %s533 = scalar_select %p532, %s28, 1
      %s534 = smul.addr %s533, 4
      %s535 = scalar_lea.vmem %s17, %s534
      %p536 = scmp.lt.s32.totalorder %s28, 1
      %s537 = scalar_select %p536, %s28, 1
      %s538 = smul.addr %s537, 4
      %s539 = scalar_lea.vmem %s0, %s538
      %p540 = scmp.lt.s32.totalorder %s28, 1
      %s541 = scalar_select %p540, %s28, 1
      %s542 = smul.addr %s541, 4
      %s543 = scalar_lea.vmem %s17, %s542
      %v545 = vld [vmem:[%s539] sm:$0xf]
      %v546 = vunpack.c.l.bf16 %v545
      %v547 = vld [vmem:[%s1] sm:$0x1]
      %v548 = vld [vmem:[%s2] sm:$0x1]
      %vm549 = vcmask 261120
      %v550 = vsel %vm549, %v546, 0.0
      %551 = vadd.xlane.f32.xlu0 %v550
      %v552 = vpop.xlane.xlu0 %551
      %v553 = vrcp.pop 32.0
      %v554 = vmul.f32 %v552, %v553
      %v555 = vsub.f32 %v546, %v554
      %v556 = vmul.f32 %v555, %v555
      %v557 = vsel %vm549, %v556, 0.0
      %558 = vadd.xlane.f32.xlu0 %v557
      %v559 = vpop.xlane.xlu0 %558
      %v560 = vmul.f32 %v559, %v553
      %v561 = vadd.f32 %v560, 1e-05
      %v562 = vrsqrt.pop %v561
      %v563 = vmul.f32 %v555, %v562
      %v565 = vlaneseq
      %v566 = vshrl.u32 %v565, 7
      %v567 = vsub.s32 0, %v566
      %v568 = vrot.slane %v547, %v567
      %v570 = vmul.f32 %v563, %v568
      %v572 = vlaneseq
      %v573 = vshrl.u32 %v572, 7
      %v574 = vsub.s32 0, %v573
      %v575 = vrot.slane %v548, %v574
      %v577 = vadd.f32 %v570, %v575
      %v578 = vpack.c.bf16 %v577, %v577
      %v579 = vld [vmem:[%s3] sm:$0xf]
      %v580 = vld [vmem:[%s3 + $0x4] sm:$0xf]
      %v581 = vld [vmem:[%s3 + $0x8] sm:$0xf]
      %v582 = vld [vmem:[%s3 + $0xc] sm:$0xf]
      %v583 = vld [vmem:[%s6] sm:$0x1]
      %v585 = vlaneseq
      %v586 = vshrl.u32 %v585, 7
      %v587 = vsub.s32 0, %v586
      %v588 = vrot.slane %v583, %v587
      %v594 = vunpack.c.l.b16 %v579
      %v595 = vunpack.c.l.b16 %v580
      %v596 = vunpack.c.l.b16 %v581
      %v597 = vunpack.c.l.b16 %v582
      %v598 = vpack.c.b16 %v595, %v594
      %v599 = vpack.c.b16 %v597, %v596
      %v603 = vsel %vm549, %v578, 0
      %605 = vmatprep.subr.bf16.mxu0 0
      %606 = vmatpush1.bf16.msra.mxu0 %v598
      %607 = vmatprep.subr.bf16.mxu0 0
      %608 = vmatpush1.bf16.msra.mxu0 %v599
      %609 = vmatprep.subr.bf16.mxu0 0
      %610 = vmatpush1.bf16.msra.mxu0 0
      %611 = vmatprep.subr.bf16.mxu0 0
      %612 = vmatpush1.bf16.msra.mxu0 0
      %613 = vmatprep.subr.bf16.mxu0 0
      %614 = vmatpush1.bf16.msra.mxu0 0
      %615 = vmatprep.subr.bf16.mxu0 0
      %616 = vmatpush1.bf16.msra.mxu0 0
      %617 = vmatprep.subr.bf16.mxu0 0
      %618 = vmatpush1.bf16.msra.mxu0 0
      %619 = vmatprep.subr.bf16.mxu0 0
      %620 = vmatpush1.bf16.msra.mxu0 0
      %621 = vmatprep.subr.bf16.mxu0 0
      %622 = vmatpush1.bf16.msra.mxu0 0
      %623 = vmatprep.subr.bf16.mxu0 0
      %624 = vmatpush1.bf16.msra.mxu0 0
      %625 = vmatprep.subr.bf16.mxu0 0
      %626 = vmatpush1.bf16.msra.mxu0 0
      %627 = vmatprep.subr.bf16.mxu0 0
      %628 = vmatpush1.bf16.msra.mxu0 0
      %629 = vmatprep.subr.bf16.mxu0 0
      %630 = vmatpush1.bf16.msra.mxu0 0
      %631 = vmatprep.subr.bf16.mxu0 0
      %632 = vmatpush1.bf16.msra.mxu0 0
      %633 = vmatprep.subr.bf16.mxu0 0
      %634 = vmatpush1.bf16.msra.mxu0 0
      %635 = vmatprep.subr.bf16.mxu0 0
      %636 = vmatpush1.bf16.msra.mxu0 0
      %637 = vmatprep.mubr.bf16.mxu0 0
      %638 = vmatmul.mubr.bf16.gmra.mrb[0].mxu0 %v603
      %v639 = vpop.f32.mrb[0].mxu0
      %v640 = vadd.f32 %v588, %v639
      %v641 = vpop.f32.mrb[0].mxu0
      %v642 = vpop.f32.mrb[0].mxu0
      %v643 = vpop.f32.mrb[0].mxu0
      %644 = vdwg.mxu0
      %v645 = vld [vmem:[%s4] sm:$0xf]
      %v646 = vld [vmem:[%s4 + $0x4] sm:$0xf]
      %v647 = vld [vmem:[%s4 + $0x8] sm:$0xf]
      %v648 = vld [vmem:[%s4 + $0xc] sm:$0xf]
      %v649 = vld [vmem:[%s7] sm:$0x1]
      %v651 = vlaneseq
      %v652 = vshrl.u32 %v651, 7
      %v653 = vsub.s32 0, %v652
      %v654 = vrot.slane %v649, %v653
      %v660 = vunpack.c.l.b16 %v645
      %v661 = vunpack.c.l.b16 %v646
      %v662 = vunpack.c.l.b16 %v647
      %v663 = vunpack.c.l.b16 %v648
      %v664 = vpack.c.b16 %v661, %v660
      %v665 = vpack.c.b16 %v663, %v662
      %668 = vmatprep.subr.bf16.mxu0 0
      %669 = vmatpush1.bf16.msra.mxu0 %v664
      %670 = vmatprep.subr.bf16.mxu0 0
      %671 = vmatpush1.bf16.msra.mxu0 %v665
      %672 = vmatprep.subr.bf16.mxu0 0
      %673 = vmatpush1.bf16.msra.mxu0 0
      %674 = vmatprep.subr.bf16.mxu0 0
      %675 = vmatpush1.bf16.msra.mxu0 0
      %676 = vmatprep.subr.bf16.mxu0 0
      %677 = vmatpush1.bf16.msra.mxu0 0
      %678 = vmatprep.subr.bf16.mxu0 0
      %679 = vmatpush1.bf16.msra.mxu0 0
      %680 = vmatprep.subr.bf16.mxu0 0
      %681 = vmatpush1.bf16.msra.mxu0 0
      %682 = vmatprep.subr.bf16.mxu0 0
      %683 = vmatpush1.bf16.msra.mxu0 0
      %684 = vmatprep.subr.bf16.mxu0 0
      %685 = vmatpush1.bf16.msra.mxu0 0
      %686 = vmatprep.subr.bf16.mxu0 0
      %687 = vmatpush1.bf16.msra.mxu0 0
      %688 = vmatprep.subr.bf16.mxu0 0
      %689 = vmatpush1.bf16.msra.mxu0 0
      %690 = vmatprep.subr.bf16.mxu0 0
      %691 = vmatpush1.bf16.msra.mxu0 0
      %692 = vmatprep.subr.bf16.mxu0 0
      %693 = vmatpush1.bf16.msra.mxu0 0
      %694 = vmatprep.subr.bf16.mxu0 0
      %695 = vmatpush1.bf16.msra.mxu0 0
      %696 = vmatprep.subr.bf16.mxu0 0
      %697 = vmatpush1.bf16.msra.mxu0 0
      %698 = vmatprep.subr.bf16.mxu0 0
      %699 = vmatpush1.bf16.msra.mxu0 0
      %700 = vmatprep.mubr.bf16.mxu0 0
      %701 = vmatmul.mubr.bf16.gmra.mrb[0].mxu0 %v603
      %v702 = vpop.f32.mrb[0].mxu0
      %v703 = vadd.f32 %v654, %v702
      %v704 = vpop.f32.mrb[0].mxu0
      %v705 = vpop.f32.mrb[0].mxu0
      %v706 = vpop.f32.mrb[0].mxu0
      %707 = vdwg.mxu0
      %v708 = vld [vmem:[%s5] sm:$0xf]
      %v709 = vld [vmem:[%s5 + $0x4] sm:$0xf]
      %v710 = vld [vmem:[%s5 + $0x8] sm:$0xf]
      %v711 = vld [vmem:[%s5 + $0xc] sm:$0xf]
      %v712 = vld [vmem:[%s8] sm:$0x1]
      %v714 = vlaneseq
      %v715 = vshrl.u32 %v714, 7
      %v716 = vsub.s32 0, %v715
      %v717 = vrot.slane %v712, %v716
      %v723 = vunpack.c.l.b16 %v708
      %v724 = vunpack.c.l.b16 %v709
      %v725 = vunpack.c.l.b16 %v710
      %v726 = vunpack.c.l.b16 %v711
      %v727 = vpack.c.b16 %v724, %v723
      %v728 = vpack.c.b16 %v726, %v725
      %731 = vmatprep.subr.bf16.mxu0 0
      %732 = vmatpush1.bf16.msra.mxu0 %v727
      %733 = vmatprep.subr.bf16.mxu0 0
      %734 = vmatpush1.bf16.msra.mxu0 %v728
      %735 = vmatprep.subr.bf16.mxu0 0
      %736 = vmatpush1.bf16.msra.mxu0 0
      %737 = vmatprep.subr.bf16.mxu0 0
      %738 = vmatpush1.bf16.msra.mxu0 0
      %739 = vmatprep.subr.bf16.mxu0 0
      %740 = vmatpush1.bf16.msra.mxu0 0
      %741 = vmatprep.subr.bf16.mxu0 0
      %742 = vmatpush1.bf16.msra.mxu0 0
      %743 = vmatprep.subr.bf16.mxu0 0
      %744 = vmatpush1.bf16.msra.mxu0 0
      %745 = vmatprep.subr.bf16.mxu0 0
      %746 = vmatpush1.bf16.msra.mxu0 0
      %747 = vmatprep.subr.bf16.mxu0 0
      %748 = vmatpush1.bf16.msra.mxu0 0
      %749 = vmatprep.subr.bf16.mxu0 0
      %750 = vmatpush1.bf16.msra.mxu0 0
      %751 = vmatprep.subr.bf16.mxu0 0
      %752 = vmatpush1.bf16.msra.mxu0 0
      %753 = vmatprep.subr.bf16.mxu0 0
      %754 = vmatpush1.bf16.msra.mxu0 0
      %755 = vmatprep.subr.bf16.mxu0 0
      %756 = vmatpush1.bf16.msra.mxu0 0
      %757 = vmatprep.subr.bf16.mxu0 0
      %758 = vmatpush1.bf16.msra.mxu0 0
      %759 = vmatprep.subr.bf16.mxu0 0
      %760 = vmatpush1.bf16.msra.mxu0 0
      %761 = vmatprep.subr.bf16.mxu0 0
      %762 = vmatpush1.bf16.msra.mxu0 0
      %763 = vmatprep.mubr.bf16.mxu0 0
      %764 = vmatmul.mubr.bf16.gmra.mrb[0].mxu0 %v603
      %v765 = vpop.f32.mrb[0].mxu0
      %v766 = vadd.f32 %v717, %v765
      %v767 = vpop.f32.mrb[0].mxu0
      %v768 = vpop.f32.mrb[0].mxu0
      %v769 = vpop.f32.mrb[0].mxu0
      %770 = vdwg.mxu0
      %v771 = vpack.c.bf16 %v640, %v640
      %v772 = vpack.c.bf16 %v703, %v703
      %v773 = vpack.c.bf16 %v766, %v766
      %vm774 = vcmask 64512
      %v776 = vsel %vm774, %v771, 0
      %v779 = vsel %vm774, %v772, 0
      %781 = vmatprep.subr.bf16.mxu0 0
      %782 = vmatpush1.bf16.xpose.msra.mxu0 %v779
      %783 = vmatprep.subr.bf16.mxu0 0
      %784 = vmatpush1.bf16.xpose.msra.mxu0 0
      %785 = vmatprep.subr.bf16.mxu0 0
      %786 = vmatpush1.bf16.xpose.msra.mxu0 0
      %787 = vmatprep.subr.bf16.mxu0 0
      %788 = vmatpush1.bf16.xpose.msra.mxu0 0
      %789 = vmatprep.subr.bf16.mxu0 0
      %790 = vmatpush1.bf16.xpose.msra.mxu0 0
      %791 = vmatprep.subr.bf16.mxu0 0
      %792 = vmatpush1.bf16.xpose.msra.mxu0 0
      %793 = vmatprep.subr.bf16.mxu0 0
      %794 = vmatpush1.bf16.xpose.msra.mxu0 0
      %795 = vmatprep.subr.bf16.mxu0 0
      %796 = vmatpush1.bf16.xpose.msra.mxu0 0
      %797 = vmatprep.subr.bf16.mxu0 0
      %798 = vmatpush1.bf16.xpose.msra.mxu0 0
      %799 = vmatprep.subr.bf16.mxu0 0
      %800 = vmatpush1.bf16.xpose.msra.mxu0 0
      %801 = vmatprep.subr.bf16.mxu0 0
      %802 = vmatpush1.bf16.xpose.msra.mxu0 0
      %803 = vmatprep.subr.bf16.mxu0 0
      %804 = vmatpush1.bf16.xpose.msra.mxu0 0
      %805 = vmatprep.subr.bf16.mxu0 0
      %806 = vmatpush1.bf16.xpose.msra.mxu0 0
      %807 = vmatprep.subr.bf16.mxu0 0
      %808 = vmatpush1.bf16.xpose.msra.mxu0 0
      %809 = vmatprep.subr.bf16.mxu0 0
      %810 = vmatpush1.bf16.xpose.msra.mxu0 0
      %811 = vmatprep.subr.bf16.mxu0 0
      %812 = vmatpush1.bf16.xpose.msra.mxu0 0
      %813 = vmatprep.mubr.bf16.mxu0 0
      %814 = vmatmul.mubr.bf16.gmra.mrb[0].mxu0 %v776
      %v815 = vpop.f32.mrb[0].mxu0
      %v816 = vadd.f32 0.0, %v815
      %v817 = vpop.f32.mrb[0].mxu0
      %v818 = vpop.f32.mrb[0].mxu0
      %v819 = vpop.f32.mrb[0].mxu0
      %820 = vdwg.mxu0
      %v821 = vmul.f32 %v816, 0.35355338
      %v822 = vsel %vm774, %v821, -inf
      %823 = vmax.xlane.f32.xlu0 %v822
      %v824 = vpop.xlane.xlu0 %823
      %v825 = vsub.f32 %v821, %v824
      %v826 = vmul.f32 %v825, 1.442695
      %v827 = vpow.pop %v826
      %v828 = vsel %vm774, %v827, 0.0
      %829 = vadd.xlane.f32.xlu0 %v828
      %v830 = vpop.xlane.xlu0 %829
      %v831 = vrcp.pop %v830
      %v832 = vmul.f32 %v827, %v831
      %v833 = vpack.c.bf16 %v832, %v832
      %v835 = vsel %vm774, %v833, 0
      %vm837 = vcmask 1043456
      %v839 = vsel %vm837, %v773, 0
      %841 = vmatprep.subr.bf16.mxu0 0
      %842 = vmatpush1.bf16.msra.mxu0 %v839
      %843 = vmatprep.subr.bf16.mxu0 0
      %844 = vmatpush1.bf16.msra.mxu0 0
      %845 = vmatprep.subr.bf16.mxu0 0
      %846 = vmatpush1.bf16.msra.mxu0 0
      %847 = vmatprep.subr.bf16.mxu0 0
      %848 = vmatpush1.bf16.msra.mxu0 0
      %849 = vmatprep.subr.bf16.mxu0 0
      %850 = vmatpush1.bf16.msra.mxu0 0
      %851 = vmatprep.subr.bf16.mxu0 0
      %852 = vmatpush1.bf16.msra.mxu0 0
      %853 = vmatprep.subr.bf16.mxu0 0
      %854 = vmatpush1.bf16.msra.mxu0 0
      %855 = vmatprep.subr.bf16.mxu0 0
      %856 = vmatpush1.bf16.msra.mxu0 0
      %857 = vmatprep.subr.bf16.mxu0 0
      %858 = vmatpush1.bf16.msra.mxu0 0
      %859 = vmatprep.subr.bf16.mxu0 0
      %860 = vmatpush1.bf16.msra.mxu0 0
      %861 = vmatprep.subr.bf16.mxu0 0
      %862 = vmatpush1.bf16.msra.mxu0 0
      %863 = vmatprep.subr.bf16.mxu0 0
      %864 = vmatpush1.bf16.msra.mxu0 0
      %865 = vmatprep.subr.bf16.mxu0 0
      %866 = vmatpush1.bf16.msra.mxu0 0
      %867 = vmatprep.subr.bf16.mxu0 0
      %868 = vmatpush1.bf16.msra.mxu0 0
      %869 = vmatprep.subr.bf16.mxu0 0
      %870 = vmatpush1.bf16.msra.mxu0 0
      %871 = vmatprep.subr.bf16.mxu0 0
      %872 = vmatpush1.bf16.msra.mxu0 0
      %873 = vmatprep.mubr.bf16.mxu0 0
      %874 = vmatmul.mubr.bf16.gmra.mrb[0].mxu0 %v835
      %v875 = vpop.f32.mrb[0].mxu0
      %v876 = vadd.f32 0.0, %v875
      %v877 = vpop.f32.mrb[0].mxu0
      %v878 = vpop.f32.mrb[0].mxu0
      %v879 = vpop.f32.mrb[0].mxu0
      %880 = vdwg.mxu0
      %882 = vrot.lane.b32.xlu0 %v771, 120
      %v883 = vpop.permute.xlu0 %882
      %885 = vrot.lane.b32.xlu0 %v772, 120
      %v886 = vpop.permute.xlu0 %885
      %v888 = vsel %vm774, %v883, 0
      %v891 = vsel %vm774, %v886, 0
      %893 = vmatprep.subr.bf16.mxu0 0
      %894 = vmatpush1.bf16.xpose.msra.mxu0 %v891
      %895 = vmatprep.subr.bf16.mxu0 0
      %896 = vmatpush1.bf16.xpose.msra.mxu0 0
      %897 = vmatprep.subr.bf16.mxu0 0
      %898 = vmatpush1.bf16.xpose.msra.mxu0 0
      %899 = vmatprep.subr.bf16.mxu0 0
      %900 = vmatpush1.bf16.xpose.msra.mxu0 0
      %901 = vmatprep.subr.bf16.mxu0 0
      %902 = vmatpush1.bf16.xpose.msra.mxu0 0
      %903 = vmatprep.subr.bf16.mxu0 0
      %904 = vmatpush1.bf16.xpose.msra.mxu0 0
      %905 = vmatprep.subr.bf16.mxu0 0
      %906 = vmatpush1.bf16.xpose.msra.mxu0 0
      %907 = vmatprep.subr.bf16.mxu0 0
      %908 = vmatpush1.bf16.xpose.msra.mxu0 0
      %909 = vmatprep.subr.bf16.mxu0 0
      %910 = vmatpush1.bf16.xpose.msra.mxu0 0
      %911 = vmatprep.subr.bf16.mxu0 0
      %912 = vmatpush1.bf16.xpose.msra.mxu0 0
      %913 = vmatprep.subr.bf16.mxu0 0
      %914 = vmatpush1.bf16.xpose.msra.mxu0 0
      %915 = vmatprep.subr.bf16.mxu0 0
      %916 = vmatpush1.bf16.xpose.msra.mxu0 0
      %917 = vmatprep.subr.bf16.mxu0 0
      %918 = vmatpush1.bf16.xpose.msra.mxu0 0
      %919 = vmatprep.subr.bf16.mxu0 0
      %920 = vmatpush1.bf16.xpose.msra.mxu0 0
      %921 = vmatprep.subr.bf16.mxu0 0
      %922 = vmatpush1.bf16.xpose.msra.mxu0 0
      %923 = vmatprep.subr.bf16.mxu0 0
      %924 = vmatpush1.bf16.xpose.msra.mxu0 0
      %925 = vmatprep.mubr.bf16.mxu0 0
      %926 = vmatmul.mubr.bf16.gmra.mrb[0].mxu0 %v888
      %v927 = vpop.f32.mrb[0].mxu0
      %v928 = vadd.f32 0.0, %v927
      %v929 = vpop.f32.mrb[0].mxu0
      %v930 = vpop.f32.mrb[0].mxu0
      %v931 = vpop.f32.mrb[0].mxu0
      %932 = vdwg.mxu0
      %v933 = vmul.f32 %v928, 0.35355338
      %v934 = vsel %vm774, %v933, -inf
      %935 = vmax.xlane.f32.xlu0 %v934
      %v936 = vpop.xlane.xlu0 %935
      %v937 = vsub.f32 %v933, %v936
      %v938 = vmul.f32 %v937, 1.442695
      %v939 = vpow.pop %v938
      %v940 = vsel %vm774, %v939, 0.0
      %941 = vadd.xlane.f32.xlu0 %v940
      %v942 = vpop.xlane.xlu0 %941
      %v943 = vrcp.pop %v942
      %v944 = vmul.f32 %v939, %v943
      %v945 = vpack.c.bf16 %v944, %v944
      %947 = vrot.lane.b32.xlu0 %v773, 120
      %v948 = vpop.permute.xlu0 %947
      %v950 = vsel %vm774, %v945, 0
      %v953 = vsel %vm837, %v948, 0
      %955 = vmatprep.subr.bf16.mxu0 0
      %956 = vmatpush1.bf16.msra.mxu0 %v953
      %957 = vmatprep.subr.bf16.mxu0 0
      %958 = vmatpush1.bf16.msra.mxu0 0
      %959 = vmatprep.subr.bf16.mxu0 0
      %960 = vmatpush1.bf16.msra.mxu0 0
      %961 = vmatprep.subr.bf16.mxu0 0
      %962 = vmatpush1.bf16.msra.mxu0 0
      %963 = vmatprep.subr.bf16.mxu0 0
      %964 = vmatpush1.bf16.msra.mxu0 0
      %965 = vmatprep.subr.bf16.mxu0 0
      %966 = vmatpush1.bf16.msra.mxu0 0
      %967 = vmatprep.subr.bf16.mxu0 0
      %968 = vmatpush1.bf16.msra.mxu0 0
      %969 = vmatprep.subr.bf16.mxu0 0
      %970 = vmatpush1.bf16.msra.mxu0 0
      %971 = vmatprep.subr.bf16.mxu0 0
      %972 = vmatpush1.bf16.msra.mxu0 0
      %973 = vmatprep.subr.bf16.mxu0 0
      %974 = vmatpush1.bf16.msra.mxu0 0
      %975 = vmatprep.subr.bf16.mxu0 0
      %976 = vmatpush1.bf16.msra.mxu0 0
      %977 = vmatprep.subr.bf16.mxu0 0
      %978 = vmatpush1.bf16.msra.mxu0 0
      %979 = vmatprep.subr.bf16.mxu0 0
      %980 = vmatpush1.bf16.msra.mxu0 0
      %981 = vmatprep.subr.bf16.mxu0 0
      %982 = vmatpush1.bf16.msra.mxu0 0
      %983 = vmatprep.subr.bf16.mxu0 0
      %984 = vmatpush1.bf16.msra.mxu0 0
      %985 = vmatprep.subr.bf16.mxu0 0
      %986 = vmatpush1.bf16.msra.mxu0 0
      %987 = vmatprep.mubr.bf16.mxu0 0
      %988 = vmatmul.mubr.bf16.gmra.mrb[0].mxu0 %v950
      %v989 = vpop.f32.mrb[0].mxu0
      %v990 = vadd.f32 0.0, %v989
      %v991 = vpop.f32.mrb[0].mxu0
      %v992 = vpop.f32.mrb[0].mxu0
      %v993 = vpop.f32.mrb[0].mxu0
      %994 = vdwg.mxu0
      %996 = vrot.lane.b32.xlu0 %v990, 8
      %v997 = vpop.permute.xlu0 %996
      %v999 = vsel %vm774, %v876, %v997
      %v1000 = vpack.c.bf16 %v999, %v999
      %v1001 = vld [vmem:[%s9] sm:$0xf]
      %v1002 = vld [vmem:[%s9 + $0x4] sm:$0xf]
      %v1005 = vunpack.c.l.b16 %v1001
      %v1006 = vunpack.c.l.b16 %v1002
      %v1007 = vpack.c.b16 %v1006, %v1005
      %vm1009 = vcmask 130048
      %v1011 = vsel %vm1009, %v1000, 0
      %1013 = vmatprep.subr.bf16.mxu0 0
      %1014 = vmatpush1.bf16.msra.mxu0 %v1007
      %1015 = vmatprep.subr.bf16.mxu0 0
      %1016 = vmatpush1.bf16.msra.mxu0 0
      %1017 = vmatprep.subr.bf16.mxu0 0
      %1018 = vmatpush1.bf16.msra.mxu0 0
      %1019 = vmatprep.subr.bf16.mxu0 0
      %1020 = vmatpush1.bf16.msra.mxu0 0
      %1021 = vmatprep.subr.bf16.mxu0 0
      %1022 = vmatpush1.bf16.msra.mxu0 0
      %1023 = vmatprep.subr.bf16.mxu0 0
      %1024 = vmatpush1.bf16.msra.mxu0 0
      %1025 = vmatprep.subr.bf16.mxu0 0
      %1026 = vmatpush1.bf16.msra.mxu0 0
      %1027 = vmatprep.subr.bf16.mxu0 0
      %1028 = vmatpush1.bf16.msra.mxu0 0
      %1029 = vmatprep.subr.bf16.mxu0 0
      %1030 = vmatpush1.bf16.msra.mxu0 0
      %1031 = vmatprep.subr.bf16.mxu0 0
      %1032 = vmatpush1.bf16.msra.mxu0 0
      %1033 = vmatprep.subr.bf16.mxu0 0
      %1034 = vmatpush1.bf16.msra.mxu0 0
      %1035 = vmatprep.subr.bf16.mxu0 0
      %1036 = vmatpush1.bf16.msra.mxu0 0
      %1037 = vmatprep.subr.bf16.mxu0 0
      %1038 = vmatpush1.bf16.msra.mxu0 0
      %1039 = vmatprep.subr.bf16.mxu0 0
      %1040 = vmatpush1.bf16.msra.mxu0 0
      %1041 = vmatprep.subr.bf16.mxu0 0
      %1042 = vmatpush1.bf16.msra.mxu0 0
      %1043 = vmatprep.subr.bf16.mxu0 0
      %1044 = vmatpush1.bf16.msra.mxu0 0
      %1045 = vmatprep.mubr.bf16.mxu0 0
      %1046 = vmatmul.mubr.bf16.gmra.mrb[0].mxu0 %v1011
      %v1047 = vpop.f32.mrb[0].mxu0
      %v1048 = vadd.f32 0.0, %v1047
      %v1049 = vpop.f32.mrb[0].mxu0
      %v1050 = vpop.f32.mrb[0].mxu0
      %v1051 = vpop.f32.mrb[0].mxu0
      %1052 = vdwg.mxu0
      %v1053 = vadd.f32 %v546, %v1048
      %v1054 = vld [vmem:[%s10] sm:$0x1]
      %v1056 = vlaneseq
      %v1057 = vshrl.u32 %v1056, 7
      %v1058 = vsub.s32 0, %v1057
      %v1059 = vrot.slane %v1054, %v1058
      %v1061 = vadd.f32 %v1053, %v1059
      %v1062 = vld [vmem:[%s11] sm:$0x1]
      %v1063 = vld [vmem:[%s12] sm:$0x1]
      %v1064 = vsel %vm549, %v1061, 0.0
      %1065 = vadd.xlane.f32.xlu0 %v1064
      %v1066 = vpop.xlane.xlu0 %1065
      %v1067 = vmul.f32 %v1066, %v553
      %v1068 = vsub.f32 %v1061, %v1067
      %v1069 = vmul.f32 %v1068, %v1068
      %v1070 = vsel %vm549, %v1069, 0.0
      %1071 = vadd.xlane.f32.xlu0 %v1070
      %v1072 = vpop.xlane.xlu0 %1071
      %v1073 = vmul.f32 %v1072, %v553
      %v1074 = vadd.f32 %v1073, 1e-05
      %v1075 = vrsqrt.pop %v1074
      %v1076 = vmul.f32 %v1068, %v1075
      %v1078 = vlaneseq
      %v1079 = vshrl.u32 %v1078, 7
      %v1080 = vsub.s32 0, %v1079
      %v1081 = vrot.slane %v1062, %v1080
      %v1083 = vmul.f32 %v1076, %v1081
      %v1085 = vlaneseq
      %v1086 = vshrl.u32 %v1085, 7
      %v1087 = vsub.s32 0, %v1086
      %v1088 = vrot.slane %v1063, %v1087
      %v1090 = vadd.f32 %v1083, %v1088
      %v1091 = vld [vmem:[%s13] sm:$0xf]
      %v1092 = vld [vmem:[%s13 + $0x4] sm:$0xf]
      %v1093 = vld [vmem:[%s13 + $0x8] sm:$0xf]
      %v1094 = vld [vmem:[%s13 + $0xc] sm:$0xf]
      %v1095 = vpack.c.bf16 %v1090, %v1090
      %v1096 = vld [vmem:[%s14] sm:$0x1]
      %v1098 = vlaneseq
      %v1099 = vshrl.u32 %v1098, 7
      %v1100 = vsub.s32 0, %v1099
      %v1101 = vrot.slane %v1096, %v1100
      %v1107 = vunpack.c.l.b16 %v1091
      %v1108 = vunpack.c.l.b16 %v1092
      %v1109 = vunpack.c.l.b16 %v1093
      %v1110 = vunpack.c.l.b16 %v1094
      %v1111 = vpack.c.b16 %v1108, %v1107
      %v1112 = vpack.c.b16 %v1110, %v1109
      %v1116 = vsel %vm549, %v1095, 0
      %1118 = vmatprep.subr.bf16.mxu0 0
      %1119 = vmatpush1.bf16.msra.mxu0 %v1111
      %1120 = vmatprep.subr.bf16.mxu0 0
      %1121 = vmatpush1.bf16.msra.mxu0 %v1112
      %1122 = vmatprep.subr.bf16.mxu0 0
      %1123 = vmatpush1.bf16.msra.mxu0 0
      %1124 = vmatprep.subr.bf16.mxu0 0
      %1125 = vmatpush1.bf16.msra.mxu0 0
      %1126 = vmatprep.subr.bf16.mxu0 0
      %1127 = vmatpush1.bf16.msra.mxu0 0
      %1128 = vmatprep.subr.bf16.mxu0 0
      %1129 = vmatpush1.bf16.msra.mxu0 0
      %1130 = vmatprep.subr.bf16.mxu0 0
      %1131 = vmatpush1.bf16.msra.mxu0 0
      %1132 = vmatprep.subr.bf16.mxu0 0
      %1133 = vmatpush1.bf16.msra.mxu0 0
      %1134 = vmatprep.subr.bf16.mxu0 0
      %1135 = vmatpush1.bf16.msra.mxu0 0
      %1136 = vmatprep.subr.bf16.mxu0 0
      %1137 = vmatpush1.bf16.msra.mxu0 0
      %1138 = vmatprep.subr.bf16.mxu0 0
      %1139 = vmatpush1.bf16.msra.mxu0 0
      %1140 = vmatprep.subr.bf16.mxu0 0
      %1141 = vmatpush1.bf16.msra.mxu0 0
      %1142 = vmatprep.subr.bf16.mxu0 0
      %1143 = vmatpush1.bf16.msra.mxu0 0
      %1144 = vmatprep.subr.bf16.mxu0 0
      %1145 = vmatpush1.bf16.msra.mxu0 0
      %1146 = vmatprep.subr.bf16.mxu0 0
      %1147 = vmatpush1.bf16.msra.mxu0 0
      %1148 = vmatprep.subr.bf16.mxu0 0
      %1149 = vmatpush1.bf16.msra.mxu0 0
      %1150 = vmatprep.mubr.bf16.mxu0 0
      %1151 = vmatmul.mubr.bf16.gmra.mrb[0].mxu0 %v1116
      %v1152 = vpop.f32.mrb[0].mxu0
      %v1153 = vadd.f32 %v1101, %v1152
      %v1154 = vpop.f32.mrb[0].mxu0
      %v1155 = vpop.f32.mrb[0].mxu0
      %v1156 = vpop.f32.mrb[0].mxu0
      %1157 = vdwg.mxu0
      %v1158 = vmul.f32 %v1153, %v1153
      %v1159 = vmul.f32 %v1153, %v1158
      %v1160 = vmul.f32 %v1159, 0.044715
      %v1161 = vadd.f32 %v1153, %v1160
      %v1162 = vmul.f32 %v1161, 0.7978846
      %v1163 = vtanh.pop %v1162
      %v1164 = vadd.f32 %v1163, 1.0
      %v1165 = vmul.f32 %v1164, 0.5
      %v1166 = vmul.f32 %v1153, %v1165
      %v1167 = vld [vmem:[%s15] sm:$0xf]
      %v1168 = vld [vmem:[%s15 + $0x4] sm:$0xf]
      %v1169 = vld [vmem:[%s15 + $0x8] sm:$0xf]
      %v1170 = vld [vmem:[%s15 + $0xc] sm:$0xf]
      %v1171 = vld [vmem:[%s15 + $0x10] sm:$0xf]
      %v1172 = vld [vmem:[%s15 + $0x14] sm:$0xf]
      %v1173 = vld [vmem:[%s15 + $0x18] sm:$0xf]
      %v1174 = vld [vmem:[%s15 + $0x1c] sm:$0xf]
      %v1175 = vpack.c.bf16 %v1166, %v1166
      %v1176 = vld [vmem:[%s16] sm:$0x1]
      %v1178 = vlaneseq
      %v1179 = vshrl.u32 %v1178, 7
      %v1180 = vsub.s32 0, %v1179
      %v1181 = vrot.slane %v1176, %v1180
      %v1191 = vunpack.c.l.b16 %v1167
      %v1192 = vunpack.c.l.b16 %v1168
      %v1193 = vunpack.c.l.b16 %v1169
      %v1194 = vunpack.c.l.b16 %v1170
      %v1195 = vunpack.c.l.b16 %v1171
      %v1196 = vunpack.c.l.b16 %v1172
      %v1197 = vunpack.c.l.b16 %v1173
      %v1198 = vunpack.c.l.b16 %v1174
      %v1199 = vpack.c.b16 %v1192, %v1191
      %v1200 = vpack.c.b16 %v1194, %v1193
      %v1201 = vpack.c.b16 %v1196, %v1195
      %v1202 = vpack.c.b16 %v1198, %v1197
      %vm1207 = vcmask 523264
      %v1209 = vsel %vm1207, %v1175, 0
      %1211 = vmatprep.subr.bf16.mxu0 0
      %1212 = vmatpush1.bf16.msra.mxu0 %v1199
      %1213 = vmatprep.subr.bf16.mxu0 0
      %1214 = vmatpush1.bf16.msra.mxu0 %v1200
      %1215 = vmatprep.subr.bf16.mxu0 0
      %1216 = vmatpush1.bf16.msra.mxu0 %v1201
      %1217 = vmatprep.subr.bf16.mxu0 0
      %1218 = vmatpush1.bf16.msra.mxu0 %v1202
      %1219 = vmatprep.subr.bf16.mxu0 0
      %1220 = vmatpush1.bf16.msra.mxu0 0
      %1221 = vmatprep.subr.bf16.mxu0 0
      %1222 = vmatpush1.bf16.msra.mxu0 0
      %1223 = vmatprep.subr.bf16.mxu0 0
      %1224 = vmatpush1.bf16.msra.mxu0 0
      %1225 = vmatprep.subr.bf16.mxu0 0
      %1226 = vmatpush1.bf16.msra.mxu0 0
      %1227 = vmatprep.subr.bf16.mxu0 0
      %1228 = vmatpush1.bf16.msra.mxu0 0
      %1229 = vmatprep.subr.bf16.mxu0 0
      %1230 = vmatpush1.bf16.msra.mxu0 0
      %1231 = vmatprep.subr.bf16.mxu0 0
      %1232 = vmatpush1.bf16.msra.mxu0 0
      %1233 = vmatprep.subr.bf16.mxu0 0
      %1234 = vmatpush1.bf16.msra.mxu0 0
      %1235 = vmatprep.subr.bf16.mxu0 0
      %1236 = vmatpush1.bf16.msra.mxu0 0
      %1237 = vmatprep.subr.bf16.mxu0 0
      %1238 = vmatpush1.bf16.msra.mxu0 0
      %1239 = vmatprep.subr.bf16.mxu0 0
      %1240 = vmatpush1.bf16.msra.mxu0 0
      %1241 = vmatprep.subr.bf16.mxu0 0
      %1242 = vmatpush1.bf16.msra.mxu0 0
      %1243 = vmatprep.mubr.bf16.mxu0 0
      %1244 = vmatmul.mubr.bf16.gmra.mrb[0].mxu0 %v1209
      %v1245 = vpop.f32.mrb[0].mxu0
      %v1246 = vadd.f32 %v1181, %v1245
      %v1247 = vpop.f32.mrb[0].mxu0
      %v1248 = vpop.f32.mrb[0].mxu0
      %v1249 = vpop.f32.mrb[0].mxu0
      %1250 = vdwg.mxu0
      %v1251 = vadd.f32 %v1061, %v1246
      %v1252 = vpack.c.bf16 %v1251, %v1251
      %vm1253 = vcmask 257024
      %1254 = vst.msk [vmem:[%s543] sm:$0xf] %vm1253, %v1252
      %p1255 = scmp.lt.s32.totalorder %s28, 1
      %s1256 = scalar_select %p1255, %s28, 1
      %s1257 = smul.addr %s1256, 4
      %s1258 = scalar_lea.vmem %s17, %s1257
      // Predicated region
      $region89: #{vqvae_forward.13} parent=87 // pred_check
        %p1259 = pneg %p408
      $region90: #{vqvae_forward.13} parent=87 // pred_check_branch
        %1261 = sbr.rel (%p1259) target = $region92
      $region91: #{vqvae_forward.13} parent=87 // pred_region
        _
      $region92: #{vqvae_forward.13} parent=87 // pred_fallthru
        _
    $region88: #{vqvae_forward.13} parent=5 // pred_fallthru
      _
    %p1262 = scmp.le.s32.totalorder 2, %s23
    // Predicated region
    $region93: #{vqvae_forward.13} parent=5 // pred_check
      %p1263 = pneg %p1262
    $region94: #{vqvae_forward.13} parent=5 // pred_check_branch
      %1265 = sbr.rel (%p1263) target = $region96
    $region95: #{vqvae_forward.13} parent=5 // pred_region
      %s1266 = ssub.s32 %s23, 2
      // Predicated region
      $region97: #{vqvae_forward.13} parent=95 // pred_check
        %p1267 = pneg %p414
      $region98: #{vqvae_forward.13} parent=95 // pred_check_branch
        %1269 = sbr.rel (%p1267) target = $region100
      $region99: #{vqvae_forward.13} parent=95 // pred_region
        %p1270 = scmp.lt.s32.totalorder %s29, 1
        %s1271 = scalar_select %p1270, %s29, 1
        %s1272 = smul.addr %s1271, 4
        %s1273 = scalar_lea.vmem %s17, %s1272
      $region100: #{vqvae_forward.13} parent=95 // pred_fallthru
        _
    $region96: #{vqvae_forward.13} parent=5 // pred_fallthru
      _
  $region6: #{vqvae_forward.13} parent=0 // loop_footer
    %s27 = sadd.s32 1, %s23
  $region7: #{vqvae_forward.13} parent=0 // loop_footer_branch
    %22 = sbr.rel target = $region3
  $region8: #{vqvae_forward.13} parent=0 // loop_exit
    _

</llo_original>
